<compile_context>
chip_gen: v7x
topology: tpu7x:2x2x1
jax: 0.10.0
libtpu: 0.0.40
codegen_flags: <defaults>
</compile_context>

<pallas_src>
import functools

import jax
import jax.numpy as jnp
from jax.experimental import pallas as pl
from jax.experimental.pallas import tpu as pltpu

MXU_DTYPE = jnp.bfloat16     # matmul operand dtype (accumulation stays f32)
INTER_DTYPE = jnp.bfloat16   # dtype of the stage1->stage2 intermediates in HBM


# ----------------------------------------------------------------------------
# In-kernel helpers.  All activations are (C, S) values with S = H*W on lanes.
# ----------------------------------------------------------------------------

def _shift_cols(x, off):
    """dest[:, s] = x[:, s + off], zero-filled outside [0, S). Static lane shift."""
    c, s = x.shape
    if off == 0:
        return x
    z = jnp.zeros((c, abs(off)), x.dtype)
    if off > 0:
        return jnp.concatenate([x[:, off:], z], axis=1)
    return jnp.concatenate([z, x[:, : s + off]], axis=1)


def _col_mask(col, dx, pad, w):
    """Destination-column validity mask for horizontal kernel tap dx (or None).

    With zero-filled flat shifts, masking horizontally-invalid destination
    columns is sufficient: vertically out-of-image sources always fall
    outside [0, S) in flat coordinates and are already zero.
    """
    lo = pad - dx            # need col >= lo
    hi = w - 1 - dx + pad    # need col <= hi
    m = None
    if lo > 0:
        m = col >= lo
    if hi < w - 1:
        mh = col <= hi
        m = mh if m is None else (m & mh)
    return m


def _im2col3_into(slab_ref, x, col, w):
    """Write the 3x3 / pad=1 im2col slab of x (Cin, S) into slab_ref (9*Cin, S)."""
    cin = x.shape[0]
    for dy in range(3):
        for dx in range(3):
            k = dy * 3 + dx
            sh = _shift_cols(x, (dy - 1) * w + (dx - 1))
            m = _col_mask(col, dx, 1, w)
            if m is not None:
                sh = jnp.where(m, sh, 0.0)
            slab_ref[k * cin:(k + 1) * cin, :] = sh


def _conv3x3(slab_ref, x, wmat, col, w):
    """3x3 'same' conv as a single lane-dense MXU matmul. Returns (Cout, S) f32."""
    _im2col3_into(slab_ref, x, col, w)
    slab = slab_ref[...].astype(wmat.dtype)
    return jnp.dot(wmat, slab, preferred_element_type=jnp.float32)


def _spatial_attention(x, w_sm, col, w):
    """CBAM spatial attention of x (C, S) -> sigmoid map (1, S).

    w_sm: SMEM ref of 98 f32 scalars ordered [(dy*7+dx)*2 + {0: avg, 1: max}].
    The 7x7 conv runs entirely on the VPU (scalar-broadcast mul-adds)."""
    avg = jnp.mean(x, axis=0, keepdims=True)   # (1, S)
    mx = jnp.max(x, axis=0, keepdims=True)     # (1, S)
    acc = jnp.zeros_like(avg)
    for dy in range(7):
        for dx in range(7):
            k = dy * 7 + dx
            off = (dy - 3) * w + (dx - 3)
            c = (w_sm[2 * k] * _shift_cols(avg, off)
                 + w_sm[2 * k + 1] * _shift_cols(mx, off))
            m = _col_mask(col, dx, 3, w)
            if m is not None:
                c = jnp.where(m, c, 0.0)
            acc = acc + c
    return jax.nn.sigmoid(acc)


# ----------------------------------------------------------------------------
# Stage kernels
# ----------------------------------------------------------------------------

def _stage1_kernel(col_ref, left_ref, rup_ref, w1_ref, b1_ref, sa1_ref, sa2_ref,
                   x1_ref, x2_ref, sum_ref, slab_ref, *, W):
    col = col_ref[...]                       # (1, S) int32: dest column index
    left = left_ref[0]                       # (C, S) f32
    # right = conv1(upsample(right))   (BN folded into w1/b1)
    right = _conv3x3(slab_ref, rup_ref[0], w1_ref[...], col, W) + b1_ref[...]
    # spatial attentions (sa2 on right, sa1 on left), fused pooling+conv+sigmoid
    sa_r = _spatial_attention(right, sa2_ref, col, W)   # (1, S)
    sa_l = _spatial_attention(left, sa1_ref, col, W)    # (1, S)
    # x1 = left*sa2(right)+left ; x2 = right*sa1(left)+right ; sum for the tail
    x1_ref[0] = (left * sa_r + left).astype(INTER_DTYPE)
    x2_ref[0] = (right * sa_l + right).astype(INTER_DTYPE)
    sum_ref[0] = (left + right).astype(INTER_DTYPE)


def _stage2_kernel(col_ref, x1_ref, x2_ref, sum_ref, wc1_ref, wc2_ref, bc_ref,
                   w2_ref, b2_ref, wf_ref, bf_ref, out_ref, slab_ref, *, W):
    col = col_ref[...]
    x1 = x1_ref[0].astype(jnp.float32)
    x2 = x2_ref[0].astype(jnp.float32)
    lr = sum_ref[0].astype(jnp.float32)
    # conv_cat over cat(x1, x2): weights split on the host -> no channel concat.
    t = _conv3x3(slab_ref, x1, wc1_ref[...], col, W)
    t = t + _conv3x3(slab_ref, x2, wc2_ref[...], col, W) + bc_ref[...]
    # mid = sigmoid(conv2(mid))
    m = jax.nn.sigmoid(_conv3x3(slab_ref, t, w2_ref[...], col, W) + b2_ref[...])
    # out = fusion((left + right) * mid)
    o = lr * m
    out = _conv3x3(slab_ref, o, wf_ref[...], col, W) + bf_ref[...]
    out_ref[0] = out.astype(jnp.float32)


# ----------------------------------------------------------------------------
# pallas_call wrappers
# ----------------------------------------------------------------------------

def _compiler_params():
    return pltpu.CompilerParams(dimension_semantics=("parallel",),
                                vmem_limit_bytes=32 * 1024 * 1024)


def csc_stage1(left, right_up, col, p, H, W):
    N, C, S = left.shape
    act_spec = pl.BlockSpec((1, C, S), lambda n: (n, 0, 0))
    w_spec = pl.BlockSpec((C, 9 * C), lambda n: (0, 0))
    b_spec = pl.BlockSpec((C, 1), lambda n: (0, 0))
    col_spec = pl.BlockSpec((1, S), lambda n: (0, 0))
    smem = pl.BlockSpec(memory_space=pltpu.MemorySpace.SMEM)
    out_sd = jax.ShapeDtypeStruct((N, C, S), INTER_DTYPE)
    return pl.pallas_call(
        functools.partial(_stage1_kernel, W=W),
        out_shape=(out_sd, out_sd, out_sd),
        grid=(N,),
        in_specs=[col_spec, act_spec, act_spec, w_spec, b_spec, smem, smem],
        out_specs=(act_spec, act_spec, act_spec),
        scratch_shapes=[pltpu.VMEM((9 * C, S), jnp.float32)],
        compiler_params=_compiler_params(),
    )(col, left, right_up, p["w1"], p["b1"], p["sa1"], p["sa2"])


def csc_stage2(x1, x2, lr_sum, col, p, H, W):
    N, C, S = x1.shape
    act_spec = pl.BlockSpec((1, C, S), lambda n: (n, 0, 0))
    w_spec = pl.BlockSpec((C, 9 * C), lambda n: (0, 0))
    b_spec = pl.BlockSpec((C, 1), lambda n: (0, 0))
    col_spec = pl.BlockSpec((1, S), lambda n: (0, 0))
    return pl.pallas_call(
        functools.partial(_stage2_kernel, W=W),
        out_shape=jax.ShapeDtypeStruct((N, C, S), jnp.float32),
        grid=(N,),
        in_specs=[col_spec, act_spec, act_spec, act_spec,
                  w_spec, w_spec, b_spec, w_spec, b_spec, w_spec, b_spec],
        out_specs=pl.BlockSpec((1, C, S), lambda n: (n, 0, 0)),
        scratch_shapes=[pltpu.VMEM((9 * C, S), jnp.float32)],
        compiler_params=_compiler_params(),
    )(col, x1, x2, lr_sum, p["wc1"], p["wc2"], p["bc"],
      p["w2"], p["b2"], p["wf"], p["bf"])


# ----------------------------------------------------------------------------
# Host glue: bilinear upsample (align_corners=True), parameter prep, forward
# ----------------------------------------------------------------------------

def bilinear_upsample_align_corners_nchw(x, out_h, out_w):
    """F.interpolate(mode='bilinear', align_corners=True) equivalent, NCHW."""
    N, C, H, W = x.shape

    def coords(o, i):
        if o == 1 or i == 1:
            return jnp.zeros((o,), jnp.float32)
        return jnp.arange(o, dtype=jnp.float32) * (i - 1) / (o - 1)

    ys = coords(out_h, H)
    xs = coords(out_w, W)
    y0 = jnp.floor(ys).astype(jnp.int32)
    y1 = jnp.minimum(y0 + 1, H - 1)
    x0 = jnp.floor(xs).astype(jnp.int32)
    x1 = jnp.minimum(x0 + 1, W - 1)
    wy = (ys - y0.astype(jnp.float32))[None, None, :, None]
    wx = (xs - x0.astype(jnp.float32))[None, None, None, :]

    def g(yi, xi):
        return x[:, :, yi][:, :, :, xi]

    top = g(y0, x0) * (1.0 - wx) + g(y0, x1) * wx
    bot = g(y1, x0) * (1.0 - wx) + g(y1, x1) * wx
    return top * (1.0 - wy) + bot * wy


def _flatten_w(w_hwio):
    """(K, K, Cin, Cout) -> (Cout, K*K*Cin) bf16, row order (dy, dx, cin)."""
    k, _, cin, cout = w_hwio.shape
    return jnp.transpose(w_hwio, (3, 0, 1, 2)).reshape(cout, k * k * cin).astype(MXU_DTYPE)


def _fold_bn(w_hwio, eps=1e-5):
    """Fold eval-mode BatchNorm (defaults: gamma=1, beta=0, mean=0, var=1)."""
    cout = w_hwio.shape[-1]
    gamma = jnp.ones((cout,), jnp.float32)
    beta = jnp.zeros((cout,), jnp.float32)
    mean = jnp.zeros((cout,), jnp.float32)
    var = jnp.ones((cout,), jnp.float32)
    scale = gamma / jnp.sqrt(var + eps)
    bias = beta - mean * scale
    return w_hwio * scale[None, None, None, :], bias


def init_csc_params(key, c):
    ks = jax.random.split(key, 7)
    p = {}
    # conv1: BasicConv2d C->C (BN folded into weights)
    w1, b1 = _fold_bn(jax.random.normal(ks[0], (3, 3, c, c), jnp.float32) * 0.1)
    p["w1"], p["b1"] = _flatten_w(w1), b1.reshape(c, 1)
    # conv_cat: BasicConv2d 2C->C, weights split for the fused no-concat matmul
    wcat, bcat = _fold_bn(jax.random.normal(ks[1], (3, 3, 2 * c, c), jnp.float32) * 0.1)
    p["wc1"] = _flatten_w(wcat[:, :, :c, :])
    p["wc2"] = _flatten_w(wcat[:, :, c:, :])
    p["bc"] = bcat.reshape(c, 1)
    # conv2: plain Conv2d with bias
    p["w2"] = _flatten_w(jax.random.normal(ks[2], (3, 3, c, c), jnp.float32) * 0.1)
    p["b2"] = (jax.random.normal(ks[3], (c,), jnp.float32) * 0.1).reshape(c, 1)
    # fusion: BasicConv2d C->C
    wf, bf = _fold_bn(jax.random.normal(ks[4], (3, 3, c, c), jnp.float32) * 0.1)
    p["wf"], p["bf"] = _flatten_w(wf), bf.reshape(c, 1)
    # SpatialAttention 7x7 convs (2 -> 1, no bias): flattened for SMEM scalar reads
    p["sa1"] = (jax.random.normal(ks[5], (7, 7, 2, 1), jnp.float32) * 0.1).reshape(98)
    p["sa2"] = (jax.random.normal(ks[6], (7, 7, 2, 1), jnp.float32) * 0.1).reshape(98)
    return p


def csc_forward(left_nchw, right_nchw, params):
    """left: (N,C,H,W), right: (N,C,H/2,W/2) -> (N,C,H,W)."""
    N, C, H, W = left_nchw.shape
    S = H * W
    left = left_nchw.astype(jnp.float32).reshape(N, C, S)
    right_up = bilinear_upsample_align_corners_nchw(
        right_nchw.astype(jnp.float32), H, W).reshape(N, C, S)
    # destination-column index (precomputed so kernels only need compares)
    col = (jnp.arange(S, dtype=jnp.int32) % W)[None, :]

    x1, x2, lr_sum = csc_stage1(left, right_up, col, params, H, W)
    out = csc_stage2(x1, x2, lr_sum, col, params, H, W)
    return out.reshape(N, C, H, W)


if __name__ == "__main__":
    key = jax.random.PRNGKey(0)
    k_left, k_right, k_params = jax.random.split(key, 3)

    N, C, H, W = 2, 4, 16, 16
    left = jax.random.normal(k_left, (N, C, H, W), jnp.float32)
    right = jax.random.normal(k_right, (N, C, H // 2, W // 2), jnp.float32)
    params = init_csc_params(k_params, C)

    out = csc_forward(left, right, params)
    out = jax.block_until_ready(out)
    assert out.shape == (N, C, H, W), out.shape
    print("KERNEL_OK")
</pallas_src>

<mosaic_0001>
module attributes {stable_mosaic.version = 11 : i64} {
  func.func @_stage1_kernel(%arg0: i32, %arg1: memref<1x256xi32, #tpu.memory_space<vmem>>, %arg2: memref<1x4x256xf32, #tpu.memory_space<vmem>>, %arg3: memref<1x4x256xf32, #tpu.memory_space<vmem>>, %arg4: memref<4x36xbf16, #tpu.memory_space<vmem>>, %arg5: memref<4x1xf32, #tpu.memory_space<vmem>>, %arg6: memref<98xf32, #tpu.memory_space<smem>>, %arg7: memref<98xf32, #tpu.memory_space<smem>>, %arg8: memref<1x4x256xbf16, #tpu.memory_space<vmem>>, %arg9: memref<1x4x256xbf16, #tpu.memory_space<vmem>>, %arg10: memref<1x4x256xbf16, #tpu.memory_space<vmem>>, %arg11: memref<36x256xf32, #tpu.memory_space<vmem>>) attributes {dimension_semantics = [#tpu.dimension_semantics<parallel>], iteration_bounds = array<i64: 2>, scalar_prefetch = 0 : i64, scratch_operands = 1 : i64, tpu.core_type = #tpu.core_type<tc>, window_params = [{pipeline_mode = #tpu.pipeline_mode<synchronous>, transform_indices = @transform_0, window_bounds = array<i64: 1, 256>}, {transform_indices = @transform_1, window_bounds = array<i64: 1, 4, 256>}, {transform_indices = @transform_2, window_bounds = array<i64: 1, 4, 256>}, {pipeline_mode = #tpu.pipeline_mode<synchronous>, transform_indices = @transform_3, window_bounds = array<i64: 4, 36>}, {pipeline_mode = #tpu.pipeline_mode<synchronous>, transform_indices = @transform_4, window_bounds = array<i64: 4, 1>}, {transform_indices = @transform_5, window_bounds = array<i64: 98>}, {transform_indices = @transform_6, window_bounds = array<i64: 98>}, {transform_indices = @transform_7, window_bounds = array<i64: 1, 4, 256>}, {transform_indices = @transform_8, window_bounds = array<i64: 1, 4, 256>}, {transform_indices = @transform_9, window_bounds = array<i64: 1, 4, 256>}]} {
    %c0 = arith.constant 0 : index
    %c0_0 = arith.constant 0 : index
    %0 = vector.load %arg1[%c0, %c0_0] : memref<1x256xi32, #tpu.memory_space<vmem>>, vector<1x256xi32>
    %c0_1 = arith.constant 0 : index
    %c0_2 = arith.constant 0 : index
    %c0_3 = arith.constant 0 : index
    %1 = vector.load %arg2[%c0_1, %c0_2, %c0_3] : memref<1x4x256xf32, #tpu.memory_space<vmem>>, vector<1x4x256xf32>
    %2 = vector.shape_cast %1 : vector<1x4x256xf32> to vector<4x256xf32>
    %c0_4 = arith.constant 0 : index
    %c0_5 = arith.constant 0 : index
    %c0_6 = arith.constant 0 : index
    %3 = vector.load %arg3[%c0_4, %c0_5, %c0_6] : memref<1x4x256xf32, #tpu.memory_space<vmem>>, vector<1x4x256xf32>
    %4 = vector.shape_cast %3 : vector<1x4x256xf32> to vector<4x256xf32>
    %c0_7 = arith.constant 0 : index
    %c0_8 = arith.constant 0 : index
    %5 = vector.load %arg4[%c0_7, %c0_8] : memref<4x36xbf16, #tpu.memory_space<vmem>>, vector<4x36xbf16>
    %cst = arith.constant 0.000000e+00 : f32
    %6 = vector.broadcast %cst : f32 to vector<4x17xf32>
    %7 = vector.extract_strided_slice %4 {offsets = [0, 0], sizes = [4, 239], strides = [1, 1]} : vector<4x256xf32> to vector<4x239xf32>
    %8 = tpu.concatenate %6, %7 in 1 : vector<4x17xf32>, vector<4x239xf32> -> vector<4x256xf32>
    %c1_i32 = arith.constant 1 : i32
    %9 = vector.broadcast %c1_i32 : i32 to vector<1x256xi32>
    %10 = arith.cmpi sge, %0, %9 : vector<1x256xi32>
    %cst_9 = arith.constant 0.000000e+00 : f32
    %11 = vector.shape_cast %10 : vector<1x256xi1> to vector<1x256xi1>
    %12 = vector.broadcast %11 : vector<1x256xi1> to vector<4x256xi1>
    %13 = vector.broadcast %cst_9 : f32 to vector<4x256xf32>
    %14 = arith.select %12, %8, %13 : vector<4x256xi1>, vector<4x256xf32>
    %c0_10 = arith.constant 0 : index
    %c0_11 = arith.constant 0 : index
    %15 = vector.load %arg11[%c0_10, %c0_11] : memref<36x256xf32, #tpu.memory_space<vmem>>, vector<4x256xf32>
    tpu.vector_store %arg11[%c0_10, %c0_11], %14 {strides = array<i32>} : memref<36x256xf32, #tpu.memory_space<vmem>>, vector<4x256xf32>,
    %cst_12 = arith.constant 0.000000e+00 : f32
    %16 = vector.broadcast %cst_12 : f32 to vector<4x16xf32>
    %17 = vector.extract_strided_slice %4 {offsets = [0, 0], sizes = [4, 240], strides = [1, 1]} : vector<4x256xf32> to vector<4x240xf32>
    %18 = tpu.concatenate %16, %17 in 1 : vector<4x16xf32>, vector<4x240xf32> -> vector<4x256xf32>
    %c4 = arith.constant 4 : index
    %c0_13 = arith.constant 0 : index
    %19 = vector.load %arg11[%c4, %c0_13] : memref<36x256xf32, #tpu.memory_space<vmem>>, vector<4x256xf32>
    tpu.vector_store %arg11[%c4, %c0_13], %18 {strides = array<i32>} : memref<36x256xf32, #tpu.memory_space<vmem>>, vector<4x256xf32>,
    %cst_14 = arith.constant 0.000000e+00 : f32
    %20 = vector.broadcast %cst_14 : f32 to vector<4x15xf32>
    %21 = vector.extract_strided_slice %4 {offsets = [0, 0], sizes = [4, 241], strides = [1, 1]} : vector<4x256xf32> to vector<4x241xf32>
    %22 = tpu.concatenate %20, %21 in 1 : vector<4x15xf32>, vector<4x241xf32> -> vector<4x256xf32>
    %c14_i32 = arith.constant 14 : i32
    %23 = vector.broadcast %c14_i32 : i32 to vector<1x256xi32>
    %24 = arith.cmpi sle, %0, %23 : vector<1x256xi32>
    %cst_15 = arith.constant 0.000000e+00 : f32
    %25 = vector.shape_cast %24 : vector<1x256xi1> to vector<1x256xi1>
    %26 = vector.broadcast %25 : vector<1x256xi1> to vector<4x256xi1>
    %27 = vector.broadcast %cst_15 : f32 to vector<4x256xf32>
    %28 = arith.select %26, %22, %27 : vector<4x256xi1>, vector<4x256xf32>
    %c8 = arith.constant 8 : index
    %c0_16 = arith.constant 0 : index
    %29 = vector.load %arg11[%c8, %c0_16] : memref<36x256xf32, #tpu.memory_space<vmem>>, vector<4x256xf32>
    tpu.vector_store %arg11[%c8, %c0_16], %28 {strides = array<i32>} : memref<36x256xf32, #tpu.memory_space<vmem>>, vector<4x256xf32>,
    %cst_17 = arith.constant 0.000000e+00 : f32
    %30 = vector.broadcast %cst_17 : f32 to vector<4x1xf32>
    %31 = vector.extract_strided_slice %4 {offsets = [0, 0], sizes = [4, 255], strides = [1, 1]} : vector<4x256xf32> to vector<4x255xf32>
    %32 = tpu.concatenate %30, %31 in 1 : vector<4x1xf32>, vector<4x255xf32> -> vector<4x256xf32>
    %c1_i32_18 = arith.constant 1 : i32
    %33 = vector.broadcast %c1_i32_18 : i32 to vector<1x256xi32>
    %34 = arith.cmpi sge, %0, %33 : vector<1x256xi32>
    %cst_19 = arith.constant 0.000000e+00 : f32
    %35 = vector.shape_cast %34 : vector<1x256xi1> to vector<1x256xi1>
    %36 = vector.broadcast %35 : vector<1x256xi1> to vector<4x256xi1>
    %37 = vector.broadcast %cst_19 : f32 to vector<4x256xf32>
    %38 = arith.select %36, %32, %37 : vector<4x256xi1>, vector<4x256xf32>
    %c12 = arith.constant 12 : index
    %c0_20 = arith.constant 0 : index
    %39 = vector.load %arg11[%c12, %c0_20] : memref<36x256xf32, #tpu.memory_space<vmem>>, vector<4x256xf32>
    tpu.vector_store %arg11[%c12, %c0_20], %38 {strides = array<i32>} : memref<36x256xf32, #tpu.memory_space<vmem>>, vector<4x256xf32>,
    %c16 = arith.constant 16 : index
    %c0_21 = arith.constant 0 : index
    %40 = vector.load %arg11[%c16, %c0_21] : memref<36x256xf32, #tpu.memory_space<vmem>>, vector<4x256xf32>
    tpu.vector_store %arg11[%c16, %c0_21], %4 {strides = array<i32>} : memref<36x256xf32, #tpu.memory_space<vmem>>, vector<4x256xf32>,
    %cst_22 = arith.constant 0.000000e+00 : f32
    %41 = vector.broadcast %cst_22 : f32 to vector<4x1xf32>
    %42 = vector.extract_strided_slice %4 {offsets = [0, 1], sizes = [4, 255], strides = [1, 1]} : vector<4x256xf32> to vector<4x255xf32>
    %43 = tpu.concatenate %42, %41 in 1 : vector<4x255xf32>, vector<4x1xf32> -> vector<4x256xf32>
    %c14_i32_23 = arith.constant 14 : i32
    %44 = vector.broadcast %c14_i32_23 : i32 to vector<1x256xi32>
    %45 = arith.cmpi sle, %0, %44 : vector<1x256xi32>
    %cst_24 = arith.constant 0.000000e+00 : f32
    %46 = vector.shape_cast %45 : vector<1x256xi1> to vector<1x256xi1>
    %47 = vector.broadcast %46 : vector<1x256xi1> to vector<4x256xi1>
    %48 = vector.broadcast %cst_24 : f32 to vector<4x256xf32>
    %49 = arith.select %47, %43, %48 : vector<4x256xi1>, vector<4x256xf32>
    %c20 = arith.constant 20 : index
    %c0_25 = arith.constant 0 : index
    %50 = vector.load %arg11[%c20, %c0_25] : memref<36x256xf32, #tpu.memory_space<vmem>>, vector<4x256xf32>
    tpu.vector_store %arg11[%c20, %c0_25], %49 {strides = array<i32>} : memref<36x256xf32, #tpu.memory_space<vmem>>, vector<4x256xf32>,
    %cst_26 = arith.constant 0.000000e+00 : f32
    %51 = vector.broadcast %cst_26 : f32 to vector<4x15xf32>
    %52 = vector.extract_strided_slice %4 {offsets = [0, 15], sizes = [4, 241], strides = [1, 1]} : vector<4x256xf32> to vector<4x241xf32>
    %53 = tpu.concatenate %52, %51 in 1 : vector<4x241xf32>, vector<4x15xf32> -> vector<4x256xf32>
    %c1_i32_27 = arith.constant 1 : i32
    %54 = vector.broadcast %c1_i32_27 : i32 to vector<1x256xi32>
    %55 = arith.cmpi sge, %0, %54 : vector<1x256xi32>
    %cst_28 = arith.constant 0.000000e+00 : f32
    %56 = vector.shape_cast %55 : vector<1x256xi1> to vector<1x256xi1>
    %57 = vector.broadcast %56 : vector<1x256xi1> to vector<4x256xi1>
    %58 = vector.broadcast %cst_28 : f32 to vector<4x256xf32>
    %59 = arith.select %57, %53, %58 : vector<4x256xi1>, vector<4x256xf32>
    %c24 = arith.constant 24 : index
    %c0_29 = arith.constant 0 : index
    %60 = vector.load %arg11[%c24, %c0_29] : memref<36x256xf32, #tpu.memory_space<vmem>>, vector<4x256xf32>
    tpu.vector_store %arg11[%c24, %c0_29], %59 {strides = array<i32>} : memref<36x256xf32, #tpu.memory_space<vmem>>, vector<4x256xf32>,
    %cst_30 = arith.constant 0.000000e+00 : f32
    %61 = vector.broadcast %cst_30 : f32 to vector<4x16xf32>
    %62 = vector.extract_strided_slice %4 {offsets = [0, 16], sizes = [4, 240], strides = [1, 1]} : vector<4x256xf32> to vector<4x240xf32>
    %63 = tpu.concatenate %62, %61 in 1 : vector<4x240xf32>, vector<4x16xf32> -> vector<4x256xf32>
    %c28 = arith.constant 28 : index
    %c0_31 = arith.constant 0 : index
    %64 = vector.load %arg11[%c28, %c0_31] : memref<36x256xf32, #tpu.memory_space<vmem>>, vector<4x256xf32>
    tpu.vector_store %arg11[%c28, %c0_31], %63 {strides = array<i32>} : memref<36x256xf32, #tpu.memory_space<vmem>>, vector<4x256xf32>,
    %cst_32 = arith.constant 0.000000e+00 : f32
    %65 = vector.broadcast %cst_32 : f32 to vector<4x17xf32>
    %66 = vector.extract_strided_slice %4 {offsets = [0, 17], sizes = [4, 239], strides = [1, 1]} : vector<4x256xf32> to vector<4x239xf32>
    %67 = tpu.concatenate %66, %65 in 1 : vector<4x239xf32>, vector<4x17xf32> -> vector<4x256xf32>
    %c14_i32_33 = arith.constant 14 : i32
    %68 = vector.broadcast %c14_i32_33 : i32 to vector<1x256xi32>
    %69 = arith.cmpi sle, %0, %68 : vector<1x256xi32>
    %cst_34 = arith.constant 0.000000e+00 : f32
    %70 = vector.shape_cast %69 : vector<1x256xi1> to vector<1x256xi1>
    %71 = vector.broadcast %70 : vector<1x256xi1> to vector<4x256xi1>
    %72 = vector.broadcast %cst_34 : f32 to vector<4x256xf32>
    %73 = arith.select %71, %67, %72 : vector<4x256xi1>, vector<4x256xf32>
    %c32 = arith.constant 32 : index
    %c0_35 = arith.constant 0 : index
    %74 = vector.load %arg11[%c32, %c0_35] : memref<36x256xf32, #tpu.memory_space<vmem>>, vector<4x256xf32>
    tpu.vector_store %arg11[%c32, %c0_35], %73 {strides = array<i32>} : memref<36x256xf32, #tpu.memory_space<vmem>>, vector<4x256xf32>,
    %c0_36 = arith.constant 0 : index
    %c0_37 = arith.constant 0 : index
    %75 = vector.load %arg11[%c0_36, %c0_37] : memref<36x256xf32, #tpu.memory_space<vmem>>, vector<36x256xf32>
    %76 = arith.truncf %75 : vector<36x256xf32> to vector<36x256xbf16>
    %cst_38 = arith.constant dense<0.000000e+00> : vector<4x256xf32>
    %77 = tpu.matmul %5, %76, %cst_38 {dimension_numbers = #tpu.dot_dimension_numbers<[1], [0], [0], [1], [0, 0, 1, 1], [], []>} : vector<4x36xbf16>, vector<36x256xbf16>, vector<4x256xf32> -> vector<4x256xf32>
    %c0_39 = arith.constant 0 : index
    %c0_40 = arith.constant 0 : index
    %78 = vector.load %arg5[%c0_39, %c0_40] : memref<4x1xf32, #tpu.memory_space<vmem>>, vector<4x1xf32>
    %79 = vector.broadcast %78 : vector<4x1xf32> to vector<4x256xf32>
    %80 = arith.addf %77, %79 : vector<4x256xf32>
    %cst_41 = arith.constant dense<0.000000e+00> : vector<256xf32>
    %81 = vector.multi_reduction <add>, %80, %cst_41 [0] : vector<4x256xf32> to vector<256xf32>
    %82 = vector.shape_cast %81 : vector<256xf32> to vector<1x256xf32>
    %cst_42 = arith.constant 4.000000e+00 : f32
    %83 = vector.broadcast %cst_42 : f32 to vector<1x256xf32>
    %84 = arith.divf %82, %83 : vector<1x256xf32>
    %cst_43 = arith.constant dense<0xFF800000> : vector<256xf32>
    %85 = vector.multi_reduction <maximumf>, %80, %cst_43 [0] : vector<4x256xf32> to vector<256xf32>
    %86 = vector.shape_cast %85 : vector<256xf32> to vector<1x256xf32>
    %cst_44 = arith.constant 0.000000e+00 : f32
    %87 = vector.broadcast %cst_44 : f32 to vector<1x256xf32>
    %c0_45 = arith.constant 0 : index
    %88 = memref.load %arg7[%c0_45] : memref<98xf32, #tpu.memory_space<smem>>
    %cst_46 = arith.constant 0.000000e+00 : f32
    %89 = vector.broadcast %cst_46 : f32 to vector<1x51xf32>
    %90 = vector.extract_strided_slice %84 {offsets = [0, 0], sizes = [1, 205], strides = [1, 1]} : vector<1x256xf32> to vector<1x205xf32>
    %91 = tpu.concatenate %89, %90 in 1 : vector<1x51xf32>, vector<1x205xf32> -> vector<1x256xf32>
    %92 = vector.broadcast %88 : f32 to vector<1x256xf32>
    %93 = arith.mulf %92, %91 : vector<1x256xf32>
    %c1 = arith.constant 1 : index
    %94 = memref.load %arg7[%c1] : memref<98xf32, #tpu.memory_space<smem>>
    %cst_47 = arith.constant 0.000000e+00 : f32
    %95 = vector.broadcast %cst_47 : f32 to vector<1x51xf32>
    %96 = vector.extract_strided_slice %86 {offsets = [0, 0], sizes = [1, 205], strides = [1, 1]} : vector<1x256xf32> to vector<1x205xf32>
    %97 = tpu.concatenate %95, %96 in 1 : vector<1x51xf32>, vector<1x205xf32> -> vector<1x256xf32>
    %98 = vector.broadcast %94 : f32 to vector<1x256xf32>
    %99 = arith.mulf %98, %97 : vector<1x256xf32>
    %100 = arith.addf %93, %99 : vector<1x256xf32>
    %c3_i32 = arith.constant 3 : i32
    %101 = vector.broadcast %c3_i32 : i32 to vector<1x256xi32>
    %102 = arith.cmpi sge, %0, %101 : vector<1x256xi32>
    %cst_48 = arith.constant 0.000000e+00 : f32
    %103 = vector.broadcast %cst_48 : f32 to vector<1x256xf32>
    %104 = arith.select %102, %100, %103 : vector<1x256xi1>, vector<1x256xf32>
    %105 = arith.addf %87, %104 : vector<1x256xf32>
    %c2 = arith.constant 2 : index
    %106 = memref.load %arg7[%c2] : memref<98xf32, #tpu.memory_space<smem>>
    %cst_49 = arith.constant 0.000000e+00 : f32
    %107 = vector.broadcast %cst_49 : f32 to vector<1x50xf32>
    %108 = vector.extract_strided_slice %84 {offsets = [0, 0], sizes = [1, 206], strides = [1, 1]} : vector<1x256xf32> to vector<1x206xf32>
    %109 = tpu.concatenate %107, %108 in 1 : vector<1x50xf32>, vector<1x206xf32> -> vector<1x256xf32>
    %110 = vector.broadcast %106 : f32 to vector<1x256xf32>
    %111 = arith.mulf %110, %109 : vector<1x256xf32>
    %c3 = arith.constant 3 : index
    %112 = memref.load %arg7[%c3] : memref<98xf32, #tpu.memory_space<smem>>
    %cst_50 = arith.constant 0.000000e+00 : f32
    %113 = vector.broadcast %cst_50 : f32 to vector<1x50xf32>
    %114 = vector.extract_strided_slice %86 {offsets = [0, 0], sizes = [1, 206], strides = [1, 1]} : vector<1x256xf32> to vector<1x206xf32>
    %115 = tpu.concatenate %113, %114 in 1 : vector<1x50xf32>, vector<1x206xf32> -> vector<1x256xf32>
    %116 = vector.broadcast %112 : f32 to vector<1x256xf32>
    %117 = arith.mulf %116, %115 : vector<1x256xf32>
    %118 = arith.addf %111, %117 : vector<1x256xf32>
    %c2_i32 = arith.constant 2 : i32
    %119 = vector.broadcast %c2_i32 : i32 to vector<1x256xi32>
    %120 = arith.cmpi sge, %0, %119 : vector<1x256xi32>
    %cst_51 = arith.constant 0.000000e+00 : f32
    %121 = vector.broadcast %cst_51 : f32 to vector<1x256xf32>
    %122 = arith.select %120, %118, %121 : vector<1x256xi1>, vector<1x256xf32>
    %123 = arith.addf %105, %122 : vector<1x256xf32>
    %c4_52 = arith.constant 4 : index
    %124 = memref.load %arg7[%c4_52] : memref<98xf32, #tpu.memory_space<smem>>
    %cst_53 = arith.constant 0.000000e+00 : f32
    %125 = vector.broadcast %cst_53 : f32 to vector<1x49xf32>
    %126 = vector.extract_strided_slice %84 {offsets = [0, 0], sizes = [1, 207], strides = [1, 1]} : vector<1x256xf32> to vector<1x207xf32>
    %127 = tpu.concatenate %125, %126 in 1 : vector<1x49xf32>, vector<1x207xf32> -> vector<1x256xf32>
    %128 = vector.broadcast %124 : f32 to vector<1x256xf32>
    %129 = arith.mulf %128, %127 : vector<1x256xf32>
    %c5 = arith.constant 5 : index
    %130 = memref.load %arg7[%c5] : memref<98xf32, #tpu.memory_space<smem>>
    %cst_54 = arith.constant 0.000000e+00 : f32
    %131 = vector.broadcast %cst_54 : f32 to vector<1x49xf32>
    %132 = vector.extract_strided_slice %86 {offsets = [0, 0], sizes = [1, 207], strides = [1, 1]} : vector<1x256xf32> to vector<1x207xf32>
    %133 = tpu.concatenate %131, %132 in 1 : vector<1x49xf32>, vector<1x207xf32> -> vector<1x256xf32>
    %134 = vector.broadcast %130 : f32 to vector<1x256xf32>
    %135 = arith.mulf %134, %133 : vector<1x256xf32>
    %136 = arith.addf %129, %135 : vector<1x256xf32>
    %c1_i32_55 = arith.constant 1 : i32
    %137 = vector.broadcast %c1_i32_55 : i32 to vector<1x256xi32>
    %138 = arith.cmpi sge, %0, %137 : vector<1x256xi32>
    %cst_56 = arith.constant 0.000000e+00 : f32
    %139 = vector.broadcast %cst_56 : f32 to vector<1x256xf32>
    %140 = arith.select %138, %136, %139 : vector<1x256xi1>, vector<1x256xf32>
    %141 = arith.addf %123, %140 : vector<1x256xf32>
    %c6 = arith.constant 6 : index
    %142 = memref.load %arg7[%c6] : memref<98xf32, #tpu.memory_space<smem>>
    %cst_57 = arith.constant 0.000000e+00 : f32
    %143 = vector.broadcast %cst_57 : f32 to vector<1x48xf32>
    %144 = vector.extract_strided_slice %84 {offsets = [0, 0], sizes = [1, 208], strides = [1, 1]} : vector<1x256xf32> to vector<1x208xf32>
    %145 = tpu.concatenate %143, %144 in 1 : vector<1x48xf32>, vector<1x208xf32> -> vector<1x256xf32>
    %146 = vector.broadcast %142 : f32 to vector<1x256xf32>
    %147 = arith.mulf %146, %145 : vector<1x256xf32>
    %c7 = arith.constant 7 : index
    %148 = memref.load %arg7[%c7] : memref<98xf32, #tpu.memory_space<smem>>
    %cst_58 = arith.constant 0.000000e+00 : f32
    %149 = vector.broadcast %cst_58 : f32 to vector<1x48xf32>
    %150 = vector.extract_strided_slice %86 {offsets = [0, 0], sizes = [1, 208], strides = [1, 1]} : vector<1x256xf32> to vector<1x208xf32>
    %151 = tpu.concatenate %149, %150 in 1 : vector<1x48xf32>, vector<1x208xf32> -> vector<1x256xf32>
    %152 = vector.broadcast %148 : f32 to vector<1x256xf32>
    %153 = arith.mulf %152, %151 : vector<1x256xf32>
    %154 = arith.addf %147, %153 : vector<1x256xf32>
    %155 = arith.addf %141, %154 : vector<1x256xf32>
    %c8_59 = arith.constant 8 : index
    %156 = memref.load %arg7[%c8_59] : memref<98xf32, #tpu.memory_space<smem>>
    %cst_60 = arith.constant 0.000000e+00 : f32
    %157 = vector.broadcast %cst_60 : f32 to vector<1x47xf32>
    %158 = vector.extract_strided_slice %84 {offsets = [0, 0], sizes = [1, 209], strides = [1, 1]} : vector<1x256xf32> to vector<1x209xf32>
    %159 = tpu.concatenate %157, %158 in 1 : vector<1x47xf32>, vector<1x209xf32> -> vector<1x256xf32>
    %160 = vector.broadcast %156 : f32 to vector<1x256xf32>
    %161 = arith.mulf %160, %159 : vector<1x256xf32>
    %c9 = arith.constant 9 : index
    %162 = memref.load %arg7[%c9] : memref<98xf32, #tpu.memory_space<smem>>
    %cst_61 = arith.constant 0.000000e+00 : f32
    %163 = vector.broadcast %cst_61 : f32 to vector<1x47xf32>
    %164 = vector.extract_strided_slice %86 {offsets = [0, 0], sizes = [1, 209], strides = [1, 1]} : vector<1x256xf32> to vector<1x209xf32>
    %165 = tpu.concatenate %163, %164 in 1 : vector<1x47xf32>, vector<1x209xf32> -> vector<1x256xf32>
    %166 = vector.broadcast %162 : f32 to vector<1x256xf32>
    %167 = arith.mulf %166, %165 : vector<1x256xf32>
    %168 = arith.addf %161, %167 : vector<1x256xf32>
    %c14_i32_62 = arith.constant 14 : i32
    %169 = vector.broadcast %c14_i32_62 : i32 to vector<1x256xi32>
    %170 = arith.cmpi sle, %0, %169 : vector<1x256xi32>
    %cst_63 = arith.constant 0.000000e+00 : f32
    %171 = vector.broadcast %cst_63 : f32 to vector<1x256xf32>
    %172 = arith.select %170, %168, %171 : vector<1x256xi1>, vector<1x256xf32>
    %173 = arith.addf %155, %172 : vector<1x256xf32>
    %c10 = arith.constant 10 : index
    %174 = memref.load %arg7[%c10] : memref<98xf32, #tpu.memory_space<smem>>
    %cst_64 = arith.constant 0.000000e+00 : f32
    %175 = vector.broadcast %cst_64 : f32 to vector<1x46xf32>
    %176 = vector.extract_strided_slice %84 {offsets = [0, 0], sizes = [1, 210], strides = [1, 1]} : vector<1x256xf32> to vector<1x210xf32>
    %177 = tpu.concatenate %175, %176 in 1 : vector<1x46xf32>, vector<1x210xf32> -> vector<1x256xf32>
    %178 = vector.broadcast %174 : f32 to vector<1x256xf32>
    %179 = arith.mulf %178, %177 : vector<1x256xf32>
    %c11 = arith.constant 11 : index
    %180 = memref.load %arg7[%c11] : memref<98xf32, #tpu.memory_space<smem>>
    %cst_65 = arith.constant 0.000000e+00 : f32
    %181 = vector.broadcast %cst_65 : f32 to vector<1x46xf32>
    %182 = vector.extract_strided_slice %86 {offsets = [0, 0], sizes = [1, 210], strides = [1, 1]} : vector<1x256xf32> to vector<1x210xf32>
    %183 = tpu.concatenate %181, %182 in 1 : vector<1x46xf32>, vector<1x210xf32> -> vector<1x256xf32>
    %184 = vector.broadcast %180 : f32 to vector<1x256xf32>
    %185 = arith.mulf %184, %183 : vector<1x256xf32>
    %186 = arith.addf %179, %185 : vector<1x256xf32>
    %c13_i32 = arith.constant 13 : i32
    %187 = vector.broadcast %c13_i32 : i32 to vector<1x256xi32>
    %188 = arith.cmpi sle, %0, %187 : vector<1x256xi32>
    %cst_66 = arith.constant 0.000000e+00 : f32
    %189 = vector.broadcast %cst_66 : f32 to vector<1x256xf32>
    %190 = arith.select %188, %186, %189 : vector<1x256xi1>, vector<1x256xf32>
    %191 = arith.addf %173, %190 : vector<1x256xf32>
    %c12_67 = arith.constant 12 : index
    %192 = memref.load %arg7[%c12_67] : memref<98xf32, #tpu.memory_space<smem>>
    %cst_68 = arith.constant 0.000000e+00 : f32
    %193 = vector.broadcast %cst_68 : f32 to vector<1x45xf32>
    %194 = vector.extract_strided_slice %84 {offsets = [0, 0], sizes = [1, 211], strides = [1, 1]} : vector<1x256xf32> to vector<1x211xf32>
    %195 = tpu.concatenate %193, %194 in 1 : vector<1x45xf32>, vector<1x211xf32> -> vector<1x256xf32>
    %196 = vector.broadcast %192 : f32 to vector<1x256xf32>
    %197 = arith.mulf %196, %195 : vector<1x256xf32>
    %c13 = arith.constant 13 : index
    %198 = memref.load %arg7[%c13] : memref<98xf32, #tpu.memory_space<smem>>
    %cst_69 = arith.constant 0.000000e+00 : f32
    %199 = vector.broadcast %cst_69 : f32 to vector<1x45xf32>
    %200 = vector.extract_strided_slice %86 {offsets = [0, 0], sizes = [1, 211], strides = [1, 1]} : vector<1x256xf32> to vector<1x211xf32>
    %201 = tpu.concatenate %199, %200 in 1 : vector<1x45xf32>, vector<1x211xf32> -> vector<1x256xf32>
    %202 = vector.broadcast %198 : f32 to vector<1x256xf32>
    %203 = arith.mulf %202, %201 : vector<1x256xf32>
    %204 = arith.addf %197, %203 : vector<1x256xf32>
    %c12_i32 = arith.constant 12 : i32
    %205 = vector.broadcast %c12_i32 : i32 to vector<1x256xi32>
    %206 = arith.cmpi sle, %0, %205 : vector<1x256xi32>
    %cst_70 = arith.constant 0.000000e+00 : f32
    %207 = vector.broadcast %cst_70 : f32 to vector<1x256xf32>
    %208 = arith.select %206, %204, %207 : vector<1x256xi1>, vector<1x256xf32>
    %209 = arith.addf %191, %208 : vector<1x256xf32>
    %c14 = arith.constant 14 : index
    %210 = memref.load %arg7[%c14] : memref<98xf32, #tpu.memory_space<smem>>
    %cst_71 = arith.constant 0.000000e+00 : f32
    %211 = vector.broadcast %cst_71 : f32 to vector<1x35xf32>
    %212 = vector.extract_strided_slice %84 {offsets = [0, 0], sizes = [1, 221], strides = [1, 1]} : vector<1x256xf32> to vector<1x221xf32>
    %213 = tpu.concatenate %211, %212 in 1 : vector<1x35xf32>, vector<1x221xf32> -> vector<1x256xf32>
    %214 = vector.broadcast %210 : f32 to vector<1x256xf32>
    %215 = arith.mulf %214, %213 : vector<1x256xf32>
    %c15 = arith.constant 15 : index
    %216 = memref.load %arg7[%c15] : memref<98xf32, #tpu.memory_space<smem>>
    %cst_72 = arith.constant 0.000000e+00 : f32
    %217 = vector.broadcast %cst_72 : f32 to vector<1x35xf32>
    %218 = vector.extract_strided_slice %86 {offsets = [0, 0], sizes = [1, 221], strides = [1, 1]} : vector<1x256xf32> to vector<1x221xf32>
    %219 = tpu.concatenate %217, %218 in 1 : vector<1x35xf32>, vector<1x221xf32> -> vector<1x256xf32>
    %220 = vector.broadcast %216 : f32 to vector<1x256xf32>
    %221 = arith.mulf %220, %219 : vector<1x256xf32>
    %222 = arith.addf %215, %221 : vector<1x256xf32>
    %c3_i32_73 = arith.constant 3 : i32
    %223 = vector.broadcast %c3_i32_73 : i32 to vector<1x256xi32>
    %224 = arith.cmpi sge, %0, %223 : vector<1x256xi32>
    %cst_74 = arith.constant 0.000000e+00 : f32
    %225 = vector.broadcast %cst_74 : f32 to vector<1x256xf32>
    %226 = arith.select %224, %222, %225 : vector<1x256xi1>, vector<1x256xf32>
    %227 = arith.addf %209, %226 : vector<1x256xf32>
    %c16_75 = arith.constant 16 : index
    %228 = memref.load %arg7[%c16_75] : memref<98xf32, #tpu.memory_space<smem>>
    %cst_76 = arith.constant 0.000000e+00 : f32
    %229 = vector.broadcast %cst_76 : f32 to vector<1x34xf32>
    %230 = vector.extract_strided_slice %84 {offsets = [0, 0], sizes = [1, 222], strides = [1, 1]} : vector<1x256xf32> to vector<1x222xf32>
    %231 = tpu.concatenate %229, %230 in 1 : vector<1x34xf32>, vector<1x222xf32> -> vector<1x256xf32>
    %232 = vector.broadcast %228 : f32 to vector<1x256xf32>
    %233 = arith.mulf %232, %231 : vector<1x256xf32>
    %c17 = arith.constant 17 : index
    %234 = memref.load %arg7[%c17] : memref<98xf32, #tpu.memory_space<smem>>
    %cst_77 = arith.constant 0.000000e+00 : f32
    %235 = vector.broadcast %cst_77 : f32 to vector<1x34xf32>
    %236 = vector.extract_strided_slice %86 {offsets = [0, 0], sizes = [1, 222], strides = [1, 1]} : vector<1x256xf32> to vector<1x222xf32>
    %237 = tpu.concatenate %235, %236 in 1 : vector<1x34xf32>, vector<1x222xf32> -> vector<1x256xf32>
    %238 = vector.broadcast %234 : f32 to vector<1x256xf32>
    %239 = arith.mulf %238, %237 : vector<1x256xf32>
    %240 = arith.addf %233, %239 : vector<1x256xf32>
    %c2_i32_78 = arith.constant 2 : i32
    %241 = vector.broadcast %c2_i32_78 : i32 to vector<1x256xi32>
    %242 = arith.cmpi sge, %0, %241 : vector<1x256xi32>
    %cst_79 = arith.constant 0.000000e+00 : f32
    %243 = vector.broadcast %cst_79 : f32 to vector<1x256xf32>
    %244 = arith.select %242, %240, %243 : vector<1x256xi1>, vector<1x256xf32>
    %245 = arith.addf %227, %244 : vector<1x256xf32>
    %c18 = arith.constant 18 : index
    %246 = memref.load %arg7[%c18] : memref<98xf32, #tpu.memory_space<smem>>
    %cst_80 = arith.constant 0.000000e+00 : f32
    %247 = vector.broadcast %cst_80 : f32 to vector<1x33xf32>
    %248 = vector.extract_strided_slice %84 {offsets = [0, 0], sizes = [1, 223], strides = [1, 1]} : vector<1x256xf32> to vector<1x223xf32>
    %249 = tpu.concatenate %247, %248 in 1 : vector<1x33xf32>, vector<1x223xf32> -> vector<1x256xf32>
    %250 = vector.broadcast %246 : f32 to vector<1x256xf32>
    %251 = arith.mulf %250, %249 : vector<1x256xf32>
    %c19 = arith.constant 19 : index
    %252 = memref.load %arg7[%c19] : memref<98xf32, #tpu.memory_space<smem>>
    %cst_81 = arith.constant 0.000000e+00 : f32
    %253 = vector.broadcast %cst_81 : f32 to vector<1x33xf32>
    %254 = vector.extract_strided_slice %86 {offsets = [0, 0], sizes = [1, 223], strides = [1, 1]} : vector<1x256xf32> to vector<1x223xf32>
    %255 = tpu.concatenate %253, %254 in 1 : vector<1x33xf32>, vector<1x223xf32> -> vector<1x256xf32>
    %256 = vector.broadcast %252 : f32 to vector<1x256xf32>
    %257 = arith.mulf %256, %255 : vector<1x256xf32>
    %258 = arith.addf %251, %257 : vector<1x256xf32>
    %c1_i32_82 = arith.constant 1 : i32
    %259 = vector.broadcast %c1_i32_82 : i32 to vector<1x256xi32>
    %260 = arith.cmpi sge, %0, %259 : vector<1x256xi32>
    %cst_83 = arith.constant 0.000000e+00 : f32
    %261 = vector.broadcast %cst_83 : f32 to vector<1x256xf32>
    %262 = arith.select %260, %258, %261 : vector<1x256xi1>, vector<1x256xf32>
    %263 = arith.addf %245, %262 : vector<1x256xf32>
    %c20_84 = arith.constant 20 : index
    %264 = memref.load %arg7[%c20_84] : memref<98xf32, #tpu.memory_space<smem>>
    %cst_85 = arith.constant 0.000000e+00 : f32
    %265 = vector.broadcast %cst_85 : f32 to vector<1x32xf32>
    %266 = vector.extract_strided_slice %84 {offsets = [0, 0], sizes = [1, 224], strides = [1, 1]} : vector<1x256xf32> to vector<1x224xf32>
    %267 = tpu.concatenate %265, %266 in 1 : vector<1x32xf32>, vector<1x224xf32> -> vector<1x256xf32>
    %268 = vector.broadcast %264 : f32 to vector<1x256xf32>
    %269 = arith.mulf %268, %267 : vector<1x256xf32>
    %c21 = arith.constant 21 : index
    %270 = memref.load %arg7[%c21] : memref<98xf32, #tpu.memory_space<smem>>
    %cst_86 = arith.constant 0.000000e+00 : f32
    %271 = vector.broadcast %cst_86 : f32 to vector<1x32xf32>
    %272 = vector.extract_strided_slice %86 {offsets = [0, 0], sizes = [1, 224], strides = [1, 1]} : vector<1x256xf32> to vector<1x224xf32>
    %273 = tpu.concatenate %271, %272 in 1 : vector<1x32xf32>, vector<1x224xf32> -> vector<1x256xf32>
    %274 = vector.broadcast %270 : f32 to vector<1x256xf32>
    %275 = arith.mulf %274, %273 : vector<1x256xf32>
    %276 = arith.addf %269, %275 : vector<1x256xf32>
    %277 = arith.addf %263, %276 : vector<1x256xf32>
    %c22 = arith.constant 22 : index
    %278 = memref.load %arg7[%c22] : memref<98xf32, #tpu.memory_space<smem>>
    %cst_87 = arith.constant 0.000000e+00 : f32
    %279 = vector.broadcast %cst_87 : f32 to vector<1x31xf32>
    %280 = vector.extract_strided_slice %84 {offsets = [0, 0], sizes = [1, 225], strides = [1, 1]} : vector<1x256xf32> to vector<1x225xf32>
    %281 = tpu.concatenate %279, %280 in 1 : vector<1x31xf32>, vector<1x225xf32> -> vector<1x256xf32>
    %282 = vector.broadcast %278 : f32 to vector<1x256xf32>
    %283 = arith.mulf %282, %281 : vector<1x256xf32>
    %c23 = arith.constant 23 : index
    %284 = memref.load %arg7[%c23] : memref<98xf32, #tpu.memory_space<smem>>
    %cst_88 = arith.constant 0.000000e+00 : f32
    %285 = vector.broadcast %cst_88 : f32 to vector<1x31xf32>
    %286 = vector.extract_strided_slice %86 {offsets = [0, 0], sizes = [1, 225], strides = [1, 1]} : vector<1x256xf32> to vector<1x225xf32>
    %287 = tpu.concatenate %285, %286 in 1 : vector<1x31xf32>, vector<1x225xf32> -> vector<1x256xf32>
    %288 = vector.broadcast %284 : f32 to vector<1x256xf32>
    %289 = arith.mulf %288, %287 : vector<1x256xf32>
    %290 = arith.addf %283, %289 : vector<1x256xf32>
    %c14_i32_89 = arith.constant 14 : i32
    %291 = vector.broadcast %c14_i32_89 : i32 to vector<1x256xi32>
    %292 = arith.cmpi sle, %0, %291 : vector<1x256xi32>
    %cst_90 = arith.constant 0.000000e+00 : f32
    %293 = vector.broadcast %cst_90 : f32 to vector<1x256xf32>
    %294 = arith.select %292, %290, %293 : vector<1x256xi1>, vector<1x256xf32>
    %295 = arith.addf %277, %294 : vector<1x256xf32>
    %c24_91 = arith.constant 24 : index
    %296 = memref.load %arg7[%c24_91] : memref<98xf32, #tpu.memory_space<smem>>
    %cst_92 = arith.constant 0.000000e+00 : f32
    %297 = vector.broadcast %cst_92 : f32 to vector<1x30xf32>
    %298 = vector.extract_strided_slice %84 {offsets = [0, 0], sizes = [1, 226], strides = [1, 1]} : vector<1x256xf32> to vector<1x226xf32>
    %299 = tpu.concatenate %297, %298 in 1 : vector<1x30xf32>, vector<1x226xf32> -> vector<1x256xf32>
    %300 = vector.broadcast %296 : f32 to vector<1x256xf32>
    %301 = arith.mulf %300, %299 : vector<1x256xf32>
    %c25 = arith.constant 25 : index
    %302 = memref.load %arg7[%c25] : memref<98xf32, #tpu.memory_space<smem>>
    %cst_93 = arith.constant 0.000000e+00 : f32
    %303 = vector.broadcast %cst_93 : f32 to vector<1x30xf32>
    %304 = vector.extract_strided_slice %86 {offsets = [0, 0], sizes = [1, 226], strides = [1, 1]} : vector<1x256xf32> to vector<1x226xf32>
    %305 = tpu.concatenate %303, %304 in 1 : vector<1x30xf32>, vector<1x226xf32> -> vector<1x256xf32>
    %306 = vector.broadcast %302 : f32 to vector<1x256xf32>
    %307 = arith.mulf %306, %305 : vector<1x256xf32>
    %308 = arith.addf %301, %307 : vector<1x256xf32>
    %c13_i32_94 = arith.constant 13 : i32
    %309 = vector.broadcast %c13_i32_94 : i32 to vector<1x256xi32>
    %310 = arith.cmpi sle, %0, %309 : vector<1x256xi32>
    %cst_95 = arith.constant 0.000000e+00 : f32
    %311 = vector.broadcast %cst_95 : f32 to vector<1x256xf32>
    %312 = arith.select %310, %308, %311 : vector<1x256xi1>, vector<1x256xf32>
    %313 = arith.addf %295, %312 : vector<1x256xf32>
    %c26 = arith.constant 26 : index
    %314 = memref.load %arg7[%c26] : memref<98xf32, #tpu.memory_space<smem>>
    %cst_96 = arith.constant 0.000000e+00 : f32
    %315 = vector.broadcast %cst_96 : f32 to vector<1x29xf32>
    %316 = vector.extract_strided_slice %84 {offsets = [0, 0], sizes = [1, 227], strides = [1, 1]} : vector<1x256xf32> to vector<1x227xf32>
    %317 = tpu.concatenate %315, %316 in 1 : vector<1x29xf32>, vector<1x227xf32> -> vector<1x256xf32>
    %318 = vector.broadcast %314 : f32 to vector<1x256xf32>
    %319 = arith.mulf %318, %317 : vector<1x256xf32>
    %c27 = arith.constant 27 : index
    %320 = memref.load %arg7[%c27] : memref<98xf32, #tpu.memory_space<smem>>
    %cst_97 = arith.constant 0.000000e+00 : f32
    %321 = vector.broadcast %cst_97 : f32 to vector<1x29xf32>
    %322 = vector.extract_strided_slice %86 {offsets = [0, 0], sizes = [1, 227], strides = [1, 1]} : vector<1x256xf32> to vector<1x227xf32>
    %323 = tpu.concatenate %321, %322 in 1 : vector<1x29xf32>, vector<1x227xf32> -> vector<1x256xf32>
    %324 = vector.broadcast %320 : f32 to vector<1x256xf32>
    %325 = arith.mulf %324, %323 : vector<1x256xf32>
    %326 = arith.addf %319, %325 : vector<1x256xf32>
    %c12_i32_98 = arith.constant 12 : i32
    %327 = vector.broadcast %c12_i32_98 : i32 to vector<1x256xi32>
    %328 = arith.cmpi sle, %0, %327 : vector<1x256xi32>
    %cst_99 = arith.constant 0.000000e+00 : f32
    %329 = vector.broadcast %cst_99 : f32 to vector<1x256xf32>
    %330 = arith.select %328, %326, %329 : vector<1x256xi1>, vector<1x256xf32>
    %331 = arith.addf %313, %330 : vector<1x256xf32>
    %c28_100 = arith.constant 28 : index
    %332 = memref.load %arg7[%c28_100] : memref<98xf32, #tpu.memory_space<smem>>
    %cst_101 = arith.constant 0.000000e+00 : f32
    %333 = vector.broadcast %cst_101 : f32 to vector<1x19xf32>
    %334 = vector.extract_strided_slice %84 {offsets = [0, 0], sizes = [1, 237], strides = [1, 1]} : vector<1x256xf32> to vector<1x237xf32>
    %335 = tpu.concatenate %333, %334 in 1 : vector<1x19xf32>, vector<1x237xf32> -> vector<1x256xf32>
    %336 = vector.broadcast %332 : f32 to vector<1x256xf32>
    %337 = arith.mulf %336, %335 : vector<1x256xf32>
    %c29 = arith.constant 29 : index
    %338 = memref.load %arg7[%c29] : memref<98xf32, #tpu.memory_space<smem>>
    %cst_102 = arith.constant 0.000000e+00 : f32
    %339 = vector.broadcast %cst_102 : f32 to vector<1x19xf32>
    %340 = vector.extract_strided_slice %86 {offsets = [0, 0], sizes = [1, 237], strides = [1, 1]} : vector<1x256xf32> to vector<1x237xf32>
    %341 = tpu.concatenate %339, %340 in 1 : vector<1x19xf32>, vector<1x237xf32> -> vector<1x256xf32>
    %342 = vector.broadcast %338 : f32 to vector<1x256xf32>
    %343 = arith.mulf %342, %341 : vector<1x256xf32>
    %344 = arith.addf %337, %343 : vector<1x256xf32>
    %c3_i32_103 = arith.constant 3 : i32
    %345 = vector.broadcast %c3_i32_103 : i32 to vector<1x256xi32>
    %346 = arith.cmpi sge, %0, %345 : vector<1x256xi32>
    %cst_104 = arith.constant 0.000000e+00 : f32
    %347 = vector.broadcast %cst_104 : f32 to vector<1x256xf32>
    %348 = arith.select %346, %344, %347 : vector<1x256xi1>, vector<1x256xf32>
    %349 = arith.addf %331, %348 : vector<1x256xf32>
    %c30 = arith.constant 30 : index
    %350 = memref.load %arg7[%c30] : memref<98xf32, #tpu.memory_space<smem>>
    %cst_105 = arith.constant 0.000000e+00 : f32
    %351 = vector.broadcast %cst_105 : f32 to vector<1x18xf32>
    %352 = vector.extract_strided_slice %84 {offsets = [0, 0], sizes = [1, 238], strides = [1, 1]} : vector<1x256xf32> to vector<1x238xf32>
    %353 = tpu.concatenate %351, %352 in 1 : vector<1x18xf32>, vector<1x238xf32> -> vector<1x256xf32>
    %354 = vector.broadcast %350 : f32 to vector<1x256xf32>
    %355 = arith.mulf %354, %353 : vector<1x256xf32>
    %c31 = arith.constant 31 : index
    %356 = memref.load %arg7[%c31] : memref<98xf32, #tpu.memory_space<smem>>
    %cst_106 = arith.constant 0.000000e+00 : f32
    %357 = vector.broadcast %cst_106 : f32 to vector<1x18xf32>
    %358 = vector.extract_strided_slice %86 {offsets = [0, 0], sizes = [1, 238], strides = [1, 1]} : vector<1x256xf32> to vector<1x238xf32>
    %359 = tpu.concatenate %357, %358 in 1 : vector<1x18xf32>, vector<1x238xf32> -> vector<1x256xf32>
    %360 = vector.broadcast %356 : f32 to vector<1x256xf32>
    %361 = arith.mulf %360, %359 : vector<1x256xf32>
    %362 = arith.addf %355, %361 : vector<1x256xf32>
    %c2_i32_107 = arith.constant 2 : i32
    %363 = vector.broadcast %c2_i32_107 : i32 to vector<1x256xi32>
    %364 = arith.cmpi sge, %0, %363 : vector<1x256xi32>
    %cst_108 = arith.constant 0.000000e+00 : f32
    %365 = vector.broadcast %cst_108 : f32 to vector<1x256xf32>
    %366 = arith.select %364, %362, %365 : vector<1x256xi1>, vector<1x256xf32>
    %367 = arith.addf %349, %366 : vector<1x256xf32>
    %c32_109 = arith.constant 32 : index
    %368 = memref.load %arg7[%c32_109] : memref<98xf32, #tpu.memory_space<smem>>
    %cst_110 = arith.constant 0.000000e+00 : f32
    %369 = vector.broadcast %cst_110 : f32 to vector<1x17xf32>
    %370 = vector.extract_strided_slice %84 {offsets = [0, 0], sizes = [1, 239], strides = [1, 1]} : vector<1x256xf32> to vector<1x239xf32>
    %371 = tpu.concatenate %369, %370 in 1 : vector<1x17xf32>, vector<1x239xf32> -> vector<1x256xf32>
    %372 = vector.broadcast %368 : f32 to vector<1x256xf32>
    %373 = arith.mulf %372, %371 : vector<1x256xf32>
    %c33 = arith.constant 33 : index
    %374 = memref.load %arg7[%c33] : memref<98xf32, #tpu.memory_space<smem>>
    %cst_111 = arith.constant 0.000000e+00 : f32
    %375 = vector.broadcast %cst_111 : f32 to vector<1x17xf32>
    %376 = vector.extract_strided_slice %86 {offsets = [0, 0], sizes = [1, 239], strides = [1, 1]} : vector<1x256xf32> to vector<1x239xf32>
    %377 = tpu.concatenate %375, %376 in 1 : vector<1x17xf32>, vector<1x239xf32> -> vector<1x256xf32>
    %378 = vector.broadcast %374 : f32 to vector<1x256xf32>
    %379 = arith.mulf %378, %377 : vector<1x256xf32>
    %380 = arith.addf %373, %379 : vector<1x256xf32>
    %c1_i32_112 = arith.constant 1 : i32
    %381 = vector.broadcast %c1_i32_112 : i32 to vector<1x256xi32>
    %382 = arith.cmpi sge, %0, %381 : vector<1x256xi32>
    %cst_113 = arith.constant 0.000000e+00 : f32
    %383 = vector.broadcast %cst_113 : f32 to vector<1x256xf32>
    %384 = arith.select %382, %380, %383 : vector<1x256xi1>, vector<1x256xf32>
    %385 = arith.addf %367, %384 : vector<1x256xf32>
    %c34 = arith.constant 34 : index
    %386 = memref.load %arg7[%c34] : memref<98xf32, #tpu.memory_space<smem>>
    %cst_114 = arith.constant 0.000000e+00 : f32
    %387 = vector.broadcast %cst_114 : f32 to vector<1x16xf32>
    %388 = vector.extract_strided_slice %84 {offsets = [0, 0], sizes = [1, 240], strides = [1, 1]} : vector<1x256xf32> to vector<1x240xf32>
    %389 = tpu.concatenate %387, %388 in 1 : vector<1x16xf32>, vector<1x240xf32> -> vector<1x256xf32>
    %390 = vector.broadcast %386 : f32 to vector<1x256xf32>
    %391 = arith.mulf %390, %389 : vector<1x256xf32>
    %c35 = arith.constant 35 : index
    %392 = memref.load %arg7[%c35] : memref<98xf32, #tpu.memory_space<smem>>
    %cst_115 = arith.constant 0.000000e+00 : f32
    %393 = vector.broadcast %cst_115 : f32 to vector<1x16xf32>
    %394 = vector.extract_strided_slice %86 {offsets = [0, 0], sizes = [1, 240], strides = [1, 1]} : vector<1x256xf32> to vector<1x240xf32>
    %395 = tpu.concatenate %393, %394 in 1 : vector<1x16xf32>, vector<1x240xf32> -> vector<1x256xf32>
    %396 = vector.broadcast %392 : f32 to vector<1x256xf32>
    %397 = arith.mulf %396, %395 : vector<1x256xf32>
    %398 = arith.addf %391, %397 : vector<1x256xf32>
    %399 = arith.addf %385, %398 : vector<1x256xf32>
    %c36 = arith.constant 36 : index
    %400 = memref.load %arg7[%c36] : memref<98xf32, #tpu.memory_space<smem>>
    %cst_116 = arith.constant 0.000000e+00 : f32
    %401 = vector.broadcast %cst_116 : f32 to vector<1x15xf32>
    %402 = vector.extract_strided_slice %84 {offsets = [0, 0], sizes = [1, 241], strides = [1, 1]} : vector<1x256xf32> to vector<1x241xf32>
    %403 = tpu.concatenate %401, %402 in 1 : vector<1x15xf32>, vector<1x241xf32> -> vector<1x256xf32>
    %404 = vector.broadcast %400 : f32 to vector<1x256xf32>
    %405 = arith.mulf %404, %403 : vector<1x256xf32>
    %c37 = arith.constant 37 : index
    %406 = memref.load %arg7[%c37] : memref<98xf32, #tpu.memory_space<smem>>
    %cst_117 = arith.constant 0.000000e+00 : f32
    %407 = vector.broadcast %cst_117 : f32 to vector<1x15xf32>
    %408 = vector.extract_strided_slice %86 {offsets = [0, 0], sizes = [1, 241], strides = [1, 1]} : vector<1x256xf32> to vector<1x241xf32>
    %409 = tpu.concatenate %407, %408 in 1 : vector<1x15xf32>, vector<1x241xf32> -> vector<1x256xf32>
    %410 = vector.broadcast %406 : f32 to vector<1x256xf32>
    %411 = arith.mulf %410, %409 : vector<1x256xf32>
    %412 = arith.addf %405, %411 : vector<1x256xf32>
    %c14_i32_118 = arith.constant 14 : i32
    %413 = vector.broadcast %c14_i32_118 : i32 to vector<1x256xi32>
    %414 = arith.cmpi sle, %0, %413 : vector<1x256xi32>
    %cst_119 = arith.constant 0.000000e+00 : f32
    %415 = vector.broadcast %cst_119 : f32 to vector<1x256xf32>
    %416 = arith.select %414, %412, %415 : vector<1x256xi1>, vector<1x256xf32>
    %417 = arith.addf %399, %416 : vector<1x256xf32>
    %c38 = arith.constant 38 : index
    %418 = memref.load %arg7[%c38] : memref<98xf32, #tpu.memory_space<smem>>
    %cst_120 = arith.constant 0.000000e+00 : f32
    %419 = vector.broadcast %cst_120 : f32 to vector<1x14xf32>
    %420 = vector.extract_strided_slice %84 {offsets = [0, 0], sizes = [1, 242], strides = [1, 1]} : vector<1x256xf32> to vector<1x242xf32>
    %421 = tpu.concatenate %419, %420 in 1 : vector<1x14xf32>, vector<1x242xf32> -> vector<1x256xf32>
    %422 = vector.broadcast %418 : f32 to vector<1x256xf32>
    %423 = arith.mulf %422, %421 : vector<1x256xf32>
    %c39 = arith.constant 39 : index
    %424 = memref.load %arg7[%c39] : memref<98xf32, #tpu.memory_space<smem>>
    %cst_121 = arith.constant 0.000000e+00 : f32
    %425 = vector.broadcast %cst_121 : f32 to vector<1x14xf32>
    %426 = vector.extract_strided_slice %86 {offsets = [0, 0], sizes = [1, 242], strides = [1, 1]} : vector<1x256xf32> to vector<1x242xf32>
    %427 = tpu.concatenate %425, %426 in 1 : vector<1x14xf32>, vector<1x242xf32> -> vector<1x256xf32>
    %428 = vector.broadcast %424 : f32 to vector<1x256xf32>
    %429 = arith.mulf %428, %427 : vector<1x256xf32>
    %430 = arith.addf %423, %429 : vector<1x256xf32>
    %c13_i32_122 = arith.constant 13 : i32
    %431 = vector.broadcast %c13_i32_122 : i32 to vector<1x256xi32>
    %432 = arith.cmpi sle, %0, %431 : vector<1x256xi32>
    %cst_123 = arith.constant 0.000000e+00 : f32
    %433 = vector.broadcast %cst_123 : f32 to vector<1x256xf32>
    %434 = arith.select %432, %430, %433 : vector<1x256xi1>, vector<1x256xf32>
    %435 = arith.addf %417, %434 : vector<1x256xf32>
    %c40 = arith.constant 40 : index
    %436 = memref.load %arg7[%c40] : memref<98xf32, #tpu.memory_space<smem>>
    %cst_124 = arith.constant 0.000000e+00 : f32
    %437 = vector.broadcast %cst_124 : f32 to vector<1x13xf32>
    %438 = vector.extract_strided_slice %84 {offsets = [0, 0], sizes = [1, 243], strides = [1, 1]} : vector<1x256xf32> to vector<1x243xf32>
    %439 = tpu.concatenate %437, %438 in 1 : vector<1x13xf32>, vector<1x243xf32> -> vector<1x256xf32>
    %440 = vector.broadcast %436 : f32 to vector<1x256xf32>
    %441 = arith.mulf %440, %439 : vector<1x256xf32>
    %c41 = arith.constant 41 : index
    %442 = memref.load %arg7[%c41] : memref<98xf32, #tpu.memory_space<smem>>
    %cst_125 = arith.constant 0.000000e+00 : f32
    %443 = vector.broadcast %cst_125 : f32 to vector<1x13xf32>
    %444 = vector.extract_strided_slice %86 {offsets = [0, 0], sizes = [1, 243], strides = [1, 1]} : vector<1x256xf32> to vector<1x243xf32>
    %445 = tpu.concatenate %443, %444 in 1 : vector<1x13xf32>, vector<1x243xf32> -> vector<1x256xf32>
    %446 = vector.broadcast %442 : f32 to vector<1x256xf32>
    %447 = arith.mulf %446, %445 : vector<1x256xf32>
    %448 = arith.addf %441, %447 : vector<1x256xf32>
    %c12_i32_126 = arith.constant 12 : i32
    %449 = vector.broadcast %c12_i32_126 : i32 to vector<1x256xi32>
    %450 = arith.cmpi sle, %0, %449 : vector<1x256xi32>
    %cst_127 = arith.constant 0.000000e+00 : f32
    %451 = vector.broadcast %cst_127 : f32 to vector<1x256xf32>
    %452 = arith.select %450, %448, %451 : vector<1x256xi1>, vector<1x256xf32>
    %453 = arith.addf %435, %452 : vector<1x256xf32>
    %c42 = arith.constant 42 : index
    %454 = memref.load %arg7[%c42] : memref<98xf32, #tpu.memory_space<smem>>
    %cst_128 = arith.constant 0.000000e+00 : f32
    %455 = vector.broadcast %cst_128 : f32 to vector<1x3xf32>
    %456 = vector.extract_strided_slice %84 {offsets = [0, 0], sizes = [1, 253], strides = [1, 1]} : vector<1x256xf32> to vector<1x253xf32>
    %457 = tpu.concatenate %455, %456 in 1 : vector<1x3xf32>, vector<1x253xf32> -> vector<1x256xf32>
    %458 = vector.broadcast %454 : f32 to vector<1x256xf32>
    %459 = arith.mulf %458, %457 : vector<1x256xf32>
    %c43 = arith.constant 43 : index
    %460 = memref.load %arg7[%c43] : memref<98xf32, #tpu.memory_space<smem>>
    %cst_129 = arith.constant 0.000000e+00 : f32
    %461 = vector.broadcast %cst_129 : f32 to vector<1x3xf32>
    %462 = vector.extract_strided_slice %86 {offsets = [0, 0], sizes = [1, 253], strides = [1, 1]} : vector<1x256xf32> to vector<1x253xf32>
    %463 = tpu.concatenate %461, %462 in 1 : vector<1x3xf32>, vector<1x253xf32> -> vector<1x256xf32>
    %464 = vector.broadcast %460 : f32 to vector<1x256xf32>
    %465 = arith.mulf %464, %463 : vector<1x256xf32>
    %466 = arith.addf %459, %465 : vector<1x256xf32>
    %c3_i32_130 = arith.constant 3 : i32
    %467 = vector.broadcast %c3_i32_130 : i32 to vector<1x256xi32>
    %468 = arith.cmpi sge, %0, %467 : vector<1x256xi32>
    %cst_131 = arith.constant 0.000000e+00 : f32
    %469 = vector.broadcast %cst_131 : f32 to vector<1x256xf32>
    %470 = arith.select %468, %466, %469 : vector<1x256xi1>, vector<1x256xf32>
    %471 = arith.addf %453, %470 : vector<1x256xf32>
    %c44 = arith.constant 44 : index
    %472 = memref.load %arg7[%c44] : memref<98xf32, #tpu.memory_space<smem>>
    %cst_132 = arith.constant 0.000000e+00 : f32
    %473 = vector.broadcast %cst_132 : f32 to vector<1x2xf32>
    %474 = vector.extract_strided_slice %84 {offsets = [0, 0], sizes = [1, 254], strides = [1, 1]} : vector<1x256xf32> to vector<1x254xf32>
    %475 = tpu.concatenate %473, %474 in 1 : vector<1x2xf32>, vector<1x254xf32> -> vector<1x256xf32>
    %476 = vector.broadcast %472 : f32 to vector<1x256xf32>
    %477 = arith.mulf %476, %475 : vector<1x256xf32>
    %c45 = arith.constant 45 : index
    %478 = memref.load %arg7[%c45] : memref<98xf32, #tpu.memory_space<smem>>
    %cst_133 = arith.constant 0.000000e+00 : f32
    %479 = vector.broadcast %cst_133 : f32 to vector<1x2xf32>
    %480 = vector.extract_strided_slice %86 {offsets = [0, 0], sizes = [1, 254], strides = [1, 1]} : vector<1x256xf32> to vector<1x254xf32>
    %481 = tpu.concatenate %479, %480 in 1 : vector<1x2xf32>, vector<1x254xf32> -> vector<1x256xf32>
    %482 = vector.broadcast %478 : f32 to vector<1x256xf32>
    %483 = arith.mulf %482, %481 : vector<1x256xf32>
    %484 = arith.addf %477, %483 : vector<1x256xf32>
    %c2_i32_134 = arith.constant 2 : i32
    %485 = vector.broadcast %c2_i32_134 : i32 to vector<1x256xi32>
    %486 = arith.cmpi sge, %0, %485 : vector<1x256xi32>
    %cst_135 = arith.constant 0.000000e+00 : f32
    %487 = vector.broadcast %cst_135 : f32 to vector<1x256xf32>
    %488 = arith.select %486, %484, %487 : vector<1x256xi1>, vector<1x256xf32>
    %489 = arith.addf %471, %488 : vector<1x256xf32>
    %c46 = arith.constant 46 : index
    %490 = memref.load %arg7[%c46] : memref<98xf32, #tpu.memory_space<smem>>
    %cst_136 = arith.constant 0.000000e+00 : f32
    %491 = vector.broadcast %cst_136 : f32 to vector<1x1xf32>
    %492 = vector.extract_strided_slice %84 {offsets = [0, 0], sizes = [1, 255], strides = [1, 1]} : vector<1x256xf32> to vector<1x255xf32>
    %493 = tpu.concatenate %491, %492 in 1 : vector<1x1xf32>, vector<1x255xf32> -> vector<1x256xf32>
    %494 = vector.broadcast %490 : f32 to vector<1x256xf32>
    %495 = arith.mulf %494, %493 : vector<1x256xf32>
    %c47 = arith.constant 47 : index
    %496 = memref.load %arg7[%c47] : memref<98xf32, #tpu.memory_space<smem>>
    %cst_137 = arith.constant 0.000000e+00 : f32
    %497 = vector.broadcast %cst_137 : f32 to vector<1x1xf32>
    %498 = vector.extract_strided_slice %86 {offsets = [0, 0], sizes = [1, 255], strides = [1, 1]} : vector<1x256xf32> to vector<1x255xf32>
    %499 = tpu.concatenate %497, %498 in 1 : vector<1x1xf32>, vector<1x255xf32> -> vector<1x256xf32>
    %500 = vector.broadcast %496 : f32 to vector<1x256xf32>
    %501 = arith.mulf %500, %499 : vector<1x256xf32>
    %502 = arith.addf %495, %501 : vector<1x256xf32>
    %c1_i32_138 = arith.constant 1 : i32
    %503 = vector.broadcast %c1_i32_138 : i32 to vector<1x256xi32>
    %504 = arith.cmpi sge, %0, %503 : vector<1x256xi32>
    %cst_139 = arith.constant 0.000000e+00 : f32
    %505 = vector.broadcast %cst_139 : f32 to vector<1x256xf32>
    %506 = arith.select %504, %502, %505 : vector<1x256xi1>, vector<1x256xf32>
    %507 = arith.addf %489, %506 : vector<1x256xf32>
    %c48 = arith.constant 48 : index
    %508 = memref.load %arg7[%c48] : memref<98xf32, #tpu.memory_space<smem>>
    %509 = vector.broadcast %508 : f32 to vector<1x256xf32>
    %510 = arith.mulf %509, %84 : vector<1x256xf32>
    %c49 = arith.constant 49 : index
    %511 = memref.load %arg7[%c49] : memref<98xf32, #tpu.memory_space<smem>>
    %512 = vector.broadcast %511 : f32 to vector<1x256xf32>
    %513 = arith.mulf %512, %86 : vector<1x256xf32>
    %514 = arith.addf %510, %513 : vector<1x256xf32>
    %515 = arith.addf %507, %514 : vector<1x256xf32>
    %c50 = arith.constant 50 : index
    %516 = memref.load %arg7[%c50] : memref<98xf32, #tpu.memory_space<smem>>
    %cst_140 = arith.constant 0.000000e+00 : f32
    %517 = vector.broadcast %cst_140 : f32 to vector<1x1xf32>
    %518 = vector.extract_strided_slice %84 {offsets = [0, 1], sizes = [1, 255], strides = [1, 1]} : vector<1x256xf32> to vector<1x255xf32>
    %519 = tpu.concatenate %518, %517 in 1 : vector<1x255xf32>, vector<1x1xf32> -> vector<1x256xf32>
    %520 = vector.broadcast %516 : f32 to vector<1x256xf32>
    %521 = arith.mulf %520, %519 : vector<1x256xf32>
    %c51 = arith.constant 51 : index
    %522 = memref.load %arg7[%c51] : memref<98xf32, #tpu.memory_space<smem>>
    %cst_141 = arith.constant 0.000000e+00 : f32
    %523 = vector.broadcast %cst_141 : f32 to vector<1x1xf32>
    %524 = vector.extract_strided_slice %86 {offsets = [0, 1], sizes = [1, 255], strides = [1, 1]} : vector<1x256xf32> to vector<1x255xf32>
    %525 = tpu.concatenate %524, %523 in 1 : vector<1x255xf32>, vector<1x1xf32> -> vector<1x256xf32>
    %526 = vector.broadcast %522 : f32 to vector<1x256xf32>
    %527 = arith.mulf %526, %525 : vector<1x256xf32>
    %528 = arith.addf %521, %527 : vector<1x256xf32>
    %c14_i32_142 = arith.constant 14 : i32
    %529 = vector.broadcast %c14_i32_142 : i32 to vector<1x256xi32>
    %530 = arith.cmpi sle, %0, %529 : vector<1x256xi32>
    %cst_143 = arith.constant 0.000000e+00 : f32
    %531 = vector.broadcast %cst_143 : f32 to vector<1x256xf32>
    %532 = arith.select %530, %528, %531 : vector<1x256xi1>, vector<1x256xf32>
    %533 = arith.addf %515, %532 : vector<1x256xf32>
    %c52 = arith.constant 52 : index
    %534 = memref.load %arg7[%c52] : memref<98xf32, #tpu.memory_space<smem>>
    %cst_144 = arith.constant 0.000000e+00 : f32
    %535 = vector.broadcast %cst_144 : f32 to vector<1x2xf32>
    %536 = vector.extract_strided_slice %84 {offsets = [0, 2], sizes = [1, 254], strides = [1, 1]} : vector<1x256xf32> to vector<1x254xf32>
    %537 = tpu.concatenate %536, %535 in 1 : vector<1x254xf32>, vector<1x2xf32> -> vector<1x256xf32>
    %538 = vector.broadcast %534 : f32 to vector<1x256xf32>
    %539 = arith.mulf %538, %537 : vector<1x256xf32>
    %c53 = arith.constant 53 : index
    %540 = memref.load %arg7[%c53] : memref<98xf32, #tpu.memory_space<smem>>
    %cst_145 = arith.constant 0.000000e+00 : f32
    %541 = vector.broadcast %cst_145 : f32 to vector<1x2xf32>
    %542 = vector.extract_strided_slice %86 {offsets = [0, 2], sizes = [1, 254], strides = [1, 1]} : vector<1x256xf32> to vector<1x254xf32>
    %543 = tpu.concatenate %542, %541 in 1 : vector<1x254xf32>, vector<1x2xf32> -> vector<1x256xf32>
    %544 = vector.broadcast %540 : f32 to vector<1x256xf32>
    %545 = arith.mulf %544, %543 : vector<1x256xf32>
    %546 = arith.addf %539, %545 : vector<1x256xf32>
    %c13_i32_146 = arith.constant 13 : i32
    %547 = vector.broadcast %c13_i32_146 : i32 to vector<1x256xi32>
    %548 = arith.cmpi sle, %0, %547 : vector<1x256xi32>
    %cst_147 = arith.constant 0.000000e+00 : f32
    %549 = vector.broadcast %cst_147 : f32 to vector<1x256xf32>
    %550 = arith.select %548, %546, %549 : vector<1x256xi1>, vector<1x256xf32>
    %551 = arith.addf %533, %550 : vector<1x256xf32>
    %c54 = arith.constant 54 : index
    %552 = memref.load %arg7[%c54] : memref<98xf32, #tpu.memory_space<smem>>
    %cst_148 = arith.constant 0.000000e+00 : f32
    %553 = vector.broadcast %cst_148 : f32 to vector<1x3xf32>
    %554 = vector.extract_strided_slice %84 {offsets = [0, 3], sizes = [1, 253], strides = [1, 1]} : vector<1x256xf32> to vector<1x253xf32>
    %555 = tpu.concatenate %554, %553 in 1 : vector<1x253xf32>, vector<1x3xf32> -> vector<1x256xf32>
    %556 = vector.broadcast %552 : f32 to vector<1x256xf32>
    %557 = arith.mulf %556, %555 : vector<1x256xf32>
    %c55 = arith.constant 55 : index
    %558 = memref.load %arg7[%c55] : memref<98xf32, #tpu.memory_space<smem>>
    %cst_149 = arith.constant 0.000000e+00 : f32
    %559 = vector.broadcast %cst_149 : f32 to vector<1x3xf32>
    %560 = vector.extract_strided_slice %86 {offsets = [0, 3], sizes = [1, 253], strides = [1, 1]} : vector<1x256xf32> to vector<1x253xf32>
    %561 = tpu.concatenate %560, %559 in 1 : vector<1x253xf32>, vector<1x3xf32> -> vector<1x256xf32>
    %562 = vector.broadcast %558 : f32 to vector<1x256xf32>
    %563 = arith.mulf %562, %561 : vector<1x256xf32>
    %564 = arith.addf %557, %563 : vector<1x256xf32>
    %c12_i32_150 = arith.constant 12 : i32
    %565 = vector.broadcast %c12_i32_150 : i32 to vector<1x256xi32>
    %566 = arith.cmpi sle, %0, %565 : vector<1x256xi32>
    %cst_151 = arith.constant 0.000000e+00 : f32
    %567 = vector.broadcast %cst_151 : f32 to vector<1x256xf32>
    %568 = arith.select %566, %564, %567 : vector<1x256xi1>, vector<1x256xf32>
    %569 = arith.addf %551, %568 : vector<1x256xf32>
    %c56 = arith.constant 56 : index
    %570 = memref.load %arg7[%c56] : memref<98xf32, #tpu.memory_space<smem>>
    %cst_152 = arith.constant 0.000000e+00 : f32
    %571 = vector.broadcast %cst_152 : f32 to vector<1x13xf32>
    %572 = vector.extract_strided_slice %84 {offsets = [0, 13], sizes = [1, 243], strides = [1, 1]} : vector<1x256xf32> to vector<1x243xf32>
    %573 = tpu.concatenate %572, %571 in 1 : vector<1x243xf32>, vector<1x13xf32> -> vector<1x256xf32>
    %574 = vector.broadcast %570 : f32 to vector<1x256xf32>
    %575 = arith.mulf %574, %573 : vector<1x256xf32>
    %c57 = arith.constant 57 : index
    %576 = memref.load %arg7[%c57] : memref<98xf32, #tpu.memory_space<smem>>
    %cst_153 = arith.constant 0.000000e+00 : f32
    %577 = vector.broadcast %cst_153 : f32 to vector<1x13xf32>
    %578 = vector.extract_strided_slice %86 {offsets = [0, 13], sizes = [1, 243], strides = [1, 1]} : vector<1x256xf32> to vector<1x243xf32>
    %579 = tpu.concatenate %578, %577 in 1 : vector<1x243xf32>, vector<1x13xf32> -> vector<1x256xf32>
    %580 = vector.broadcast %576 : f32 to vector<1x256xf32>
    %581 = arith.mulf %580, %579 : vector<1x256xf32>
    %582 = arith.addf %575, %581 : vector<1x256xf32>
    %c3_i32_154 = arith.constant 3 : i32
    %583 = vector.broadcast %c3_i32_154 : i32 to vector<1x256xi32>
    %584 = arith.cmpi sge, %0, %583 : vector<1x256xi32>
    %cst_155 = arith.constant 0.000000e+00 : f32
    %585 = vector.broadcast %cst_155 : f32 to vector<1x256xf32>
    %586 = arith.select %584, %582, %585 : vector<1x256xi1>, vector<1x256xf32>
    %587 = arith.addf %569, %586 : vector<1x256xf32>
    %c58 = arith.constant 58 : index
    %588 = memref.load %arg7[%c58] : memref<98xf32, #tpu.memory_space<smem>>
    %cst_156 = arith.constant 0.000000e+00 : f32
    %589 = vector.broadcast %cst_156 : f32 to vector<1x14xf32>
    %590 = vector.extract_strided_slice %84 {offsets = [0, 14], sizes = [1, 242], strides = [1, 1]} : vector<1x256xf32> to vector<1x242xf32>
    %591 = tpu.concatenate %590, %589 in 1 : vector<1x242xf32>, vector<1x14xf32> -> vector<1x256xf32>
    %592 = vector.broadcast %588 : f32 to vector<1x256xf32>
    %593 = arith.mulf %592, %591 : vector<1x256xf32>
    %c59 = arith.constant 59 : index
    %594 = memref.load %arg7[%c59] : memref<98xf32, #tpu.memory_space<smem>>
    %cst_157 = arith.constant 0.000000e+00 : f32
    %595 = vector.broadcast %cst_157 : f32 to vector<1x14xf32>
    %596 = vector.extract_strided_slice %86 {offsets = [0, 14], sizes = [1, 242], strides = [1, 1]} : vector<1x256xf32> to vector<1x242xf32>
    %597 = tpu.concatenate %596, %595 in 1 : vector<1x242xf32>, vector<1x14xf32> -> vector<1x256xf32>
    %598 = vector.broadcast %594 : f32 to vector<1x256xf32>
    %599 = arith.mulf %598, %597 : vector<1x256xf32>
    %600 = arith.addf %593, %599 : vector<1x256xf32>
    %c2_i32_158 = arith.constant 2 : i32
    %601 = vector.broadcast %c2_i32_158 : i32 to vector<1x256xi32>
    %602 = arith.cmpi sge, %0, %601 : vector<1x256xi32>
    %cst_159 = arith.constant 0.000000e+00 : f32
    %603 = vector.broadcast %cst_159 : f32 to vector<1x256xf32>
    %604 = arith.select %602, %600, %603 : vector<1x256xi1>, vector<1x256xf32>
    %605 = arith.addf %587, %604 : vector<1x256xf32>
    %c60 = arith.constant 60 : index
    %606 = memref.load %arg7[%c60] : memref<98xf32, #tpu.memory_space<smem>>
    %cst_160 = arith.constant 0.000000e+00 : f32
    %607 = vector.broadcast %cst_160 : f32 to vector<1x15xf32>
    %608 = vector.extract_strided_slice %84 {offsets = [0, 15], sizes = [1, 241], strides = [1, 1]} : vector<1x256xf32> to vector<1x241xf32>
    %609 = tpu.concatenate %608, %607 in 1 : vector<1x241xf32>, vector<1x15xf32> -> vector<1x256xf32>
    %610 = vector.broadcast %606 : f32 to vector<1x256xf32>
    %611 = arith.mulf %610, %609 : vector<1x256xf32>
    %c61 = arith.constant 61 : index
    %612 = memref.load %arg7[%c61] : memref<98xf32, #tpu.memory_space<smem>>
    %cst_161 = arith.constant 0.000000e+00 : f32
    %613 = vector.broadcast %cst_161 : f32 to vector<1x15xf32>
    %614 = vector.extract_strided_slice %86 {offsets = [0, 15], sizes = [1, 241], strides = [1, 1]} : vector<1x256xf32> to vector<1x241xf32>
    %615 = tpu.concatenate %614, %613 in 1 : vector<1x241xf32>, vector<1x15xf32> -> vector<1x256xf32>
    %616 = vector.broadcast %612 : f32 to vector<1x256xf32>
    %617 = arith.mulf %616, %615 : vector<1x256xf32>
    %618 = arith.addf %611, %617 : vector<1x256xf32>
    %c1_i32_162 = arith.constant 1 : i32
    %619 = vector.broadcast %c1_i32_162 : i32 to vector<1x256xi32>
    %620 = arith.cmpi sge, %0, %619 : vector<1x256xi32>
    %cst_163 = arith.constant 0.000000e+00 : f32
    %621 = vector.broadcast %cst_163 : f32 to vector<1x256xf32>
    %622 = arith.select %620, %618, %621 : vector<1x256xi1>, vector<1x256xf32>
    %623 = arith.addf %605, %622 : vector<1x256xf32>
    %c62 = arith.constant 62 : index
    %624 = memref.load %arg7[%c62] : memref<98xf32, #tpu.memory_space<smem>>
    %cst_164 = arith.constant 0.000000e+00 : f32
    %625 = vector.broadcast %cst_164 : f32 to vector<1x16xf32>
    %626 = vector.extract_strided_slice %84 {offsets = [0, 16], sizes = [1, 240], strides = [1, 1]} : vector<1x256xf32> to vector<1x240xf32>
    %627 = tpu.concatenate %626, %625 in 1 : vector<1x240xf32>, vector<1x16xf32> -> vector<1x256xf32>
    %628 = vector.broadcast %624 : f32 to vector<1x256xf32>
    %629 = arith.mulf %628, %627 : vector<1x256xf32>
    %c63 = arith.constant 63 : index
    %630 = memref.load %arg7[%c63] : memref<98xf32, #tpu.memory_space<smem>>
    %cst_165 = arith.constant 0.000000e+00 : f32
    %631 = vector.broadcast %cst_165 : f32 to vector<1x16xf32>
    %632 = vector.extract_strided_slice %86 {offsets = [0, 16], sizes = [1, 240], strides = [1, 1]} : vector<1x256xf32> to vector<1x240xf32>
    %633 = tpu.concatenate %632, %631 in 1 : vector<1x240xf32>, vector<1x16xf32> -> vector<1x256xf32>
    %634 = vector.broadcast %630 : f32 to vector<1x256xf32>
    %635 = arith.mulf %634, %633 : vector<1x256xf32>
    %636 = arith.addf %629, %635 : vector<1x256xf32>
    %637 = arith.addf %623, %636 : vector<1x256xf32>
    %c64 = arith.constant 64 : index
    %638 = memref.load %arg7[%c64] : memref<98xf32, #tpu.memory_space<smem>>
    %cst_166 = arith.constant 0.000000e+00 : f32
    %639 = vector.broadcast %cst_166 : f32 to vector<1x17xf32>
    %640 = vector.extract_strided_slice %84 {offsets = [0, 17], sizes = [1, 239], strides = [1, 1]} : vector<1x256xf32> to vector<1x239xf32>
    %641 = tpu.concatenate %640, %639 in 1 : vector<1x239xf32>, vector<1x17xf32> -> vector<1x256xf32>
    %642 = vector.broadcast %638 : f32 to vector<1x256xf32>
    %643 = arith.mulf %642, %641 : vector<1x256xf32>
    %c65 = arith.constant 65 : index
    %644 = memref.load %arg7[%c65] : memref<98xf32, #tpu.memory_space<smem>>
    %cst_167 = arith.constant 0.000000e+00 : f32
    %645 = vector.broadcast %cst_167 : f32 to vector<1x17xf32>
    %646 = vector.extract_strided_slice %86 {offsets = [0, 17], sizes = [1, 239], strides = [1, 1]} : vector<1x256xf32> to vector<1x239xf32>
    %647 = tpu.concatenate %646, %645 in 1 : vector<1x239xf32>, vector<1x17xf32> -> vector<1x256xf32>
    %648 = vector.broadcast %644 : f32 to vector<1x256xf32>
    %649 = arith.mulf %648, %647 : vector<1x256xf32>
    %650 = arith.addf %643, %649 : vector<1x256xf32>
    %c14_i32_168 = arith.constant 14 : i32
    %651 = vector.broadcast %c14_i32_168 : i32 to vector<1x256xi32>
    %652 = arith.cmpi sle, %0, %651 : vector<1x256xi32>
    %cst_169 = arith.constant 0.000000e+00 : f32
    %653 = vector.broadcast %cst_169 : f32 to vector<1x256xf32>
    %654 = arith.select %652, %650, %653 : vector<1x256xi1>, vector<1x256xf32>
    %655 = arith.addf %637, %654 : vector<1x256xf32>
    %c66 = arith.constant 66 : index
    %656 = memref.load %arg7[%c66] : memref<98xf32, #tpu.memory_space<smem>>
    %cst_170 = arith.constant 0.000000e+00 : f32
    %657 = vector.broadcast %cst_170 : f32 to vector<1x18xf32>
    %658 = vector.extract_strided_slice %84 {offsets = [0, 18], sizes = [1, 238], strides = [1, 1]} : vector<1x256xf32> to vector<1x238xf32>
    %659 = tpu.concatenate %658, %657 in 1 : vector<1x238xf32>, vector<1x18xf32> -> vector<1x256xf32>
    %660 = vector.broadcast %656 : f32 to vector<1x256xf32>
    %661 = arith.mulf %660, %659 : vector<1x256xf32>
    %c67 = arith.constant 67 : index
    %662 = memref.load %arg7[%c67] : memref<98xf32, #tpu.memory_space<smem>>
    %cst_171 = arith.constant 0.000000e+00 : f32
    %663 = vector.broadcast %cst_171 : f32 to vector<1x18xf32>
    %664 = vector.extract_strided_slice %86 {offsets = [0, 18], sizes = [1, 238], strides = [1, 1]} : vector<1x256xf32> to vector<1x238xf32>
    %665 = tpu.concatenate %664, %663 in 1 : vector<1x238xf32>, vector<1x18xf32> -> vector<1x256xf32>
    %666 = vector.broadcast %662 : f32 to vector<1x256xf32>
    %667 = arith.mulf %666, %665 : vector<1x256xf32>
    %668 = arith.addf %661, %667 : vector<1x256xf32>
    %c13_i32_172 = arith.constant 13 : i32
    %669 = vector.broadcast %c13_i32_172 : i32 to vector<1x256xi32>
    %670 = arith.cmpi sle, %0, %669 : vector<1x256xi32>
    %cst_173 = arith.constant 0.000000e+00 : f32
    %671 = vector.broadcast %cst_173 : f32 to vector<1x256xf32>
    %672 = arith.select %670, %668, %671 : vector<1x256xi1>, vector<1x256xf32>
    %673 = arith.addf %655, %672 : vector<1x256xf32>
    %c68 = arith.constant 68 : index
    %674 = memref.load %arg7[%c68] : memref<98xf32, #tpu.memory_space<smem>>
    %cst_174 = arith.constant 0.000000e+00 : f32
    %675 = vector.broadcast %cst_174 : f32 to vector<1x19xf32>
    %676 = vector.extract_strided_slice %84 {offsets = [0, 19], sizes = [1, 237], strides = [1, 1]} : vector<1x256xf32> to vector<1x237xf32>
    %677 = tpu.concatenate %676, %675 in 1 : vector<1x237xf32>, vector<1x19xf32> -> vector<1x256xf32>
    %678 = vector.broadcast %674 : f32 to vector<1x256xf32>
    %679 = arith.mulf %678, %677 : vector<1x256xf32>
    %c69 = arith.constant 69 : index
    %680 = memref.load %arg7[%c69] : memref<98xf32, #tpu.memory_space<smem>>
    %cst_175 = arith.constant 0.000000e+00 : f32
    %681 = vector.broadcast %cst_175 : f32 to vector<1x19xf32>
    %682 = vector.extract_strided_slice %86 {offsets = [0, 19], sizes = [1, 237], strides = [1, 1]} : vector<1x256xf32> to vector<1x237xf32>
    %683 = tpu.concatenate %682, %681 in 1 : vector<1x237xf32>, vector<1x19xf32> -> vector<1x256xf32>
    %684 = vector.broadcast %680 : f32 to vector<1x256xf32>
    %685 = arith.mulf %684, %683 : vector<1x256xf32>
    %686 = arith.addf %679, %685 : vector<1x256xf32>
    %c12_i32_176 = arith.constant 12 : i32
    %687 = vector.broadcast %c12_i32_176 : i32 to vector<1x256xi32>
    %688 = arith.cmpi sle, %0, %687 : vector<1x256xi32>
    %cst_177 = arith.constant 0.000000e+00 : f32
    %689 = vector.broadcast %cst_177 : f32 to vector<1x256xf32>
    %690 = arith.select %688, %686, %689 : vector<1x256xi1>, vector<1x256xf32>
    %691 = arith.addf %673, %690 : vector<1x256xf32>
    %c70 = arith.constant 70 : index
    %692 = memref.load %arg7[%c70] : memref<98xf32, #tpu.memory_space<smem>>
    %cst_178 = arith.constant 0.000000e+00 : f32
    %693 = vector.broadcast %cst_178 : f32 to vector<1x29xf32>
    %694 = vector.extract_strided_slice %84 {offsets = [0, 29], sizes = [1, 227], strides = [1, 1]} : vector<1x256xf32> to vector<1x227xf32>
    %695 = tpu.concatenate %694, %693 in 1 : vector<1x227xf32>, vector<1x29xf32> -> vector<1x256xf32>
    %696 = vector.broadcast %692 : f32 to vector<1x256xf32>
    %697 = arith.mulf %696, %695 : vector<1x256xf32>
    %c71 = arith.constant 71 : index
    %698 = memref.load %arg7[%c71] : memref<98xf32, #tpu.memory_space<smem>>
    %cst_179 = arith.constant 0.000000e+00 : f32
    %699 = vector.broadcast %cst_179 : f32 to vector<1x29xf32>
    %700 = vector.extract_strided_slice %86 {offsets = [0, 29], sizes = [1, 227], strides = [1, 1]} : vector<1x256xf32> to vector<1x227xf32>
    %701 = tpu.concatenate %700, %699 in 1 : vector<1x227xf32>, vector<1x29xf32> -> vector<1x256xf32>
    %702 = vector.broadcast %698 : f32 to vector<1x256xf32>
    %703 = arith.mulf %702, %701 : vector<1x256xf32>
    %704 = arith.addf %697, %703 : vector<1x256xf32>
    %c3_i32_180 = arith.constant 3 : i32
    %705 = vector.broadcast %c3_i32_180 : i32 to vector<1x256xi32>
    %706 = arith.cmpi sge, %0, %705 : vector<1x256xi32>
    %cst_181 = arith.constant 0.000000e+00 : f32
    %707 = vector.broadcast %cst_181 : f32 to vector<1x256xf32>
    %708 = arith.select %706, %704, %707 : vector<1x256xi1>, vector<1x256xf32>
    %709 = arith.addf %691, %708 : vector<1x256xf32>
    %c72 = arith.constant 72 : index
    %710 = memref.load %arg7[%c72] : memref<98xf32, #tpu.memory_space<smem>>
    %cst_182 = arith.constant 0.000000e+00 : f32
    %711 = vector.broadcast %cst_182 : f32 to vector<1x30xf32>
    %712 = vector.extract_strided_slice %84 {offsets = [0, 30], sizes = [1, 226], strides = [1, 1]} : vector<1x256xf32> to vector<1x226xf32>
    %713 = tpu.concatenate %712, %711 in 1 : vector<1x226xf32>, vector<1x30xf32> -> vector<1x256xf32>
    %714 = vector.broadcast %710 : f32 to vector<1x256xf32>
    %715 = arith.mulf %714, %713 : vector<1x256xf32>
    %c73 = arith.constant 73 : index
    %716 = memref.load %arg7[%c73] : memref<98xf32, #tpu.memory_space<smem>>
    %cst_183 = arith.constant 0.000000e+00 : f32
    %717 = vector.broadcast %cst_183 : f32 to vector<1x30xf32>
    %718 = vector.extract_strided_slice %86 {offsets = [0, 30], sizes = [1, 226], strides = [1, 1]} : vector<1x256xf32> to vector<1x226xf32>
    %719 = tpu.concatenate %718, %717 in 1 : vector<1x226xf32>, vector<1x30xf32> -> vector<1x256xf32>
    %720 = vector.broadcast %716 : f32 to vector<1x256xf32>
    %721 = arith.mulf %720, %719 : vector<1x256xf32>
    %722 = arith.addf %715, %721 : vector<1x256xf32>
    %c2_i32_184 = arith.constant 2 : i32
    %723 = vector.broadcast %c2_i32_184 : i32 to vector<1x256xi32>
    %724 = arith.cmpi sge, %0, %723 : vector<1x256xi32>
    %cst_185 = arith.constant 0.000000e+00 : f32
    %725 = vector.broadcast %cst_185 : f32 to vector<1x256xf32>
    %726 = arith.select %724, %722, %725 : vector<1x256xi1>, vector<1x256xf32>
    %727 = arith.addf %709, %726 : vector<1x256xf32>
    %c74 = arith.constant 74 : index
    %728 = memref.load %arg7[%c74] : memref<98xf32, #tpu.memory_space<smem>>
    %cst_186 = arith.constant 0.000000e+00 : f32
    %729 = vector.broadcast %cst_186 : f32 to vector<1x31xf32>
    %730 = vector.extract_strided_slice %84 {offsets = [0, 31], sizes = [1, 225], strides = [1, 1]} : vector<1x256xf32> to vector<1x225xf32>
    %731 = tpu.concatenate %730, %729 in 1 : vector<1x225xf32>, vector<1x31xf32> -> vector<1x256xf32>
    %732 = vector.broadcast %728 : f32 to vector<1x256xf32>
    %733 = arith.mulf %732, %731 : vector<1x256xf32>
    %c75 = arith.constant 75 : index
    %734 = memref.load %arg7[%c75] : memref<98xf32, #tpu.memory_space<smem>>
    %cst_187 = arith.constant 0.000000e+00 : f32
    %735 = vector.broadcast %cst_187 : f32 to vector<1x31xf32>
    %736 = vector.extract_strided_slice %86 {offsets = [0, 31], sizes = [1, 225], strides = [1, 1]} : vector<1x256xf32> to vector<1x225xf32>
    %737 = tpu.concatenate %736, %735 in 1 : vector<1x225xf32>, vector<1x31xf32> -> vector<1x256xf32>
    %738 = vector.broadcast %734 : f32 to vector<1x256xf32>
    %739 = arith.mulf %738, %737 : vector<1x256xf32>
    %740 = arith.addf %733, %739 : vector<1x256xf32>
    %c1_i32_188 = arith.constant 1 : i32
    %741 = vector.broadcast %c1_i32_188 : i32 to vector<1x256xi32>
    %742 = arith.cmpi sge, %0, %741 : vector<1x256xi32>
    %cst_189 = arith.constant 0.000000e+00 : f32
    %743 = vector.broadcast %cst_189 : f32 to vector<1x256xf32>
    %744 = arith.select %742, %740, %743 : vector<1x256xi1>, vector<1x256xf32>
    %745 = arith.addf %727, %744 : vector<1x256xf32>
    %c76 = arith.constant 76 : index
    %746 = memref.load %arg7[%c76] : memref<98xf32, #tpu.memory_space<smem>>
    %cst_190 = arith.constant 0.000000e+00 : f32
    %747 = vector.broadcast %cst_190 : f32 to vector<1x32xf32>
    %748 = vector.extract_strided_slice %84 {offsets = [0, 32], sizes = [1, 224], strides = [1, 1]} : vector<1x256xf32> to vector<1x224xf32>
    %749 = tpu.concatenate %748, %747 in 1 : vector<1x224xf32>, vector<1x32xf32> -> vector<1x256xf32>
    %750 = vector.broadcast %746 : f32 to vector<1x256xf32>
    %751 = arith.mulf %750, %749 : vector<1x256xf32>
    %c77 = arith.constant 77 : index
    %752 = memref.load %arg7[%c77] : memref<98xf32, #tpu.memory_space<smem>>
    %cst_191 = arith.constant 0.000000e+00 : f32
    %753 = vector.broadcast %cst_191 : f32 to vector<1x32xf32>
    %754 = vector.extract_strided_slice %86 {offsets = [0, 32], sizes = [1, 224], strides = [1, 1]} : vector<1x256xf32> to vector<1x224xf32>
    %755 = tpu.concatenate %754, %753 in 1 : vector<1x224xf32>, vector<1x32xf32> -> vector<1x256xf32>
    %756 = vector.broadcast %752 : f32 to vector<1x256xf32>
    %757 = arith.mulf %756, %755 : vector<1x256xf32>
    %758 = arith.addf %751, %757 : vector<1x256xf32>
    %759 = arith.addf %745, %758 : vector<1x256xf32>
    %c78 = arith.constant 78 : index
    %760 = memref.load %arg7[%c78] : memref<98xf32, #tpu.memory_space<smem>>
    %cst_192 = arith.constant 0.000000e+00 : f32
    %761 = vector.broadcast %cst_192 : f32 to vector<1x33xf32>
    %762 = vector.extract_strided_slice %84 {offsets = [0, 33], sizes = [1, 223], strides = [1, 1]} : vector<1x256xf32> to vector<1x223xf32>
    %763 = tpu.concatenate %762, %761 in 1 : vector<1x223xf32>, vector<1x33xf32> -> vector<1x256xf32>
    %764 = vector.broadcast %760 : f32 to vector<1x256xf32>
    %765 = arith.mulf %764, %763 : vector<1x256xf32>
    %c79 = arith.constant 79 : index
    %766 = memref.load %arg7[%c79] : memref<98xf32, #tpu.memory_space<smem>>
    %cst_193 = arith.constant 0.000000e+00 : f32
    %767 = vector.broadcast %cst_193 : f32 to vector<1x33xf32>
    %768 = vector.extract_strided_slice %86 {offsets = [0, 33], sizes = [1, 223], strides = [1, 1]} : vector<1x256xf32> to vector<1x223xf32>
    %769 = tpu.concatenate %768, %767 in 1 : vector<1x223xf32>, vector<1x33xf32> -> vector<1x256xf32>
    %770 = vector.broadcast %766 : f32 to vector<1x256xf32>
    %771 = arith.mulf %770, %769 : vector<1x256xf32>
    %772 = arith.addf %765, %771 : vector<1x256xf32>
    %c14_i32_194 = arith.constant 14 : i32
    %773 = vector.broadcast %c14_i32_194 : i32 to vector<1x256xi32>
    %774 = arith.cmpi sle, %0, %773 : vector<1x256xi32>
    %cst_195 = arith.constant 0.000000e+00 : f32
    %775 = vector.broadcast %cst_195 : f32 to vector<1x256xf32>
    %776 = arith.select %774, %772, %775 : vector<1x256xi1>, vector<1x256xf32>
    %777 = arith.addf %759, %776 : vector<1x256xf32>
    %c80 = arith.constant 80 : index
    %778 = memref.load %arg7[%c80] : memref<98xf32, #tpu.memory_space<smem>>
    %cst_196 = arith.constant 0.000000e+00 : f32
    %779 = vector.broadcast %cst_196 : f32 to vector<1x34xf32>
    %780 = vector.extract_strided_slice %84 {offsets = [0, 34], sizes = [1, 222], strides = [1, 1]} : vector<1x256xf32> to vector<1x222xf32>
    %781 = tpu.concatenate %780, %779 in 1 : vector<1x222xf32>, vector<1x34xf32> -> vector<1x256xf32>
    %782 = vector.broadcast %778 : f32 to vector<1x256xf32>
    %783 = arith.mulf %782, %781 : vector<1x256xf32>
    %c81 = arith.constant 81 : index
    %784 = memref.load %arg7[%c81] : memref<98xf32, #tpu.memory_space<smem>>
    %cst_197 = arith.constant 0.000000e+00 : f32
    %785 = vector.broadcast %cst_197 : f32 to vector<1x34xf32>
    %786 = vector.extract_strided_slice %86 {offsets = [0, 34], sizes = [1, 222], strides = [1, 1]} : vector<1x256xf32> to vector<1x222xf32>
    %787 = tpu.concatenate %786, %785 in 1 : vector<1x222xf32>, vector<1x34xf32> -> vector<1x256xf32>
    %788 = vector.broadcast %784 : f32 to vector<1x256xf32>
    %789 = arith.mulf %788, %787 : vector<1x256xf32>
    %790 = arith.addf %783, %789 : vector<1x256xf32>
    %c13_i32_198 = arith.constant 13 : i32
    %791 = vector.broadcast %c13_i32_198 : i32 to vector<1x256xi32>
    %792 = arith.cmpi sle, %0, %791 : vector<1x256xi32>
    %cst_199 = arith.constant 0.000000e+00 : f32
    %793 = vector.broadcast %cst_199 : f32 to vector<1x256xf32>
    %794 = arith.select %792, %790, %793 : vector<1x256xi1>, vector<1x256xf32>
    %795 = arith.addf %777, %794 : vector<1x256xf32>
    %c82 = arith.constant 82 : index
    %796 = memref.load %arg7[%c82] : memref<98xf32, #tpu.memory_space<smem>>
    %cst_200 = arith.constant 0.000000e+00 : f32
    %797 = vector.broadcast %cst_200 : f32 to vector<1x35xf32>
    %798 = vector.extract_strided_slice %84 {offsets = [0, 35], sizes = [1, 221], strides = [1, 1]} : vector<1x256xf32> to vector<1x221xf32>
    %799 = tpu.concatenate %798, %797 in 1 : vector<1x221xf32>, vector<1x35xf32> -> vector<1x256xf32>
    %800 = vector.broadcast %796 : f32 to vector<1x256xf32>
    %801 = arith.mulf %800, %799 : vector<1x256xf32>
    %c83 = arith.constant 83 : index
    %802 = memref.load %arg7[%c83] : memref<98xf32, #tpu.memory_space<smem>>
    %cst_201 = arith.constant 0.000000e+00 : f32
    %803 = vector.broadcast %cst_201 : f32 to vector<1x35xf32>
    %804 = vector.extract_strided_slice %86 {offsets = [0, 35], sizes = [1, 221], strides = [1, 1]} : vector<1x256xf32> to vector<1x221xf32>
    %805 = tpu.concatenate %804, %803 in 1 : vector<1x221xf32>, vector<1x35xf32> -> vector<1x256xf32>
    %806 = vector.broadcast %802 : f32 to vector<1x256xf32>
    %807 = arith.mulf %806, %805 : vector<1x256xf32>
    %808 = arith.addf %801, %807 : vector<1x256xf32>
    %c12_i32_202 = arith.constant 12 : i32
    %809 = vector.broadcast %c12_i32_202 : i32 to vector<1x256xi32>
    %810 = arith.cmpi sle, %0, %809 : vector<1x256xi32>
    %cst_203 = arith.constant 0.000000e+00 : f32
    %811 = vector.broadcast %cst_203 : f32 to vector<1x256xf32>
    %812 = arith.select %810, %808, %811 : vector<1x256xi1>, vector<1x256xf32>
    %813 = arith.addf %795, %812 : vector<1x256xf32>
    %c84 = arith.constant 84 : index
    %814 = memref.load %arg7[%c84] : memref<98xf32, #tpu.memory_space<smem>>
    %cst_204 = arith.constant 0.000000e+00 : f32
    %815 = vector.broadcast %cst_204 : f32 to vector<1x45xf32>
    %816 = vector.extract_strided_slice %84 {offsets = [0, 45], sizes = [1, 211], strides = [1, 1]} : vector<1x256xf32> to vector<1x211xf32>
    %817 = tpu.concatenate %816, %815 in 1 : vector<1x211xf32>, vector<1x45xf32> -> vector<1x256xf32>
    %818 = vector.broadcast %814 : f32 to vector<1x256xf32>
    %819 = arith.mulf %818, %817 : vector<1x256xf32>
    %c85 = arith.constant 85 : index
    %820 = memref.load %arg7[%c85] : memref<98xf32, #tpu.memory_space<smem>>
    %cst_205 = arith.constant 0.000000e+00 : f32
    %821 = vector.broadcast %cst_205 : f32 to vector<1x45xf32>
    %822 = vector.extract_strided_slice %86 {offsets = [0, 45], sizes = [1, 211], strides = [1, 1]} : vector<1x256xf32> to vector<1x211xf32>
    %823 = tpu.concatenate %822, %821 in 1 : vector<1x211xf32>, vector<1x45xf32> -> vector<1x256xf32>
    %824 = vector.broadcast %820 : f32 to vector<1x256xf32>
    %825 = arith.mulf %824, %823 : vector<1x256xf32>
    %826 = arith.addf %819, %825 : vector<1x256xf32>
    %c3_i32_206 = arith.constant 3 : i32
    %827 = vector.broadcast %c3_i32_206 : i32 to vector<1x256xi32>
    %828 = arith.cmpi sge, %0, %827 : vector<1x256xi32>
    %cst_207 = arith.constant 0.000000e+00 : f32
    %829 = vector.broadcast %cst_207 : f32 to vector<1x256xf32>
    %830 = arith.select %828, %826, %829 : vector<1x256xi1>, vector<1x256xf32>
    %831 = arith.addf %813, %830 : vector<1x256xf32>
    %c86 = arith.constant 86 : index
    %832 = memref.load %arg7[%c86] : memref<98xf32, #tpu.memory_space<smem>>
    %cst_208 = arith.constant 0.000000e+00 : f32
    %833 = vector.broadcast %cst_208 : f32 to vector<1x46xf32>
    %834 = vector.extract_strided_slice %84 {offsets = [0, 46], sizes = [1, 210], strides = [1, 1]} : vector<1x256xf32> to vector<1x210xf32>
    %835 = tpu.concatenate %834, %833 in 1 : vector<1x210xf32>, vector<1x46xf32> -> vector<1x256xf32>
    %836 = vector.broadcast %832 : f32 to vector<1x256xf32>
    %837 = arith.mulf %836, %835 : vector<1x256xf32>
    %c87 = arith.constant 87 : index
    %838 = memref.load %arg7[%c87] : memref<98xf32, #tpu.memory_space<smem>>
    %cst_209 = arith.constant 0.000000e+00 : f32
    %839 = vector.broadcast %cst_209 : f32 to vector<1x46xf32>
    %840 = vector.extract_strided_slice %86 {offsets = [0, 46], sizes = [1, 210], strides = [1, 1]} : vector<1x256xf32> to vector<1x210xf32>
    %841 = tpu.concatenate %840, %839 in 1 : vector<1x210xf32>, vector<1x46xf32> -> vector<1x256xf32>
    %842 = vector.broadcast %838 : f32 to vector<1x256xf32>
    %843 = arith.mulf %842, %841 : vector<1x256xf32>
    %844 = arith.addf %837, %843 : vector<1x256xf32>
    %c2_i32_210 = arith.constant 2 : i32
    %845 = vector.broadcast %c2_i32_210 : i32 to vector<1x256xi32>
    %846 = arith.cmpi sge, %0, %845 : vector<1x256xi32>
    %cst_211 = arith.constant 0.000000e+00 : f32
    %847 = vector.broadcast %cst_211 : f32 to vector<1x256xf32>
    %848 = arith.select %846, %844, %847 : vector<1x256xi1>, vector<1x256xf32>
    %849 = arith.addf %831, %848 : vector<1x256xf32>
    %c88 = arith.constant 88 : index
    %850 = memref.load %arg7[%c88] : memref<98xf32, #tpu.memory_space<smem>>
    %cst_212 = arith.constant 0.000000e+00 : f32
    %851 = vector.broadcast %cst_212 : f32 to vector<1x47xf32>
    %852 = vector.extract_strided_slice %84 {offsets = [0, 47], sizes = [1, 209], strides = [1, 1]} : vector<1x256xf32> to vector<1x209xf32>
    %853 = tpu.concatenate %852, %851 in 1 : vector<1x209xf32>, vector<1x47xf32> -> vector<1x256xf32>
    %854 = vector.broadcast %850 : f32 to vector<1x256xf32>
    %855 = arith.mulf %854, %853 : vector<1x256xf32>
    %c89 = arith.constant 89 : index
    %856 = memref.load %arg7[%c89] : memref<98xf32, #tpu.memory_space<smem>>
    %cst_213 = arith.constant 0.000000e+00 : f32
    %857 = vector.broadcast %cst_213 : f32 to vector<1x47xf32>
    %858 = vector.extract_strided_slice %86 {offsets = [0, 47], sizes = [1, 209], strides = [1, 1]} : vector<1x256xf32> to vector<1x209xf32>
    %859 = tpu.concatenate %858, %857 in 1 : vector<1x209xf32>, vector<1x47xf32> -> vector<1x256xf32>
    %860 = vector.broadcast %856 : f32 to vector<1x256xf32>
    %861 = arith.mulf %860, %859 : vector<1x256xf32>
    %862 = arith.addf %855, %861 : vector<1x256xf32>
    %c1_i32_214 = arith.constant 1 : i32
    %863 = vector.broadcast %c1_i32_214 : i32 to vector<1x256xi32>
    %864 = arith.cmpi sge, %0, %863 : vector<1x256xi32>
    %cst_215 = arith.constant 0.000000e+00 : f32
    %865 = vector.broadcast %cst_215 : f32 to vector<1x256xf32>
    %866 = arith.select %864, %862, %865 : vector<1x256xi1>, vector<1x256xf32>
    %867 = arith.addf %849, %866 : vector<1x256xf32>
    %c90 = arith.constant 90 : index
    %868 = memref.load %arg7[%c90] : memref<98xf32, #tpu.memory_space<smem>>
    %cst_216 = arith.constant 0.000000e+00 : f32
    %869 = vector.broadcast %cst_216 : f32 to vector<1x48xf32>
    %870 = vector.extract_strided_slice %84 {offsets = [0, 48], sizes = [1, 208], strides = [1, 1]} : vector<1x256xf32> to vector<1x208xf32>
    %871 = tpu.concatenate %870, %869 in 1 : vector<1x208xf32>, vector<1x48xf32> -> vector<1x256xf32>
    %872 = vector.broadcast %868 : f32 to vector<1x256xf32>
    %873 = arith.mulf %872, %871 : vector<1x256xf32>
    %c91 = arith.constant 91 : index
    %874 = memref.load %arg7[%c91] : memref<98xf32, #tpu.memory_space<smem>>
    %cst_217 = arith.constant 0.000000e+00 : f32
    %875 = vector.broadcast %cst_217 : f32 to vector<1x48xf32>
    %876 = vector.extract_strided_slice %86 {offsets = [0, 48], sizes = [1, 208], strides = [1, 1]} : vector<1x256xf32> to vector<1x208xf32>
    %877 = tpu.concatenate %876, %875 in 1 : vector<1x208xf32>, vector<1x48xf32> -> vector<1x256xf32>
    %878 = vector.broadcast %874 : f32 to vector<1x256xf32>
    %879 = arith.mulf %878, %877 : vector<1x256xf32>
    %880 = arith.addf %873, %879 : vector<1x256xf32>
    %881 = arith.addf %867, %880 : vector<1x256xf32>
    %c92 = arith.constant 92 : index
    %882 = memref.load %arg7[%c92] : memref<98xf32, #tpu.memory_space<smem>>
    %cst_218 = arith.constant 0.000000e+00 : f32
    %883 = vector.broadcast %cst_218 : f32 to vector<1x49xf32>
    %884 = vector.extract_strided_slice %84 {offsets = [0, 49], sizes = [1, 207], strides = [1, 1]} : vector<1x256xf32> to vector<1x207xf32>
    %885 = tpu.concatenate %884, %883 in 1 : vector<1x207xf32>, vector<1x49xf32> -> vector<1x256xf32>
    %886 = vector.broadcast %882 : f32 to vector<1x256xf32>
    %887 = arith.mulf %886, %885 : vector<1x256xf32>
    %c93 = arith.constant 93 : index
    %888 = memref.load %arg7[%c93] : memref<98xf32, #tpu.memory_space<smem>>
    %cst_219 = arith.constant 0.000000e+00 : f32
    %889 = vector.broadcast %cst_219 : f32 to vector<1x49xf32>
    %890 = vector.extract_strided_slice %86 {offsets = [0, 49], sizes = [1, 207], strides = [1, 1]} : vector<1x256xf32> to vector<1x207xf32>
    %891 = tpu.concatenate %890, %889 in 1 : vector<1x207xf32>, vector<1x49xf32> -> vector<1x256xf32>
    %892 = vector.broadcast %888 : f32 to vector<1x256xf32>
    %893 = arith.mulf %892, %891 : vector<1x256xf32>
    %894 = arith.addf %887, %893 : vector<1x256xf32>
    %c14_i32_220 = arith.constant 14 : i32
    %895 = vector.broadcast %c14_i32_220 : i32 to vector<1x256xi32>
    %896 = arith.cmpi sle, %0, %895 : vector<1x256xi32>
    %cst_221 = arith.constant 0.000000e+00 : f32
    %897 = vector.broadcast %cst_221 : f32 to vector<1x256xf32>
    %898 = arith.select %896, %894, %897 : vector<1x256xi1>, vector<1x256xf32>
    %899 = arith.addf %881, %898 : vector<1x256xf32>
    %c94 = arith.constant 94 : index
    %900 = memref.load %arg7[%c94] : memref<98xf32, #tpu.memory_space<smem>>
    %cst_222 = arith.constant 0.000000e+00 : f32
    %901 = vector.broadcast %cst_222 : f32 to vector<1x50xf32>
    %902 = vector.extract_strided_slice %84 {offsets = [0, 50], sizes = [1, 206], strides = [1, 1]} : vector<1x256xf32> to vector<1x206xf32>
    %903 = tpu.concatenate %902, %901 in 1 : vector<1x206xf32>, vector<1x50xf32> -> vector<1x256xf32>
    %904 = vector.broadcast %900 : f32 to vector<1x256xf32>
    %905 = arith.mulf %904, %903 : vector<1x256xf32>
    %c95 = arith.constant 95 : index
    %906 = memref.load %arg7[%c95] : memref<98xf32, #tpu.memory_space<smem>>
    %cst_223 = arith.constant 0.000000e+00 : f32
    %907 = vector.broadcast %cst_223 : f32 to vector<1x50xf32>
    %908 = vector.extract_strided_slice %86 {offsets = [0, 50], sizes = [1, 206], strides = [1, 1]} : vector<1x256xf32> to vector<1x206xf32>
    %909 = tpu.concatenate %908, %907 in 1 : vector<1x206xf32>, vector<1x50xf32> -> vector<1x256xf32>
    %910 = vector.broadcast %906 : f32 to vector<1x256xf32>
    %911 = arith.mulf %910, %909 : vector<1x256xf32>
    %912 = arith.addf %905, %911 : vector<1x256xf32>
    %c13_i32_224 = arith.constant 13 : i32
    %913 = vector.broadcast %c13_i32_224 : i32 to vector<1x256xi32>
    %914 = arith.cmpi sle, %0, %913 : vector<1x256xi32>
    %cst_225 = arith.constant 0.000000e+00 : f32
    %915 = vector.broadcast %cst_225 : f32 to vector<1x256xf32>
    %916 = arith.select %914, %912, %915 : vector<1x256xi1>, vector<1x256xf32>
    %917 = arith.addf %899, %916 : vector<1x256xf32>
    %c96 = arith.constant 96 : index
    %918 = memref.load %arg7[%c96] : memref<98xf32, #tpu.memory_space<smem>>
    %cst_226 = arith.constant 0.000000e+00 : f32
    %919 = vector.broadcast %cst_226 : f32 to vector<1x51xf32>
    %920 = vector.extract_strided_slice %84 {offsets = [0, 51], sizes = [1, 205], strides = [1, 1]} : vector<1x256xf32> to vector<1x205xf32>
    %921 = tpu.concatenate %920, %919 in 1 : vector<1x205xf32>, vector<1x51xf32> -> vector<1x256xf32>
    %922 = vector.broadcast %918 : f32 to vector<1x256xf32>
    %923 = arith.mulf %922, %921 : vector<1x256xf32>
    %c97 = arith.constant 97 : index
    %924 = memref.load %arg7[%c97] : memref<98xf32, #tpu.memory_space<smem>>
    %cst_227 = arith.constant 0.000000e+00 : f32
    %925 = vector.broadcast %cst_227 : f32 to vector<1x51xf32>
    %926 = vector.extract_strided_slice %86 {offsets = [0, 51], sizes = [1, 205], strides = [1, 1]} : vector<1x256xf32> to vector<1x205xf32>
    %927 = tpu.concatenate %926, %925 in 1 : vector<1x205xf32>, vector<1x51xf32> -> vector<1x256xf32>
    %928 = vector.broadcast %924 : f32 to vector<1x256xf32>
    %929 = arith.mulf %928, %927 : vector<1x256xf32>
    %930 = arith.addf %923, %929 : vector<1x256xf32>
    %c12_i32_228 = arith.constant 12 : i32
    %931 = vector.broadcast %c12_i32_228 : i32 to vector<1x256xi32>
    %932 = arith.cmpi sle, %0, %931 : vector<1x256xi32>
    %cst_229 = arith.constant 0.000000e+00 : f32
    %933 = vector.broadcast %cst_229 : f32 to vector<1x256xf32>
    %934 = arith.select %932, %930, %933 : vector<1x256xi1>, vector<1x256xf32>
    %935 = arith.addf %917, %934 : vector<1x256xf32>
    %936 = arith.negf %935 : vector<1x256xf32>
    %937 = math.exp %936 : vector<1x256xf32>
    %cst_230 = arith.constant 1.000000e+00 : f32
    %938 = vector.broadcast %cst_230 : f32 to vector<1x256xf32>
    %939 = arith.addf %938, %937 : vector<1x256xf32>
    %940 = arith.divf %938, %939 : vector<1x256xf32>
    %cst_231 = arith.constant dense<0.000000e+00> : vector<256xf32>
    %941 = vector.multi_reduction <add>, %2, %cst_231 [0] : vector<4x256xf32> to vector<256xf32>
    %942 = vector.shape_cast %941 : vector<256xf32> to vector<1x256xf32>
    %cst_232 = arith.constant 4.000000e+00 : f32
    %943 = vector.broadcast %cst_232 : f32 to vector<1x256xf32>
    %944 = arith.divf %942, %943 : vector<1x256xf32>
    %cst_233 = arith.constant dense<0xFF800000> : vector<256xf32>
    %945 = vector.multi_reduction <maximumf>, %2, %cst_233 [0] : vector<4x256xf32> to vector<256xf32>
    %946 = vector.shape_cast %945 : vector<256xf32> to vector<1x256xf32>
    %cst_234 = arith.constant 0.000000e+00 : f32
    %947 = vector.broadcast %cst_234 : f32 to vector<1x256xf32>
    %c0_235 = arith.constant 0 : index
    %948 = memref.load %arg6[%c0_235] : memref<98xf32, #tpu.memory_space<smem>>
    %cst_236 = arith.constant 0.000000e+00 : f32
    %949 = vector.broadcast %cst_236 : f32 to vector<1x51xf32>
    %950 = vector.extract_strided_slice %944 {offsets = [0, 0], sizes = [1, 205], strides = [1, 1]} : vector<1x256xf32> to vector<1x205xf32>
    %951 = tpu.concatenate %949, %950 in 1 : vector<1x51xf32>, vector<1x205xf32> -> vector<1x256xf32>
    %952 = vector.broadcast %948 : f32 to vector<1x256xf32>
    %953 = arith.mulf %952, %951 : vector<1x256xf32>
    %c1_237 = arith.constant 1 : index
    %954 = memref.load %arg6[%c1_237] : memref<98xf32, #tpu.memory_space<smem>>
    %cst_238 = arith.constant 0.000000e+00 : f32
    %955 = vector.broadcast %cst_238 : f32 to vector<1x51xf32>
    %956 = vector.extract_strided_slice %946 {offsets = [0, 0], sizes = [1, 205], strides = [1, 1]} : vector<1x256xf32> to vector<1x205xf32>
    %957 = tpu.concatenate %955, %956 in 1 : vector<1x51xf32>, vector<1x205xf32> -> vector<1x256xf32>
    %958 = vector.broadcast %954 : f32 to vector<1x256xf32>
    %959 = arith.mulf %958, %957 : vector<1x256xf32>
    %960 = arith.addf %953, %959 : vector<1x256xf32>
    %c3_i32_239 = arith.constant 3 : i32
    %961 = vector.broadcast %c3_i32_239 : i32 to vector<1x256xi32>
    %962 = arith.cmpi sge, %0, %961 : vector<1x256xi32>
    %cst_240 = arith.constant 0.000000e+00 : f32
    %963 = vector.broadcast %cst_240 : f32 to vector<1x256xf32>
    %964 = arith.select %962, %960, %963 : vector<1x256xi1>, vector<1x256xf32>
    %965 = arith.addf %947, %964 : vector<1x256xf32>
    %c2_241 = arith.constant 2 : index
    %966 = memref.load %arg6[%c2_241] : memref<98xf32, #tpu.memory_space<smem>>
    %cst_242 = arith.constant 0.000000e+00 : f32
    %967 = vector.broadcast %cst_242 : f32 to vector<1x50xf32>
    %968 = vector.extract_strided_slice %944 {offsets = [0, 0], sizes = [1, 206], strides = [1, 1]} : vector<1x256xf32> to vector<1x206xf32>
    %969 = tpu.concatenate %967, %968 in 1 : vector<1x50xf32>, vector<1x206xf32> -> vector<1x256xf32>
    %970 = vector.broadcast %966 : f32 to vector<1x256xf32>
    %971 = arith.mulf %970, %969 : vector<1x256xf32>
    %c3_243 = arith.constant 3 : index
    %972 = memref.load %arg6[%c3_243] : memref<98xf32, #tpu.memory_space<smem>>
    %cst_244 = arith.constant 0.000000e+00 : f32
    %973 = vector.broadcast %cst_244 : f32 to vector<1x50xf32>
    %974 = vector.extract_strided_slice %946 {offsets = [0, 0], sizes = [1, 206], strides = [1, 1]} : vector<1x256xf32> to vector<1x206xf32>
    %975 = tpu.concatenate %973, %974 in 1 : vector<1x50xf32>, vector<1x206xf32> -> vector<1x256xf32>
    %976 = vector.broadcast %972 : f32 to vector<1x256xf32>
    %977 = arith.mulf %976, %975 : vector<1x256xf32>
    %978 = arith.addf %971, %977 : vector<1x256xf32>
    %c2_i32_245 = arith.constant 2 : i32
    %979 = vector.broadcast %c2_i32_245 : i32 to vector<1x256xi32>
    %980 = arith.cmpi sge, %0, %979 : vector<1x256xi32>
    %cst_246 = arith.constant 0.000000e+00 : f32
    %981 = vector.broadcast %cst_246 : f32 to vector<1x256xf32>
    %982 = arith.select %980, %978, %981 : vector<1x256xi1>, vector<1x256xf32>
    %983 = arith.addf %965, %982 : vector<1x256xf32>
    %c4_247 = arith.constant 4 : index
    %984 = memref.load %arg6[%c4_247] : memref<98xf32, #tpu.memory_space<smem>>
    %cst_248 = arith.constant 0.000000e+00 : f32
    %985 = vector.broadcast %cst_248 : f32 to vector<1x49xf32>
    %986 = vector.extract_strided_slice %944 {offsets = [0, 0], sizes = [1, 207], strides = [1, 1]} : vector<1x256xf32> to vector<1x207xf32>
    %987 = tpu.concatenate %985, %986 in 1 : vector<1x49xf32>, vector<1x207xf32> -> vector<1x256xf32>
    %988 = vector.broadcast %984 : f32 to vector<1x256xf32>
    %989 = arith.mulf %988, %987 : vector<1x256xf32>
    %c5_249 = arith.constant 5 : index
    %990 = memref.load %arg6[%c5_249] : memref<98xf32, #tpu.memory_space<smem>>
    %cst_250 = arith.constant 0.000000e+00 : f32
    %991 = vector.broadcast %cst_250 : f32 to vector<1x49xf32>
    %992 = vector.extract_strided_slice %946 {offsets = [0, 0], sizes = [1, 207], strides = [1, 1]} : vector<1x256xf32> to vector<1x207xf32>
    %993 = tpu.concatenate %991, %992 in 1 : vector<1x49xf32>, vector<1x207xf32> -> vector<1x256xf32>
    %994 = vector.broadcast %990 : f32 to vector<1x256xf32>
    %995 = arith.mulf %994, %993 : vector<1x256xf32>
    %996 = arith.addf %989, %995 : vector<1x256xf32>
    %c1_i32_251 = arith.constant 1 : i32
    %997 = vector.broadcast %c1_i32_251 : i32 to vector<1x256xi32>
    %998 = arith.cmpi sge, %0, %997 : vector<1x256xi32>
    %cst_252 = arith.constant 0.000000e+00 : f32
    %999 = vector.broadcast %cst_252 : f32 to vector<1x256xf32>
    %1000 = arith.select %998, %996, %999 : vector<1x256xi1>, vector<1x256xf32>
    %1001 = arith.addf %983, %1000 : vector<1x256xf32>
    %c6_253 = arith.constant 6 : index
    %1002 = memref.load %arg6[%c6_253] : memref<98xf32, #tpu.memory_space<smem>>
    %cst_254 = arith.constant 0.000000e+00 : f32
    %1003 = vector.broadcast %cst_254 : f32 to vector<1x48xf32>
    %1004 = vector.extract_strided_slice %944 {offsets = [0, 0], sizes = [1, 208], strides = [1, 1]} : vector<1x256xf32> to vector<1x208xf32>
    %1005 = tpu.concatenate %1003, %1004 in 1 : vector<1x48xf32>, vector<1x208xf32> -> vector<1x256xf32>
    %1006 = vector.broadcast %1002 : f32 to vector<1x256xf32>
    %1007 = arith.mulf %1006, %1005 : vector<1x256xf32>
    %c7_255 = arith.constant 7 : index
    %1008 = memref.load %arg6[%c7_255] : memref<98xf32, #tpu.memory_space<smem>>
    %cst_256 = arith.constant 0.000000e+00 : f32
    %1009 = vector.broadcast %cst_256 : f32 to vector<1x48xf32>
    %1010 = vector.extract_strided_slice %946 {offsets = [0, 0], sizes = [1, 208], strides = [1, 1]} : vector<1x256xf32> to vector<1x208xf32>
    %1011 = tpu.concatenate %1009, %1010 in 1 : vector<1x48xf32>, vector<1x208xf32> -> vector<1x256xf32>
    %1012 = vector.broadcast %1008 : f32 to vector<1x256xf32>
    %1013 = arith.mulf %1012, %1011 : vector<1x256xf32>
    %1014 = arith.addf %1007, %1013 : vector<1x256xf32>
    %1015 = arith.addf %1001, %1014 : vector<1x256xf32>
    %c8_257 = arith.constant 8 : index
    %1016 = memref.load %arg6[%c8_257] : memref<98xf32, #tpu.memory_space<smem>>
    %cst_258 = arith.constant 0.000000e+00 : f32
    %1017 = vector.broadcast %cst_258 : f32 to vector<1x47xf32>
    %1018 = vector.extract_strided_slice %944 {offsets = [0, 0], sizes = [1, 209], strides = [1, 1]} : vector<1x256xf32> to vector<1x209xf32>
    %1019 = tpu.concatenate %1017, %1018 in 1 : vector<1x47xf32>, vector<1x209xf32> -> vector<1x256xf32>
    %1020 = vector.broadcast %1016 : f32 to vector<1x256xf32>
    %1021 = arith.mulf %1020, %1019 : vector<1x256xf32>
    %c9_259 = arith.constant 9 : index
    %1022 = memref.load %arg6[%c9_259] : memref<98xf32, #tpu.memory_space<smem>>
    %cst_260 = arith.constant 0.000000e+00 : f32
    %1023 = vector.broadcast %cst_260 : f32 to vector<1x47xf32>
    %1024 = vector.extract_strided_slice %946 {offsets = [0, 0], sizes = [1, 209], strides = [1, 1]} : vector<1x256xf32> to vector<1x209xf32>
    %1025 = tpu.concatenate %1023, %1024 in 1 : vector<1x47xf32>, vector<1x209xf32> -> vector<1x256xf32>
    %1026 = vector.broadcast %1022 : f32 to vector<1x256xf32>
    %1027 = arith.mulf %1026, %1025 : vector<1x256xf32>
    %1028 = arith.addf %1021, %1027 : vector<1x256xf32>
    %c14_i32_261 = arith.constant 14 : i32
    %1029 = vector.broadcast %c14_i32_261 : i32 to vector<1x256xi32>
    %1030 = arith.cmpi sle, %0, %1029 : vector<1x256xi32>
    %cst_262 = arith.constant 0.000000e+00 : f32
    %1031 = vector.broadcast %cst_262 : f32 to vector<1x256xf32>
    %1032 = arith.select %1030, %1028, %1031 : vector<1x256xi1>, vector<1x256xf32>
    %1033 = arith.addf %1015, %1032 : vector<1x256xf32>
    %c10_263 = arith.constant 10 : index
    %1034 = memref.load %arg6[%c10_263] : memref<98xf32, #tpu.memory_space<smem>>
    %cst_264 = arith.constant 0.000000e+00 : f32
    %1035 = vector.broadcast %cst_264 : f32 to vector<1x46xf32>
    %1036 = vector.extract_strided_slice %944 {offsets = [0, 0], sizes = [1, 210], strides = [1, 1]} : vector<1x256xf32> to vector<1x210xf32>
    %1037 = tpu.concatenate %1035, %1036 in 1 : vector<1x46xf32>, vector<1x210xf32> -> vector<1x256xf32>
    %1038 = vector.broadcast %1034 : f32 to vector<1x256xf32>
    %1039 = arith.mulf %1038, %1037 : vector<1x256xf32>
    %c11_265 = arith.constant 11 : index
    %1040 = memref.load %arg6[%c11_265] : memref<98xf32, #tpu.memory_space<smem>>
    %cst_266 = arith.constant 0.000000e+00 : f32
    %1041 = vector.broadcast %cst_266 : f32 to vector<1x46xf32>
    %1042 = vector.extract_strided_slice %946 {offsets = [0, 0], sizes = [1, 210], strides = [1, 1]} : vector<1x256xf32> to vector<1x210xf32>
    %1043 = tpu.concatenate %1041, %1042 in 1 : vector<1x46xf32>, vector<1x210xf32> -> vector<1x256xf32>
    %1044 = vector.broadcast %1040 : f32 to vector<1x256xf32>
    %1045 = arith.mulf %1044, %1043 : vector<1x256xf32>
    %1046 = arith.addf %1039, %1045 : vector<1x256xf32>
    %c13_i32_267 = arith.constant 13 : i32
    %1047 = vector.broadcast %c13_i32_267 : i32 to vector<1x256xi32>
    %1048 = arith.cmpi sle, %0, %1047 : vector<1x256xi32>
    %cst_268 = arith.constant 0.000000e+00 : f32
    %1049 = vector.broadcast %cst_268 : f32 to vector<1x256xf32>
    %1050 = arith.select %1048, %1046, %1049 : vector<1x256xi1>, vector<1x256xf32>
    %1051 = arith.addf %1033, %1050 : vector<1x256xf32>
    %c12_269 = arith.constant 12 : index
    %1052 = memref.load %arg6[%c12_269] : memref<98xf32, #tpu.memory_space<smem>>
    %cst_270 = arith.constant 0.000000e+00 : f32
    %1053 = vector.broadcast %cst_270 : f32 to vector<1x45xf32>
    %1054 = vector.extract_strided_slice %944 {offsets = [0, 0], sizes = [1, 211], strides = [1, 1]} : vector<1x256xf32> to vector<1x211xf32>
    %1055 = tpu.concatenate %1053, %1054 in 1 : vector<1x45xf32>, vector<1x211xf32> -> vector<1x256xf32>
    %1056 = vector.broadcast %1052 : f32 to vector<1x256xf32>
    %1057 = arith.mulf %1056, %1055 : vector<1x256xf32>
    %c13_271 = arith.constant 13 : index
    %1058 = memref.load %arg6[%c13_271] : memref<98xf32, #tpu.memory_space<smem>>
    %cst_272 = arith.constant 0.000000e+00 : f32
    %1059 = vector.broadcast %cst_272 : f32 to vector<1x45xf32>
    %1060 = vector.extract_strided_slice %946 {offsets = [0, 0], sizes = [1, 211], strides = [1, 1]} : vector<1x256xf32> to vector<1x211xf32>
    %1061 = tpu.concatenate %1059, %1060 in 1 : vector<1x45xf32>, vector<1x211xf32> -> vector<1x256xf32>
    %1062 = vector.broadcast %1058 : f32 to vector<1x256xf32>
    %1063 = arith.mulf %1062, %1061 : vector<1x256xf32>
    %1064 = arith.addf %1057, %1063 : vector<1x256xf32>
    %c12_i32_273 = arith.constant 12 : i32
    %1065 = vector.broadcast %c12_i32_273 : i32 to vector<1x256xi32>
    %1066 = arith.cmpi sle, %0, %1065 : vector<1x256xi32>
    %cst_274 = arith.constant 0.000000e+00 : f32
    %1067 = vector.broadcast %cst_274 : f32 to vector<1x256xf32>
    %1068 = arith.select %1066, %1064, %1067 : vector<1x256xi1>, vector<1x256xf32>
    %1069 = arith.addf %1051, %1068 : vector<1x256xf32>
    %c14_275 = arith.constant 14 : index
    %1070 = memref.load %arg6[%c14_275] : memref<98xf32, #tpu.memory_space<smem>>
    %cst_276 = arith.constant 0.000000e+00 : f32
    %1071 = vector.broadcast %cst_276 : f32 to vector<1x35xf32>
    %1072 = vector.extract_strided_slice %944 {offsets = [0, 0], sizes = [1, 221], strides = [1, 1]} : vector<1x256xf32> to vector<1x221xf32>
    %1073 = tpu.concatenate %1071, %1072 in 1 : vector<1x35xf32>, vector<1x221xf32> -> vector<1x256xf32>
    %1074 = vector.broadcast %1070 : f32 to vector<1x256xf32>
    %1075 = arith.mulf %1074, %1073 : vector<1x256xf32>
    %c15_277 = arith.constant 15 : index
    %1076 = memref.load %arg6[%c15_277] : memref<98xf32, #tpu.memory_space<smem>>
    %cst_278 = arith.constant 0.000000e+00 : f32
    %1077 = vector.broadcast %cst_278 : f32 to vector<1x35xf32>
    %1078 = vector.extract_strided_slice %946 {offsets = [0, 0], sizes = [1, 221], strides = [1, 1]} : vector<1x256xf32> to vector<1x221xf32>
    %1079 = tpu.concatenate %1077, %1078 in 1 : vector<1x35xf32>, vector<1x221xf32> -> vector<1x256xf32>
    %1080 = vector.broadcast %1076 : f32 to vector<1x256xf32>
    %1081 = arith.mulf %1080, %1079 : vector<1x256xf32>
    %1082 = arith.addf %1075, %1081 : vector<1x256xf32>
    %c3_i32_279 = arith.constant 3 : i32
    %1083 = vector.broadcast %c3_i32_279 : i32 to vector<1x256xi32>
    %1084 = arith.cmpi sge, %0, %1083 : vector<1x256xi32>
    %cst_280 = arith.constant 0.000000e+00 : f32
    %1085 = vector.broadcast %cst_280 : f32 to vector<1x256xf32>
    %1086 = arith.select %1084, %1082, %1085 : vector<1x256xi1>, vector<1x256xf32>
    %1087 = arith.addf %1069, %1086 : vector<1x256xf32>
    %c16_281 = arith.constant 16 : index
    %1088 = memref.load %arg6[%c16_281] : memref<98xf32, #tpu.memory_space<smem>>
    %cst_282 = arith.constant 0.000000e+00 : f32
    %1089 = vector.broadcast %cst_282 : f32 to vector<1x34xf32>
    %1090 = vector.extract_strided_slice %944 {offsets = [0, 0], sizes = [1, 222], strides = [1, 1]} : vector<1x256xf32> to vector<1x222xf32>
    %1091 = tpu.concatenate %1089, %1090 in 1 : vector<1x34xf32>, vector<1x222xf32> -> vector<1x256xf32>
    %1092 = vector.broadcast %1088 : f32 to vector<1x256xf32>
    %1093 = arith.mulf %1092, %1091 : vector<1x256xf32>
    %c17_283 = arith.constant 17 : index
    %1094 = memref.load %arg6[%c17_283] : memref<98xf32, #tpu.memory_space<smem>>
    %cst_284 = arith.constant 0.000000e+00 : f32
    %1095 = vector.broadcast %cst_284 : f32 to vector<1x34xf32>
    %1096 = vector.extract_strided_slice %946 {offsets = [0, 0], sizes = [1, 222], strides = [1, 1]} : vector<1x256xf32> to vector<1x222xf32>
    %1097 = tpu.concatenate %1095, %1096 in 1 : vector<1x34xf32>, vector<1x222xf32> -> vector<1x256xf32>
    %1098 = vector.broadcast %1094 : f32 to vector<1x256xf32>
    %1099 = arith.mulf %1098, %1097 : vector<1x256xf32>
    %1100 = arith.addf %1093, %1099 : vector<1x256xf32>
    %c2_i32_285 = arith.constant 2 : i32
    %1101 = vector.broadcast %c2_i32_285 : i32 to vector<1x256xi32>
    %1102 = arith.cmpi sge, %0, %1101 : vector<1x256xi32>
    %cst_286 = arith.constant 0.000000e+00 : f32
    %1103 = vector.broadcast %cst_286 : f32 to vector<1x256xf32>
    %1104 = arith.select %1102, %1100, %1103 : vector<1x256xi1>, vector<1x256xf32>
    %1105 = arith.addf %1087, %1104 : vector<1x256xf32>
    %c18_287 = arith.constant 18 : index
    %1106 = memref.load %arg6[%c18_287] : memref<98xf32, #tpu.memory_space<smem>>
    %cst_288 = arith.constant 0.000000e+00 : f32
    %1107 = vector.broadcast %cst_288 : f32 to vector<1x33xf32>
    %1108 = vector.extract_strided_slice %944 {offsets = [0, 0], sizes = [1, 223], strides = [1, 1]} : vector<1x256xf32> to vector<1x223xf32>
    %1109 = tpu.concatenate %1107, %1108 in 1 : vector<1x33xf32>, vector<1x223xf32> -> vector<1x256xf32>
    %1110 = vector.broadcast %1106 : f32 to vector<1x256xf32>
    %1111 = arith.mulf %1110, %1109 : vector<1x256xf32>
    %c19_289 = arith.constant 19 : index
    %1112 = memref.load %arg6[%c19_289] : memref<98xf32, #tpu.memory_space<smem>>
    %cst_290 = arith.constant 0.000000e+00 : f32
    %1113 = vector.broadcast %cst_290 : f32 to vector<1x33xf32>
    %1114 = vector.extract_strided_slice %946 {offsets = [0, 0], sizes = [1, 223], strides = [1, 1]} : vector<1x256xf32> to vector<1x223xf32>
    %1115 = tpu.concatenate %1113, %1114 in 1 : vector<1x33xf32>, vector<1x223xf32> -> vector<1x256xf32>
    %1116 = vector.broadcast %1112 : f32 to vector<1x256xf32>
    %1117 = arith.mulf %1116, %1115 : vector<1x256xf32>
    %1118 = arith.addf %1111, %1117 : vector<1x256xf32>
    %c1_i32_291 = arith.constant 1 : i32
    %1119 = vector.broadcast %c1_i32_291 : i32 to vector<1x256xi32>
    %1120 = arith.cmpi sge, %0, %1119 : vector<1x256xi32>
    %cst_292 = arith.constant 0.000000e+00 : f32
    %1121 = vector.broadcast %cst_292 : f32 to vector<1x256xf32>
    %1122 = arith.select %1120, %1118, %1121 : vector<1x256xi1>, vector<1x256xf32>
    %1123 = arith.addf %1105, %1122 : vector<1x256xf32>
    %c20_293 = arith.constant 20 : index
    %1124 = memref.load %arg6[%c20_293] : memref<98xf32, #tpu.memory_space<smem>>
    %cst_294 = arith.constant 0.000000e+00 : f32
    %1125 = vector.broadcast %cst_294 : f32 to vector<1x32xf32>
    %1126 = vector.extract_strided_slice %944 {offsets = [0, 0], sizes = [1, 224], strides = [1, 1]} : vector<1x256xf32> to vector<1x224xf32>
    %1127 = tpu.concatenate %1125, %1126 in 1 : vector<1x32xf32>, vector<1x224xf32> -> vector<1x256xf32>
    %1128 = vector.broadcast %1124 : f32 to vector<1x256xf32>
    %1129 = arith.mulf %1128, %1127 : vector<1x256xf32>
    %c21_295 = arith.constant 21 : index
    %1130 = memref.load %arg6[%c21_295] : memref<98xf32, #tpu.memory_space<smem>>
    %cst_296 = arith.constant 0.000000e+00 : f32
    %1131 = vector.broadcast %cst_296 : f32 to vector<1x32xf32>
    %1132 = vector.extract_strided_slice %946 {offsets = [0, 0], sizes = [1, 224], strides = [1, 1]} : vector<1x256xf32> to vector<1x224xf32>
    %1133 = tpu.concatenate %1131, %1132 in 1 : vector<1x32xf32>, vector<1x224xf32> -> vector<1x256xf32>
    %1134 = vector.broadcast %1130 : f32 to vector<1x256xf32>
    %1135 = arith.mulf %1134, %1133 : vector<1x256xf32>
    %1136 = arith.addf %1129, %1135 : vector<1x256xf32>
    %1137 = arith.addf %1123, %1136 : vector<1x256xf32>
    %c22_297 = arith.constant 22 : index
    %1138 = memref.load %arg6[%c22_297] : memref<98xf32, #tpu.memory_space<smem>>
    %cst_298 = arith.constant 0.000000e+00 : f32
    %1139 = vector.broadcast %cst_298 : f32 to vector<1x31xf32>
    %1140 = vector.extract_strided_slice %944 {offsets = [0, 0], sizes = [1, 225], strides = [1, 1]} : vector<1x256xf32> to vector<1x225xf32>
    %1141 = tpu.concatenate %1139, %1140 in 1 : vector<1x31xf32>, vector<1x225xf32> -> vector<1x256xf32>
    %1142 = vector.broadcast %1138 : f32 to vector<1x256xf32>
    %1143 = arith.mulf %1142, %1141 : vector<1x256xf32>
    %c23_299 = arith.constant 23 : index
    %1144 = memref.load %arg6[%c23_299] : memref<98xf32, #tpu.memory_space<smem>>
    %cst_300 = arith.constant 0.000000e+00 : f32
    %1145 = vector.broadcast %cst_300 : f32 to vector<1x31xf32>
    %1146 = vector.extract_strided_slice %946 {offsets = [0, 0], sizes = [1, 225], strides = [1, 1]} : vector<1x256xf32> to vector<1x225xf32>
    %1147 = tpu.concatenate %1145, %1146 in 1 : vector<1x31xf32>, vector<1x225xf32> -> vector<1x256xf32>
    %1148 = vector.broadcast %1144 : f32 to vector<1x256xf32>
    %1149 = arith.mulf %1148, %1147 : vector<1x256xf32>
    %1150 = arith.addf %1143, %1149 : vector<1x256xf32>
    %c14_i32_301 = arith.constant 14 : i32
    %1151 = vector.broadcast %c14_i32_301 : i32 to vector<1x256xi32>
    %1152 = arith.cmpi sle, %0, %1151 : vector<1x256xi32>
    %cst_302 = arith.constant 0.000000e+00 : f32
    %1153 = vector.broadcast %cst_302 : f32 to vector<1x256xf32>
    %1154 = arith.select %1152, %1150, %1153 : vector<1x256xi1>, vector<1x256xf32>
    %1155 = arith.addf %1137, %1154 : vector<1x256xf32>
    %c24_303 = arith.constant 24 : index
    %1156 = memref.load %arg6[%c24_303] : memref<98xf32, #tpu.memory_space<smem>>
    %cst_304 = arith.constant 0.000000e+00 : f32
    %1157 = vector.broadcast %cst_304 : f32 to vector<1x30xf32>
    %1158 = vector.extract_strided_slice %944 {offsets = [0, 0], sizes = [1, 226], strides = [1, 1]} : vector<1x256xf32> to vector<1x226xf32>
    %1159 = tpu.concatenate %1157, %1158 in 1 : vector<1x30xf32>, vector<1x226xf32> -> vector<1x256xf32>
    %1160 = vector.broadcast %1156 : f32 to vector<1x256xf32>
    %1161 = arith.mulf %1160, %1159 : vector<1x256xf32>
    %c25_305 = arith.constant 25 : index
    %1162 = memref.load %arg6[%c25_305] : memref<98xf32, #tpu.memory_space<smem>>
    %cst_306 = arith.constant 0.000000e+00 : f32
    %1163 = vector.broadcast %cst_306 : f32 to vector<1x30xf32>
    %1164 = vector.extract_strided_slice %946 {offsets = [0, 0], sizes = [1, 226], strides = [1, 1]} : vector<1x256xf32> to vector<1x226xf32>
    %1165 = tpu.concatenate %1163, %1164 in 1 : vector<1x30xf32>, vector<1x226xf32> -> vector<1x256xf32>
    %1166 = vector.broadcast %1162 : f32 to vector<1x256xf32>
    %1167 = arith.mulf %1166, %1165 : vector<1x256xf32>
    %1168 = arith.addf %1161, %1167 : vector<1x256xf32>
    %c13_i32_307 = arith.constant 13 : i32
    %1169 = vector.broadcast %c13_i32_307 : i32 to vector<1x256xi32>
    %1170 = arith.cmpi sle, %0, %1169 : vector<1x256xi32>
    %cst_308 = arith.constant 0.000000e+00 : f32
    %1171 = vector.broadcast %cst_308 : f32 to vector<1x256xf32>
    %1172 = arith.select %1170, %1168, %1171 : vector<1x256xi1>, vector<1x256xf32>
    %1173 = arith.addf %1155, %1172 : vector<1x256xf32>
    %c26_309 = arith.constant 26 : index
    %1174 = memref.load %arg6[%c26_309] : memref<98xf32, #tpu.memory_space<smem>>
    %cst_310 = arith.constant 0.000000e+00 : f32
    %1175 = vector.broadcast %cst_310 : f32 to vector<1x29xf32>
    %1176 = vector.extract_strided_slice %944 {offsets = [0, 0], sizes = [1, 227], strides = [1, 1]} : vector<1x256xf32> to vector<1x227xf32>
    %1177 = tpu.concatenate %1175, %1176 in 1 : vector<1x29xf32>, vector<1x227xf32> -> vector<1x256xf32>
    %1178 = vector.broadcast %1174 : f32 to vector<1x256xf32>
    %1179 = arith.mulf %1178, %1177 : vector<1x256xf32>
    %c27_311 = arith.constant 27 : index
    %1180 = memref.load %arg6[%c27_311] : memref<98xf32, #tpu.memory_space<smem>>
    %cst_312 = arith.constant 0.000000e+00 : f32
    %1181 = vector.broadcast %cst_312 : f32 to vector<1x29xf32>
    %1182 = vector.extract_strided_slice %946 {offsets = [0, 0], sizes = [1, 227], strides = [1, 1]} : vector<1x256xf32> to vector<1x227xf32>
    %1183 = tpu.concatenate %1181, %1182 in 1 : vector<1x29xf32>, vector<1x227xf32> -> vector<1x256xf32>
    %1184 = vector.broadcast %1180 : f32 to vector<1x256xf32>
    %1185 = arith.mulf %1184, %1183 : vector<1x256xf32>
    %1186 = arith.addf %1179, %1185 : vector<1x256xf32>
    %c12_i32_313 = arith.constant 12 : i32
    %1187 = vector.broadcast %c12_i32_313 : i32 to vector<1x256xi32>
    %1188 = arith.cmpi sle, %0, %1187 : vector<1x256xi32>
    %cst_314 = arith.constant 0.000000e+00 : f32
    %1189 = vector.broadcast %cst_314 : f32 to vector<1x256xf32>
    %1190 = arith.select %1188, %1186, %1189 : vector<1x256xi1>, vector<1x256xf32>
    %1191 = arith.addf %1173, %1190 : vector<1x256xf32>
    %c28_315 = arith.constant 28 : index
    %1192 = memref.load %arg6[%c28_315] : memref<98xf32, #tpu.memory_space<smem>>
    %cst_316 = arith.constant 0.000000e+00 : f32
    %1193 = vector.broadcast %cst_316 : f32 to vector<1x19xf32>
    %1194 = vector.extract_strided_slice %944 {offsets = [0, 0], sizes = [1, 237], strides = [1, 1]} : vector<1x256xf32> to vector<1x237xf32>
    %1195 = tpu.concatenate %1193, %1194 in 1 : vector<1x19xf32>, vector<1x237xf32> -> vector<1x256xf32>
    %1196 = vector.broadcast %1192 : f32 to vector<1x256xf32>
    %1197 = arith.mulf %1196, %1195 : vector<1x256xf32>
    %c29_317 = arith.constant 29 : index
    %1198 = memref.load %arg6[%c29_317] : memref<98xf32, #tpu.memory_space<smem>>
    %cst_318 = arith.constant 0.000000e+00 : f32
    %1199 = vector.broadcast %cst_318 : f32 to vector<1x19xf32>
    %1200 = vector.extract_strided_slice %946 {offsets = [0, 0], sizes = [1, 237], strides = [1, 1]} : vector<1x256xf32> to vector<1x237xf32>
    %1201 = tpu.concatenate %1199, %1200 in 1 : vector<1x19xf32>, vector<1x237xf32> -> vector<1x256xf32>
    %1202 = vector.broadcast %1198 : f32 to vector<1x256xf32>
    %1203 = arith.mulf %1202, %1201 : vector<1x256xf32>
    %1204 = arith.addf %1197, %1203 : vector<1x256xf32>
    %c3_i32_319 = arith.constant 3 : i32
    %1205 = vector.broadcast %c3_i32_319 : i32 to vector<1x256xi32>
    %1206 = arith.cmpi sge, %0, %1205 : vector<1x256xi32>
    %cst_320 = arith.constant 0.000000e+00 : f32
    %1207 = vector.broadcast %cst_320 : f32 to vector<1x256xf32>
    %1208 = arith.select %1206, %1204, %1207 : vector<1x256xi1>, vector<1x256xf32>
    %1209 = arith.addf %1191, %1208 : vector<1x256xf32>
    %c30_321 = arith.constant 30 : index
    %1210 = memref.load %arg6[%c30_321] : memref<98xf32, #tpu.memory_space<smem>>
    %cst_322 = arith.constant 0.000000e+00 : f32
    %1211 = vector.broadcast %cst_322 : f32 to vector<1x18xf32>
    %1212 = vector.extract_strided_slice %944 {offsets = [0, 0], sizes = [1, 238], strides = [1, 1]} : vector<1x256xf32> to vector<1x238xf32>
    %1213 = tpu.concatenate %1211, %1212 in 1 : vector<1x18xf32>, vector<1x238xf32> -> vector<1x256xf32>
    %1214 = vector.broadcast %1210 : f32 to vector<1x256xf32>
    %1215 = arith.mulf %1214, %1213 : vector<1x256xf32>
    %c31_323 = arith.constant 31 : index
    %1216 = memref.load %arg6[%c31_323] : memref<98xf32, #tpu.memory_space<smem>>
    %cst_324 = arith.constant 0.000000e+00 : f32
    %1217 = vector.broadcast %cst_324 : f32 to vector<1x18xf32>
    %1218 = vector.extract_strided_slice %946 {offsets = [0, 0], sizes = [1, 238], strides = [1, 1]} : vector<1x256xf32> to vector<1x238xf32>
    %1219 = tpu.concatenate %1217, %1218 in 1 : vector<1x18xf32>, vector<1x238xf32> -> vector<1x256xf32>
    %1220 = vector.broadcast %1216 : f32 to vector<1x256xf32>
    %1221 = arith.mulf %1220, %1219 : vector<1x256xf32>
    %1222 = arith.addf %1215, %1221 : vector<1x256xf32>
    %c2_i32_325 = arith.constant 2 : i32
    %1223 = vector.broadcast %c2_i32_325 : i32 to vector<1x256xi32>
    %1224 = arith.cmpi sge, %0, %1223 : vector<1x256xi32>
    %cst_326 = arith.constant 0.000000e+00 : f32
    %1225 = vector.broadcast %cst_326 : f32 to vector<1x256xf32>
    %1226 = arith.select %1224, %1222, %1225 : vector<1x256xi1>, vector<1x256xf32>
    %1227 = arith.addf %1209, %1226 : vector<1x256xf32>
    %c32_327 = arith.constant 32 : index
    %1228 = memref.load %arg6[%c32_327] : memref<98xf32, #tpu.memory_space<smem>>
    %cst_328 = arith.constant 0.000000e+00 : f32
    %1229 = vector.broadcast %cst_328 : f32 to vector<1x17xf32>
    %1230 = vector.extract_strided_slice %944 {offsets = [0, 0], sizes = [1, 239], strides = [1, 1]} : vector<1x256xf32> to vector<1x239xf32>
    %1231 = tpu.concatenate %1229, %1230 in 1 : vector<1x17xf32>, vector<1x239xf32> -> vector<1x256xf32>
    %1232 = vector.broadcast %1228 : f32 to vector<1x256xf32>
    %1233 = arith.mulf %1232, %1231 : vector<1x256xf32>
    %c33_329 = arith.constant 33 : index
    %1234 = memref.load %arg6[%c33_329] : memref<98xf32, #tpu.memory_space<smem>>
    %cst_330 = arith.constant 0.000000e+00 : f32
    %1235 = vector.broadcast %cst_330 : f32 to vector<1x17xf32>
    %1236 = vector.extract_strided_slice %946 {offsets = [0, 0], sizes = [1, 239], strides = [1, 1]} : vector<1x256xf32> to vector<1x239xf32>
    %1237 = tpu.concatenate %1235, %1236 in 1 : vector<1x17xf32>, vector<1x239xf32> -> vector<1x256xf32>
    %1238 = vector.broadcast %1234 : f32 to vector<1x256xf32>
    %1239 = arith.mulf %1238, %1237 : vector<1x256xf32>
    %1240 = arith.addf %1233, %1239 : vector<1x256xf32>
    %c1_i32_331 = arith.constant 1 : i32
    %1241 = vector.broadcast %c1_i32_331 : i32 to vector<1x256xi32>
    %1242 = arith.cmpi sge, %0, %1241 : vector<1x256xi32>
    %cst_332 = arith.constant 0.000000e+00 : f32
    %1243 = vector.broadcast %cst_332 : f32 to vector<1x256xf32>
    %1244 = arith.select %1242, %1240, %1243 : vector<1x256xi1>, vector<1x256xf32>
    %1245 = arith.addf %1227, %1244 : vector<1x256xf32>
    %c34_333 = arith.constant 34 : index
    %1246 = memref.load %arg6[%c34_333] : memref<98xf32, #tpu.memory_space<smem>>
    %cst_334 = arith.constant 0.000000e+00 : f32
    %1247 = vector.broadcast %cst_334 : f32 to vector<1x16xf32>
    %1248 = vector.extract_strided_slice %944 {offsets = [0, 0], sizes = [1, 240], strides = [1, 1]} : vector<1x256xf32> to vector<1x240xf32>
    %1249 = tpu.concatenate %1247, %1248 in 1 : vector<1x16xf32>, vector<1x240xf32> -> vector<1x256xf32>
    %1250 = vector.broadcast %1246 : f32 to vector<1x256xf32>
    %1251 = arith.mulf %1250, %1249 : vector<1x256xf32>
    %c35_335 = arith.constant 35 : index
    %1252 = memref.load %arg6[%c35_335] : memref<98xf32, #tpu.memory_space<smem>>
    %cst_336 = arith.constant 0.000000e+00 : f32
    %1253 = vector.broadcast %cst_336 : f32 to vector<1x16xf32>
    %1254 = vector.extract_strided_slice %946 {offsets = [0, 0], sizes = [1, 240], strides = [1, 1]} : vector<1x256xf32> to vector<1x240xf32>
    %1255 = tpu.concatenate %1253, %1254 in 1 : vector<1x16xf32>, vector<1x240xf32> -> vector<1x256xf32>
    %1256 = vector.broadcast %1252 : f32 to vector<1x256xf32>
    %1257 = arith.mulf %1256, %1255 : vector<1x256xf32>
    %1258 = arith.addf %1251, %1257 : vector<1x256xf32>
    %1259 = arith.addf %1245, %1258 : vector<1x256xf32>
    %c36_337 = arith.constant 36 : index
    %1260 = memref.load %arg6[%c36_337] : memref<98xf32, #tpu.memory_space<smem>>
    %cst_338 = arith.constant 0.000000e+00 : f32
    %1261 = vector.broadcast %cst_338 : f32 to vector<1x15xf32>
    %1262 = vector.extract_strided_slice %944 {offsets = [0, 0], sizes = [1, 241], strides = [1, 1]} : vector<1x256xf32> to vector<1x241xf32>
    %1263 = tpu.concatenate %1261, %1262 in 1 : vector<1x15xf32>, vector<1x241xf32> -> vector<1x256xf32>
    %1264 = vector.broadcast %1260 : f32 to vector<1x256xf32>
    %1265 = arith.mulf %1264, %1263 : vector<1x256xf32>
    %c37_339 = arith.constant 37 : index
    %1266 = memref.load %arg6[%c37_339] : memref<98xf32, #tpu.memory_space<smem>>
    %cst_340 = arith.constant 0.000000e+00 : f32
    %1267 = vector.broadcast %cst_340 : f32 to vector<1x15xf32>
    %1268 = vector.extract_strided_slice %946 {offsets = [0, 0], sizes = [1, 241], strides = [1, 1]} : vector<1x256xf32> to vector<1x241xf32>
    %1269 = tpu.concatenate %1267, %1268 in 1 : vector<1x15xf32>, vector<1x241xf32> -> vector<1x256xf32>
    %1270 = vector.broadcast %1266 : f32 to vector<1x256xf32>
    %1271 = arith.mulf %1270, %1269 : vector<1x256xf32>
    %1272 = arith.addf %1265, %1271 : vector<1x256xf32>
    %c14_i32_341 = arith.constant 14 : i32
    %1273 = vector.broadcast %c14_i32_341 : i32 to vector<1x256xi32>
    %1274 = arith.cmpi sle, %0, %1273 : vector<1x256xi32>
    %cst_342 = arith.constant 0.000000e+00 : f32
    %1275 = vector.broadcast %cst_342 : f32 to vector<1x256xf32>
    %1276 = arith.select %1274, %1272, %1275 : vector<1x256xi1>, vector<1x256xf32>
    %1277 = arith.addf %1259, %1276 : vector<1x256xf32>
    %c38_343 = arith.constant 38 : index
    %1278 = memref.load %arg6[%c38_343] : memref<98xf32, #tpu.memory_space<smem>>
    %cst_344 = arith.constant 0.000000e+00 : f32
    %1279 = vector.broadcast %cst_344 : f32 to vector<1x14xf32>
    %1280 = vector.extract_strided_slice %944 {offsets = [0, 0], sizes = [1, 242], strides = [1, 1]} : vector<1x256xf32> to vector<1x242xf32>
    %1281 = tpu.concatenate %1279, %1280 in 1 : vector<1x14xf32>, vector<1x242xf32> -> vector<1x256xf32>
    %1282 = vector.broadcast %1278 : f32 to vector<1x256xf32>
    %1283 = arith.mulf %1282, %1281 : vector<1x256xf32>
    %c39_345 = arith.constant 39 : index
    %1284 = memref.load %arg6[%c39_345] : memref<98xf32, #tpu.memory_space<smem>>
    %cst_346 = arith.constant 0.000000e+00 : f32
    %1285 = vector.broadcast %cst_346 : f32 to vector<1x14xf32>
    %1286 = vector.extract_strided_slice %946 {offsets = [0, 0], sizes = [1, 242], strides = [1, 1]} : vector<1x256xf32> to vector<1x242xf32>
    %1287 = tpu.concatenate %1285, %1286 in 1 : vector<1x14xf32>, vector<1x242xf32> -> vector<1x256xf32>
    %1288 = vector.broadcast %1284 : f32 to vector<1x256xf32>
    %1289 = arith.mulf %1288, %1287 : vector<1x256xf32>
    %1290 = arith.addf %1283, %1289 : vector<1x256xf32>
    %c13_i32_347 = arith.constant 13 : i32
    %1291 = vector.broadcast %c13_i32_347 : i32 to vector<1x256xi32>
    %1292 = arith.cmpi sle, %0, %1291 : vector<1x256xi32>
    %cst_348 = arith.constant 0.000000e+00 : f32
    %1293 = vector.broadcast %cst_348 : f32 to vector<1x256xf32>
    %1294 = arith.select %1292, %1290, %1293 : vector<1x256xi1>, vector<1x256xf32>
    %1295 = arith.addf %1277, %1294 : vector<1x256xf32>
    %c40_349 = arith.constant 40 : index
    %1296 = memref.load %arg6[%c40_349] : memref<98xf32, #tpu.memory_space<smem>>
    %cst_350 = arith.constant 0.000000e+00 : f32
    %1297 = vector.broadcast %cst_350 : f32 to vector<1x13xf32>
    %1298 = vector.extract_strided_slice %944 {offsets = [0, 0], sizes = [1, 243], strides = [1, 1]} : vector<1x256xf32> to vector<1x243xf32>
    %1299 = tpu.concatenate %1297, %1298 in 1 : vector<1x13xf32>, vector<1x243xf32> -> vector<1x256xf32>
    %1300 = vector.broadcast %1296 : f32 to vector<1x256xf32>
    %1301 = arith.mulf %1300, %1299 : vector<1x256xf32>
    %c41_351 = arith.constant 41 : index
    %1302 = memref.load %arg6[%c41_351] : memref<98xf32, #tpu.memory_space<smem>>
    %cst_352 = arith.constant 0.000000e+00 : f32
    %1303 = vector.broadcast %cst_352 : f32 to vector<1x13xf32>
    %1304 = vector.extract_strided_slice %946 {offsets = [0, 0], sizes = [1, 243], strides = [1, 1]} : vector<1x256xf32> to vector<1x243xf32>
    %1305 = tpu.concatenate %1303, %1304 in 1 : vector<1x13xf32>, vector<1x243xf32> -> vector<1x256xf32>
    %1306 = vector.broadcast %1302 : f32 to vector<1x256xf32>
    %1307 = arith.mulf %1306, %1305 : vector<1x256xf32>
    %1308 = arith.addf %1301, %1307 : vector<1x256xf32>
    %c12_i32_353 = arith.constant 12 : i32
    %1309 = vector.broadcast %c12_i32_353 : i32 to vector<1x256xi32>
    %1310 = arith.cmpi sle, %0, %1309 : vector<1x256xi32>
    %cst_354 = arith.constant 0.000000e+00 : f32
    %1311 = vector.broadcast %cst_354 : f32 to vector<1x256xf32>
    %1312 = arith.select %1310, %1308, %1311 : vector<1x256xi1>, vector<1x256xf32>
    %1313 = arith.addf %1295, %1312 : vector<1x256xf32>
    %c42_355 = arith.constant 42 : index
    %1314 = memref.load %arg6[%c42_355] : memref<98xf32, #tpu.memory_space<smem>>
    %cst_356 = arith.constant 0.000000e+00 : f32
    %1315 = vector.broadcast %cst_356 : f32 to vector<1x3xf32>
    %1316 = vector.extract_strided_slice %944 {offsets = [0, 0], sizes = [1, 253], strides = [1, 1]} : vector<1x256xf32> to vector<1x253xf32>
    %1317 = tpu.concatenate %1315, %1316 in 1 : vector<1x3xf32>, vector<1x253xf32> -> vector<1x256xf32>
    %1318 = vector.broadcast %1314 : f32 to vector<1x256xf32>
    %1319 = arith.mulf %1318, %1317 : vector<1x256xf32>
    %c43_357 = arith.constant 43 : index
    %1320 = memref.load %arg6[%c43_357] : memref<98xf32, #tpu.memory_space<smem>>
    %cst_358 = arith.constant 0.000000e+00 : f32
    %1321 = vector.broadcast %cst_358 : f32 to vector<1x3xf32>
    %1322 = vector.extract_strided_slice %946 {offsets = [0, 0], sizes = [1, 253], strides = [1, 1]} : vector<1x256xf32> to vector<1x253xf32>
    %1323 = tpu.concatenate %1321, %1322 in 1 : vector<1x3xf32>, vector<1x253xf32> -> vector<1x256xf32>
    %1324 = vector.broadcast %1320 : f32 to vector<1x256xf32>
    %1325 = arith.mulf %1324, %1323 : vector<1x256xf32>
    %1326 = arith.addf %1319, %1325 : vector<1x256xf32>
    %c3_i32_359 = arith.constant 3 : i32
    %1327 = vector.broadcast %c3_i32_359 : i32 to vector<1x256xi32>
    %1328 = arith.cmpi sge, %0, %1327 : vector<1x256xi32>
    %cst_360 = arith.constant 0.000000e+00 : f32
    %1329 = vector.broadcast %cst_360 : f32 to vector<1x256xf32>
    %1330 = arith.select %1328, %1326, %1329 : vector<1x256xi1>, vector<1x256xf32>
    %1331 = arith.addf %1313, %1330 : vector<1x256xf32>
    %c44_361 = arith.constant 44 : index
    %1332 = memref.load %arg6[%c44_361] : memref<98xf32, #tpu.memory_space<smem>>
    %cst_362 = arith.constant 0.000000e+00 : f32
    %1333 = vector.broadcast %cst_362 : f32 to vector<1x2xf32>
    %1334 = vector.extract_strided_slice %944 {offsets = [0, 0], sizes = [1, 254], strides = [1, 1]} : vector<1x256xf32> to vector<1x254xf32>
    %1335 = tpu.concatenate %1333, %1334 in 1 : vector<1x2xf32>, vector<1x254xf32> -> vector<1x256xf32>
    %1336 = vector.broadcast %1332 : f32 to vector<1x256xf32>
    %1337 = arith.mulf %1336, %1335 : vector<1x256xf32>
    %c45_363 = arith.constant 45 : index
    %1338 = memref.load %arg6[%c45_363] : memref<98xf32, #tpu.memory_space<smem>>
    %cst_364 = arith.constant 0.000000e+00 : f32
    %1339 = vector.broadcast %cst_364 : f32 to vector<1x2xf32>
    %1340 = vector.extract_strided_slice %946 {offsets = [0, 0], sizes = [1, 254], strides = [1, 1]} : vector<1x256xf32> to vector<1x254xf32>
    %1341 = tpu.concatenate %1339, %1340 in 1 : vector<1x2xf32>, vector<1x254xf32> -> vector<1x256xf32>
    %1342 = vector.broadcast %1338 : f32 to vector<1x256xf32>
    %1343 = arith.mulf %1342, %1341 : vector<1x256xf32>
    %1344 = arith.addf %1337, %1343 : vector<1x256xf32>
    %c2_i32_365 = arith.constant 2 : i32
    %1345 = vector.broadcast %c2_i32_365 : i32 to vector<1x256xi32>
    %1346 = arith.cmpi sge, %0, %1345 : vector<1x256xi32>
    %cst_366 = arith.constant 0.000000e+00 : f32
    %1347 = vector.broadcast %cst_366 : f32 to vector<1x256xf32>
    %1348 = arith.select %1346, %1344, %1347 : vector<1x256xi1>, vector<1x256xf32>
    %1349 = arith.addf %1331, %1348 : vector<1x256xf32>
    %c46_367 = arith.constant 46 : index
    %1350 = memref.load %arg6[%c46_367] : memref<98xf32, #tpu.memory_space<smem>>
    %cst_368 = arith.constant 0.000000e+00 : f32
    %1351 = vector.broadcast %cst_368 : f32 to vector<1x1xf32>
    %1352 = vector.extract_strided_slice %944 {offsets = [0, 0], sizes = [1, 255], strides = [1, 1]} : vector<1x256xf32> to vector<1x255xf32>
    %1353 = tpu.concatenate %1351, %1352 in 1 : vector<1x1xf32>, vector<1x255xf32> -> vector<1x256xf32>
    %1354 = vector.broadcast %1350 : f32 to vector<1x256xf32>
    %1355 = arith.mulf %1354, %1353 : vector<1x256xf32>
    %c47_369 = arith.constant 47 : index
    %1356 = memref.load %arg6[%c47_369] : memref<98xf32, #tpu.memory_space<smem>>
    %cst_370 = arith.constant 0.000000e+00 : f32
    %1357 = vector.broadcast %cst_370 : f32 to vector<1x1xf32>
    %1358 = vector.extract_strided_slice %946 {offsets = [0, 0], sizes = [1, 255], strides = [1, 1]} : vector<1x256xf32> to vector<1x255xf32>
    %1359 = tpu.concatenate %1357, %1358 in 1 : vector<1x1xf32>, vector<1x255xf32> -> vector<1x256xf32>
    %1360 = vector.broadcast %1356 : f32 to vector<1x256xf32>
    %1361 = arith.mulf %1360, %1359 : vector<1x256xf32>
    %1362 = arith.addf %1355, %1361 : vector<1x256xf32>
    %c1_i32_371 = arith.constant 1 : i32
    %1363 = vector.broadcast %c1_i32_371 : i32 to vector<1x256xi32>
    %1364 = arith.cmpi sge, %0, %1363 : vector<1x256xi32>
    %cst_372 = arith.constant 0.000000e+00 : f32
    %1365 = vector.broadcast %cst_372 : f32 to vector<1x256xf32>
    %1366 = arith.select %1364, %1362, %1365 : vector<1x256xi1>, vector<1x256xf32>
    %1367 = arith.addf %1349, %1366 : vector<1x256xf32>
    %c48_373 = arith.constant 48 : index
    %1368 = memref.load %arg6[%c48_373] : memref<98xf32, #tpu.memory_space<smem>>
    %1369 = vector.broadcast %1368 : f32 to vector<1x256xf32>
    %1370 = arith.mulf %1369, %944 : vector<1x256xf32>
    %c49_374 = arith.constant 49 : index
    %1371 = memref.load %arg6[%c49_374] : memref<98xf32, #tpu.memory_space<smem>>
    %1372 = vector.broadcast %1371 : f32 to vector<1x256xf32>
    %1373 = arith.mulf %1372, %946 : vector<1x256xf32>
    %1374 = arith.addf %1370, %1373 : vector<1x256xf32>
    %1375 = arith.addf %1367, %1374 : vector<1x256xf32>
    %c50_375 = arith.constant 50 : index
    %1376 = memref.load %arg6[%c50_375] : memref<98xf32, #tpu.memory_space<smem>>
    %cst_376 = arith.constant 0.000000e+00 : f32
    %1377 = vector.broadcast %cst_376 : f32 to vector<1x1xf32>
    %1378 = vector.extract_strided_slice %944 {offsets = [0, 1], sizes = [1, 255], strides = [1, 1]} : vector<1x256xf32> to vector<1x255xf32>
    %1379 = tpu.concatenate %1378, %1377 in 1 : vector<1x255xf32>, vector<1x1xf32> -> vector<1x256xf32>
    %1380 = vector.broadcast %1376 : f32 to vector<1x256xf32>
    %1381 = arith.mulf %1380, %1379 : vector<1x256xf32>
    %c51_377 = arith.constant 51 : index
    %1382 = memref.load %arg6[%c51_377] : memref<98xf32, #tpu.memory_space<smem>>
    %cst_378 = arith.constant 0.000000e+00 : f32
    %1383 = vector.broadcast %cst_378 : f32 to vector<1x1xf32>
    %1384 = vector.extract_strided_slice %946 {offsets = [0, 1], sizes = [1, 255], strides = [1, 1]} : vector<1x256xf32> to vector<1x255xf32>
    %1385 = tpu.concatenate %1384, %1383 in 1 : vector<1x255xf32>, vector<1x1xf32> -> vector<1x256xf32>
    %1386 = vector.broadcast %1382 : f32 to vector<1x256xf32>
    %1387 = arith.mulf %1386, %1385 : vector<1x256xf32>
    %1388 = arith.addf %1381, %1387 : vector<1x256xf32>
    %c14_i32_379 = arith.constant 14 : i32
    %1389 = vector.broadcast %c14_i32_379 : i32 to vector<1x256xi32>
    %1390 = arith.cmpi sle, %0, %1389 : vector<1x256xi32>
    %cst_380 = arith.constant 0.000000e+00 : f32
    %1391 = vector.broadcast %cst_380 : f32 to vector<1x256xf32>
    %1392 = arith.select %1390, %1388, %1391 : vector<1x256xi1>, vector<1x256xf32>
    %1393 = arith.addf %1375, %1392 : vector<1x256xf32>
    %c52_381 = arith.constant 52 : index
    %1394 = memref.load %arg6[%c52_381] : memref<98xf32, #tpu.memory_space<smem>>
    %cst_382 = arith.constant 0.000000e+00 : f32
    %1395 = vector.broadcast %cst_382 : f32 to vector<1x2xf32>
    %1396 = vector.extract_strided_slice %944 {offsets = [0, 2], sizes = [1, 254], strides = [1, 1]} : vector<1x256xf32> to vector<1x254xf32>
    %1397 = tpu.concatenate %1396, %1395 in 1 : vector<1x254xf32>, vector<1x2xf32> -> vector<1x256xf32>
    %1398 = vector.broadcast %1394 : f32 to vector<1x256xf32>
    %1399 = arith.mulf %1398, %1397 : vector<1x256xf32>
    %c53_383 = arith.constant 53 : index
    %1400 = memref.load %arg6[%c53_383] : memref<98xf32, #tpu.memory_space<smem>>
    %cst_384 = arith.constant 0.000000e+00 : f32
    %1401 = vector.broadcast %cst_384 : f32 to vector<1x2xf32>
    %1402 = vector.extract_strided_slice %946 {offsets = [0, 2], sizes = [1, 254], strides = [1, 1]} : vector<1x256xf32> to vector<1x254xf32>
    %1403 = tpu.concatenate %1402, %1401 in 1 : vector<1x254xf32>, vector<1x2xf32> -> vector<1x256xf32>
    %1404 = vector.broadcast %1400 : f32 to vector<1x256xf32>
    %1405 = arith.mulf %1404, %1403 : vector<1x256xf32>
    %1406 = arith.addf %1399, %1405 : vector<1x256xf32>
    %c13_i32_385 = arith.constant 13 : i32
    %1407 = vector.broadcast %c13_i32_385 : i32 to vector<1x256xi32>
    %1408 = arith.cmpi sle, %0, %1407 : vector<1x256xi32>
    %cst_386 = arith.constant 0.000000e+00 : f32
    %1409 = vector.broadcast %cst_386 : f32 to vector<1x256xf32>
    %1410 = arith.select %1408, %1406, %1409 : vector<1x256xi1>, vector<1x256xf32>
    %1411 = arith.addf %1393, %1410 : vector<1x256xf32>
    %c54_387 = arith.constant 54 : index
    %1412 = memref.load %arg6[%c54_387] : memref<98xf32, #tpu.memory_space<smem>>
    %cst_388 = arith.constant 0.000000e+00 : f32
    %1413 = vector.broadcast %cst_388 : f32 to vector<1x3xf32>
    %1414 = vector.extract_strided_slice %944 {offsets = [0, 3], sizes = [1, 253], strides = [1, 1]} : vector<1x256xf32> to vector<1x253xf32>
    %1415 = tpu.concatenate %1414, %1413 in 1 : vector<1x253xf32>, vector<1x3xf32> -> vector<1x256xf32>
    %1416 = vector.broadcast %1412 : f32 to vector<1x256xf32>
    %1417 = arith.mulf %1416, %1415 : vector<1x256xf32>
    %c55_389 = arith.constant 55 : index
    %1418 = memref.load %arg6[%c55_389] : memref<98xf32, #tpu.memory_space<smem>>
    %cst_390 = arith.constant 0.000000e+00 : f32
    %1419 = vector.broadcast %cst_390 : f32 to vector<1x3xf32>
    %1420 = vector.extract_strided_slice %946 {offsets = [0, 3], sizes = [1, 253], strides = [1, 1]} : vector<1x256xf32> to vector<1x253xf32>
    %1421 = tpu.concatenate %1420, %1419 in 1 : vector<1x253xf32>, vector<1x3xf32> -> vector<1x256xf32>
    %1422 = vector.broadcast %1418 : f32 to vector<1x256xf32>
    %1423 = arith.mulf %1422, %1421 : vector<1x256xf32>
    %1424 = arith.addf %1417, %1423 : vector<1x256xf32>
    %c12_i32_391 = arith.constant 12 : i32
    %1425 = vector.broadcast %c12_i32_391 : i32 to vector<1x256xi32>
    %1426 = arith.cmpi sle, %0, %1425 : vector<1x256xi32>
    %cst_392 = arith.constant 0.000000e+00 : f32
    %1427 = vector.broadcast %cst_392 : f32 to vector<1x256xf32>
    %1428 = arith.select %1426, %1424, %1427 : vector<1x256xi1>, vector<1x256xf32>
    %1429 = arith.addf %1411, %1428 : vector<1x256xf32>
    %c56_393 = arith.constant 56 : index
    %1430 = memref.load %arg6[%c56_393] : memref<98xf32, #tpu.memory_space<smem>>
    %cst_394 = arith.constant 0.000000e+00 : f32
    %1431 = vector.broadcast %cst_394 : f32 to vector<1x13xf32>
    %1432 = vector.extract_strided_slice %944 {offsets = [0, 13], sizes = [1, 243], strides = [1, 1]} : vector<1x256xf32> to vector<1x243xf32>
    %1433 = tpu.concatenate %1432, %1431 in 1 : vector<1x243xf32>, vector<1x13xf32> -> vector<1x256xf32>
    %1434 = vector.broadcast %1430 : f32 to vector<1x256xf32>
    %1435 = arith.mulf %1434, %1433 : vector<1x256xf32>
    %c57_395 = arith.constant 57 : index
    %1436 = memref.load %arg6[%c57_395] : memref<98xf32, #tpu.memory_space<smem>>
    %cst_396 = arith.constant 0.000000e+00 : f32
    %1437 = vector.broadcast %cst_396 : f32 to vector<1x13xf32>
    %1438 = vector.extract_strided_slice %946 {offsets = [0, 13], sizes = [1, 243], strides = [1, 1]} : vector<1x256xf32> to vector<1x243xf32>
    %1439 = tpu.concatenate %1438, %1437 in 1 : vector<1x243xf32>, vector<1x13xf32> -> vector<1x256xf32>
    %1440 = vector.broadcast %1436 : f32 to vector<1x256xf32>
    %1441 = arith.mulf %1440, %1439 : vector<1x256xf32>
    %1442 = arith.addf %1435, %1441 : vector<1x256xf32>
    %c3_i32_397 = arith.constant 3 : i32
    %1443 = vector.broadcast %c3_i32_397 : i32 to vector<1x256xi32>
    %1444 = arith.cmpi sge, %0, %1443 : vector<1x256xi32>
    %cst_398 = arith.constant 0.000000e+00 : f32
    %1445 = vector.broadcast %cst_398 : f32 to vector<1x256xf32>
    %1446 = arith.select %1444, %1442, %1445 : vector<1x256xi1>, vector<1x256xf32>
    %1447 = arith.addf %1429, %1446 : vector<1x256xf32>
    %c58_399 = arith.constant 58 : index
    %1448 = memref.load %arg6[%c58_399] : memref<98xf32, #tpu.memory_space<smem>>
    %cst_400 = arith.constant 0.000000e+00 : f32
    %1449 = vector.broadcast %cst_400 : f32 to vector<1x14xf32>
    %1450 = vector.extract_strided_slice %944 {offsets = [0, 14], sizes = [1, 242], strides = [1, 1]} : vector<1x256xf32> to vector<1x242xf32>
    %1451 = tpu.concatenate %1450, %1449 in 1 : vector<1x242xf32>, vector<1x14xf32> -> vector<1x256xf32>
    %1452 = vector.broadcast %1448 : f32 to vector<1x256xf32>
    %1453 = arith.mulf %1452, %1451 : vector<1x256xf32>
    %c59_401 = arith.constant 59 : index
    %1454 = memref.load %arg6[%c59_401] : memref<98xf32, #tpu.memory_space<smem>>
    %cst_402 = arith.constant 0.000000e+00 : f32
    %1455 = vector.broadcast %cst_402 : f32 to vector<1x14xf32>
    %1456 = vector.extract_strided_slice %946 {offsets = [0, 14], sizes = [1, 242], strides = [1, 1]} : vector<1x256xf32> to vector<1x242xf32>
    %1457 = tpu.concatenate %1456, %1455 in 1 : vector<1x242xf32>, vector<1x14xf32> -> vector<1x256xf32>
    %1458 = vector.broadcast %1454 : f32 to vector<1x256xf32>
    %1459 = arith.mulf %1458, %1457 : vector<1x256xf32>
    %1460 = arith.addf %1453, %1459 : vector<1x256xf32>
    %c2_i32_403 = arith.constant 2 : i32
    %1461 = vector.broadcast %c2_i32_403 : i32 to vector<1x256xi32>
    %1462 = arith.cmpi sge, %0, %1461 : vector<1x256xi32>
    %cst_404 = arith.constant 0.000000e+00 : f32
    %1463 = vector.broadcast %cst_404 : f32 to vector<1x256xf32>
    %1464 = arith.select %1462, %1460, %1463 : vector<1x256xi1>, vector<1x256xf32>
    %1465 = arith.addf %1447, %1464 : vector<1x256xf32>
    %c60_405 = arith.constant 60 : index
    %1466 = memref.load %arg6[%c60_405] : memref<98xf32, #tpu.memory_space<smem>>
    %cst_406 = arith.constant 0.000000e+00 : f32
    %1467 = vector.broadcast %cst_406 : f32 to vector<1x15xf32>
    %1468 = vector.extract_strided_slice %944 {offsets = [0, 15], sizes = [1, 241], strides = [1, 1]} : vector<1x256xf32> to vector<1x241xf32>
    %1469 = tpu.concatenate %1468, %1467 in 1 : vector<1x241xf32>, vector<1x15xf32> -> vector<1x256xf32>
    %1470 = vector.broadcast %1466 : f32 to vector<1x256xf32>
    %1471 = arith.mulf %1470, %1469 : vector<1x256xf32>
    %c61_407 = arith.constant 61 : index
    %1472 = memref.load %arg6[%c61_407] : memref<98xf32, #tpu.memory_space<smem>>
    %cst_408 = arith.constant 0.000000e+00 : f32
    %1473 = vector.broadcast %cst_408 : f32 to vector<1x15xf32>
    %1474 = vector.extract_strided_slice %946 {offsets = [0, 15], sizes = [1, 241], strides = [1, 1]} : vector<1x256xf32> to vector<1x241xf32>
    %1475 = tpu.concatenate %1474, %1473 in 1 : vector<1x241xf32>, vector<1x15xf32> -> vector<1x256xf32>
    %1476 = vector.broadcast %1472 : f32 to vector<1x256xf32>
    %1477 = arith.mulf %1476, %1475 : vector<1x256xf32>
    %1478 = arith.addf %1471, %1477 : vector<1x256xf32>
    %c1_i32_409 = arith.constant 1 : i32
    %1479 = vector.broadcast %c1_i32_409 : i32 to vector<1x256xi32>
    %1480 = arith.cmpi sge, %0, %1479 : vector<1x256xi32>
    %cst_410 = arith.constant 0.000000e+00 : f32
    %1481 = vector.broadcast %cst_410 : f32 to vector<1x256xf32>
    %1482 = arith.select %1480, %1478, %1481 : vector<1x256xi1>, vector<1x256xf32>
    %1483 = arith.addf %1465, %1482 : vector<1x256xf32>
    %c62_411 = arith.constant 62 : index
    %1484 = memref.load %arg6[%c62_411] : memref<98xf32, #tpu.memory_space<smem>>
    %cst_412 = arith.constant 0.000000e+00 : f32
    %1485 = vector.broadcast %cst_412 : f32 to vector<1x16xf32>
    %1486 = vector.extract_strided_slice %944 {offsets = [0, 16], sizes = [1, 240], strides = [1, 1]} : vector<1x256xf32> to vector<1x240xf32>
    %1487 = tpu.concatenate %1486, %1485 in 1 : vector<1x240xf32>, vector<1x16xf32> -> vector<1x256xf32>
    %1488 = vector.broadcast %1484 : f32 to vector<1x256xf32>
    %1489 = arith.mulf %1488, %1487 : vector<1x256xf32>
    %c63_413 = arith.constant 63 : index
    %1490 = memref.load %arg6[%c63_413] : memref<98xf32, #tpu.memory_space<smem>>
    %cst_414 = arith.constant 0.000000e+00 : f32
    %1491 = vector.broadcast %cst_414 : f32 to vector<1x16xf32>
    %1492 = vector.extract_strided_slice %946 {offsets = [0, 16], sizes = [1, 240], strides = [1, 1]} : vector<1x256xf32> to vector<1x240xf32>
    %1493 = tpu.concatenate %1492, %1491 in 1 : vector<1x240xf32>, vector<1x16xf32> -> vector<1x256xf32>
    %1494 = vector.broadcast %1490 : f32 to vector<1x256xf32>
    %1495 = arith.mulf %1494, %1493 : vector<1x256xf32>
    %1496 = arith.addf %1489, %1495 : vector<1x256xf32>
    %1497 = arith.addf %1483, %1496 : vector<1x256xf32>
    %c64_415 = arith.constant 64 : index
    %1498 = memref.load %arg6[%c64_415] : memref<98xf32, #tpu.memory_space<smem>>
    %cst_416 = arith.constant 0.000000e+00 : f32
    %1499 = vector.broadcast %cst_416 : f32 to vector<1x17xf32>
    %1500 = vector.extract_strided_slice %944 {offsets = [0, 17], sizes = [1, 239], strides = [1, 1]} : vector<1x256xf32> to vector<1x239xf32>
    %1501 = tpu.concatenate %1500, %1499 in 1 : vector<1x239xf32>, vector<1x17xf32> -> vector<1x256xf32>
    %1502 = vector.broadcast %1498 : f32 to vector<1x256xf32>
    %1503 = arith.mulf %1502, %1501 : vector<1x256xf32>
    %c65_417 = arith.constant 65 : index
    %1504 = memref.load %arg6[%c65_417] : memref<98xf32, #tpu.memory_space<smem>>
    %cst_418 = arith.constant 0.000000e+00 : f32
    %1505 = vector.broadcast %cst_418 : f32 to vector<1x17xf32>
    %1506 = vector.extract_strided_slice %946 {offsets = [0, 17], sizes = [1, 239], strides = [1, 1]} : vector<1x256xf32> to vector<1x239xf32>
    %1507 = tpu.concatenate %1506, %1505 in 1 : vector<1x239xf32>, vector<1x17xf32> -> vector<1x256xf32>
    %1508 = vector.broadcast %1504 : f32 to vector<1x256xf32>
    %1509 = arith.mulf %1508, %1507 : vector<1x256xf32>
    %1510 = arith.addf %1503, %1509 : vector<1x256xf32>
    %c14_i32_419 = arith.constant 14 : i32
    %1511 = vector.broadcast %c14_i32_419 : i32 to vector<1x256xi32>
    %1512 = arith.cmpi sle, %0, %1511 : vector<1x256xi32>
    %cst_420 = arith.constant 0.000000e+00 : f32
    %1513 = vector.broadcast %cst_420 : f32 to vector<1x256xf32>
    %1514 = arith.select %1512, %1510, %1513 : vector<1x256xi1>, vector<1x256xf32>
    %1515 = arith.addf %1497, %1514 : vector<1x256xf32>
    %c66_421 = arith.constant 66 : index
    %1516 = memref.load %arg6[%c66_421] : memref<98xf32, #tpu.memory_space<smem>>
    %cst_422 = arith.constant 0.000000e+00 : f32
    %1517 = vector.broadcast %cst_422 : f32 to vector<1x18xf32>
    %1518 = vector.extract_strided_slice %944 {offsets = [0, 18], sizes = [1, 238], strides = [1, 1]} : vector<1x256xf32> to vector<1x238xf32>
    %1519 = tpu.concatenate %1518, %1517 in 1 : vector<1x238xf32>, vector<1x18xf32> -> vector<1x256xf32>
    %1520 = vector.broadcast %1516 : f32 to vector<1x256xf32>
    %1521 = arith.mulf %1520, %1519 : vector<1x256xf32>
    %c67_423 = arith.constant 67 : index
    %1522 = memref.load %arg6[%c67_423] : memref<98xf32, #tpu.memory_space<smem>>
    %cst_424 = arith.constant 0.000000e+00 : f32
    %1523 = vector.broadcast %cst_424 : f32 to vector<1x18xf32>
    %1524 = vector.extract_strided_slice %946 {offsets = [0, 18], sizes = [1, 238], strides = [1, 1]} : vector<1x256xf32> to vector<1x238xf32>
    %1525 = tpu.concatenate %1524, %1523 in 1 : vector<1x238xf32>, vector<1x18xf32> -> vector<1x256xf32>
    %1526 = vector.broadcast %1522 : f32 to vector<1x256xf32>
    %1527 = arith.mulf %1526, %1525 : vector<1x256xf32>
    %1528 = arith.addf %1521, %1527 : vector<1x256xf32>
    %c13_i32_425 = arith.constant 13 : i32
    %1529 = vector.broadcast %c13_i32_425 : i32 to vector<1x256xi32>
    %1530 = arith.cmpi sle, %0, %1529 : vector<1x256xi32>
    %cst_426 = arith.constant 0.000000e+00 : f32
    %1531 = vector.broadcast %cst_426 : f32 to vector<1x256xf32>
    %1532 = arith.select %1530, %1528, %1531 : vector<1x256xi1>, vector<1x256xf32>
    %1533 = arith.addf %1515, %1532 : vector<1x256xf32>
    %c68_427 = arith.constant 68 : index
    %1534 = memref.load %arg6[%c68_427] : memref<98xf32, #tpu.memory_space<smem>>
    %cst_428 = arith.constant 0.000000e+00 : f32
    %1535 = vector.broadcast %cst_428 : f32 to vector<1x19xf32>
    %1536 = vector.extract_strided_slice %944 {offsets = [0, 19], sizes = [1, 237], strides = [1, 1]} : vector<1x256xf32> to vector<1x237xf32>
    %1537 = tpu.concatenate %1536, %1535 in 1 : vector<1x237xf32>, vector<1x19xf32> -> vector<1x256xf32>
    %1538 = vector.broadcast %1534 : f32 to vector<1x256xf32>
    %1539 = arith.mulf %1538, %1537 : vector<1x256xf32>
    %c69_429 = arith.constant 69 : index
    %1540 = memref.load %arg6[%c69_429] : memref<98xf32, #tpu.memory_space<smem>>
    %cst_430 = arith.constant 0.000000e+00 : f32
    %1541 = vector.broadcast %cst_430 : f32 to vector<1x19xf32>
    %1542 = vector.extract_strided_slice %946 {offsets = [0, 19], sizes = [1, 237], strides = [1, 1]} : vector<1x256xf32> to vector<1x237xf32>
    %1543 = tpu.concatenate %1542, %1541 in 1 : vector<1x237xf32>, vector<1x19xf32> -> vector<1x256xf32>
    %1544 = vector.broadcast %1540 : f32 to vector<1x256xf32>
    %1545 = arith.mulf %1544, %1543 : vector<1x256xf32>
    %1546 = arith.addf %1539, %1545 : vector<1x256xf32>
    %c12_i32_431 = arith.constant 12 : i32
    %1547 = vector.broadcast %c12_i32_431 : i32 to vector<1x256xi32>
    %1548 = arith.cmpi sle, %0, %1547 : vector<1x256xi32>
    %cst_432 = arith.constant 0.000000e+00 : f32
    %1549 = vector.broadcast %cst_432 : f32 to vector<1x256xf32>
    %1550 = arith.select %1548, %1546, %1549 : vector<1x256xi1>, vector<1x256xf32>
    %1551 = arith.addf %1533, %1550 : vector<1x256xf32>
    %c70_433 = arith.constant 70 : index
    %1552 = memref.load %arg6[%c70_433] : memref<98xf32, #tpu.memory_space<smem>>
    %cst_434 = arith.constant 0.000000e+00 : f32
    %1553 = vector.broadcast %cst_434 : f32 to vector<1x29xf32>
    %1554 = vector.extract_strided_slice %944 {offsets = [0, 29], sizes = [1, 227], strides = [1, 1]} : vector<1x256xf32> to vector<1x227xf32>
    %1555 = tpu.concatenate %1554, %1553 in 1 : vector<1x227xf32>, vector<1x29xf32> -> vector<1x256xf32>
    %1556 = vector.broadcast %1552 : f32 to vector<1x256xf32>
    %1557 = arith.mulf %1556, %1555 : vector<1x256xf32>
    %c71_435 = arith.constant 71 : index
    %1558 = memref.load %arg6[%c71_435] : memref<98xf32, #tpu.memory_space<smem>>
    %cst_436 = arith.constant 0.000000e+00 : f32
    %1559 = vector.broadcast %cst_436 : f32 to vector<1x29xf32>
    %1560 = vector.extract_strided_slice %946 {offsets = [0, 29], sizes = [1, 227], strides = [1, 1]} : vector<1x256xf32> to vector<1x227xf32>
    %1561 = tpu.concatenate %1560, %1559 in 1 : vector<1x227xf32>, vector<1x29xf32> -> vector<1x256xf32>
    %1562 = vector.broadcast %1558 : f32 to vector<1x256xf32>
    %1563 = arith.mulf %1562, %1561 : vector<1x256xf32>
    %1564 = arith.addf %1557, %1563 : vector<1x256xf32>
    %c3_i32_437 = arith.constant 3 : i32
    %1565 = vector.broadcast %c3_i32_437 : i32 to vector<1x256xi32>
    %1566 = arith.cmpi sge, %0, %1565 : vector<1x256xi32>
    %cst_438 = arith.constant 0.000000e+00 : f32
    %1567 = vector.broadcast %cst_438 : f32 to vector<1x256xf32>
    %1568 = arith.select %1566, %1564, %1567 : vector<1x256xi1>, vector<1x256xf32>
    %1569 = arith.addf %1551, %1568 : vector<1x256xf32>
    %c72_439 = arith.constant 72 : index
    %1570 = memref.load %arg6[%c72_439] : memref<98xf32, #tpu.memory_space<smem>>
    %cst_440 = arith.constant 0.000000e+00 : f32
    %1571 = vector.broadcast %cst_440 : f32 to vector<1x30xf32>
    %1572 = vector.extract_strided_slice %944 {offsets = [0, 30], sizes = [1, 226], strides = [1, 1]} : vector<1x256xf32> to vector<1x226xf32>
    %1573 = tpu.concatenate %1572, %1571 in 1 : vector<1x226xf32>, vector<1x30xf32> -> vector<1x256xf32>
    %1574 = vector.broadcast %1570 : f32 to vector<1x256xf32>
    %1575 = arith.mulf %1574, %1573 : vector<1x256xf32>
    %c73_441 = arith.constant 73 : index
    %1576 = memref.load %arg6[%c73_441] : memref<98xf32, #tpu.memory_space<smem>>
    %cst_442 = arith.constant 0.000000e+00 : f32
    %1577 = vector.broadcast %cst_442 : f32 to vector<1x30xf32>
    %1578 = vector.extract_strided_slice %946 {offsets = [0, 30], sizes = [1, 226], strides = [1, 1]} : vector<1x256xf32> to vector<1x226xf32>
    %1579 = tpu.concatenate %1578, %1577 in 1 : vector<1x226xf32>, vector<1x30xf32> -> vector<1x256xf32>
    %1580 = vector.broadcast %1576 : f32 to vector<1x256xf32>
    %1581 = arith.mulf %1580, %1579 : vector<1x256xf32>
    %1582 = arith.addf %1575, %1581 : vector<1x256xf32>
    %c2_i32_443 = arith.constant 2 : i32
    %1583 = vector.broadcast %c2_i32_443 : i32 to vector<1x256xi32>
    %1584 = arith.cmpi sge, %0, %1583 : vector<1x256xi32>
    %cst_444 = arith.constant 0.000000e+00 : f32
    %1585 = vector.broadcast %cst_444 : f32 to vector<1x256xf32>
    %1586 = arith.select %1584, %1582, %1585 : vector<1x256xi1>, vector<1x256xf32>
    %1587 = arith.addf %1569, %1586 : vector<1x256xf32>
    %c74_445 = arith.constant 74 : index
    %1588 = memref.load %arg6[%c74_445] : memref<98xf32, #tpu.memory_space<smem>>
    %cst_446 = arith.constant 0.000000e+00 : f32
    %1589 = vector.broadcast %cst_446 : f32 to vector<1x31xf32>
    %1590 = vector.extract_strided_slice %944 {offsets = [0, 31], sizes = [1, 225], strides = [1, 1]} : vector<1x256xf32> to vector<1x225xf32>
    %1591 = tpu.concatenate %1590, %1589 in 1 : vector<1x225xf32>, vector<1x31xf32> -> vector<1x256xf32>
    %1592 = vector.broadcast %1588 : f32 to vector<1x256xf32>
    %1593 = arith.mulf %1592, %1591 : vector<1x256xf32>
    %c75_447 = arith.constant 75 : index
    %1594 = memref.load %arg6[%c75_447] : memref<98xf32, #tpu.memory_space<smem>>
    %cst_448 = arith.constant 0.000000e+00 : f32
    %1595 = vector.broadcast %cst_448 : f32 to vector<1x31xf32>
    %1596 = vector.extract_strided_slice %946 {offsets = [0, 31], sizes = [1, 225], strides = [1, 1]} : vector<1x256xf32> to vector<1x225xf32>
    %1597 = tpu.concatenate %1596, %1595 in 1 : vector<1x225xf32>, vector<1x31xf32> -> vector<1x256xf32>
    %1598 = vector.broadcast %1594 : f32 to vector<1x256xf32>
    %1599 = arith.mulf %1598, %1597 : vector<1x256xf32>
    %1600 = arith.addf %1593, %1599 : vector<1x256xf32>
    %c1_i32_449 = arith.constant 1 : i32
    %1601 = vector.broadcast %c1_i32_449 : i32 to vector<1x256xi32>
    %1602 = arith.cmpi sge, %0, %1601 : vector<1x256xi32>
    %cst_450 = arith.constant 0.000000e+00 : f32
    %1603 = vector.broadcast %cst_450 : f32 to vector<1x256xf32>
    %1604 = arith.select %1602, %1600, %1603 : vector<1x256xi1>, vector<1x256xf32>
    %1605 = arith.addf %1587, %1604 : vector<1x256xf32>
    %c76_451 = arith.constant 76 : index
    %1606 = memref.load %arg6[%c76_451] : memref<98xf32, #tpu.memory_space<smem>>
    %cst_452 = arith.constant 0.000000e+00 : f32
    %1607 = vector.broadcast %cst_452 : f32 to vector<1x32xf32>
    %1608 = vector.extract_strided_slice %944 {offsets = [0, 32], sizes = [1, 224], strides = [1, 1]} : vector<1x256xf32> to vector<1x224xf32>
    %1609 = tpu.concatenate %1608, %1607 in 1 : vector<1x224xf32>, vector<1x32xf32> -> vector<1x256xf32>
    %1610 = vector.broadcast %1606 : f32 to vector<1x256xf32>
    %1611 = arith.mulf %1610, %1609 : vector<1x256xf32>
    %c77_453 = arith.constant 77 : index
    %1612 = memref.load %arg6[%c77_453] : memref<98xf32, #tpu.memory_space<smem>>
    %cst_454 = arith.constant 0.000000e+00 : f32
    %1613 = vector.broadcast %cst_454 : f32 to vector<1x32xf32>
    %1614 = vector.extract_strided_slice %946 {offsets = [0, 32], sizes = [1, 224], strides = [1, 1]} : vector<1x256xf32> to vector<1x224xf32>
    %1615 = tpu.concatenate %1614, %1613 in 1 : vector<1x224xf32>, vector<1x32xf32> -> vector<1x256xf32>
    %1616 = vector.broadcast %1612 : f32 to vector<1x256xf32>
    %1617 = arith.mulf %1616, %1615 : vector<1x256xf32>
    %1618 = arith.addf %1611, %1617 : vector<1x256xf32>
    %1619 = arith.addf %1605, %1618 : vector<1x256xf32>
    %c78_455 = arith.constant 78 : index
    %1620 = memref.load %arg6[%c78_455] : memref<98xf32, #tpu.memory_space<smem>>
    %cst_456 = arith.constant 0.000000e+00 : f32
    %1621 = vector.broadcast %cst_456 : f32 to vector<1x33xf32>
    %1622 = vector.extract_strided_slice %944 {offsets = [0, 33], sizes = [1, 223], strides = [1, 1]} : vector<1x256xf32> to vector<1x223xf32>
    %1623 = tpu.concatenate %1622, %1621 in 1 : vector<1x223xf32>, vector<1x33xf32> -> vector<1x256xf32>
    %1624 = vector.broadcast %1620 : f32 to vector<1x256xf32>
    %1625 = arith.mulf %1624, %1623 : vector<1x256xf32>
    %c79_457 = arith.constant 79 : index
    %1626 = memref.load %arg6[%c79_457] : memref<98xf32, #tpu.memory_space<smem>>
    %cst_458 = arith.constant 0.000000e+00 : f32
    %1627 = vector.broadcast %cst_458 : f32 to vector<1x33xf32>
    %1628 = vector.extract_strided_slice %946 {offsets = [0, 33], sizes = [1, 223], strides = [1, 1]} : vector<1x256xf32> to vector<1x223xf32>
    %1629 = tpu.concatenate %1628, %1627 in 1 : vector<1x223xf32>, vector<1x33xf32> -> vector<1x256xf32>
    %1630 = vector.broadcast %1626 : f32 to vector<1x256xf32>
    %1631 = arith.mulf %1630, %1629 : vector<1x256xf32>
    %1632 = arith.addf %1625, %1631 : vector<1x256xf32>
    %c14_i32_459 = arith.constant 14 : i32
    %1633 = vector.broadcast %c14_i32_459 : i32 to vector<1x256xi32>
    %1634 = arith.cmpi sle, %0, %1633 : vector<1x256xi32>
    %cst_460 = arith.constant 0.000000e+00 : f32
    %1635 = vector.broadcast %cst_460 : f32 to vector<1x256xf32>
    %1636 = arith.select %1634, %1632, %1635 : vector<1x256xi1>, vector<1x256xf32>
    %1637 = arith.addf %1619, %1636 : vector<1x256xf32>
    %c80_461 = arith.constant 80 : index
    %1638 = memref.load %arg6[%c80_461] : memref<98xf32, #tpu.memory_space<smem>>
    %cst_462 = arith.constant 0.000000e+00 : f32
    %1639 = vector.broadcast %cst_462 : f32 to vector<1x34xf32>
    %1640 = vector.extract_strided_slice %944 {offsets = [0, 34], sizes = [1, 222], strides = [1, 1]} : vector<1x256xf32> to vector<1x222xf32>
    %1641 = tpu.concatenate %1640, %1639 in 1 : vector<1x222xf32>, vector<1x34xf32> -> vector<1x256xf32>
    %1642 = vector.broadcast %1638 : f32 to vector<1x256xf32>
    %1643 = arith.mulf %1642, %1641 : vector<1x256xf32>
    %c81_463 = arith.constant 81 : index
    %1644 = memref.load %arg6[%c81_463] : memref<98xf32, #tpu.memory_space<smem>>
    %cst_464 = arith.constant 0.000000e+00 : f32
    %1645 = vector.broadcast %cst_464 : f32 to vector<1x34xf32>
    %1646 = vector.extract_strided_slice %946 {offsets = [0, 34], sizes = [1, 222], strides = [1, 1]} : vector<1x256xf32> to vector<1x222xf32>
    %1647 = tpu.concatenate %1646, %1645 in 1 : vector<1x222xf32>, vector<1x34xf32> -> vector<1x256xf32>
    %1648 = vector.broadcast %1644 : f32 to vector<1x256xf32>
    %1649 = arith.mulf %1648, %1647 : vector<1x256xf32>
    %1650 = arith.addf %1643, %1649 : vector<1x256xf32>
    %c13_i32_465 = arith.constant 13 : i32
    %1651 = vector.broadcast %c13_i32_465 : i32 to vector<1x256xi32>
    %1652 = arith.cmpi sle, %0, %1651 : vector<1x256xi32>
    %cst_466 = arith.constant 0.000000e+00 : f32
    %1653 = vector.broadcast %cst_466 : f32 to vector<1x256xf32>
    %1654 = arith.select %1652, %1650, %1653 : vector<1x256xi1>, vector<1x256xf32>
    %1655 = arith.addf %1637, %1654 : vector<1x256xf32>
    %c82_467 = arith.constant 82 : index
    %1656 = memref.load %arg6[%c82_467] : memref<98xf32, #tpu.memory_space<smem>>
    %cst_468 = arith.constant 0.000000e+00 : f32
    %1657 = vector.broadcast %cst_468 : f32 to vector<1x35xf32>
    %1658 = vector.extract_strided_slice %944 {offsets = [0, 35], sizes = [1, 221], strides = [1, 1]} : vector<1x256xf32> to vector<1x221xf32>
    %1659 = tpu.concatenate %1658, %1657 in 1 : vector<1x221xf32>, vector<1x35xf32> -> vector<1x256xf32>
    %1660 = vector.broadcast %1656 : f32 to vector<1x256xf32>
    %1661 = arith.mulf %1660, %1659 : vector<1x256xf32>
    %c83_469 = arith.constant 83 : index
    %1662 = memref.load %arg6[%c83_469] : memref<98xf32, #tpu.memory_space<smem>>
    %cst_470 = arith.constant 0.000000e+00 : f32
    %1663 = vector.broadcast %cst_470 : f32 to vector<1x35xf32>
    %1664 = vector.extract_strided_slice %946 {offsets = [0, 35], sizes = [1, 221], strides = [1, 1]} : vector<1x256xf32> to vector<1x221xf32>
    %1665 = tpu.concatenate %1664, %1663 in 1 : vector<1x221xf32>, vector<1x35xf32> -> vector<1x256xf32>
    %1666 = vector.broadcast %1662 : f32 to vector<1x256xf32>
    %1667 = arith.mulf %1666, %1665 : vector<1x256xf32>
    %1668 = arith.addf %1661, %1667 : vector<1x256xf32>
    %c12_i32_471 = arith.constant 12 : i32
    %1669 = vector.broadcast %c12_i32_471 : i32 to vector<1x256xi32>
    %1670 = arith.cmpi sle, %0, %1669 : vector<1x256xi32>
    %cst_472 = arith.constant 0.000000e+00 : f32
    %1671 = vector.broadcast %cst_472 : f32 to vector<1x256xf32>
    %1672 = arith.select %1670, %1668, %1671 : vector<1x256xi1>, vector<1x256xf32>
    %1673 = arith.addf %1655, %1672 : vector<1x256xf32>
    %c84_473 = arith.constant 84 : index
    %1674 = memref.load %arg6[%c84_473] : memref<98xf32, #tpu.memory_space<smem>>
    %cst_474 = arith.constant 0.000000e+00 : f32
    %1675 = vector.broadcast %cst_474 : f32 to vector<1x45xf32>
    %1676 = vector.extract_strided_slice %944 {offsets = [0, 45], sizes = [1, 211], strides = [1, 1]} : vector<1x256xf32> to vector<1x211xf32>
    %1677 = tpu.concatenate %1676, %1675 in 1 : vector<1x211xf32>, vector<1x45xf32> -> vector<1x256xf32>
    %1678 = vector.broadcast %1674 : f32 to vector<1x256xf32>
    %1679 = arith.mulf %1678, %1677 : vector<1x256xf32>
    %c85_475 = arith.constant 85 : index
    %1680 = memref.load %arg6[%c85_475] : memref<98xf32, #tpu.memory_space<smem>>
    %cst_476 = arith.constant 0.000000e+00 : f32
    %1681 = vector.broadcast %cst_476 : f32 to vector<1x45xf32>
    %1682 = vector.extract_strided_slice %946 {offsets = [0, 45], sizes = [1, 211], strides = [1, 1]} : vector<1x256xf32> to vector<1x211xf32>
    %1683 = tpu.concatenate %1682, %1681 in 1 : vector<1x211xf32>, vector<1x45xf32> -> vector<1x256xf32>
    %1684 = vector.broadcast %1680 : f32 to vector<1x256xf32>
    %1685 = arith.mulf %1684, %1683 : vector<1x256xf32>
    %1686 = arith.addf %1679, %1685 : vector<1x256xf32>
    %c3_i32_477 = arith.constant 3 : i32
    %1687 = vector.broadcast %c3_i32_477 : i32 to vector<1x256xi32>
    %1688 = arith.cmpi sge, %0, %1687 : vector<1x256xi32>
    %cst_478 = arith.constant 0.000000e+00 : f32
    %1689 = vector.broadcast %cst_478 : f32 to vector<1x256xf32>
    %1690 = arith.select %1688, %1686, %1689 : vector<1x256xi1>, vector<1x256xf32>
    %1691 = arith.addf %1673, %1690 : vector<1x256xf32>
    %c86_479 = arith.constant 86 : index
    %1692 = memref.load %arg6[%c86_479] : memref<98xf32, #tpu.memory_space<smem>>
    %cst_480 = arith.constant 0.000000e+00 : f32
    %1693 = vector.broadcast %cst_480 : f32 to vector<1x46xf32>
    %1694 = vector.extract_strided_slice %944 {offsets = [0, 46], sizes = [1, 210], strides = [1, 1]} : vector<1x256xf32> to vector<1x210xf32>
    %1695 = tpu.concatenate %1694, %1693 in 1 : vector<1x210xf32>, vector<1x46xf32> -> vector<1x256xf32>
    %1696 = vector.broadcast %1692 : f32 to vector<1x256xf32>
    %1697 = arith.mulf %1696, %1695 : vector<1x256xf32>
    %c87_481 = arith.constant 87 : index
    %1698 = memref.load %arg6[%c87_481] : memref<98xf32, #tpu.memory_space<smem>>
    %cst_482 = arith.constant 0.000000e+00 : f32
    %1699 = vector.broadcast %cst_482 : f32 to vector<1x46xf32>
    %1700 = vector.extract_strided_slice %946 {offsets = [0, 46], sizes = [1, 210], strides = [1, 1]} : vector<1x256xf32> to vector<1x210xf32>
    %1701 = tpu.concatenate %1700, %1699 in 1 : vector<1x210xf32>, vector<1x46xf32> -> vector<1x256xf32>
    %1702 = vector.broadcast %1698 : f32 to vector<1x256xf32>
    %1703 = arith.mulf %1702, %1701 : vector<1x256xf32>
    %1704 = arith.addf %1697, %1703 : vector<1x256xf32>
    %c2_i32_483 = arith.constant 2 : i32
    %1705 = vector.broadcast %c2_i32_483 : i32 to vector<1x256xi32>
    %1706 = arith.cmpi sge, %0, %1705 : vector<1x256xi32>
    %cst_484 = arith.constant 0.000000e+00 : f32
    %1707 = vector.broadcast %cst_484 : f32 to vector<1x256xf32>
    %1708 = arith.select %1706, %1704, %1707 : vector<1x256xi1>, vector<1x256xf32>
    %1709 = arith.addf %1691, %1708 : vector<1x256xf32>
    %c88_485 = arith.constant 88 : index
    %1710 = memref.load %arg6[%c88_485] : memref<98xf32, #tpu.memory_space<smem>>
    %cst_486 = arith.constant 0.000000e+00 : f32
    %1711 = vector.broadcast %cst_486 : f32 to vector<1x47xf32>
    %1712 = vector.extract_strided_slice %944 {offsets = [0, 47], sizes = [1, 209], strides = [1, 1]} : vector<1x256xf32> to vector<1x209xf32>
    %1713 = tpu.concatenate %1712, %1711 in 1 : vector<1x209xf32>, vector<1x47xf32> -> vector<1x256xf32>
    %1714 = vector.broadcast %1710 : f32 to vector<1x256xf32>
    %1715 = arith.mulf %1714, %1713 : vector<1x256xf32>
    %c89_487 = arith.constant 89 : index
    %1716 = memref.load %arg6[%c89_487] : memref<98xf32, #tpu.memory_space<smem>>
    %cst_488 = arith.constant 0.000000e+00 : f32
    %1717 = vector.broadcast %cst_488 : f32 to vector<1x47xf32>
    %1718 = vector.extract_strided_slice %946 {offsets = [0, 47], sizes = [1, 209], strides = [1, 1]} : vector<1x256xf32> to vector<1x209xf32>
    %1719 = tpu.concatenate %1718, %1717 in 1 : vector<1x209xf32>, vector<1x47xf32> -> vector<1x256xf32>
    %1720 = vector.broadcast %1716 : f32 to vector<1x256xf32>
    %1721 = arith.mulf %1720, %1719 : vector<1x256xf32>
    %1722 = arith.addf %1715, %1721 : vector<1x256xf32>
    %c1_i32_489 = arith.constant 1 : i32
    %1723 = vector.broadcast %c1_i32_489 : i32 to vector<1x256xi32>
    %1724 = arith.cmpi sge, %0, %1723 : vector<1x256xi32>
    %cst_490 = arith.constant 0.000000e+00 : f32
    %1725 = vector.broadcast %cst_490 : f32 to vector<1x256xf32>
    %1726 = arith.select %1724, %1722, %1725 : vector<1x256xi1>, vector<1x256xf32>
    %1727 = arith.addf %1709, %1726 : vector<1x256xf32>
    %c90_491 = arith.constant 90 : index
    %1728 = memref.load %arg6[%c90_491] : memref<98xf32, #tpu.memory_space<smem>>
    %cst_492 = arith.constant 0.000000e+00 : f32
    %1729 = vector.broadcast %cst_492 : f32 to vector<1x48xf32>
    %1730 = vector.extract_strided_slice %944 {offsets = [0, 48], sizes = [1, 208], strides = [1, 1]} : vector<1x256xf32> to vector<1x208xf32>
    %1731 = tpu.concatenate %1730, %1729 in 1 : vector<1x208xf32>, vector<1x48xf32> -> vector<1x256xf32>
    %1732 = vector.broadcast %1728 : f32 to vector<1x256xf32>
    %1733 = arith.mulf %1732, %1731 : vector<1x256xf32>
    %c91_493 = arith.constant 91 : index
    %1734 = memref.load %arg6[%c91_493] : memref<98xf32, #tpu.memory_space<smem>>
    %cst_494 = arith.constant 0.000000e+00 : f32
    %1735 = vector.broadcast %cst_494 : f32 to vector<1x48xf32>
    %1736 = vector.extract_strided_slice %946 {offsets = [0, 48], sizes = [1, 208], strides = [1, 1]} : vector<1x256xf32> to vector<1x208xf32>
    %1737 = tpu.concatenate %1736, %1735 in 1 : vector<1x208xf32>, vector<1x48xf32> -> vector<1x256xf32>
    %1738 = vector.broadcast %1734 : f32 to vector<1x256xf32>
    %1739 = arith.mulf %1738, %1737 : vector<1x256xf32>
    %1740 = arith.addf %1733, %1739 : vector<1x256xf32>
    %1741 = arith.addf %1727, %1740 : vector<1x256xf32>
    %c92_495 = arith.constant 92 : index
    %1742 = memref.load %arg6[%c92_495] : memref<98xf32, #tpu.memory_space<smem>>
    %cst_496 = arith.constant 0.000000e+00 : f32
    %1743 = vector.broadcast %cst_496 : f32 to vector<1x49xf32>
    %1744 = vector.extract_strided_slice %944 {offsets = [0, 49], sizes = [1, 207], strides = [1, 1]} : vector<1x256xf32> to vector<1x207xf32>
    %1745 = tpu.concatenate %1744, %1743 in 1 : vector<1x207xf32>, vector<1x49xf32> -> vector<1x256xf32>
    %1746 = vector.broadcast %1742 : f32 to vector<1x256xf32>
    %1747 = arith.mulf %1746, %1745 : vector<1x256xf32>
    %c93_497 = arith.constant 93 : index
    %1748 = memref.load %arg6[%c93_497] : memref<98xf32, #tpu.memory_space<smem>>
    %cst_498 = arith.constant 0.000000e+00 : f32
    %1749 = vector.broadcast %cst_498 : f32 to vector<1x49xf32>
    %1750 = vector.extract_strided_slice %946 {offsets = [0, 49], sizes = [1, 207], strides = [1, 1]} : vector<1x256xf32> to vector<1x207xf32>
    %1751 = tpu.concatenate %1750, %1749 in 1 : vector<1x207xf32>, vector<1x49xf32> -> vector<1x256xf32>
    %1752 = vector.broadcast %1748 : f32 to vector<1x256xf32>
    %1753 = arith.mulf %1752, %1751 : vector<1x256xf32>
    %1754 = arith.addf %1747, %1753 : vector<1x256xf32>
    %c14_i32_499 = arith.constant 14 : i32
    %1755 = vector.broadcast %c14_i32_499 : i32 to vector<1x256xi32>
    %1756 = arith.cmpi sle, %0, %1755 : vector<1x256xi32>
    %cst_500 = arith.constant 0.000000e+00 : f32
    %1757 = vector.broadcast %cst_500 : f32 to vector<1x256xf32>
    %1758 = arith.select %1756, %1754, %1757 : vector<1x256xi1>, vector<1x256xf32>
    %1759 = arith.addf %1741, %1758 : vector<1x256xf32>
    %c94_501 = arith.constant 94 : index
    %1760 = memref.load %arg6[%c94_501] : memref<98xf32, #tpu.memory_space<smem>>
    %cst_502 = arith.constant 0.000000e+00 : f32
    %1761 = vector.broadcast %cst_502 : f32 to vector<1x50xf32>
    %1762 = vector.extract_strided_slice %944 {offsets = [0, 50], sizes = [1, 206], strides = [1, 1]} : vector<1x256xf32> to vector<1x206xf32>
    %1763 = tpu.concatenate %1762, %1761 in 1 : vector<1x206xf32>, vector<1x50xf32> -> vector<1x256xf32>
    %1764 = vector.broadcast %1760 : f32 to vector<1x256xf32>
    %1765 = arith.mulf %1764, %1763 : vector<1x256xf32>
    %c95_503 = arith.constant 95 : index
    %1766 = memref.load %arg6[%c95_503] : memref<98xf32, #tpu.memory_space<smem>>
    %cst_504 = arith.constant 0.000000e+00 : f32
    %1767 = vector.broadcast %cst_504 : f32 to vector<1x50xf32>
    %1768 = vector.extract_strided_slice %946 {offsets = [0, 50], sizes = [1, 206], strides = [1, 1]} : vector<1x256xf32> to vector<1x206xf32>
    %1769 = tpu.concatenate %1768, %1767 in 1 : vector<1x206xf32>, vector<1x50xf32> -> vector<1x256xf32>
    %1770 = vector.broadcast %1766 : f32 to vector<1x256xf32>
    %1771 = arith.mulf %1770, %1769 : vector<1x256xf32>
    %1772 = arith.addf %1765, %1771 : vector<1x256xf32>
    %c13_i32_505 = arith.constant 13 : i32
    %1773 = vector.broadcast %c13_i32_505 : i32 to vector<1x256xi32>
    %1774 = arith.cmpi sle, %0, %1773 : vector<1x256xi32>
    %cst_506 = arith.constant 0.000000e+00 : f32
    %1775 = vector.broadcast %cst_506 : f32 to vector<1x256xf32>
    %1776 = arith.select %1774, %1772, %1775 : vector<1x256xi1>, vector<1x256xf32>
    %1777 = arith.addf %1759, %1776 : vector<1x256xf32>
    %c96_507 = arith.constant 96 : index
    %1778 = memref.load %arg6[%c96_507] : memref<98xf32, #tpu.memory_space<smem>>
    %cst_508 = arith.constant 0.000000e+00 : f32
    %1779 = vector.broadcast %cst_508 : f32 to vector<1x51xf32>
    %1780 = vector.extract_strided_slice %944 {offsets = [0, 51], sizes = [1, 205], strides = [1, 1]} : vector<1x256xf32> to vector<1x205xf32>
    %1781 = tpu.concatenate %1780, %1779 in 1 : vector<1x205xf32>, vector<1x51xf32> -> vector<1x256xf32>
    %1782 = vector.broadcast %1778 : f32 to vector<1x256xf32>
    %1783 = arith.mulf %1782, %1781 : vector<1x256xf32>
    %c97_509 = arith.constant 97 : index
    %1784 = memref.load %arg6[%c97_509] : memref<98xf32, #tpu.memory_space<smem>>
    %cst_510 = arith.constant 0.000000e+00 : f32
    %1785 = vector.broadcast %cst_510 : f32 to vector<1x51xf32>
    %1786 = vector.extract_strided_slice %946 {offsets = [0, 51], sizes = [1, 205], strides = [1, 1]} : vector<1x256xf32> to vector<1x205xf32>
    %1787 = tpu.concatenate %1786, %1785 in 1 : vector<1x205xf32>, vector<1x51xf32> -> vector<1x256xf32>
    %1788 = vector.broadcast %1784 : f32 to vector<1x256xf32>
    %1789 = arith.mulf %1788, %1787 : vector<1x256xf32>
    %1790 = arith.addf %1783, %1789 : vector<1x256xf32>
    %c12_i32_511 = arith.constant 12 : i32
    %1791 = vector.broadcast %c12_i32_511 : i32 to vector<1x256xi32>
    %1792 = arith.cmpi sle, %0, %1791 : vector<1x256xi32>
    %cst_512 = arith.constant 0.000000e+00 : f32
    %1793 = vector.broadcast %cst_512 : f32 to vector<1x256xf32>
    %1794 = arith.select %1792, %1790, %1793 : vector<1x256xi1>, vector<1x256xf32>
    %1795 = arith.addf %1777, %1794 : vector<1x256xf32>
    %1796 = arith.negf %1795 : vector<1x256xf32>
    %1797 = math.exp %1796 : vector<1x256xf32>
    %cst_513 = arith.constant 1.000000e+00 : f32
    %1798 = vector.broadcast %cst_513 : f32 to vector<1x256xf32>
    %1799 = arith.addf %1798, %1797 : vector<1x256xf32>
    %1800 = arith.divf %1798, %1799 : vector<1x256xf32>
    %1801 = vector.broadcast %940 : vector<1x256xf32> to vector<4x256xf32>
    %1802 = arith.mulf %2, %1801 : vector<4x256xf32>
    %1803 = arith.addf %1802, %2 : vector<4x256xf32>
    %1804 = arith.truncf %1803 : vector<4x256xf32> to vector<4x256xbf16>
    %c0_514 = arith.constant 0 : index
    %c0_515 = arith.constant 0 : index
    %c0_516 = arith.constant 0 : index
    %1805 = vector.load %arg8[%c0_514, %c0_515, %c0_516] : memref<1x4x256xbf16, #tpu.memory_space<vmem>>, vector<1x4x256xbf16>
    %1806 = vector.shape_cast %1805 : vector<1x4x256xbf16> to vector<4x256xbf16>
    %1807 = vector.shape_cast %1804 : vector<4x256xbf16> to vector<1x4x256xbf16>
    tpu.vector_store %arg8[%c0_514, %c0_515, %c0_516], %1807 {strides = array<i32>} : memref<1x4x256xbf16, #tpu.memory_space<vmem>>, vector<1x4x256xbf16>,
    %1808 = vector.broadcast %1800 : vector<1x256xf32> to vector<4x256xf32>
    %1809 = arith.mulf %80, %1808 : vector<4x256xf32>
    %1810 = arith.addf %1809, %80 : vector<4x256xf32>
    %1811 = arith.truncf %1810 : vector<4x256xf32> to vector<4x256xbf16>
    %c0_517 = arith.constant 0 : index
    %c0_518 = arith.constant 0 : index
    %c0_519 = arith.constant 0 : index
    %1812 = vector.load %arg9[%c0_517, %c0_518, %c0_519] : memref<1x4x256xbf16, #tpu.memory_space<vmem>>, vector<1x4x256xbf16>
    %1813 = vector.shape_cast %1812 : vector<1x4x256xbf16> to vector<4x256xbf16>
    %1814 = vector.shape_cast %1811 : vector<4x256xbf16> to vector<1x4x256xbf16>
    tpu.vector_store %arg9[%c0_517, %c0_518, %c0_519], %1814 {strides = array<i32>} : memref<1x4x256xbf16, #tpu.memory_space<vmem>>, vector<1x4x256xbf16>,
    %1815 = arith.addf %2, %80 : vector<4x256xf32>
    %1816 = arith.truncf %1815 : vector<4x256xf32> to vector<4x256xbf16>
    %c0_520 = arith.constant 0 : index
    %c0_521 = arith.constant 0 : index
    %c0_522 = arith.constant 0 : index
    %1817 = vector.load %arg10[%c0_520, %c0_521, %c0_522] : memref<1x4x256xbf16, #tpu.memory_space<vmem>>, vector<1x4x256xbf16>
    %1818 = vector.shape_cast %1817 : vector<1x4x256xbf16> to vector<4x256xbf16>
    %1819 = vector.shape_cast %1816 : vector<4x256xbf16> to vector<1x4x256xbf16>
    tpu.vector_store %arg10[%c0_520, %c0_521, %c0_522], %1819 {strides = array<i32>} : memref<1x4x256xbf16, #tpu.memory_space<vmem>>, vector<1x4x256xbf16>,
    return
  }
  func.func @transform_0(%arg0: i32) -> (i32, i32) {
    %c0_i32 = arith.constant 0 : i32
    %c0_i32_0 = arith.constant 0 : i32
    %c0_i32_1 = arith.constant 0 : i32
    return %c0_i32, %c0_i32_0 : i32, i32
  }
  func.func @transform_1(%arg0: i32) -> (i32, i32, i32) {
    %c0_i32 = arith.constant 0 : i32
    %c0_i32_0 = arith.constant 0 : i32
    %c0_i32_1 = arith.constant 0 : i32
    return %arg0, %c0_i32, %c0_i32_0 : i32, i32, i32
  }
  func.func @transform_2(%arg0: i32) -> (i32, i32, i32) {
    %c0_i32 = arith.constant 0 : i32
    %c0_i32_0 = arith.constant 0 : i32
    %c0_i32_1 = arith.constant 0 : i32
    return %arg0, %c0_i32, %c0_i32_0 : i32, i32, i32
  }
  func.func @transform_3(%arg0: i32) -> (i32, i32) {
    %c0_i32 = arith.constant 0 : i32
    %c0_i32_0 = arith.constant 0 : i32
    %c0_i32_1 = arith.constant 0 : i32
    return %c0_i32, %c0_i32_0 : i32, i32
  }
  func.func @transform_4(%arg0: i32) -> (i32, i32) {
    %c0_i32 = arith.constant 0 : i32
    %c0_i32_0 = arith.constant 0 : i32
    %c0_i32_1 = arith.constant 0 : i32
    return %c0_i32, %c0_i32_0 : i32, i32
  }
  func.func @transform_5(%arg0: i32) -> i32 {
    %c0_i32 = arith.constant 0 : i32
    %c0_i32_0 = arith.constant 0 : i32
    return %c0_i32 : i32
  }
  func.func @transform_6(%arg0: i32) -> i32 {
    %c0_i32 = arith.constant 0 : i32
    %c0_i32_0 = arith.constant 0 : i32
    return %c0_i32 : i32
  }
  func.func @transform_7(%arg0: i32) -> (i32, i32, i32) {
    %c0_i32 = arith.constant 0 : i32
    %c0_i32_0 = arith.constant 0 : i32
    %c0_i32_1 = arith.constant 0 : i32
    return %arg0, %c0_i32, %c0_i32_0 : i32, i32, i32
  }
  func.func @transform_8(%arg0: i32) -> (i32, i32, i32) {
    %c0_i32 = arith.constant 0 : i32
    %c0_i32_0 = arith.constant 0 : i32
    %c0_i32_1 = arith.constant 0 : i32
    return %arg0, %c0_i32, %c0_i32_0 : i32, i32, i32
  }
  func.func @transform_9(%arg0: i32) -> (i32, i32, i32) {
    %c0_i32 = arith.constant 0 : i32
    %c0_i32_0 = arith.constant 0 : i32
    %c0_i32_1 = arith.constant 0 : i32
    return %arg0, %c0_i32, %c0_i32_0 : i32, i32, i32
  }
}

</mosaic_0001>

<llo_original>
// kernel: tpu_custom_call.1
$region0: #{tpu_custom_call.1}
  #allocation0 [shape = 'u32[]', space=smem, size = 0x4, offset = 0x4, fixed_abs, tag = 'smem constant byte address 0x4 - core index']
  #allocation1 [shape = 'u32[144,128]{1,0:T(1,128)}', space=vmem, size = 0x12000, scoped, tag = 'internal scratch']
  #allocation2 [shape = 'f32[36,256]{1,0:T(8,128)}', space=vmem, size = 0xa000, scoped, tag = 'scratch operand']
  %s0 = inlined_call_operand.vmem [shape: s32[1,256], index: 0, kind: input, shape index: {}]
  %s1 = inlined_call_operand.hbm [shape: f32[2,4,256], index: 1, kind: input, shape index: {}]
  %s2 = inlined_call_operand.hbm [shape: f32[2,4,256], index: 2, kind: input, shape index: {}]
  %s3 = inlined_call_operand.vmem [shape: bf16[4,36], index: 3, kind: input, shape index: {}]
  %s4 = inlined_call_operand.vmem [shape: f32[4,1], index: 4, kind: input, shape index: {}]
  %s5 = inlined_call_operand.vmem [shape: f32[98], index: 5, kind: input, shape index: {}]
  %s6 = inlined_call_operand.vmem [shape: f32[98], index: 6, kind: input, shape index: {}]
  %s7 = inlined_call_operand.hbm [shape: bf16[2,4,256], index: 7, kind: output, shape index: {0}]
  %s8 = inlined_call_operand.hbm [shape: bf16[2,4,256], index: 8, kind: output, shape index: {1}]
  %s9 = inlined_call_operand.hbm [shape: bf16[2,4,256], index: 9, kind: output, shape index: {2}]
  %10 = xla_tuple %s7, %s8, %s9
  %s11 = sld [smem:[#allocation0]]
  $region93: #{tpu_custom_call.1} parent=0
    _
  %s13 = ssub.s32 1, %s11
  %s14 = scalar_select 0, %s13, %s11
  $region1: #{tpu_custom_call.1} parent=0
    #allocation3 [shape = 'u8[8192]{0}', space=vmem, size = 0x2000, scoped, tag = 'input window, operand 1']
    #allocation4 [shape = 's32[2]{0}', space=sflag, size = 0x8, scoped, tag = 'scoped memory for tpu_custom_call.1']
    #allocation5 [shape = 's32[2]{0}', space=sflag, size = 0x8, scoped, tag = 'scoped memory for tpu_custom_call.1']
    #allocation6 [shape = 's32[2]{0}', space=sflag, size = 0x8, scoped, tag = 'scoped memory for tpu_custom_call.1']
    #allocation7 [shape = 'u8[8192]{0}', space=vmem, size = 0x2000, scoped, tag = 'input window, operand 2']
    #allocation8 [shape = 's32[2]{0}', space=sflag, size = 0x8, scoped, tag = 'scoped memory for tpu_custom_call.1']
    #allocation9 [shape = 'u8[512]{0}', space=smem, size = 0x200, scoped, tag = 'input window, operand 5, single buffered']
    #allocation10 [shape = 'u8[512]{0}', space=smem, size = 0x200, scoped, tag = 'input window, operand 6, single buffered']
    #allocation11 [shape = 's32[1]{0}', space=sflag, size = 0x4, scoped, tag = 'scoped memory for tpu_custom_call.1']
    #allocation12 [shape = 'u8[4096]{0}', space=vmem, size = 0x1000, scoped, tag = 'output window, operand 0']
    #allocation13 [shape = 'u8[4096]{0}', space=vmem, size = 0x1000, scoped, tag = 'output window, operand 1']
    #allocation14 [shape = 's32[2]{0}', space=sflag, size = 0x8, scoped, tag = 'scoped memory for tpu_custom_call.1']
    #allocation15 [shape = 'u8[4096]{0}', space=vmem, size = 0x1000, scoped, tag = 'output window, operand 2']
    %15 = vsyncpa [#allocation4], 0
    %s16 = scalar_lea.sflag [#allocation4], 1
    %17 = vsyncpa %s16, 0
    %18 = vsyncpa [#allocation8], 0
    %s19 = scalar_lea.sflag [#allocation8], 1
    %20 = vsyncpa %s19, 0
    %21 = vsyncpa [#allocation6], 0
    %22 = vsyncpa [#allocation11], 0
    %23 = vsyncpa [#allocation5], 0
    %s24 = scalar_lea.sflag [#allocation5], 1
    %25 = vsyncpa %s24, 0
    %26 = vsyncpa [#allocation14], 0
    %s27 = scalar_lea.sflag [#allocation14], 1
    %28 = vsyncpa %s27, 0
    loop: start=0, step=1, limit=4
    $region2: #{tpu_custom_call.1} parent=1 // loop_pre_header
      _
    $region3: #{tpu_custom_call.1} parent=1 // loop_header
      %s30 = sphi 0, %s34
      %p31 = scmp.ge.s32.totalorder %s30, 4
      %s38 = sphi 0, %s38
      %s40 = sphi 0, %s38
      %s41 = sphi 0, %s40
      %s55 = sphi 0, %s41
      %s61 = sphi 0, %s63
      %s64 = sphi 0, %s61
      %s65 = sphi 0, %s64
      %s81 = sphi 0, %s65
      %s87 = sphi 0, %s89
      %s90 = sphi 0, %s87
      %s91 = sphi 0, %s90
      %s107 = sphi 0, %s91
      %s111 = sphi 0, %s111
      %s113 = sphi 0, %s111
      %s114 = sphi 0, %s113
      %s128 = sphi 0, %s114
      %s132 = sphi 0, %s132
      %s134 = sphi 0, %s132
      %s135 = sphi 0, %s134
      %s149 = sphi 0, %s135
      %s153 = sphi 0, %s153
      %s155 = sphi 0, %s153
      %s156 = sphi 0, %s155
      %s170 = sphi 0, %s156
      %s174 = sphi 0, %s174
      %s176 = sphi 0, %s174
      %s177 = sphi 0, %s176
      %s191 = sphi 0, %s177
      %s197 = sphi 0, %s199
      %s200 = sphi 0, %s197
      %s201 = sphi 0, %s200
      %s217 = sphi 0, %s201
      %s223 = sphi 0, %s225
      %s226 = sphi 0, %s223
      %s227 = sphi 0, %s226
      %s243 = sphi 0, %s227
      %s249 = sphi 0, %s251
      %s252 = sphi 0, %s249
      %s253 = sphi 0, %s252
      %s269 = sphi 0, %s253
    $region4: #{tpu_custom_call.1} parent=1 // loop_header_branch
      %33 = sbr.rel (%p31) target = $region8
    $region5: #{tpu_custom_call.1} parent=1 // loop_body
      %s35 = ssub.s32 %s30, 1
      %s36 = ssub.s32 %s30, 2
      %s37 = sadd.s32 %s30, 1
      %s39 = sadd.s32 %s38, 1
      %p42 = scmp.eq.s32.totalorder %s30, 1
      %p43 = scmp.ne.s32.totalorder %s38, %s40
      %p44 = scmp.eq.s32.totalorder %s30, 0
      %p45 = por %p43, %p44
      %p46 = scmp.ne.s32.totalorder %s38, %s40
      %p47 = scmp.eq.s32.totalorder %s35, 1
      %p48 = por %p46, %p47
      %p49 = scmp.ne.s32.totalorder %s40, %s41
      %p50 = scmp.eq.s32.totalorder %s35, 0
      %p51 = por %p49, %p50
      %p52 = scmp.ne.s32.totalorder %s40, %s41
      %p53 = scmp.eq.s32.totalorder %s36, 1
      %p54 = por %p52, %p53
      %p56 = scmp.ne.s32.totalorder %s41, %s55
      %p57 = scmp.eq.s32.totalorder %s36, 0
      %p58 = por %p56, %p57
      %s59 = ssub.s32 %s30, %s37
      %p60 = scmp.eq.s32.totalorder %s59, 0
      %s62 = sadd.s32 %s61, 1
      %s63 = scalar_select %p60, %s61, %s62
      %p66 = pneg %p60
      %p67 = scmp.eq.s32.totalorder %s30, 1
      %p68 = por %p66, %p67
      %p69 = scmp.ne.s32.totalorder %s61, %s64
      %p70 = scmp.eq.s32.totalorder %s30, 0
      %p71 = por %p69, %p70
      %p72 = scmp.ne.s32.totalorder %s61, %s64
      %p73 = scmp.eq.s32.totalorder %s35, 1
      %p74 = por %p72, %p73
      %p75 = scmp.ne.s32.totalorder %s64, %s65
      %p76 = scmp.eq.s32.totalorder %s35, 0
      %p77 = por %p75, %p76
      %p78 = scmp.ne.s32.totalorder %s64, %s65
      %p79 = scmp.eq.s32.totalorder %s36, 1
      %p80 = por %p78, %p79
      %p82 = scmp.ne.s32.totalorder %s65, %s81
      %p83 = scmp.eq.s32.totalorder %s36, 0
      %p84 = por %p82, %p83
      %s85 = ssub.s32 %s30, %s37
      %p86 = scmp.eq.s32.totalorder %s85, 0
      %s88 = sadd.s32 %s87, 1
      %s89 = scalar_select %p86, %s87, %s88
      %p92 = pneg %p86
      %p93 = scmp.eq.s32.totalorder %s30, 1
      %p94 = por %p92, %p93
      %p95 = scmp.ne.s32.totalorder %s87, %s90
      %p96 = scmp.eq.s32.totalorder %s30, 0
      %p97 = por %p95, %p96
      %p98 = scmp.ne.s32.totalorder %s87, %s90
      %p99 = scmp.eq.s32.totalorder %s35, 1
      %p100 = por %p98, %p99
      %p101 = scmp.ne.s32.totalorder %s90, %s91
      %p102 = scmp.eq.s32.totalorder %s35, 0
      %p103 = por %p101, %p102
      %p104 = scmp.ne.s32.totalorder %s90, %s91
      %p105 = scmp.eq.s32.totalorder %s36, 1
      %p106 = por %p104, %p105
      %p108 = scmp.ne.s32.totalorder %s91, %s107
      %p109 = scmp.eq.s32.totalorder %s36, 0
      %p110 = por %p108, %p109
      %s112 = sadd.s32 %s111, 1
      %p115 = scmp.eq.s32.totalorder %s30, 1
      %p116 = scmp.ne.s32.totalorder %s111, %s113
      %p117 = scmp.eq.s32.totalorder %s30, 0
      %p118 = por %p116, %p117
      %p119 = scmp.ne.s32.totalorder %s111, %s113
      %p120 = scmp.eq.s32.totalorder %s35, 1
      %p121 = por %p119, %p120
      %p122 = scmp.ne.s32.totalorder %s113, %s114
      %p123 = scmp.eq.s32.totalorder %s35, 0
      %p124 = por %p122, %p123
      %p125 = scmp.ne.s32.totalorder %s113, %s114
      %p126 = scmp.eq.s32.totalorder %s36, 1
      %p127 = por %p125, %p126
      %p129 = scmp.ne.s32.totalorder %s114, %s128
      %p130 = scmp.eq.s32.totalorder %s36, 0
      %p131 = por %p129, %p130
      %s133 = sadd.s32 %s132, 1
      %p136 = scmp.eq.s32.totalorder %s30, 1
      %p137 = scmp.ne.s32.totalorder %s132, %s134
      %p138 = scmp.eq.s32.totalorder %s30, 0
      %p139 = por %p137, %p138
      %p140 = scmp.ne.s32.totalorder %s132, %s134
      %p141 = scmp.eq.s32.totalorder %s35, 1
      %p142 = por %p140, %p141
      %p143 = scmp.ne.s32.totalorder %s134, %s135
      %p144 = scmp.eq.s32.totalorder %s35, 0
      %p145 = por %p143, %p144
      %p146 = scmp.ne.s32.totalorder %s134, %s135
      %p147 = scmp.eq.s32.totalorder %s36, 1
      %p148 = por %p146, %p147
      %p150 = scmp.ne.s32.totalorder %s135, %s149
      %p151 = scmp.eq.s32.totalorder %s36, 0
      %p152 = por %p150, %p151
      %s154 = sadd.s32 %s153, 1
      %p157 = scmp.eq.s32.totalorder %s30, 1
      %p158 = scmp.ne.s32.totalorder %s153, %s155
      %p159 = scmp.eq.s32.totalorder %s30, 0
      %p160 = por %p158, %p159
      %p161 = scmp.ne.s32.totalorder %s153, %s155
      %p162 = scmp.eq.s32.totalorder %s35, 1
      %p163 = por %p161, %p162
      %p164 = scmp.ne.s32.totalorder %s155, %s156
      %p165 = scmp.eq.s32.totalorder %s35, 0
      %p166 = por %p164, %p165
      %p167 = scmp.ne.s32.totalorder %s155, %s156
      %p168 = scmp.eq.s32.totalorder %s36, 1
      %p169 = por %p167, %p168
      %p171 = scmp.ne.s32.totalorder %s156, %s170
      %p172 = scmp.eq.s32.totalorder %s36, 0
      %p173 = por %p171, %p172
      %s175 = sadd.s32 %s174, 1
      %p178 = scmp.eq.s32.totalorder %s30, 1
      %p179 = scmp.ne.s32.totalorder %s174, %s176
      %p180 = scmp.eq.s32.totalorder %s30, 0
      %p181 = por %p179, %p180
      %p182 = scmp.ne.s32.totalorder %s174, %s176
      %p183 = scmp.eq.s32.totalorder %s35, 1
      %p184 = por %p182, %p183
      %p185 = scmp.ne.s32.totalorder %s176, %s177
      %p186 = scmp.eq.s32.totalorder %s35, 0
      %p187 = por %p185, %p186
      %p188 = scmp.ne.s32.totalorder %s176, %s177
      %p189 = scmp.eq.s32.totalorder %s36, 1
      %p190 = por %p188, %p189
      %p192 = scmp.ne.s32.totalorder %s177, %s191
      %p193 = scmp.eq.s32.totalorder %s36, 0
      %p194 = por %p192, %p193
      %s195 = ssub.s32 %s30, %s37
      %p196 = scmp.eq.s32.totalorder %s195, 0
      %s198 = sadd.s32 %s197, 1
      %s199 = scalar_select %p196, %s197, %s198
      %p202 = pneg %p196
      %p203 = scmp.eq.s32.totalorder %s30, 1
      %p204 = por %p202, %p203
      %p205 = scmp.ne.s32.totalorder %s197, %s200
      %p206 = scmp.eq.s32.totalorder %s30, 0
      %p207 = por %p205, %p206
      %p208 = scmp.ne.s32.totalorder %s197, %s200
      %p209 = scmp.eq.s32.totalorder %s35, 1
      %p210 = por %p208, %p209
      %p211 = scmp.ne.s32.totalorder %s200, %s201
      %p212 = scmp.eq.s32.totalorder %s35, 0
      %p213 = por %p211, %p212
      %p214 = scmp.ne.s32.totalorder %s200, %s201
      %p215 = scmp.eq.s32.totalorder %s36, 1
      %p216 = por %p214, %p215
      %p218 = scmp.ne.s32.totalorder %s201, %s217
      %p219 = scmp.eq.s32.totalorder %s36, 0
      %p220 = por %p218, %p219
      %s221 = ssub.s32 %s30, %s37
      %p222 = scmp.eq.s32.totalorder %s221, 0
      %s224 = sadd.s32 %s223, 1
      %s225 = scalar_select %p222, %s223, %s224
      %p228 = pneg %p222
      %p229 = scmp.eq.s32.totalorder %s30, 1
      %p230 = por %p228, %p229
      %p231 = scmp.ne.s32.totalorder %s223, %s226
      %p232 = scmp.eq.s32.totalorder %s30, 0
      %p233 = por %p231, %p232
      %p234 = scmp.ne.s32.totalorder %s223, %s226
      %p235 = scmp.eq.s32.totalorder %s35, 1
      %p236 = por %p234, %p235
      %p237 = scmp.ne.s32.totalorder %s226, %s227
      %p238 = scmp.eq.s32.totalorder %s35, 0
      %p239 = por %p237, %p238
      %p240 = scmp.ne.s32.totalorder %s226, %s227
      %p241 = scmp.eq.s32.totalorder %s36, 1
      %p242 = por %p240, %p241
      %p244 = scmp.ne.s32.totalorder %s227, %s243
      %p245 = scmp.eq.s32.totalorder %s36, 0
      %p246 = por %p244, %p245
      %s247 = ssub.s32 %s30, %s37
      %p248 = scmp.eq.s32.totalorder %s247, 0
      %s250 = sadd.s32 %s249, 1
      %s251 = scalar_select %p248, %s249, %s250
      %p254 = pneg %p248
      %p255 = scmp.eq.s32.totalorder %s30, 1
      %p256 = por %p254, %p255
      %p257 = scmp.ne.s32.totalorder %s249, %s252
      %p258 = scmp.eq.s32.totalorder %s30, 0
      %p259 = por %p257, %p258
      %p260 = scmp.ne.s32.totalorder %s249, %s252
      %p261 = scmp.eq.s32.totalorder %s35, 1
      %p262 = por %p260, %p261
      %p263 = scmp.ne.s32.totalorder %s252, %s253
      %p264 = scmp.eq.s32.totalorder %s35, 0
      %p265 = por %p263, %p264
      %p266 = scmp.ne.s32.totalorder %s252, %s253
      %p267 = scmp.eq.s32.totalorder %s36, 1
      %p268 = por %p266, %p267
      %p270 = scmp.ne.s32.totalorder %s253, %s269
      %p271 = scmp.eq.s32.totalorder %s36, 0
      %p272 = por %p270, %p271
      %p273 = scmp.le.s32.totalorder 1, %s30
      %p274 = scmp.lt.s32.totalorder %s30, 3
      %p275 = pnand %p273, %p274
      %p276 = pneg %p275
      // Predicated region
      $region9: #{tpu_custom_call.1} parent=5 // pred_check
        _
      $region10: #{tpu_custom_call.1} parent=5 // pred_check_branch
        %278 = sbr.rel (%p275) target = $region12
      $region11: #{tpu_custom_call.1} parent=5 // pred_region
        %s279 = ssub.s32 %s30, 1
        // Predicated region
        $region13: #{tpu_custom_call.1} parent=11 // pred_check
          %p280 = pneg %p51
        $region14: #{tpu_custom_call.1} parent=11 // pred_check_branch
          %282 = sbr.rel (%p280) target = $region16
        $region15: #{tpu_custom_call.1} parent=11 // pred_region
          _
        $region16: #{tpu_custom_call.1} parent=11 // pred_fallthru
          _
        // Predicated region
        $region17: #{tpu_custom_call.1} parent=11 // pred_check
          %p283 = pneg %p124
        $region18: #{tpu_custom_call.1} parent=11 // pred_check_branch
          %285 = sbr.rel (%p283) target = $region20
        $region19: #{tpu_custom_call.1} parent=11 // pred_region
          _
        $region20: #{tpu_custom_call.1} parent=11 // pred_fallthru
          _
        // Predicated region
        $region21: #{tpu_custom_call.1} parent=11 // pred_check
          %p286 = pneg %p145
        $region22: #{tpu_custom_call.1} parent=11 // pred_check_branch
          %288 = sbr.rel (%p286) target = $region24
        $region23: #{tpu_custom_call.1} parent=11 // pred_region
          _
        $region24: #{tpu_custom_call.1} parent=11 // pred_fallthru
          _
        // Predicated region
        $region25: #{tpu_custom_call.1} parent=11 // pred_check
          %p289 = pneg %p166
        $region26: #{tpu_custom_call.1} parent=11 // pred_check_branch
          %291 = sbr.rel (%p289) target = $region28
        $region27: #{tpu_custom_call.1} parent=11 // pred_region
          %s293 = ssub.s32 16, 16
          %294 = vsyncadd [#allocation6], %s293
          %s296 = sshll.u32 %s5, 4
          %s297 = int_to_ptr.vmem [resolvable:$true] %s296
          %299 = dma.vmem_to_smem %s297, 16, [#allocation9], [#allocation6]
        $region28: #{tpu_custom_call.1} parent=11 // pred_fallthru
          _
        // Predicated region
        $region29: #{tpu_custom_call.1} parent=11 // pred_check
          %p300 = pneg %p187
        $region30: #{tpu_custom_call.1} parent=11 // pred_check_branch
          %302 = sbr.rel (%p300) target = $region32
        $region31: #{tpu_custom_call.1} parent=11 // pred_region
          %s304 = ssub.s32 16, 16
          %305 = vsyncadd [#allocation11], %s304
          %s307 = sshll.u32 %s6, 4
          %s308 = int_to_ptr.vmem [resolvable:$true] %s307
          %310 = dma.vmem_to_smem %s308, 16, [#allocation10], [#allocation11]
        $region32: #{tpu_custom_call.1} parent=11 // pred_fallthru
          _
      $region12: #{tpu_custom_call.1} parent=5 // pred_fallthru
        _
      %p311 = scmp.lt.s32.totalorder %s30, 2
      // Predicated region
      $region33: #{tpu_custom_call.1} parent=5 // pred_check
        %p312 = pneg %p311
      $region34: #{tpu_custom_call.1} parent=5 // pred_check_branch
        %314 = sbr.rel (%p312) target = $region36
      $region35: #{tpu_custom_call.1} parent=5 // pred_region
        // Predicated region
        $region37: #{tpu_custom_call.1} parent=35 // pred_check
          %p315 = pneg %p71
        $region38: #{tpu_custom_call.1} parent=35 // pred_check_branch
          %317 = sbr.rel (%p315) target = $region40
        $region39: #{tpu_custom_call.1} parent=35 // pred_region
          %s318 = sand.u32 %s61, 1
          %s319 = scalar_lea.sflag [#allocation4], %s318
          %s320 = sand.u32 %s61, 1
          %s321 = smul.addr %s320, 8
          %s322 = scalar_lea.vmem [#allocation3], %s321
          %s324 = ssub.s32 128, 128
          %325 = vsyncadd %s319, %s324
          %s326 = smul.addr %s30, 2
          %s327 = smul.addr %s326, 64
          %s328 = scalar_lea.hbm %s1, %s327
          %s330 = sshll.u32 %s322, 4
          %s331 = int_to_ptr.vmem [resolvable:$true] %s330
          %333 = dma.hbm_to_vmem [thread:$0]  %s328, 128, %s331, %s319
        $region40: #{tpu_custom_call.1} parent=35 // pred_fallthru
          _
        // Predicated region
        $region41: #{tpu_custom_call.1} parent=35 // pred_check
          %p334 = pneg %p97
        $region42: #{tpu_custom_call.1} parent=35 // pred_check_branch
          %336 = sbr.rel (%p334) target = $region44
        $region43: #{tpu_custom_call.1} parent=35 // pred_region
          %s337 = sand.u32 %s87, 1
          %s338 = scalar_lea.sflag [#allocation8], %s337
          %s339 = sand.u32 %s87, 1
          %s340 = smul.addr %s339, 8
          %s341 = scalar_lea.vmem [#allocation7], %s340
          %s343 = ssub.s32 128, 128
          %344 = vsyncadd %s338, %s343
          %s345 = smul.addr %s30, 2
          %s346 = smul.addr %s345, 64
          %s347 = scalar_lea.hbm %s2, %s346
          %s349 = sshll.u32 %s341, 4
          %s350 = int_to_ptr.vmem [resolvable:$true] %s349
          %352 = dma.hbm_to_vmem [thread:$0]  %s347, 128, %s350, %s338
        $region44: #{tpu_custom_call.1} parent=35 // pred_fallthru
          _
      $region36: #{tpu_custom_call.1} parent=5 // pred_fallthru
        _
      %p353 = scmp.le.s32.totalorder 1, %s30
      %p354 = scmp.lt.s32.totalorder %s30, 3
      %p355 = pnand %p353, %p354
      %p356 = pneg %p355
      // Predicated region
      $region45: #{tpu_custom_call.1} parent=5 // pred_check
        _
      $region46: #{tpu_custom_call.1} parent=5 // pred_check_branch
        %358 = sbr.rel (%p355) target = $region48
      $region47: #{tpu_custom_call.1} parent=5 // pred_region
        %s359 = ssub.s32 %s30, 1
        %s360 = sand.u32 %s64, 1
        %s361 = scalar_lea.sflag [#allocation4], %s360
        %s362 = sand.u32 %s64, 1
        %s363 = smul.addr %s362, 8
        %s364 = scalar_lea.vmem [#allocation3], %s363
        // Predicated region
        $region49: #{tpu_custom_call.1} parent=47 // pred_check
          %p365 = pneg %p77
        $region50: #{tpu_custom_call.1} parent=47 // pred_check_branch
          %367 = sbr.rel (%p365) target = $region52
        $region51: #{tpu_custom_call.1} parent=47 // pred_region
          %368 = dma.done %s361, 128
        $region52: #{tpu_custom_call.1} parent=47 // pred_fallthru
          _
        %s369 = sand.u32 %s90, 1
        %s370 = scalar_lea.sflag [#allocation8], %s369
        %s371 = sand.u32 %s90, 1
        %s372 = smul.addr %s371, 8
        %s373 = scalar_lea.vmem [#allocation7], %s372
        // Predicated region
        $region53: #{tpu_custom_call.1} parent=47 // pred_check
          %p374 = pneg %p103
        $region54: #{tpu_custom_call.1} parent=47 // pred_check_branch
          %376 = sbr.rel (%p374) target = $region56
        $region55: #{tpu_custom_call.1} parent=47 // pred_region
          %377 = dma.done %s370, 128
        $region56: #{tpu_custom_call.1} parent=47 // pred_fallthru
          _
        // Predicated region
        $region57: #{tpu_custom_call.1} parent=47 // pred_check
          %p378 = pneg %p166
        $region58: #{tpu_custom_call.1} parent=47 // pred_check_branch
          %380 = sbr.rel (%p378) target = $region60
        $region59: #{tpu_custom_call.1} parent=47 // pred_region
          %381 = dma.done [#allocation6], 16
        $region60: #{tpu_custom_call.1} parent=47 // pred_fallthru
          _
        // Predicated region
        $region61: #{tpu_custom_call.1} parent=47 // pred_check
          %p382 = pneg %p187
        $region62: #{tpu_custom_call.1} parent=47 // pred_check_branch
          %384 = sbr.rel (%p382) target = $region64
        $region63: #{tpu_custom_call.1} parent=47 // pred_region
          %385 = dma.done [#allocation11], 16
        $region64: #{tpu_custom_call.1} parent=47 // pred_fallthru
          _
        %386 = sfence
        %p387 = pneg %p51
        %p388 = pneg %p48
        %s389 = sand.u32 %s64, 1
        %s390 = scalar_lea.sflag [#allocation4], %s389
        %s391 = sand.u32 %s64, 1
        %s392 = smul.addr %s391, 8
        %s393 = scalar_lea.vmem [#allocation3], %s392
        %p394 = pneg %p77
        %p395 = pneg %p74
        %s396 = sand.u32 %s90, 1
        %s397 = scalar_lea.sflag [#allocation8], %s396
        %s398 = sand.u32 %s90, 1
        %s399 = smul.addr %s398, 8
        %s400 = scalar_lea.vmem [#allocation7], %s399
        %p401 = pneg %p103
        %p402 = pneg %p100
        %p403 = pneg %p124
        %p404 = pneg %p121
        %p405 = pneg %p145
        %p406 = pneg %p142
        %p407 = pneg %p166
        %p408 = pneg %p163
        %p409 = pneg %p187
        %p410 = pneg %p184
        %p411 = pneg %p213
        %p412 = pneg %p210
        %s413 = sand.u32 %s200, 1
        %s414 = scalar_lea.sflag [#allocation5], %s413
        %s415 = sand.u32 %s200, 1
        %s416 = smul.addr %s415, 4
        %s417 = scalar_lea.vmem [#allocation12], %s416
        %p418 = pneg %p239
        %p419 = pneg %p236
        %s420 = sand.u32 %s35, 1
        %s421 = scalar_lea.sflag [#allocation14], %s420
        %s422 = sand.u32 %s226, 1
        %s423 = smul.addr %s422, 4
        %s424 = scalar_lea.vmem [#allocation13], %s423
        %p425 = pneg %p265
        %p426 = pneg %p262
        %s427 = sand.u32 %s35, 1
        %s428 = scalar_lea.sflag [#allocation14], %s427
        %s429 = sand.u32 %s252, 1
        %s430 = smul.addr %s429, 4
        %s431 = scalar_lea.vmem [#allocation15], %s430
        %v433 = vld [vmem:[%s0] sm:$0x3]
        %v434 = vld [vmem:[%s364] sm:$0xff]
        %v435 = vld [vmem:[%s373] sm:$0xff]
        %v436 = vld [vmem:[%s3] sm:$0x3]
        %v438 = vcombine.high %v435, %v435
        %439 = vrot.lane.b32.xlu0 %v435, 17
        %v440 = vpop.permute.xlu0 %439
        %441 = vrot.lane.b32.xlu0 %v438, 17
        %v442 = vpop.permute.xlu0 %441
        %vm443 = vcmask 138240
        %v444 = vsel %vm443, %v440, %v442
        %v447 = vsel %vm443, 0.0, %v440
        %vm448 = vcmp.ge.s32.totalorder %v433, 1
        %v449 = vsel %vm448, 1, 0
        %v450 = vlaneseq
        %v451 = vshrl.u32 %v450, 7
        %v452 = vsub.s32 0, %v451
        %v453 = vrot.slane %v449, %v452
        %v454 = vlaneseq
        %v455 = vshrl.u32 %v454, 7
        %v456 = vsub.s32 1, %v455
        %v457 = vrot.slane %v449, %v456
        %vm458 = vcmp.eq.s32.totalorder %v453, 1
        %vm459 = vcmp.eq.s32.totalorder %v457, 1
        %v460 = vsel %vm458, %v447, 0.0
        %v461 = vsel %vm459, %v444, 0.0
        %462 = vst [vmem:[#allocation2] sm:$0xf] %v460
        %463 = vst [vmem:[#allocation2 + $0x8] sm:$0xf] %v461
        %464 = vrot.lane.b32.xlu0 %v435, 16
        %v465 = vpop.permute.xlu0 %464
        %466 = vrot.lane.b32.xlu0 %v438, 16
        %v467 = vpop.permute.xlu0 %466
        %vm468 = vcmask 130048
        %v469 = vsel %vm468, %v465, %v467
        %v471 = vsel %vm468, 0.0, %v465
        %v473 = vrot.slane %v471, 4
        %v474 = vrot.slane %v469, 4
        %477 = vst [vmem:[#allocation2] sm:$0xf0] %v473
        %478 = vst [vmem:[#allocation2 + $0x8] sm:$0xf0] %v474
        %479 = vrot.lane.b32.xlu0 %v435, 15
        %v480 = vpop.permute.xlu0 %479
        %481 = vrot.lane.b32.xlu0 %v438, 15
        %v482 = vpop.permute.xlu0 %481
        %vm483 = vcmask 121856
        %v484 = vsel %vm483, %v480, %v482
        %v487 = vsel %vm483, 0.0, %v480
        %vm488 = vcmp.le.s32.totalorder %v433, 14
        %v489 = vsel %vm488, 1, 0
        %v490 = vlaneseq
        %v491 = vshrl.u32 %v490, 7
        %v492 = vsub.s32 0, %v491
        %v493 = vrot.slane %v489, %v492
        %v494 = vlaneseq
        %v495 = vshrl.u32 %v494, 7
        %v496 = vsub.s32 1, %v495
        %v497 = vrot.slane %v489, %v496
        %vm498 = vcmp.eq.s32.totalorder %v493, 1
        %vm499 = vcmp.eq.s32.totalorder %v497, 1
        %v500 = vsel %vm498, %v487, 0.0
        %v501 = vsel %vm499, %v484, 0.0
        %502 = vst [vmem:[#allocation2 + $0x10] sm:$0xf] %v500
        %503 = vst [vmem:[#allocation2 + $0x18] sm:$0xf] %v501
        %504 = vrot.lane.b32.xlu0 %v435, 1
        %v505 = vpop.permute.xlu0 %504
        %506 = vrot.lane.b32.xlu0 %v438, 1
        %v507 = vpop.permute.xlu0 %506
        %vm508 = vcmask 7168
        %v509 = vsel %vm508, %v505, %v507
        %v512 = vsel %vm508, 0.0, %v505
        %v513 = vsel %vm458, %v512, 0.0
        %v514 = vsel %vm459, %v509, 0.0
        %v517 = vrot.slane %v513, 4
        %v518 = vrot.slane %v514, 4
        %521 = vst [vmem:[#allocation2 + $0x10] sm:$0xf0] %v517
        %522 = vst [vmem:[#allocation2 + $0x18] sm:$0xf0] %v518
        %524 = vst [vmem:[#allocation2 + $0x20] sm:$0xf] %v435
        %525 = vst [vmem:[#allocation2 + $0x28] sm:$0xf] %v438
        %526 = vrot.lane.b32.xlu0 %v435, 127
        %v527 = vpop.permute.xlu0 %526
        %528 = vrot.lane.b32.xlu0 %v438, 127
        %v529 = vpop.permute.xlu0 %528
        %vm530 = vcmask 1039360
        %v531 = vsel %vm530, %v527, %v529
        %v534 = vsel %vm530, %v529, 0.0
        %v535 = vsel %vm498, %v531, 0.0
        %v536 = vsel %vm499, %v534, 0.0
        %v539 = vrot.slane %v535, 4
        %v540 = vrot.slane %v536, 4
        %543 = vst [vmem:[#allocation2 + $0x20] sm:$0xf0] %v539
        %544 = vst [vmem:[#allocation2 + $0x28] sm:$0xf0] %v540
        %545 = vrot.lane.b32.xlu0 %v435, 113
        %v546 = vpop.permute.xlu0 %545
        %547 = vrot.lane.b32.xlu0 %v438, 113
        %v548 = vpop.permute.xlu0 %547
        %vm549 = vcmask 924672
        %v550 = vsel %vm549, %v546, %v548
        %v553 = vsel %vm549, %v548, 0.0
        %v554 = vsel %vm458, %v550, 0.0
        %v555 = vsel %vm459, %v553, 0.0
        %556 = vst [vmem:[#allocation2 + $0x30] sm:$0xf] %v554
        %557 = vst [vmem:[#allocation2 + $0x38] sm:$0xf] %v555
        %558 = vrot.lane.b32.xlu0 %v435, 112
        %v559 = vpop.permute.xlu0 %558
        %560 = vrot.lane.b32.xlu0 %v438, 112
        %v561 = vpop.permute.xlu0 %560
        %vm562 = vcmask 916480
        %v563 = vsel %vm562, %v559, %v561
        %v565 = vsel %vm562, %v561, 0.0
        %v567 = vrot.slane %v563, 4
        %v568 = vrot.slane %v565, 4
        %571 = vst [vmem:[#allocation2 + $0x30] sm:$0xf0] %v567
        %572 = vst [vmem:[#allocation2 + $0x38] sm:$0xf0] %v568
        %573 = vrot.lane.b32.xlu0 %v435, 111
        %v574 = vpop.permute.xlu0 %573
        %575 = vrot.lane.b32.xlu0 %v438, 111
        %v576 = vpop.permute.xlu0 %575
        %vm577 = vcmask 908288
        %v578 = vsel %vm577, %v574, %v576
        %v581 = vsel %vm577, %v576, 0.0
        %v582 = vsel %vm498, %v578, 0.0
        %v583 = vsel %vm499, %v581, 0.0
        %584 = vst [vmem:[#allocation2 + $0x40] sm:$0xf] %v582
        %585 = vst [vmem:[#allocation2 + $0x48] sm:$0xf] %v583
        %v586 = vld [vmem:[#allocation2] sm:$0xff]
        %v587 = vld [vmem:[#allocation2 + $0x8] sm:$0xff]
        %v588 = vld [vmem:[#allocation2 + $0x10] sm:$0xff]
        %v589 = vld [vmem:[#allocation2 + $0x18] sm:$0xff]
        %v590 = vld [vmem:[#allocation2 + $0x20] sm:$0xff]
        %v591 = vld [vmem:[#allocation2 + $0x28] sm:$0xff]
        %v592 = vld [vmem:[#allocation2 + $0x30] sm:$0xff]
        %v593 = vld [vmem:[#allocation2 + $0x38] sm:$0xff]
        %v594 = vld [vmem:[#allocation2 + $0x40] sm:$0xf]
        %v595 = vld [vmem:[#allocation2 + $0x48] sm:$0xf]
        %v596 = vpack.c.bf16 %v588, %v586
        %v597 = vpack.c.bf16 %v589, %v587
        %v598 = vpack.c.bf16 %v592, %v590
        %v599 = vpack.c.bf16 %v593, %v591
        %v600 = vpack.c.bf16 %v594, %v594
        %v601 = vpack.c.bf16 %v595, %v595
        %v602 = vld [vmem:[%s4] sm:$0xf]
        %604 = vset.pattern.permute.xlu0 0
        %605 = vperm.xlu0 %604, %v602
        %v606 = vpop.permute.xlu0 %605
        %vm608 = vcmask 293888
        %v610 = vsel %vm608, %v436, 0
        %vm612 = vcmask 1041408
        %v614 = vsel %vm612, %v600, 0
        %v617 = vsel %vm612, %v601, 0
        %619 = vmatprep.subr.bf16.mxu0 %v597
        %620 = vmatpush1.bf16.msra.mxu0 %v596
        %621 = vmatprep.subr.bf16.mxu0 %v599
        %622 = vmatpush1.bf16.msra.mxu0 %v598
        %623 = vmatprep.subr.bf16.mxu0 %v617
        %624 = vmatpush1.bf16.msra.mxu0 %v614
        %625 = vmatprep.subr.bf16.mxu0 0
        %626 = vmatpush1.bf16.msra.mxu0 0
        %627 = vmatprep.subr.bf16.mxu0 0
        %628 = vmatpush1.bf16.msra.mxu0 0
        %629 = vmatprep.subr.bf16.mxu0 0
        %630 = vmatpush1.bf16.msra.mxu0 0
        %631 = vmatprep.subr.bf16.mxu0 0
        %632 = vmatpush1.bf16.msra.mxu0 0
        %633 = vmatprep.subr.bf16.mxu0 0
        %634 = vmatpush1.bf16.msra.mxu0 0
        %635 = vmatprep.subr.bf16.mxu0 0
        %636 = vmatpush1.bf16.msra.mxu0 0
        %637 = vmatprep.subr.bf16.mxu0 0
        %638 = vmatpush1.bf16.msra.mxu0 0
        %639 = vmatprep.subr.bf16.mxu0 0
        %640 = vmatpush1.bf16.msra.mxu0 0
        %641 = vmatprep.subr.bf16.mxu0 0
        %642 = vmatpush1.bf16.msra.mxu0 0
        %643 = vmatprep.subr.bf16.mxu0 0
        %644 = vmatpush1.bf16.msra.mxu0 0
        %645 = vmatprep.subr.bf16.mxu0 0
        %646 = vmatpush1.bf16.msra.mxu0 0
        %647 = vmatprep.subr.bf16.mxu0 0
        %648 = vmatpush1.bf16.msra.mxu0 0
        %649 = vmatprep.subr.bf16.mxu0 0
        %650 = vmatpush1.bf16.msra.mxu0 0
        %651 = vmatprep.mubr.bf16.mxu0 0
        %652 = vmatmul.mubr.bf16.gmra.mrb[0].mxu0 %v610
        %v653 = vpop.f32.mrb[0].mxu0
        %v654 = vadd.f32 %v606, %v653
        %v655 = vpop.f32.mrb[0].mxu0
        %v656 = vadd.f32 %v606, %v655
        %v657 = vpop.f32.mrb[0].mxu0
        %v658 = vpop.f32.mrb[0].mxu0
        %659 = vdwg.mxu0
        %vm660 = vcmask 1043456
        %v661 = vsel %vm660, %v654, 0.0
        %v662 = vrot.slane %v661, 4
        %v663 = vadd.f32 %v661, %v662
        %v664 = vrot.slane %v663, 2
        %v665 = vadd.f32 %v663, %v664
        %v666 = vrot.slane %v665, 1
        %v667 = vadd.f32 %v665, %v666
        %v668 = vsel %vm660, %v656, 0.0
        %v669 = vrot.slane %v668, 4
        %v670 = vadd.f32 %v668, %v669
        %v671 = vrot.slane %v670, 2
        %v672 = vadd.f32 %v670, %v671
        %v673 = vrot.slane %v672, 1
        %v674 = vadd.f32 %v672, %v673
        %v675 = vrcp.pop 4.0
        %v676 = vmul.f32 %v667, %v675
        %v677 = vmul.f32 %v674, %v675
        %v678 = vsel %vm660, %v654, -inf
        %v679 = vrot.slane %v678, 4
        %v680 = vmax.f32 %v678, %v679
        %v681 = vrot.slane %v680, 2
        %v682 = vmax.f32 %v680, %v681
        %v683 = vrot.slane %v682, 1
        %v684 = vmax.f32 %v682, %v683
        %v685 = vsel %vm660, %v656, -inf
        %v686 = vrot.slane %v685, 4
        %v687 = vmax.f32 %v685, %v686
        %v688 = vrot.slane %v687, 2
        %v689 = vmax.f32 %v687, %v688
        %v690 = vrot.slane %v689, 1
        %v691 = vmax.f32 %v689, %v690
        %s692 = sld [smem:[#allocation10]]
        %695 = vrot.lane.b32.xlu0 %v676, 51
        %v696 = vpop.permute.xlu0 %695
        %697 = vrot.lane.b32.xlu0 %v677, 51
        %v698 = vpop.permute.xlu0 %697
        %vm699 = vcmask 416768
        %v700 = vsel %vm699, %v696, %v698
        %v703 = vsel %vm699, 0.0, %v696
        %v704 = vstv %s692
        %v705 = vmul.f32 %v704, %v703
        %v706 = vmul.f32 %v704, %v700
        %s707 = sld [smem:[#allocation10 + $0x1]]
        %710 = vrot.lane.b32.xlu0 %v684, 51
        %v711 = vpop.permute.xlu0 %710
        %712 = vrot.lane.b32.xlu0 %v691, 51
        %v713 = vpop.permute.xlu0 %712
        %v714 = vsel %vm699, %v711, %v713
        %v717 = vsel %vm699, 0.0, %v711
        %v718 = vstv %s707
        %v719 = vmul.f32 %v718, %v717
        %v720 = vmul.f32 %v718, %v714
        %v721 = vadd.f32 %v705, %v719
        %v722 = vadd.f32 %v706, %v720
        %vm723 = vcmp.ge.s32.totalorder %v433, 3
        %v726 = vcombine.low %v721, %v722
        %v728 = vunpack.c.l.s4 1966171168
        %v729 = vunpack.c.0.s8 %v728
        %v730 = vlaneseq
        %v731 = vshrl.u32 %v730, 7
        %v732 = vsub.s32 %v729, %v731
        %v733 = vrot.slane %v726, %v732
        %v735 = vunpack.c.l.s4 1966171168
        %v736 = vunpack.c.0.s8 %v735
        %v737 = vlaneseq
        %v738 = vshrl.u32 %v737, 7
        %v739 = vsub.s32 %v736, %v738
        %v740 = vrot.slane %v733, %v739
        %v742 = vsel %vm723, %v740, 0.0
        %v743 = vadd.f32 %v742, 0.0
        %s744 = sld [smem:[#allocation10 + $0x2]]
        %745 = vrot.lane.b32.xlu0 %v676, 50
        %v746 = vpop.permute.xlu0 %745
        %747 = vrot.lane.b32.xlu0 %v677, 50
        %v748 = vpop.permute.xlu0 %747
        %vm749 = vcmask 408576
        %v750 = vsel %vm749, %v746, %v748
        %v753 = vsel %vm749, 0.0, %v746
        %v754 = vstv %s744
        %v755 = vmul.f32 %v754, %v753
        %v756 = vmul.f32 %v754, %v750
        %s757 = sld [smem:[#allocation10 + $0x3]]
        %758 = vrot.lane.b32.xlu0 %v684, 50
        %v759 = vpop.permute.xlu0 %758
        %760 = vrot.lane.b32.xlu0 %v691, 50
        %v761 = vpop.permute.xlu0 %760
        %v762 = vsel %vm749, %v759, %v761
        %v765 = vsel %vm749, 0.0, %v759
        %v766 = vstv %s757
        %v767 = vmul.f32 %v766, %v765
        %v768 = vmul.f32 %v766, %v762
        %v769 = vadd.f32 %v755, %v767
        %v770 = vadd.f32 %v756, %v768
        %vm771 = vcmp.ge.s32.totalorder %v433, 2
        %v774 = vcombine.low %v769, %v770
        %v776 = vunpack.c.l.s4 1966171168
        %v777 = vunpack.c.0.s8 %v776
        %v778 = vlaneseq
        %v779 = vshrl.u32 %v778, 7
        %v780 = vsub.s32 %v777, %v779
        %v781 = vrot.slane %v774, %v780
        %v783 = vunpack.c.l.s4 1966171168
        %v784 = vunpack.c.0.s8 %v783
        %v785 = vlaneseq
        %v786 = vshrl.u32 %v785, 7
        %v787 = vsub.s32 %v784, %v786
        %v788 = vrot.slane %v781, %v787
        %v790 = vsel %vm771, %v788, 0.0
        %v791 = vadd.f32 %v743, %v790
        %s792 = sld [smem:[#allocation10 + $0x4]]
        %793 = vrot.lane.b32.xlu0 %v676, 49
        %v794 = vpop.permute.xlu0 %793
        %795 = vrot.lane.b32.xlu0 %v677, 49
        %v796 = vpop.permute.xlu0 %795
        %vm797 = vcmask 400384
        %v798 = vsel %vm797, %v794, %v796
        %v801 = vsel %vm797, 0.0, %v794
        %v802 = vstv %s792
        %v803 = vmul.f32 %v802, %v801
        %v804 = vmul.f32 %v802, %v798
        %s805 = sld [smem:[#allocation10 + $0x5]]
        %806 = vrot.lane.b32.xlu0 %v684, 49
        %v807 = vpop.permute.xlu0 %806
        %808 = vrot.lane.b32.xlu0 %v691, 49
        %v809 = vpop.permute.xlu0 %808
        %v810 = vsel %vm797, %v807, %v809
        %v813 = vsel %vm797, 0.0, %v807
        %v814 = vstv %s805
        %v815 = vmul.f32 %v814, %v813
        %v816 = vmul.f32 %v814, %v810
        %v817 = vadd.f32 %v803, %v815
        %v818 = vadd.f32 %v804, %v816
        %v821 = vcombine.low %v817, %v818
        %v823 = vunpack.c.l.s4 1966171168
        %v824 = vunpack.c.0.s8 %v823
        %v825 = vlaneseq
        %v826 = vshrl.u32 %v825, 7
        %v827 = vsub.s32 %v824, %v826
        %v828 = vrot.slane %v821, %v827
        %v830 = vunpack.c.l.s4 1966171168
        %v831 = vunpack.c.0.s8 %v830
        %v832 = vlaneseq
        %v833 = vshrl.u32 %v832, 7
        %v834 = vsub.s32 %v831, %v833
        %v835 = vrot.slane %v828, %v834
        %v837 = vsel %vm448, %v835, 0.0
        %v838 = vadd.f32 %v791, %v837
        %s839 = sld [smem:[#allocation10 + $0x6]]
        %840 = vrot.lane.b32.xlu0 %v676, 48
        %v841 = vpop.permute.xlu0 %840
        %842 = vrot.lane.b32.xlu0 %v677, 48
        %v843 = vpop.permute.xlu0 %842
        %vm844 = vcmask 392192
        %v845 = vsel %vm844, %v841, %v843
        %v848 = vsel %vm844, 0.0, %v841
        %v849 = vstv %s839
        %v850 = vmul.f32 %v849, %v848
        %v851 = vmul.f32 %v849, %v845
        %s852 = sld [smem:[#allocation10 + $0x7]]
        %853 = vrot.lane.b32.xlu0 %v684, 48
        %v854 = vpop.permute.xlu0 %853
        %855 = vrot.lane.b32.xlu0 %v691, 48
        %v856 = vpop.permute.xlu0 %855
        %v857 = vsel %vm844, %v854, %v856
        %v860 = vsel %vm844, 0.0, %v854
        %v861 = vstv %s852
        %v862 = vmul.f32 %v861, %v860
        %v863 = vmul.f32 %v861, %v857
        %v864 = vadd.f32 %v850, %v862
        %v865 = vadd.f32 %v851, %v863
        %v868 = vcombine.low %v864, %v865
        %v870 = vunpack.c.l.s4 1966171168
        %v871 = vunpack.c.0.s8 %v870
        %v872 = vlaneseq
        %v873 = vshrl.u32 %v872, 7
        %v874 = vsub.s32 %v871, %v873
        %v875 = vrot.slane %v868, %v874
        %v877 = vunpack.c.l.s4 1966171168
        %v878 = vunpack.c.0.s8 %v877
        %v879 = vlaneseq
        %v880 = vshrl.u32 %v879, 7
        %v881 = vsub.s32 %v878, %v880
        %v882 = vrot.slane %v875, %v881
        %v884 = vadd.f32 %v838, %v882
        %s885 = sld [smem:[#allocation10 + $0x8]]
        %886 = vrot.lane.b32.xlu0 %v676, 47
        %v887 = vpop.permute.xlu0 %886
        %888 = vrot.lane.b32.xlu0 %v677, 47
        %v889 = vpop.permute.xlu0 %888
        %vm890 = vcmask 384000
        %v891 = vsel %vm890, %v887, %v889
        %v894 = vsel %vm890, 0.0, %v887
        %v895 = vstv %s885
        %v896 = vmul.f32 %v895, %v894
        %v897 = vmul.f32 %v895, %v891
        %s898 = sld [smem:[#allocation10 + $0x9]]
        %899 = vrot.lane.b32.xlu0 %v684, 47
        %v900 = vpop.permute.xlu0 %899
        %901 = vrot.lane.b32.xlu0 %v691, 47
        %v902 = vpop.permute.xlu0 %901
        %v903 = vsel %vm890, %v900, %v902
        %v906 = vsel %vm890, 0.0, %v900
        %v907 = vstv %s898
        %v908 = vmul.f32 %v907, %v906
        %v909 = vmul.f32 %v907, %v903
        %v910 = vadd.f32 %v896, %v908
        %v911 = vadd.f32 %v897, %v909
        %v914 = vcombine.low %v910, %v911
        %v916 = vunpack.c.l.s4 1966171168
        %v917 = vunpack.c.0.s8 %v916
        %v918 = vlaneseq
        %v919 = vshrl.u32 %v918, 7
        %v920 = vsub.s32 %v917, %v919
        %v921 = vrot.slane %v914, %v920
        %v923 = vunpack.c.l.s4 1966171168
        %v924 = vunpack.c.0.s8 %v923
        %v925 = vlaneseq
        %v926 = vshrl.u32 %v925, 7
        %v927 = vsub.s32 %v924, %v926
        %v928 = vrot.slane %v921, %v927
        %v930 = vsel %vm488, %v928, 0.0
        %v931 = vadd.f32 %v884, %v930
        %s932 = sld [smem:[#allocation10 + $0xa]]
        %933 = vrot.lane.b32.xlu0 %v676, 46
        %v934 = vpop.permute.xlu0 %933
        %935 = vrot.lane.b32.xlu0 %v677, 46
        %v936 = vpop.permute.xlu0 %935
        %vm937 = vcmask 375808
        %v938 = vsel %vm937, %v934, %v936
        %v941 = vsel %vm937, 0.0, %v934
        %v942 = vstv %s932
        %v943 = vmul.f32 %v942, %v941
        %v944 = vmul.f32 %v942, %v938
        %s945 = sld [smem:[#allocation10 + $0xb]]
        %946 = vrot.lane.b32.xlu0 %v684, 46
        %v947 = vpop.permute.xlu0 %946
        %948 = vrot.lane.b32.xlu0 %v691, 46
        %v949 = vpop.permute.xlu0 %948
        %v950 = vsel %vm937, %v947, %v949
        %v953 = vsel %vm937, 0.0, %v947
        %v954 = vstv %s945
        %v955 = vmul.f32 %v954, %v953
        %v956 = vmul.f32 %v954, %v950
        %v957 = vadd.f32 %v943, %v955
        %v958 = vadd.f32 %v944, %v956
        %vm959 = vcmp.le.s32.totalorder %v433, 13
        %v962 = vcombine.low %v957, %v958
        %v964 = vunpack.c.l.s4 1966171168
        %v965 = vunpack.c.0.s8 %v964
        %v966 = vlaneseq
        %v967 = vshrl.u32 %v966, 7
        %v968 = vsub.s32 %v965, %v967
        %v969 = vrot.slane %v962, %v968
        %v971 = vunpack.c.l.s4 1966171168
        %v972 = vunpack.c.0.s8 %v971
        %v973 = vlaneseq
        %v974 = vshrl.u32 %v973, 7
        %v975 = vsub.s32 %v972, %v974
        %v976 = vrot.slane %v969, %v975
        %v978 = vsel %vm959, %v976, 0.0
        %v979 = vadd.f32 %v931, %v978
        %s980 = sld [smem:[#allocation10 + $0xc]]
        %981 = vrot.lane.b32.xlu0 %v676, 45
        %v982 = vpop.permute.xlu0 %981
        %983 = vrot.lane.b32.xlu0 %v677, 45
        %v984 = vpop.permute.xlu0 %983
        %vm985 = vcmask 367616
        %v986 = vsel %vm985, %v982, %v984
        %v989 = vsel %vm985, 0.0, %v982
        %v990 = vstv %s980
        %v991 = vmul.f32 %v990, %v989
        %v992 = vmul.f32 %v990, %v986
        %s993 = sld [smem:[#allocation10 + $0xd]]
        %994 = vrot.lane.b32.xlu0 %v684, 45
        %v995 = vpop.permute.xlu0 %994
        %996 = vrot.lane.b32.xlu0 %v691, 45
        %v997 = vpop.permute.xlu0 %996
        %v998 = vsel %vm985, %v995, %v997
        %v1001 = vsel %vm985, 0.0, %v995
        %v1002 = vstv %s993
        %v1003 = vmul.f32 %v1002, %v1001
        %v1004 = vmul.f32 %v1002, %v998
        %v1005 = vadd.f32 %v991, %v1003
        %v1006 = vadd.f32 %v992, %v1004
        %vm1007 = vcmp.le.s32.totalorder %v433, 12
        %v1010 = vcombine.low %v1005, %v1006
        %v1012 = vunpack.c.l.s4 1966171168
        %v1013 = vunpack.c.0.s8 %v1012
        %v1014 = vlaneseq
        %v1015 = vshrl.u32 %v1014, 7
        %v1016 = vsub.s32 %v1013, %v1015
        %v1017 = vrot.slane %v1010, %v1016
        %v1019 = vunpack.c.l.s4 1966171168
        %v1020 = vunpack.c.0.s8 %v1019
        %v1021 = vlaneseq
        %v1022 = vshrl.u32 %v1021, 7
        %v1023 = vsub.s32 %v1020, %v1022
        %v1024 = vrot.slane %v1017, %v1023
        %v1026 = vsel %vm1007, %v1024, 0.0
        %v1027 = vadd.f32 %v979, %v1026
        %s1028 = sld [smem:[#allocation10 + $0xe]]
        %1029 = vrot.lane.b32.xlu0 %v676, 35
        %v1030 = vpop.permute.xlu0 %1029
        %1031 = vrot.lane.b32.xlu0 %v677, 35
        %v1032 = vpop.permute.xlu0 %1031
        %vm1033 = vcmask 285696
        %v1034 = vsel %vm1033, %v1030, %v1032
        %v1037 = vsel %vm1033, 0.0, %v1030
        %v1038 = vstv %s1028
        %v1039 = vmul.f32 %v1038, %v1037
        %v1040 = vmul.f32 %v1038, %v1034
        %s1041 = sld [smem:[#allocation10 + $0xf]]
        %1042 = vrot.lane.b32.xlu0 %v684, 35
        %v1043 = vpop.permute.xlu0 %1042
        %1044 = vrot.lane.b32.xlu0 %v691, 35
        %v1045 = vpop.permute.xlu0 %1044
        %v1046 = vsel %vm1033, %v1043, %v1045
        %v1049 = vsel %vm1033, 0.0, %v1043
        %v1050 = vstv %s1041
        %v1051 = vmul.f32 %v1050, %v1049
        %v1052 = vmul.f32 %v1050, %v1046
        %v1053 = vadd.f32 %v1039, %v1051
        %v1054 = vadd.f32 %v1040, %v1052
        %v1057 = vcombine.low %v1053, %v1054
        %v1059 = vunpack.c.l.s4 1966171168
        %v1060 = vunpack.c.0.s8 %v1059
        %v1061 = vlaneseq
        %v1062 = vshrl.u32 %v1061, 7
        %v1063 = vsub.s32 %v1060, %v1062
        %v1064 = vrot.slane %v1057, %v1063
        %v1066 = vunpack.c.l.s4 1966171168
        %v1067 = vunpack.c.0.s8 %v1066
        %v1068 = vlaneseq
        %v1069 = vshrl.u32 %v1068, 7
        %v1070 = vsub.s32 %v1067, %v1069
        %v1071 = vrot.slane %v1064, %v1070
        %v1073 = vsel %vm723, %v1071, 0.0
        %v1074 = vadd.f32 %v1027, %v1073
        %s1075 = sld [smem:[#allocation10 + $0x10]]
        %1076 = vrot.lane.b32.xlu0 %v676, 34
        %v1077 = vpop.permute.xlu0 %1076
        %1078 = vrot.lane.b32.xlu0 %v677, 34
        %v1079 = vpop.permute.xlu0 %1078
        %vm1080 = vcmask 277504
        %v1081 = vsel %vm1080, %v1077, %v1079
        %v1084 = vsel %vm1080, 0.0, %v1077
        %v1085 = vstv %s1075
        %v1086 = vmul.f32 %v1085, %v1084
        %v1087 = vmul.f32 %v1085, %v1081
        %s1088 = sld [smem:[#allocation10 + $0x11]]
        %1089 = vrot.lane.b32.xlu0 %v684, 34
        %v1090 = vpop.permute.xlu0 %1089
        %1091 = vrot.lane.b32.xlu0 %v691, 34
        %v1092 = vpop.permute.xlu0 %1091
        %v1093 = vsel %vm1080, %v1090, %v1092
        %v1096 = vsel %vm1080, 0.0, %v1090
        %v1097 = vstv %s1088
        %v1098 = vmul.f32 %v1097, %v1096
        %v1099 = vmul.f32 %v1097, %v1093
        %v1100 = vadd.f32 %v1086, %v1098
        %v1101 = vadd.f32 %v1087, %v1099
        %v1104 = vcombine.low %v1100, %v1101
        %v1106 = vunpack.c.l.s4 1966171168
        %v1107 = vunpack.c.0.s8 %v1106
        %v1108 = vlaneseq
        %v1109 = vshrl.u32 %v1108, 7
        %v1110 = vsub.s32 %v1107, %v1109
        %v1111 = vrot.slane %v1104, %v1110
        %v1113 = vunpack.c.l.s4 1966171168
        %v1114 = vunpack.c.0.s8 %v1113
        %v1115 = vlaneseq
        %v1116 = vshrl.u32 %v1115, 7
        %v1117 = vsub.s32 %v1114, %v1116
        %v1118 = vrot.slane %v1111, %v1117
        %v1120 = vsel %vm771, %v1118, 0.0
        %v1121 = vadd.f32 %v1074, %v1120
        %s1122 = sld [smem:[#allocation10 + $0x12]]
        %1123 = vrot.lane.b32.xlu0 %v676, 33
        %v1124 = vpop.permute.xlu0 %1123
        %1125 = vrot.lane.b32.xlu0 %v677, 33
        %v1126 = vpop.permute.xlu0 %1125
        %vm1127 = vcmask 269312
        %v1128 = vsel %vm1127, %v1124, %v1126
        %v1131 = vsel %vm1127, 0.0, %v1124
        %v1132 = vstv %s1122
        %v1133 = vmul.f32 %v1132, %v1131
        %v1134 = vmul.f32 %v1132, %v1128
        %s1135 = sld [smem:[#allocation10 + $0x13]]
        %1136 = vrot.lane.b32.xlu0 %v684, 33
        %v1137 = vpop.permute.xlu0 %1136
        %1138 = vrot.lane.b32.xlu0 %v691, 33
        %v1139 = vpop.permute.xlu0 %1138
        %v1140 = vsel %vm1127, %v1137, %v1139
        %v1143 = vsel %vm1127, 0.0, %v1137
        %v1144 = vstv %s1135
        %v1145 = vmul.f32 %v1144, %v1143
        %v1146 = vmul.f32 %v1144, %v1140
        %v1147 = vadd.f32 %v1133, %v1145
        %v1148 = vadd.f32 %v1134, %v1146
        %v1151 = vcombine.low %v1147, %v1148
        %v1153 = vunpack.c.l.s4 1966171168
        %v1154 = vunpack.c.0.s8 %v1153
        %v1155 = vlaneseq
        %v1156 = vshrl.u32 %v1155, 7
        %v1157 = vsub.s32 %v1154, %v1156
        %v1158 = vrot.slane %v1151, %v1157
        %v1160 = vunpack.c.l.s4 1966171168
        %v1161 = vunpack.c.0.s8 %v1160
        %v1162 = vlaneseq
        %v1163 = vshrl.u32 %v1162, 7
        %v1164 = vsub.s32 %v1161, %v1163
        %v1165 = vrot.slane %v1158, %v1164
        %v1167 = vsel %vm448, %v1165, 0.0
        %v1168 = vadd.f32 %v1121, %v1167
        %s1169 = sld [smem:[#allocation10 + $0x14]]
        %1170 = vrot.lane.b32.xlu0 %v676, 32
        %v1171 = vpop.permute.xlu0 %1170
        %1172 = vrot.lane.b32.xlu0 %v677, 32
        %v1173 = vpop.permute.xlu0 %1172
        %vm1174 = vcmask 261120
        %v1175 = vsel %vm1174, %v1171, %v1173
        %v1178 = vsel %vm1174, 0.0, %v1171
        %v1179 = vstv %s1169
        %v1180 = vmul.f32 %v1179, %v1178
        %v1181 = vmul.f32 %v1179, %v1175
        %s1182 = sld [smem:[#allocation10 + $0x15]]
        %1183 = vrot.lane.b32.xlu0 %v684, 32
        %v1184 = vpop.permute.xlu0 %1183
        %1185 = vrot.lane.b32.xlu0 %v691, 32
        %v1186 = vpop.permute.xlu0 %1185
        %v1187 = vsel %vm1174, %v1184, %v1186
        %v1190 = vsel %vm1174, 0.0, %v1184
        %v1191 = vstv %s1182
        %v1192 = vmul.f32 %v1191, %v1190
        %v1193 = vmul.f32 %v1191, %v1187
        %v1194 = vadd.f32 %v1180, %v1192
        %v1195 = vadd.f32 %v1181, %v1193
        %v1198 = vcombine.low %v1194, %v1195
        %v1200 = vunpack.c.l.s4 1966171168
        %v1201 = vunpack.c.0.s8 %v1200
        %v1202 = vlaneseq
        %v1203 = vshrl.u32 %v1202, 7
        %v1204 = vsub.s32 %v1201, %v1203
        %v1205 = vrot.slane %v1198, %v1204
        %v1207 = vunpack.c.l.s4 1966171168
        %v1208 = vunpack.c.0.s8 %v1207
        %v1209 = vlaneseq
        %v1210 = vshrl.u32 %v1209, 7
        %v1211 = vsub.s32 %v1208, %v1210
        %v1212 = vrot.slane %v1205, %v1211
        %v1214 = vadd.f32 %v1168, %v1212
        %s1215 = sld [smem:[#allocation10 + $0x16]]
        %1216 = vrot.lane.b32.xlu0 %v676, 31
        %v1217 = vpop.permute.xlu0 %1216
        %1218 = vrot.lane.b32.xlu0 %v677, 31
        %v1219 = vpop.permute.xlu0 %1218
        %vm1220 = vcmask 252928
        %v1221 = vsel %vm1220, %v1217, %v1219
        %v1224 = vsel %vm1220, 0.0, %v1217
        %v1225 = vstv %s1215
        %v1226 = vmul.f32 %v1225, %v1224
        %v1227 = vmul.f32 %v1225, %v1221
        %s1228 = sld [smem:[#allocation10 + $0x17]]
        %1229 = vrot.lane.b32.xlu0 %v684, 31
        %v1230 = vpop.permute.xlu0 %1229
        %1231 = vrot.lane.b32.xlu0 %v691, 31
        %v1232 = vpop.permute.xlu0 %1231
        %v1233 = vsel %vm1220, %v1230, %v1232
        %v1236 = vsel %vm1220, 0.0, %v1230
        %v1237 = vstv %s1228
        %v1238 = vmul.f32 %v1237, %v1236
        %v1239 = vmul.f32 %v1237, %v1233
        %v1240 = vadd.f32 %v1226, %v1238
        %v1241 = vadd.f32 %v1227, %v1239
        %v1244 = vcombine.low %v1240, %v1241
        %v1246 = vunpack.c.l.s4 1966171168
        %v1247 = vunpack.c.0.s8 %v1246
        %v1248 = vlaneseq
        %v1249 = vshrl.u32 %v1248, 7
        %v1250 = vsub.s32 %v1247, %v1249
        %v1251 = vrot.slane %v1244, %v1250
        %v1253 = vunpack.c.l.s4 1966171168
        %v1254 = vunpack.c.0.s8 %v1253
        %v1255 = vlaneseq
        %v1256 = vshrl.u32 %v1255, 7
        %v1257 = vsub.s32 %v1254, %v1256
        %v1258 = vrot.slane %v1251, %v1257
        %v1260 = vsel %vm488, %v1258, 0.0
        %v1261 = vadd.f32 %v1214, %v1260
        %s1262 = sld [smem:[#allocation10 + $0x18]]
        %1263 = vrot.lane.b32.xlu0 %v676, 30
        %v1264 = vpop.permute.xlu0 %1263
        %1265 = vrot.lane.b32.xlu0 %v677, 30
        %v1266 = vpop.permute.xlu0 %1265
        %vm1267 = vcmask 244736
        %v1268 = vsel %vm1267, %v1264, %v1266
        %v1271 = vsel %vm1267, 0.0, %v1264
        %v1272 = vstv %s1262
        %v1273 = vmul.f32 %v1272, %v1271
        %v1274 = vmul.f32 %v1272, %v1268
        %s1275 = sld [smem:[#allocation10 + $0x19]]
        %1276 = vrot.lane.b32.xlu0 %v684, 30
        %v1277 = vpop.permute.xlu0 %1276
        %1278 = vrot.lane.b32.xlu0 %v691, 30
        %v1279 = vpop.permute.xlu0 %1278
        %v1280 = vsel %vm1267, %v1277, %v1279
        %v1283 = vsel %vm1267, 0.0, %v1277
        %v1284 = vstv %s1275
        %v1285 = vmul.f32 %v1284, %v1283
        %v1286 = vmul.f32 %v1284, %v1280
        %v1287 = vadd.f32 %v1273, %v1285
        %v1288 = vadd.f32 %v1274, %v1286
        %v1291 = vcombine.low %v1287, %v1288
        %v1293 = vunpack.c.l.s4 1966171168
        %v1294 = vunpack.c.0.s8 %v1293
        %v1295 = vlaneseq
        %v1296 = vshrl.u32 %v1295, 7
        %v1297 = vsub.s32 %v1294, %v1296
        %v1298 = vrot.slane %v1291, %v1297
        %v1300 = vunpack.c.l.s4 1966171168
        %v1301 = vunpack.c.0.s8 %v1300
        %v1302 = vlaneseq
        %v1303 = vshrl.u32 %v1302, 7
        %v1304 = vsub.s32 %v1301, %v1303
        %v1305 = vrot.slane %v1298, %v1304
        %v1307 = vsel %vm959, %v1305, 0.0
        %v1308 = vadd.f32 %v1261, %v1307
        %s1309 = sld [smem:[#allocation10 + $0x1a]]
        %1310 = vrot.lane.b32.xlu0 %v676, 29
        %v1311 = vpop.permute.xlu0 %1310
        %1312 = vrot.lane.b32.xlu0 %v677, 29
        %v1313 = vpop.permute.xlu0 %1312
        %vm1314 = vcmask 236544
        %v1315 = vsel %vm1314, %v1311, %v1313
        %v1318 = vsel %vm1314, 0.0, %v1311
        %v1319 = vstv %s1309
        %v1320 = vmul.f32 %v1319, %v1318
        %v1321 = vmul.f32 %v1319, %v1315
        %s1322 = sld [smem:[#allocation10 + $0x1b]]
        %1323 = vrot.lane.b32.xlu0 %v684, 29
        %v1324 = vpop.permute.xlu0 %1323
        %1325 = vrot.lane.b32.xlu0 %v691, 29
        %v1326 = vpop.permute.xlu0 %1325
        %v1327 = vsel %vm1314, %v1324, %v1326
        %v1330 = vsel %vm1314, 0.0, %v1324
        %v1331 = vstv %s1322
        %v1332 = vmul.f32 %v1331, %v1330
        %v1333 = vmul.f32 %v1331, %v1327
        %v1334 = vadd.f32 %v1320, %v1332
        %v1335 = vadd.f32 %v1321, %v1333
        %v1338 = vcombine.low %v1334, %v1335
        %v1340 = vunpack.c.l.s4 1966171168
        %v1341 = vunpack.c.0.s8 %v1340
        %v1342 = vlaneseq
        %v1343 = vshrl.u32 %v1342, 7
        %v1344 = vsub.s32 %v1341, %v1343
        %v1345 = vrot.slane %v1338, %v1344
        %v1347 = vunpack.c.l.s4 1966171168
        %v1348 = vunpack.c.0.s8 %v1347
        %v1349 = vlaneseq
        %v1350 = vshrl.u32 %v1349, 7
        %v1351 = vsub.s32 %v1348, %v1350
        %v1352 = vrot.slane %v1345, %v1351
        %v1354 = vsel %vm1007, %v1352, 0.0
        %v1355 = vadd.f32 %v1308, %v1354
        %s1356 = sld [smem:[#allocation10 + $0x1c]]
        %1357 = vrot.lane.b32.xlu0 %v676, 19
        %v1358 = vpop.permute.xlu0 %1357
        %1359 = vrot.lane.b32.xlu0 %v677, 19
        %v1360 = vpop.permute.xlu0 %1359
        %vm1361 = vcmask 154624
        %v1362 = vsel %vm1361, %v1358, %v1360
        %v1365 = vsel %vm1361, 0.0, %v1358
        %v1366 = vstv %s1356
        %v1367 = vmul.f32 %v1366, %v1365
        %v1368 = vmul.f32 %v1366, %v1362
        %s1369 = sld [smem:[#allocation10 + $0x1d]]
        %1370 = vrot.lane.b32.xlu0 %v684, 19
        %v1371 = vpop.permute.xlu0 %1370
        %1372 = vrot.lane.b32.xlu0 %v691, 19
        %v1373 = vpop.permute.xlu0 %1372
        %v1374 = vsel %vm1361, %v1371, %v1373
        %v1377 = vsel %vm1361, 0.0, %v1371
        %v1378 = vstv %s1369
        %v1379 = vmul.f32 %v1378, %v1377
        %v1380 = vmul.f32 %v1378, %v1374
        %v1381 = vadd.f32 %v1367, %v1379
        %v1382 = vadd.f32 %v1368, %v1380
        %v1385 = vcombine.low %v1381, %v1382
        %v1387 = vunpack.c.l.s4 1966171168
        %v1388 = vunpack.c.0.s8 %v1387
        %v1389 = vlaneseq
        %v1390 = vshrl.u32 %v1389, 7
        %v1391 = vsub.s32 %v1388, %v1390
        %v1392 = vrot.slane %v1385, %v1391
        %v1394 = vunpack.c.l.s4 1966171168
        %v1395 = vunpack.c.0.s8 %v1394
        %v1396 = vlaneseq
        %v1397 = vshrl.u32 %v1396, 7
        %v1398 = vsub.s32 %v1395, %v1397
        %v1399 = vrot.slane %v1392, %v1398
        %v1401 = vsel %vm723, %v1399, 0.0
        %v1402 = vadd.f32 %v1355, %v1401
        %s1403 = sld [smem:[#allocation10 + $0x1e]]
        %1404 = vrot.lane.b32.xlu0 %v676, 18
        %v1405 = vpop.permute.xlu0 %1404
        %1406 = vrot.lane.b32.xlu0 %v677, 18
        %v1407 = vpop.permute.xlu0 %1406
        %vm1408 = vcmask 146432
        %v1409 = vsel %vm1408, %v1405, %v1407
        %v1412 = vsel %vm1408, 0.0, %v1405
        %v1413 = vstv %s1403
        %v1414 = vmul.f32 %v1413, %v1412
        %v1415 = vmul.f32 %v1413, %v1409
        %s1416 = sld [smem:[#allocation10 + $0x1f]]
        %1417 = vrot.lane.b32.xlu0 %v684, 18
        %v1418 = vpop.permute.xlu0 %1417
        %1419 = vrot.lane.b32.xlu0 %v691, 18
        %v1420 = vpop.permute.xlu0 %1419
        %v1421 = vsel %vm1408, %v1418, %v1420
        %v1424 = vsel %vm1408, 0.0, %v1418
        %v1425 = vstv %s1416
        %v1426 = vmul.f32 %v1425, %v1424
        %v1427 = vmul.f32 %v1425, %v1421
        %v1428 = vadd.f32 %v1414, %v1426
        %v1429 = vadd.f32 %v1415, %v1427
        %v1432 = vcombine.low %v1428, %v1429
        %v1434 = vunpack.c.l.s4 1966171168
        %v1435 = vunpack.c.0.s8 %v1434
        %v1436 = vlaneseq
        %v1437 = vshrl.u32 %v1436, 7
        %v1438 = vsub.s32 %v1435, %v1437
        %v1439 = vrot.slane %v1432, %v1438
        %v1441 = vunpack.c.l.s4 1966171168
        %v1442 = vunpack.c.0.s8 %v1441
        %v1443 = vlaneseq
        %v1444 = vshrl.u32 %v1443, 7
        %v1445 = vsub.s32 %v1442, %v1444
        %v1446 = vrot.slane %v1439, %v1445
        %v1448 = vsel %vm771, %v1446, 0.0
        %v1449 = vadd.f32 %v1402, %v1448
        %s1450 = sld [smem:[#allocation10 + $0x20]]
        %1451 = vrot.lane.b32.xlu0 %v676, 17
        %v1452 = vpop.permute.xlu0 %1451
        %1453 = vrot.lane.b32.xlu0 %v677, 17
        %v1454 = vpop.permute.xlu0 %1453
        %v1455 = vsel %vm443, %v1452, %v1454
        %v1458 = vsel %vm443, 0.0, %v1452
        %v1459 = vstv %s1450
        %v1460 = vmul.f32 %v1459, %v1458
        %v1461 = vmul.f32 %v1459, %v1455
        %s1462 = sld [smem:[#allocation10 + $0x21]]
        %1463 = vrot.lane.b32.xlu0 %v684, 17
        %v1464 = vpop.permute.xlu0 %1463
        %1465 = vrot.lane.b32.xlu0 %v691, 17
        %v1466 = vpop.permute.xlu0 %1465
        %v1467 = vsel %vm443, %v1464, %v1466
        %v1470 = vsel %vm443, 0.0, %v1464
        %v1471 = vstv %s1462
        %v1472 = vmul.f32 %v1471, %v1470
        %v1473 = vmul.f32 %v1471, %v1467
        %v1474 = vadd.f32 %v1460, %v1472
        %v1475 = vadd.f32 %v1461, %v1473
        %v1478 = vcombine.low %v1474, %v1475
        %v1480 = vunpack.c.l.s4 1966171168
        %v1481 = vunpack.c.0.s8 %v1480
        %v1482 = vlaneseq
        %v1483 = vshrl.u32 %v1482, 7
        %v1484 = vsub.s32 %v1481, %v1483
        %v1485 = vrot.slane %v1478, %v1484
        %v1487 = vunpack.c.l.s4 1966171168
        %v1488 = vunpack.c.0.s8 %v1487
        %v1489 = vlaneseq
        %v1490 = vshrl.u32 %v1489, 7
        %v1491 = vsub.s32 %v1488, %v1490
        %v1492 = vrot.slane %v1485, %v1491
        %v1494 = vsel %vm448, %v1492, 0.0
        %v1495 = vadd.f32 %v1449, %v1494
        %s1496 = sld [smem:[#allocation10 + $0x22]]
        %1497 = vrot.lane.b32.xlu0 %v676, 16
        %v1498 = vpop.permute.xlu0 %1497
        %1499 = vrot.lane.b32.xlu0 %v677, 16
        %v1500 = vpop.permute.xlu0 %1499
        %v1501 = vsel %vm468, %v1498, %v1500
        %v1504 = vsel %vm468, 0.0, %v1498
        %v1505 = vstv %s1496
        %v1506 = vmul.f32 %v1505, %v1504
        %v1507 = vmul.f32 %v1505, %v1501
        %s1508 = sld [smem:[#allocation10 + $0x23]]
        %1509 = vrot.lane.b32.xlu0 %v684, 16
        %v1510 = vpop.permute.xlu0 %1509
        %1511 = vrot.lane.b32.xlu0 %v691, 16
        %v1512 = vpop.permute.xlu0 %1511
        %v1513 = vsel %vm468, %v1510, %v1512
        %v1516 = vsel %vm468, 0.0, %v1510
        %v1517 = vstv %s1508
        %v1518 = vmul.f32 %v1517, %v1516
        %v1519 = vmul.f32 %v1517, %v1513
        %v1520 = vadd.f32 %v1506, %v1518
        %v1521 = vadd.f32 %v1507, %v1519
        %v1524 = vcombine.low %v1520, %v1521
        %v1526 = vunpack.c.l.s4 1966171168
        %v1527 = vunpack.c.0.s8 %v1526
        %v1528 = vlaneseq
        %v1529 = vshrl.u32 %v1528, 7
        %v1530 = vsub.s32 %v1527, %v1529
        %v1531 = vrot.slane %v1524, %v1530
        %v1533 = vunpack.c.l.s4 1966171168
        %v1534 = vunpack.c.0.s8 %v1533
        %v1535 = vlaneseq
        %v1536 = vshrl.u32 %v1535, 7
        %v1537 = vsub.s32 %v1534, %v1536
        %v1538 = vrot.slane %v1531, %v1537
        %v1540 = vadd.f32 %v1495, %v1538
        %s1541 = sld [smem:[#allocation10 + $0x24]]
        %1542 = vrot.lane.b32.xlu0 %v676, 15
        %v1543 = vpop.permute.xlu0 %1542
        %1544 = vrot.lane.b32.xlu0 %v677, 15
        %v1545 = vpop.permute.xlu0 %1544
        %v1546 = vsel %vm483, %v1543, %v1545
        %v1549 = vsel %vm483, 0.0, %v1543
        %v1550 = vstv %s1541
        %v1551 = vmul.f32 %v1550, %v1549
        %v1552 = vmul.f32 %v1550, %v1546
        %s1553 = sld [smem:[#allocation10 + $0x25]]
        %1554 = vrot.lane.b32.xlu0 %v684, 15
        %v1555 = vpop.permute.xlu0 %1554
        %1556 = vrot.lane.b32.xlu0 %v691, 15
        %v1557 = vpop.permute.xlu0 %1556
        %v1558 = vsel %vm483, %v1555, %v1557
        %v1561 = vsel %vm483, 0.0, %v1555
        %v1562 = vstv %s1553
        %v1563 = vmul.f32 %v1562, %v1561
        %v1564 = vmul.f32 %v1562, %v1558
        %v1565 = vadd.f32 %v1551, %v1563
        %v1566 = vadd.f32 %v1552, %v1564
        %v1569 = vcombine.low %v1565, %v1566
        %v1571 = vunpack.c.l.s4 1966171168
        %v1572 = vunpack.c.0.s8 %v1571
        %v1573 = vlaneseq
        %v1574 = vshrl.u32 %v1573, 7
        %v1575 = vsub.s32 %v1572, %v1574
        %v1576 = vrot.slane %v1569, %v1575
        %v1578 = vunpack.c.l.s4 1966171168
        %v1579 = vunpack.c.0.s8 %v1578
        %v1580 = vlaneseq
        %v1581 = vshrl.u32 %v1580, 7
        %v1582 = vsub.s32 %v1579, %v1581
        %v1583 = vrot.slane %v1576, %v1582
        %v1585 = vsel %vm488, %v1583, 0.0
        %v1586 = vadd.f32 %v1540, %v1585
        %s1587 = sld [smem:[#allocation10 + $0x26]]
        %1588 = vrot.lane.b32.xlu0 %v676, 14
        %v1589 = vpop.permute.xlu0 %1588
        %1590 = vrot.lane.b32.xlu0 %v677, 14
        %v1591 = vpop.permute.xlu0 %1590
        %vm1592 = vcmask 113664
        %v1593 = vsel %vm1592, %v1589, %v1591
        %v1596 = vsel %vm1592, 0.0, %v1589
        %v1597 = vstv %s1587
        %v1598 = vmul.f32 %v1597, %v1596
        %v1599 = vmul.f32 %v1597, %v1593
        %s1600 = sld [smem:[#allocation10 + $0x27]]
        %1601 = vrot.lane.b32.xlu0 %v684, 14
        %v1602 = vpop.permute.xlu0 %1601
        %1603 = vrot.lane.b32.xlu0 %v691, 14
        %v1604 = vpop.permute.xlu0 %1603
        %v1605 = vsel %vm1592, %v1602, %v1604
        %v1608 = vsel %vm1592, 0.0, %v1602
        %v1609 = vstv %s1600
        %v1610 = vmul.f32 %v1609, %v1608
        %v1611 = vmul.f32 %v1609, %v1605
        %v1612 = vadd.f32 %v1598, %v1610
        %v1613 = vadd.f32 %v1599, %v1611
        %v1616 = vcombine.low %v1612, %v1613
        %v1618 = vunpack.c.l.s4 1966171168
        %v1619 = vunpack.c.0.s8 %v1618
        %v1620 = vlaneseq
        %v1621 = vshrl.u32 %v1620, 7
        %v1622 = vsub.s32 %v1619, %v1621
        %v1623 = vrot.slane %v1616, %v1622
        %v1625 = vunpack.c.l.s4 1966171168
        %v1626 = vunpack.c.0.s8 %v1625
        %v1627 = vlaneseq
        %v1628 = vshrl.u32 %v1627, 7
        %v1629 = vsub.s32 %v1626, %v1628
        %v1630 = vrot.slane %v1623, %v1629
        %v1632 = vsel %vm959, %v1630, 0.0
        %v1633 = vadd.f32 %v1586, %v1632
        %s1634 = sld [smem:[#allocation10 + $0x28]]
        %1635 = vrot.lane.b32.xlu0 %v676, 13
        %v1636 = vpop.permute.xlu0 %1635
        %1637 = vrot.lane.b32.xlu0 %v677, 13
        %v1638 = vpop.permute.xlu0 %1637
        %vm1639 = vcmask 105472
        %v1640 = vsel %vm1639, %v1636, %v1638
        %v1643 = vsel %vm1639, 0.0, %v1636
        %v1644 = vstv %s1634
        %v1645 = vmul.f32 %v1644, %v1643
        %v1646 = vmul.f32 %v1644, %v1640
        %s1647 = sld [smem:[#allocation10 + $0x29]]
        %1648 = vrot.lane.b32.xlu0 %v684, 13
        %v1649 = vpop.permute.xlu0 %1648
        %1650 = vrot.lane.b32.xlu0 %v691, 13
        %v1651 = vpop.permute.xlu0 %1650
        %v1652 = vsel %vm1639, %v1649, %v1651
        %v1655 = vsel %vm1639, 0.0, %v1649
        %v1656 = vstv %s1647
        %v1657 = vmul.f32 %v1656, %v1655
        %v1658 = vmul.f32 %v1656, %v1652
        %v1659 = vadd.f32 %v1645, %v1657
        %v1660 = vadd.f32 %v1646, %v1658
        %v1663 = vcombine.low %v1659, %v1660
        %v1665 = vunpack.c.l.s4 1966171168
        %v1666 = vunpack.c.0.s8 %v1665
        %v1667 = vlaneseq
        %v1668 = vshrl.u32 %v1667, 7
        %v1669 = vsub.s32 %v1666, %v1668
        %v1670 = vrot.slane %v1663, %v1669
        %v1672 = vunpack.c.l.s4 1966171168
        %v1673 = vunpack.c.0.s8 %v1672
        %v1674 = vlaneseq
        %v1675 = vshrl.u32 %v1674, 7
        %v1676 = vsub.s32 %v1673, %v1675
        %v1677 = vrot.slane %v1670, %v1676
        %v1679 = vsel %vm1007, %v1677, 0.0
        %v1680 = vadd.f32 %v1633, %v1679
        %s1681 = sld [smem:[#allocation10 + $0x2a]]
        %1682 = vrot.lane.b32.xlu0 %v676, 3
        %v1683 = vpop.permute.xlu0 %1682
        %1684 = vrot.lane.b32.xlu0 %v677, 3
        %v1685 = vpop.permute.xlu0 %1684
        %vm1686 = vcmask 23552
        %v1687 = vsel %vm1686, %v1683, %v1685
        %v1690 = vsel %vm1686, 0.0, %v1683
        %v1691 = vstv %s1681
        %v1692 = vmul.f32 %v1691, %v1690
        %v1693 = vmul.f32 %v1691, %v1687
        %s1694 = sld [smem:[#allocation10 + $0x2b]]
        %1695 = vrot.lane.b32.xlu0 %v684, 3
        %v1696 = vpop.permute.xlu0 %1695
        %1697 = vrot.lane.b32.xlu0 %v691, 3
        %v1698 = vpop.permute.xlu0 %1697
        %v1699 = vsel %vm1686, %v1696, %v1698
        %v1702 = vsel %vm1686, 0.0, %v1696
        %v1703 = vstv %s1694
        %v1704 = vmul.f32 %v1703, %v1702
        %v1705 = vmul.f32 %v1703, %v1699
        %v1706 = vadd.f32 %v1692, %v1704
        %v1707 = vadd.f32 %v1693, %v1705
        %v1710 = vcombine.low %v1706, %v1707
        %v1712 = vunpack.c.l.s4 1966171168
        %v1713 = vunpack.c.0.s8 %v1712
        %v1714 = vlaneseq
        %v1715 = vshrl.u32 %v1714, 7
        %v1716 = vsub.s32 %v1713, %v1715
        %v1717 = vrot.slane %v1710, %v1716
        %v1719 = vunpack.c.l.s4 1966171168
        %v1720 = vunpack.c.0.s8 %v1719
        %v1721 = vlaneseq
        %v1722 = vshrl.u32 %v1721, 7
        %v1723 = vsub.s32 %v1720, %v1722
        %v1724 = vrot.slane %v1717, %v1723
        %v1726 = vsel %vm723, %v1724, 0.0
        %v1727 = vadd.f32 %v1680, %v1726
        %s1728 = sld [smem:[#allocation10 + $0x2c]]
        %1729 = vrot.lane.b32.xlu0 %v676, 2
        %v1730 = vpop.permute.xlu0 %1729
        %1731 = vrot.lane.b32.xlu0 %v677, 2
        %v1732 = vpop.permute.xlu0 %1731
        %vm1733 = vcmask 15360
        %v1734 = vsel %vm1733, %v1730, %v1732
        %v1737 = vsel %vm1733, 0.0, %v1730
        %v1738 = vstv %s1728
        %v1739 = vmul.f32 %v1738, %v1737
        %v1740 = vmul.f32 %v1738, %v1734
        %s1741 = sld [smem:[#allocation10 + $0x2d]]
        %1742 = vrot.lane.b32.xlu0 %v684, 2
        %v1743 = vpop.permute.xlu0 %1742
        %1744 = vrot.lane.b32.xlu0 %v691, 2
        %v1745 = vpop.permute.xlu0 %1744
        %v1746 = vsel %vm1733, %v1743, %v1745
        %v1749 = vsel %vm1733, 0.0, %v1743
        %v1750 = vstv %s1741
        %v1751 = vmul.f32 %v1750, %v1749
        %v1752 = vmul.f32 %v1750, %v1746
        %v1753 = vadd.f32 %v1739, %v1751
        %v1754 = vadd.f32 %v1740, %v1752
        %v1757 = vcombine.low %v1753, %v1754
        %v1759 = vunpack.c.l.s4 1966171168
        %v1760 = vunpack.c.0.s8 %v1759
        %v1761 = vlaneseq
        %v1762 = vshrl.u32 %v1761, 7
        %v1763 = vsub.s32 %v1760, %v1762
        %v1764 = vrot.slane %v1757, %v1763
        %v1766 = vunpack.c.l.s4 1966171168
        %v1767 = vunpack.c.0.s8 %v1766
        %v1768 = vlaneseq
        %v1769 = vshrl.u32 %v1768, 7
        %v1770 = vsub.s32 %v1767, %v1769
        %v1771 = vrot.slane %v1764, %v1770
        %v1773 = vsel %vm771, %v1771, 0.0
        %v1774 = vadd.f32 %v1727, %v1773
        %s1775 = sld [smem:[#allocation10 + $0x2e]]
        %1776 = vrot.lane.b32.xlu0 %v676, 1
        %v1777 = vpop.permute.xlu0 %1776
        %1778 = vrot.lane.b32.xlu0 %v677, 1
        %v1779 = vpop.permute.xlu0 %1778
        %v1780 = vsel %vm508, %v1777, %v1779
        %v1783 = vsel %vm508, 0.0, %v1777
        %v1784 = vstv %s1775
        %v1785 = vmul.f32 %v1784, %v1783
        %v1786 = vmul.f32 %v1784, %v1780
        %s1787 = sld [smem:[#allocation10 + $0x2f]]
        %1788 = vrot.lane.b32.xlu0 %v684, 1
        %v1789 = vpop.permute.xlu0 %1788
        %1790 = vrot.lane.b32.xlu0 %v691, 1
        %v1791 = vpop.permute.xlu0 %1790
        %v1792 = vsel %vm508, %v1789, %v1791
        %v1795 = vsel %vm508, 0.0, %v1789
        %v1796 = vstv %s1787
        %v1797 = vmul.f32 %v1796, %v1795
        %v1798 = vmul.f32 %v1796, %v1792
        %v1799 = vadd.f32 %v1785, %v1797
        %v1800 = vadd.f32 %v1786, %v1798
        %v1803 = vcombine.low %v1799, %v1800
        %v1805 = vunpack.c.l.s4 1966171168
        %v1806 = vunpack.c.0.s8 %v1805
        %v1807 = vlaneseq
        %v1808 = vshrl.u32 %v1807, 7
        %v1809 = vsub.s32 %v1806, %v1808
        %v1810 = vrot.slane %v1803, %v1809
        %v1812 = vunpack.c.l.s4 1966171168
        %v1813 = vunpack.c.0.s8 %v1812
        %v1814 = vlaneseq
        %v1815 = vshrl.u32 %v1814, 7
        %v1816 = vsub.s32 %v1813, %v1815
        %v1817 = vrot.slane %v1810, %v1816
        %v1819 = vsel %vm448, %v1817, 0.0
        %v1820 = vadd.f32 %v1774, %v1819
        %s1821 = sld [smem:[#allocation10 + $0x30]]
        %v1822 = vstv %s1821
        %v1823 = vmul.f32 %v1822, %v676
        %v1824 = vmul.f32 %v1822, %v677
        %s1825 = sld [smem:[#allocation10 + $0x31]]
        %v1826 = vstv %s1825
        %v1827 = vmul.f32 %v1826, %v684
        %v1828 = vmul.f32 %v1826, %v691
        %v1829 = vadd.f32 %v1823, %v1827
        %v1830 = vadd.f32 %v1824, %v1828
        %v1833 = vcombine.low %v1829, %v1830
        %v1835 = vunpack.c.l.s4 1966171168
        %v1836 = vunpack.c.0.s8 %v1835
        %v1837 = vlaneseq
        %v1838 = vshrl.u32 %v1837, 7
        %v1839 = vsub.s32 %v1836, %v1838
        %v1840 = vrot.slane %v1833, %v1839
        %v1842 = vunpack.c.l.s4 1966171168
        %v1843 = vunpack.c.0.s8 %v1842
        %v1844 = vlaneseq
        %v1845 = vshrl.u32 %v1844, 7
        %v1846 = vsub.s32 %v1843, %v1845
        %v1847 = vrot.slane %v1840, %v1846
        %v1849 = vadd.f32 %v1820, %v1847
        %s1850 = sld [smem:[#allocation10 + $0x32]]
        %1851 = vrot.lane.b32.xlu0 %v676, 127
        %v1852 = vpop.permute.xlu0 %1851
        %1853 = vrot.lane.b32.xlu0 %v677, 127
        %v1854 = vpop.permute.xlu0 %1853
        %v1855 = vsel %vm530, %v1852, %v1854
        %v1858 = vsel %vm530, %v1854, 0.0
        %v1859 = vstv %s1850
        %v1860 = vmul.f32 %v1859, %v1855
        %v1861 = vmul.f32 %v1859, %v1858
        %s1862 = sld [smem:[#allocation10 + $0x33]]
        %1863 = vrot.lane.b32.xlu0 %v684, 127
        %v1864 = vpop.permute.xlu0 %1863
        %1865 = vrot.lane.b32.xlu0 %v691, 127
        %v1866 = vpop.permute.xlu0 %1865
        %v1867 = vsel %vm530, %v1864, %v1866
        %v1870 = vsel %vm530, %v1866, 0.0
        %v1871 = vstv %s1862
        %v1872 = vmul.f32 %v1871, %v1867
        %v1873 = vmul.f32 %v1871, %v1870
        %v1874 = vadd.f32 %v1860, %v1872
        %v1875 = vadd.f32 %v1861, %v1873
        %v1878 = vcombine.low %v1874, %v1875
        %v1880 = vunpack.c.l.s4 1966171168
        %v1881 = vunpack.c.0.s8 %v1880
        %v1882 = vlaneseq
        %v1883 = vshrl.u32 %v1882, 7
        %v1884 = vsub.s32 %v1881, %v1883
        %v1885 = vrot.slane %v1878, %v1884
        %v1887 = vunpack.c.l.s4 1966171168
        %v1888 = vunpack.c.0.s8 %v1887
        %v1889 = vlaneseq
        %v1890 = vshrl.u32 %v1889, 7
        %v1891 = vsub.s32 %v1888, %v1890
        %v1892 = vrot.slane %v1885, %v1891
        %v1894 = vsel %vm488, %v1892, 0.0
        %v1895 = vadd.f32 %v1849, %v1894
        %s1896 = sld [smem:[#allocation10 + $0x34]]
        %1897 = vrot.lane.b32.xlu0 %v676, 126
        %v1898 = vpop.permute.xlu0 %1897
        %1899 = vrot.lane.b32.xlu0 %v677, 126
        %v1900 = vpop.permute.xlu0 %1899
        %vm1901 = vcmask 1031168
        %v1902 = vsel %vm1901, %v1898, %v1900
        %v1905 = vsel %vm1901, %v1900, 0.0
        %v1906 = vstv %s1896
        %v1907 = vmul.f32 %v1906, %v1902
        %v1908 = vmul.f32 %v1906, %v1905
        %s1909 = sld [smem:[#allocation10 + $0x35]]
        %1910 = vrot.lane.b32.xlu0 %v684, 126
        %v1911 = vpop.permute.xlu0 %1910
        %1912 = vrot.lane.b32.xlu0 %v691, 126
        %v1913 = vpop.permute.xlu0 %1912
        %v1914 = vsel %vm1901, %v1911, %v1913
        %v1917 = vsel %vm1901, %v1913, 0.0
        %v1918 = vstv %s1909
        %v1919 = vmul.f32 %v1918, %v1914
        %v1920 = vmul.f32 %v1918, %v1917
        %v1921 = vadd.f32 %v1907, %v1919
        %v1922 = vadd.f32 %v1908, %v1920
        %v1925 = vcombine.low %v1921, %v1922
        %v1927 = vunpack.c.l.s4 1966171168
        %v1928 = vunpack.c.0.s8 %v1927
        %v1929 = vlaneseq
        %v1930 = vshrl.u32 %v1929, 7
        %v1931 = vsub.s32 %v1928, %v1930
        %v1932 = vrot.slane %v1925, %v1931
        %v1934 = vunpack.c.l.s4 1966171168
        %v1935 = vunpack.c.0.s8 %v1934
        %v1936 = vlaneseq
        %v1937 = vshrl.u32 %v1936, 7
        %v1938 = vsub.s32 %v1935, %v1937
        %v1939 = vrot.slane %v1932, %v1938
        %v1941 = vsel %vm959, %v1939, 0.0
        %v1942 = vadd.f32 %v1895, %v1941
        %s1943 = sld [smem:[#allocation10 + $0x36]]
        %1944 = vrot.lane.b32.xlu0 %v676, 125
        %v1945 = vpop.permute.xlu0 %1944
        %1946 = vrot.lane.b32.xlu0 %v677, 125
        %v1947 = vpop.permute.xlu0 %1946
        %vm1948 = vcmask 1022976
        %v1949 = vsel %vm1948, %v1945, %v1947
        %v1952 = vsel %vm1948, %v1947, 0.0
        %v1953 = vstv %s1943
        %v1954 = vmul.f32 %v1953, %v1949
        %v1955 = vmul.f32 %v1953, %v1952
        %s1956 = sld [smem:[#allocation10 + $0x37]]
        %1957 = vrot.lane.b32.xlu0 %v684, 125
        %v1958 = vpop.permute.xlu0 %1957
        %1959 = vrot.lane.b32.xlu0 %v691, 125
        %v1960 = vpop.permute.xlu0 %1959
        %v1961 = vsel %vm1948, %v1958, %v1960
        %v1964 = vsel %vm1948, %v1960, 0.0
        %v1965 = vstv %s1956
        %v1966 = vmul.f32 %v1965, %v1961
        %v1967 = vmul.f32 %v1965, %v1964
        %v1968 = vadd.f32 %v1954, %v1966
        %v1969 = vadd.f32 %v1955, %v1967
        %v1972 = vcombine.low %v1968, %v1969
        %v1974 = vunpack.c.l.s4 1966171168
        %v1975 = vunpack.c.0.s8 %v1974
        %v1976 = vlaneseq
        %v1977 = vshrl.u32 %v1976, 7
        %v1978 = vsub.s32 %v1975, %v1977
        %v1979 = vrot.slane %v1972, %v1978
        %v1981 = vunpack.c.l.s4 1966171168
        %v1982 = vunpack.c.0.s8 %v1981
        %v1983 = vlaneseq
        %v1984 = vshrl.u32 %v1983, 7
        %v1985 = vsub.s32 %v1982, %v1984
        %v1986 = vrot.slane %v1979, %v1985
        %v1988 = vsel %vm1007, %v1986, 0.0
        %v1989 = vadd.f32 %v1942, %v1988
        %s1990 = sld [smem:[#allocation10 + $0x38]]
        %1991 = vrot.lane.b32.xlu0 %v676, 115
        %v1992 = vpop.permute.xlu0 %1991
        %1993 = vrot.lane.b32.xlu0 %v677, 115
        %v1994 = vpop.permute.xlu0 %1993
        %vm1995 = vcmask 941056
        %v1996 = vsel %vm1995, %v1992, %v1994
        %v1999 = vsel %vm1995, %v1994, 0.0
        %v2000 = vstv %s1990
        %v2001 = vmul.f32 %v2000, %v1996
        %v2002 = vmul.f32 %v2000, %v1999
        %s2003 = sld [smem:[#allocation10 + $0x39]]
        %2004 = vrot.lane.b32.xlu0 %v684, 115
        %v2005 = vpop.permute.xlu0 %2004
        %2006 = vrot.lane.b32.xlu0 %v691, 115
        %v2007 = vpop.permute.xlu0 %2006
        %v2008 = vsel %vm1995, %v2005, %v2007
        %v2011 = vsel %vm1995, %v2007, 0.0
        %v2012 = vstv %s2003
        %v2013 = vmul.f32 %v2012, %v2008
        %v2014 = vmul.f32 %v2012, %v2011
        %v2015 = vadd.f32 %v2001, %v2013
        %v2016 = vadd.f32 %v2002, %v2014
        %v2019 = vcombine.low %v2015, %v2016
        %v2021 = vunpack.c.l.s4 1966171168
        %v2022 = vunpack.c.0.s8 %v2021
        %v2023 = vlaneseq
        %v2024 = vshrl.u32 %v2023, 7
        %v2025 = vsub.s32 %v2022, %v2024
        %v2026 = vrot.slane %v2019, %v2025
        %v2028 = vunpack.c.l.s4 1966171168
        %v2029 = vunpack.c.0.s8 %v2028
        %v2030 = vlaneseq
        %v2031 = vshrl.u32 %v2030, 7
        %v2032 = vsub.s32 %v2029, %v2031
        %v2033 = vrot.slane %v2026, %v2032
        %v2035 = vsel %vm723, %v2033, 0.0
        %v2036 = vadd.f32 %v1989, %v2035
        %s2037 = sld [smem:[#allocation10 + $0x3a]]
        %2038 = vrot.lane.b32.xlu0 %v676, 114
        %v2039 = vpop.permute.xlu0 %2038
        %2040 = vrot.lane.b32.xlu0 %v677, 114
        %v2041 = vpop.permute.xlu0 %2040
        %vm2042 = vcmask 932864
        %v2043 = vsel %vm2042, %v2039, %v2041
        %v2046 = vsel %vm2042, %v2041, 0.0
        %v2047 = vstv %s2037
        %v2048 = vmul.f32 %v2047, %v2043
        %v2049 = vmul.f32 %v2047, %v2046
        %s2050 = sld [smem:[#allocation10 + $0x3b]]
        %2051 = vrot.lane.b32.xlu0 %v684, 114
        %v2052 = vpop.permute.xlu0 %2051
        %2053 = vrot.lane.b32.xlu0 %v691, 114
        %v2054 = vpop.permute.xlu0 %2053
        %v2055 = vsel %vm2042, %v2052, %v2054
        %v2058 = vsel %vm2042, %v2054, 0.0
        %v2059 = vstv %s2050
        %v2060 = vmul.f32 %v2059, %v2055
        %v2061 = vmul.f32 %v2059, %v2058
        %v2062 = vadd.f32 %v2048, %v2060
        %v2063 = vadd.f32 %v2049, %v2061
        %v2066 = vcombine.low %v2062, %v2063
        %v2068 = vunpack.c.l.s4 1966171168
        %v2069 = vunpack.c.0.s8 %v2068
        %v2070 = vlaneseq
        %v2071 = vshrl.u32 %v2070, 7
        %v2072 = vsub.s32 %v2069, %v2071
        %v2073 = vrot.slane %v2066, %v2072
        %v2075 = vunpack.c.l.s4 1966171168
        %v2076 = vunpack.c.0.s8 %v2075
        %v2077 = vlaneseq
        %v2078 = vshrl.u32 %v2077, 7
        %v2079 = vsub.s32 %v2076, %v2078
        %v2080 = vrot.slane %v2073, %v2079
        %v2082 = vsel %vm771, %v2080, 0.0
        %v2083 = vadd.f32 %v2036, %v2082
        %s2084 = sld [smem:[#allocation10 + $0x3c]]
        %2085 = vrot.lane.b32.xlu0 %v676, 113
        %v2086 = vpop.permute.xlu0 %2085
        %2087 = vrot.lane.b32.xlu0 %v677, 113
        %v2088 = vpop.permute.xlu0 %2087
        %v2089 = vsel %vm549, %v2086, %v2088
        %v2092 = vsel %vm549, %v2088, 0.0
        %v2093 = vstv %s2084
        %v2094 = vmul.f32 %v2093, %v2089
        %v2095 = vmul.f32 %v2093, %v2092
        %s2096 = sld [smem:[#allocation10 + $0x3d]]
        %2097 = vrot.lane.b32.xlu0 %v684, 113
        %v2098 = vpop.permute.xlu0 %2097
        %2099 = vrot.lane.b32.xlu0 %v691, 113
        %v2100 = vpop.permute.xlu0 %2099
        %v2101 = vsel %vm549, %v2098, %v2100
        %v2104 = vsel %vm549, %v2100, 0.0
        %v2105 = vstv %s2096
        %v2106 = vmul.f32 %v2105, %v2101
        %v2107 = vmul.f32 %v2105, %v2104
        %v2108 = vadd.f32 %v2094, %v2106
        %v2109 = vadd.f32 %v2095, %v2107
        %v2112 = vcombine.low %v2108, %v2109
        %v2114 = vunpack.c.l.s4 1966171168
        %v2115 = vunpack.c.0.s8 %v2114
        %v2116 = vlaneseq
        %v2117 = vshrl.u32 %v2116, 7
        %v2118 = vsub.s32 %v2115, %v2117
        %v2119 = vrot.slane %v2112, %v2118
        %v2121 = vunpack.c.l.s4 1966171168
        %v2122 = vunpack.c.0.s8 %v2121
        %v2123 = vlaneseq
        %v2124 = vshrl.u32 %v2123, 7
        %v2125 = vsub.s32 %v2122, %v2124
        %v2126 = vrot.slane %v2119, %v2125
        %v2128 = vsel %vm448, %v2126, 0.0
        %v2129 = vadd.f32 %v2083, %v2128
        %s2130 = sld [smem:[#allocation10 + $0x3e]]
        %2131 = vrot.lane.b32.xlu0 %v676, 112
        %v2132 = vpop.permute.xlu0 %2131
        %2133 = vrot.lane.b32.xlu0 %v677, 112
        %v2134 = vpop.permute.xlu0 %2133
        %v2135 = vsel %vm562, %v2132, %v2134
        %v2138 = vsel %vm562, %v2134, 0.0
        %v2139 = vstv %s2130
        %v2140 = vmul.f32 %v2139, %v2135
        %v2141 = vmul.f32 %v2139, %v2138
        %s2142 = sld [smem:[#allocation10 + $0x3f]]
        %2143 = vrot.lane.b32.xlu0 %v684, 112
        %v2144 = vpop.permute.xlu0 %2143
        %2145 = vrot.lane.b32.xlu0 %v691, 112
        %v2146 = vpop.permute.xlu0 %2145
        %v2147 = vsel %vm562, %v2144, %v2146
        %v2150 = vsel %vm562, %v2146, 0.0
        %v2151 = vstv %s2142
        %v2152 = vmul.f32 %v2151, %v2147
        %v2153 = vmul.f32 %v2151, %v2150
        %v2154 = vadd.f32 %v2140, %v2152
        %v2155 = vadd.f32 %v2141, %v2153
        %v2158 = vcombine.low %v2154, %v2155
        %v2160 = vunpack.c.l.s4 1966171168
        %v2161 = vunpack.c.0.s8 %v2160
        %v2162 = vlaneseq
        %v2163 = vshrl.u32 %v2162, 7
        %v2164 = vsub.s32 %v2161, %v2163
        %v2165 = vrot.slane %v2158, %v2164
        %v2167 = vunpack.c.l.s4 1966171168
        %v2168 = vunpack.c.0.s8 %v2167
        %v2169 = vlaneseq
        %v2170 = vshrl.u32 %v2169, 7
        %v2171 = vsub.s32 %v2168, %v2170
        %v2172 = vrot.slane %v2165, %v2171
        %v2174 = vadd.f32 %v2129, %v2172
        %s2175 = sld [smem:[#allocation10 + $0x40]]
        %2176 = vrot.lane.b32.xlu0 %v676, 111
        %v2177 = vpop.permute.xlu0 %2176
        %2178 = vrot.lane.b32.xlu0 %v677, 111
        %v2179 = vpop.permute.xlu0 %2178
        %v2180 = vsel %vm577, %v2177, %v2179
        %v2183 = vsel %vm577, %v2179, 0.0
        %v2184 = vstv %s2175
        %v2185 = vmul.f32 %v2184, %v2180
        %v2186 = vmul.f32 %v2184, %v2183
        %s2187 = sld [smem:[#allocation10 + $0x41]]
        %2188 = vrot.lane.b32.xlu0 %v684, 111
        %v2189 = vpop.permute.xlu0 %2188
        %2190 = vrot.lane.b32.xlu0 %v691, 111
        %v2191 = vpop.permute.xlu0 %2190
        %v2192 = vsel %vm577, %v2189, %v2191
        %v2195 = vsel %vm577, %v2191, 0.0
        %v2196 = vstv %s2187
        %v2197 = vmul.f32 %v2196, %v2192
        %v2198 = vmul.f32 %v2196, %v2195
        %v2199 = vadd.f32 %v2185, %v2197
        %v2200 = vadd.f32 %v2186, %v2198
        %v2203 = vcombine.low %v2199, %v2200
        %v2205 = vunpack.c.l.s4 1966171168
        %v2206 = vunpack.c.0.s8 %v2205
        %v2207 = vlaneseq
        %v2208 = vshrl.u32 %v2207, 7
        %v2209 = vsub.s32 %v2206, %v2208
        %v2210 = vrot.slane %v2203, %v2209
        %v2212 = vunpack.c.l.s4 1966171168
        %v2213 = vunpack.c.0.s8 %v2212
        %v2214 = vlaneseq
        %v2215 = vshrl.u32 %v2214, 7
        %v2216 = vsub.s32 %v2213, %v2215
        %v2217 = vrot.slane %v2210, %v2216
        %v2219 = vsel %vm488, %v2217, 0.0
        %v2220 = vadd.f32 %v2174, %v2219
        %s2221 = sld [smem:[#allocation10 + $0x42]]
        %2222 = vrot.lane.b32.xlu0 %v676, 110
        %v2223 = vpop.permute.xlu0 %2222
        %2224 = vrot.lane.b32.xlu0 %v677, 110
        %v2225 = vpop.permute.xlu0 %2224
        %vm2226 = vcmask 900096
        %v2227 = vsel %vm2226, %v2223, %v2225
        %v2230 = vsel %vm2226, %v2225, 0.0
        %v2231 = vstv %s2221
        %v2232 = vmul.f32 %v2231, %v2227
        %v2233 = vmul.f32 %v2231, %v2230
        %s2234 = sld [smem:[#allocation10 + $0x43]]
        %2235 = vrot.lane.b32.xlu0 %v684, 110
        %v2236 = vpop.permute.xlu0 %2235
        %2237 = vrot.lane.b32.xlu0 %v691, 110
        %v2238 = vpop.permute.xlu0 %2237
        %v2239 = vsel %vm2226, %v2236, %v2238
        %v2242 = vsel %vm2226, %v2238, 0.0
        %v2243 = vstv %s2234
        %v2244 = vmul.f32 %v2243, %v2239
        %v2245 = vmul.f32 %v2243, %v2242
        %v2246 = vadd.f32 %v2232, %v2244
        %v2247 = vadd.f32 %v2233, %v2245
        %v2250 = vcombine.low %v2246, %v2247
        %v2252 = vunpack.c.l.s4 1966171168
        %v2253 = vunpack.c.0.s8 %v2252
        %v2254 = vlaneseq
        %v2255 = vshrl.u32 %v2254, 7
        %v2256 = vsub.s32 %v2253, %v2255
        %v2257 = vrot.slane %v2250, %v2256
        %v2259 = vunpack.c.l.s4 1966171168
        %v2260 = vunpack.c.0.s8 %v2259
        %v2261 = vlaneseq
        %v2262 = vshrl.u32 %v2261, 7
        %v2263 = vsub.s32 %v2260, %v2262
        %v2264 = vrot.slane %v2257, %v2263
        %v2266 = vsel %vm959, %v2264, 0.0
        %v2267 = vadd.f32 %v2220, %v2266
        %s2268 = sld [smem:[#allocation10 + $0x44]]
        %2269 = vrot.lane.b32.xlu0 %v676, 109
        %v2270 = vpop.permute.xlu0 %2269
        %2271 = vrot.lane.b32.xlu0 %v677, 109
        %v2272 = vpop.permute.xlu0 %2271
        %vm2273 = vcmask 891904
        %v2274 = vsel %vm2273, %v2270, %v2272
        %v2277 = vsel %vm2273, %v2272, 0.0
        %v2278 = vstv %s2268
        %v2279 = vmul.f32 %v2278, %v2274
        %v2280 = vmul.f32 %v2278, %v2277
        %s2281 = sld [smem:[#allocation10 + $0x45]]
        %2282 = vrot.lane.b32.xlu0 %v684, 109
        %v2283 = vpop.permute.xlu0 %2282
        %2284 = vrot.lane.b32.xlu0 %v691, 109
        %v2285 = vpop.permute.xlu0 %2284
        %v2286 = vsel %vm2273, %v2283, %v2285
        %v2289 = vsel %vm2273, %v2285, 0.0
        %v2290 = vstv %s2281
        %v2291 = vmul.f32 %v2290, %v2286
        %v2292 = vmul.f32 %v2290, %v2289
        %v2293 = vadd.f32 %v2279, %v2291
        %v2294 = vadd.f32 %v2280, %v2292
        %v2297 = vcombine.low %v2293, %v2294
        %v2299 = vunpack.c.l.s4 1966171168
        %v2300 = vunpack.c.0.s8 %v2299
        %v2301 = vlaneseq
        %v2302 = vshrl.u32 %v2301, 7
        %v2303 = vsub.s32 %v2300, %v2302
        %v2304 = vrot.slane %v2297, %v2303
        %v2306 = vunpack.c.l.s4 1966171168
        %v2307 = vunpack.c.0.s8 %v2306
        %v2308 = vlaneseq
        %v2309 = vshrl.u32 %v2308, 7
        %v2310 = vsub.s32 %v2307, %v2309
        %v2311 = vrot.slane %v2304, %v2310
        %v2313 = vsel %vm1007, %v2311, 0.0
        %v2314 = vadd.f32 %v2267, %v2313
        %s2315 = sld [smem:[#allocation10 + $0x46]]
        %2316 = vrot.lane.b32.xlu0 %v676, 99
        %v2317 = vpop.permute.xlu0 %2316
        %2318 = vrot.lane.b32.xlu0 %v677, 99
        %v2319 = vpop.permute.xlu0 %2318
        %vm2320 = vcmask 809984
        %v2321 = vsel %vm2320, %v2317, %v2319
        %v2324 = vsel %vm2320, %v2319, 0.0
        %v2325 = vstv %s2315
        %v2326 = vmul.f32 %v2325, %v2321
        %v2327 = vmul.f32 %v2325, %v2324
        %s2328 = sld [smem:[#allocation10 + $0x47]]
        %2329 = vrot.lane.b32.xlu0 %v684, 99
        %v2330 = vpop.permute.xlu0 %2329
        %2331 = vrot.lane.b32.xlu0 %v691, 99
        %v2332 = vpop.permute.xlu0 %2331
        %v2333 = vsel %vm2320, %v2330, %v2332
        %v2336 = vsel %vm2320, %v2332, 0.0
        %v2337 = vstv %s2328
        %v2338 = vmul.f32 %v2337, %v2333
        %v2339 = vmul.f32 %v2337, %v2336
        %v2340 = vadd.f32 %v2326, %v2338
        %v2341 = vadd.f32 %v2327, %v2339
        %v2344 = vcombine.low %v2340, %v2341
        %v2346 = vunpack.c.l.s4 1966171168
        %v2347 = vunpack.c.0.s8 %v2346
        %v2348 = vlaneseq
        %v2349 = vshrl.u32 %v2348, 7
        %v2350 = vsub.s32 %v2347, %v2349
        %v2351 = vrot.slane %v2344, %v2350
        %v2353 = vunpack.c.l.s4 1966171168
        %v2354 = vunpack.c.0.s8 %v2353
        %v2355 = vlaneseq
        %v2356 = vshrl.u32 %v2355, 7
        %v2357 = vsub.s32 %v2354, %v2356
        %v2358 = vrot.slane %v2351, %v2357
        %v2360 = vsel %vm723, %v2358, 0.0
        %v2361 = vadd.f32 %v2314, %v2360
        %s2362 = sld [smem:[#allocation10 + $0x48]]
        %2363 = vrot.lane.b32.xlu0 %v676, 98
        %v2364 = vpop.permute.xlu0 %2363
        %2365 = vrot.lane.b32.xlu0 %v677, 98
        %v2366 = vpop.permute.xlu0 %2365
        %vm2367 = vcmask 801792
        %v2368 = vsel %vm2367, %v2364, %v2366
        %v2371 = vsel %vm2367, %v2366, 0.0
        %v2372 = vstv %s2362
        %v2373 = vmul.f32 %v2372, %v2368
        %v2374 = vmul.f32 %v2372, %v2371
        %s2375 = sld [smem:[#allocation10 + $0x49]]
        %2376 = vrot.lane.b32.xlu0 %v684, 98
        %v2377 = vpop.permute.xlu0 %2376
        %2378 = vrot.lane.b32.xlu0 %v691, 98
        %v2379 = vpop.permute.xlu0 %2378
        %v2380 = vsel %vm2367, %v2377, %v2379
        %v2383 = vsel %vm2367, %v2379, 0.0
        %v2384 = vstv %s2375
        %v2385 = vmul.f32 %v2384, %v2380
        %v2386 = vmul.f32 %v2384, %v2383
        %v2387 = vadd.f32 %v2373, %v2385
        %v2388 = vadd.f32 %v2374, %v2386
        %v2391 = vcombine.low %v2387, %v2388
        %v2393 = vunpack.c.l.s4 1966171168
        %v2394 = vunpack.c.0.s8 %v2393
        %v2395 = vlaneseq
        %v2396 = vshrl.u32 %v2395, 7
        %v2397 = vsub.s32 %v2394, %v2396
        %v2398 = vrot.slane %v2391, %v2397
        %v2400 = vunpack.c.l.s4 1966171168
        %v2401 = vunpack.c.0.s8 %v2400
        %v2402 = vlaneseq
        %v2403 = vshrl.u32 %v2402, 7
        %v2404 = vsub.s32 %v2401, %v2403
        %v2405 = vrot.slane %v2398, %v2404
        %v2407 = vsel %vm771, %v2405, 0.0
        %v2408 = vadd.f32 %v2361, %v2407
        %s2409 = sld [smem:[#allocation10 + $0x4a]]
        %2410 = vrot.lane.b32.xlu0 %v676, 97
        %v2411 = vpop.permute.xlu0 %2410
        %2412 = vrot.lane.b32.xlu0 %v677, 97
        %v2413 = vpop.permute.xlu0 %2412
        %vm2414 = vcmask 793600
        %v2415 = vsel %vm2414, %v2411, %v2413
        %v2418 = vsel %vm2414, %v2413, 0.0
        %v2419 = vstv %s2409
        %v2420 = vmul.f32 %v2419, %v2415
        %v2421 = vmul.f32 %v2419, %v2418
        %s2422 = sld [smem:[#allocation10 + $0x4b]]
        %2423 = vrot.lane.b32.xlu0 %v684, 97
        %v2424 = vpop.permute.xlu0 %2423
        %2425 = vrot.lane.b32.xlu0 %v691, 97
        %v2426 = vpop.permute.xlu0 %2425
        %v2427 = vsel %vm2414, %v2424, %v2426
        %v2430 = vsel %vm2414, %v2426, 0.0
        %v2431 = vstv %s2422
        %v2432 = vmul.f32 %v2431, %v2427
        %v2433 = vmul.f32 %v2431, %v2430
        %v2434 = vadd.f32 %v2420, %v2432
        %v2435 = vadd.f32 %v2421, %v2433
        %v2438 = vcombine.low %v2434, %v2435
        %v2440 = vunpack.c.l.s4 1966171168
        %v2441 = vunpack.c.0.s8 %v2440
        %v2442 = vlaneseq
        %v2443 = vshrl.u32 %v2442, 7
        %v2444 = vsub.s32 %v2441, %v2443
        %v2445 = vrot.slane %v2438, %v2444
        %v2447 = vunpack.c.l.s4 1966171168
        %v2448 = vunpack.c.0.s8 %v2447
        %v2449 = vlaneseq
        %v2450 = vshrl.u32 %v2449, 7
        %v2451 = vsub.s32 %v2448, %v2450
        %v2452 = vrot.slane %v2445, %v2451
        %v2454 = vsel %vm448, %v2452, 0.0
        %v2455 = vadd.f32 %v2408, %v2454
        %s2456 = sld [smem:[#allocation10 + $0x4c]]
        %2457 = vrot.lane.b32.xlu0 %v676, 96
        %v2458 = vpop.permute.xlu0 %2457
        %2459 = vrot.lane.b32.xlu0 %v677, 96
        %v2460 = vpop.permute.xlu0 %2459
        %vm2461 = vcmask 785408
        %v2462 = vsel %vm2461, %v2458, %v2460
        %v2465 = vsel %vm2461, %v2460, 0.0
        %v2466 = vstv %s2456
        %v2467 = vmul.f32 %v2466, %v2462
        %v2468 = vmul.f32 %v2466, %v2465
        %s2469 = sld [smem:[#allocation10 + $0x4d]]
        %2470 = vrot.lane.b32.xlu0 %v684, 96
        %v2471 = vpop.permute.xlu0 %2470
        %2472 = vrot.lane.b32.xlu0 %v691, 96
        %v2473 = vpop.permute.xlu0 %2472
        %v2474 = vsel %vm2461, %v2471, %v2473
        %v2477 = vsel %vm2461, %v2473, 0.0
        %v2478 = vstv %s2469
        %v2479 = vmul.f32 %v2478, %v2474
        %v2480 = vmul.f32 %v2478, %v2477
        %v2481 = vadd.f32 %v2467, %v2479
        %v2482 = vadd.f32 %v2468, %v2480
        %v2485 = vcombine.low %v2481, %v2482
        %v2487 = vunpack.c.l.s4 1966171168
        %v2488 = vunpack.c.0.s8 %v2487
        %v2489 = vlaneseq
        %v2490 = vshrl.u32 %v2489, 7
        %v2491 = vsub.s32 %v2488, %v2490
        %v2492 = vrot.slane %v2485, %v2491
        %v2494 = vunpack.c.l.s4 1966171168
        %v2495 = vunpack.c.0.s8 %v2494
        %v2496 = vlaneseq
        %v2497 = vshrl.u32 %v2496, 7
        %v2498 = vsub.s32 %v2495, %v2497
        %v2499 = vrot.slane %v2492, %v2498
        %v2501 = vadd.f32 %v2455, %v2499
        %s2502 = sld [smem:[#allocation10 + $0x4e]]
        %2503 = vrot.lane.b32.xlu0 %v676, 95
        %v2504 = vpop.permute.xlu0 %2503
        %2505 = vrot.lane.b32.xlu0 %v677, 95
        %v2506 = vpop.permute.xlu0 %2505
        %vm2507 = vcmask 777216
        %v2508 = vsel %vm2507, %v2504, %v2506
        %v2511 = vsel %vm2507, %v2506, 0.0
        %v2512 = vstv %s2502
        %v2513 = vmul.f32 %v2512, %v2508
        %v2514 = vmul.f32 %v2512, %v2511
        %s2515 = sld [smem:[#allocation10 + $0x4f]]
        %2516 = vrot.lane.b32.xlu0 %v684, 95
        %v2517 = vpop.permute.xlu0 %2516
        %2518 = vrot.lane.b32.xlu0 %v691, 95
        %v2519 = vpop.permute.xlu0 %2518
        %v2520 = vsel %vm2507, %v2517, %v2519
        %v2523 = vsel %vm2507, %v2519, 0.0
        %v2524 = vstv %s2515
        %v2525 = vmul.f32 %v2524, %v2520
        %v2526 = vmul.f32 %v2524, %v2523
        %v2527 = vadd.f32 %v2513, %v2525
        %v2528 = vadd.f32 %v2514, %v2526
        %v2531 = vcombine.low %v2527, %v2528
        %v2533 = vunpack.c.l.s4 1966171168
        %v2534 = vunpack.c.0.s8 %v2533
        %v2535 = vlaneseq
        %v2536 = vshrl.u32 %v2535, 7
        %v2537 = vsub.s32 %v2534, %v2536
        %v2538 = vrot.slane %v2531, %v2537
        %v2540 = vunpack.c.l.s4 1966171168
        %v2541 = vunpack.c.0.s8 %v2540
        %v2542 = vlaneseq
        %v2543 = vshrl.u32 %v2542, 7
        %v2544 = vsub.s32 %v2541, %v2543
        %v2545 = vrot.slane %v2538, %v2544
        %v2547 = vsel %vm488, %v2545, 0.0
        %v2548 = vadd.f32 %v2501, %v2547
        %s2549 = sld [smem:[#allocation10 + $0x50]]
        %2550 = vrot.lane.b32.xlu0 %v676, 94
        %v2551 = vpop.permute.xlu0 %2550
        %2552 = vrot.lane.b32.xlu0 %v677, 94
        %v2553 = vpop.permute.xlu0 %2552
        %vm2554 = vcmask 769024
        %v2555 = vsel %vm2554, %v2551, %v2553
        %v2558 = vsel %vm2554, %v2553, 0.0
        %v2559 = vstv %s2549
        %v2560 = vmul.f32 %v2559, %v2555
        %v2561 = vmul.f32 %v2559, %v2558
        %s2562 = sld [smem:[#allocation10 + $0x51]]
        %2563 = vrot.lane.b32.xlu0 %v684, 94
        %v2564 = vpop.permute.xlu0 %2563
        %2565 = vrot.lane.b32.xlu0 %v691, 94
        %v2566 = vpop.permute.xlu0 %2565
        %v2567 = vsel %vm2554, %v2564, %v2566
        %v2570 = vsel %vm2554, %v2566, 0.0
        %v2571 = vstv %s2562
        %v2572 = vmul.f32 %v2571, %v2567
        %v2573 = vmul.f32 %v2571, %v2570
        %v2574 = vadd.f32 %v2560, %v2572
        %v2575 = vadd.f32 %v2561, %v2573
        %v2578 = vcombine.low %v2574, %v2575
        %v2580 = vunpack.c.l.s4 1966171168
        %v2581 = vunpack.c.0.s8 %v2580
        %v2582 = vlaneseq
        %v2583 = vshrl.u32 %v2582, 7
        %v2584 = vsub.s32 %v2581, %v2583
        %v2585 = vrot.slane %v2578, %v2584
        %v2587 = vunpack.c.l.s4 1966171168
        %v2588 = vunpack.c.0.s8 %v2587
        %v2589 = vlaneseq
        %v2590 = vshrl.u32 %v2589, 7
        %v2591 = vsub.s32 %v2588, %v2590
        %v2592 = vrot.slane %v2585, %v2591
        %v2594 = vsel %vm959, %v2592, 0.0
        %v2595 = vadd.f32 %v2548, %v2594
        %s2596 = sld [smem:[#allocation10 + $0x52]]
        %2597 = vrot.lane.b32.xlu0 %v676, 93
        %v2598 = vpop.permute.xlu0 %2597
        %2599 = vrot.lane.b32.xlu0 %v677, 93
        %v2600 = vpop.permute.xlu0 %2599
        %vm2601 = vcmask 760832
        %v2602 = vsel %vm2601, %v2598, %v2600
        %v2605 = vsel %vm2601, %v2600, 0.0
        %v2606 = vstv %s2596
        %v2607 = vmul.f32 %v2606, %v2602
        %v2608 = vmul.f32 %v2606, %v2605
        %s2609 = sld [smem:[#allocation10 + $0x53]]
        %2610 = vrot.lane.b32.xlu0 %v684, 93
        %v2611 = vpop.permute.xlu0 %2610
        %2612 = vrot.lane.b32.xlu0 %v691, 93
        %v2613 = vpop.permute.xlu0 %2612
        %v2614 = vsel %vm2601, %v2611, %v2613
        %v2617 = vsel %vm2601, %v2613, 0.0
        %v2618 = vstv %s2609
        %v2619 = vmul.f32 %v2618, %v2614
        %v2620 = vmul.f32 %v2618, %v2617
        %v2621 = vadd.f32 %v2607, %v2619
        %v2622 = vadd.f32 %v2608, %v2620
        %v2625 = vcombine.low %v2621, %v2622
        %v2627 = vunpack.c.l.s4 1966171168
        %v2628 = vunpack.c.0.s8 %v2627
        %v2629 = vlaneseq
        %v2630 = vshrl.u32 %v2629, 7
        %v2631 = vsub.s32 %v2628, %v2630
        %v2632 = vrot.slane %v2625, %v2631
        %v2634 = vunpack.c.l.s4 1966171168
        %v2635 = vunpack.c.0.s8 %v2634
        %v2636 = vlaneseq
        %v2637 = vshrl.u32 %v2636, 7
        %v2638 = vsub.s32 %v2635, %v2637
        %v2639 = vrot.slane %v2632, %v2638
        %v2641 = vsel %vm1007, %v2639, 0.0
        %v2642 = vadd.f32 %v2595, %v2641
        %s2643 = sld [smem:[#allocation10 + $0x54]]
        %2644 = vrot.lane.b32.xlu0 %v676, 83
        %v2645 = vpop.permute.xlu0 %2644
        %2646 = vrot.lane.b32.xlu0 %v677, 83
        %v2647 = vpop.permute.xlu0 %2646
        %vm2648 = vcmask 678912
        %v2649 = vsel %vm2648, %v2645, %v2647
        %v2652 = vsel %vm2648, %v2647, 0.0
        %v2653 = vstv %s2643
        %v2654 = vmul.f32 %v2653, %v2649
        %v2655 = vmul.f32 %v2653, %v2652
        %s2656 = sld [smem:[#allocation10 + $0x55]]
        %2657 = vrot.lane.b32.xlu0 %v684, 83
        %v2658 = vpop.permute.xlu0 %2657
        %2659 = vrot.lane.b32.xlu0 %v691, 83
        %v2660 = vpop.permute.xlu0 %2659
        %v2661 = vsel %vm2648, %v2658, %v2660
        %v2664 = vsel %vm2648, %v2660, 0.0
        %v2665 = vstv %s2656
        %v2666 = vmul.f32 %v2665, %v2661
        %v2667 = vmul.f32 %v2665, %v2664
        %v2668 = vadd.f32 %v2654, %v2666
        %v2669 = vadd.f32 %v2655, %v2667
        %v2672 = vcombine.low %v2668, %v2669
        %v2674 = vunpack.c.l.s4 1966171168
        %v2675 = vunpack.c.0.s8 %v2674
        %v2676 = vlaneseq
        %v2677 = vshrl.u32 %v2676, 7
        %v2678 = vsub.s32 %v2675, %v2677
        %v2679 = vrot.slane %v2672, %v2678
        %v2681 = vunpack.c.l.s4 1966171168
        %v2682 = vunpack.c.0.s8 %v2681
        %v2683 = vlaneseq
        %v2684 = vshrl.u32 %v2683, 7
        %v2685 = vsub.s32 %v2682, %v2684
        %v2686 = vrot.slane %v2679, %v2685
        %v2688 = vsel %vm723, %v2686, 0.0
        %v2689 = vadd.f32 %v2642, %v2688
        %s2690 = sld [smem:[#allocation10 + $0x56]]
        %2691 = vrot.lane.b32.xlu0 %v676, 82
        %v2692 = vpop.permute.xlu0 %2691
        %2693 = vrot.lane.b32.xlu0 %v677, 82
        %v2694 = vpop.permute.xlu0 %2693
        %vm2695 = vcmask 670720
        %v2696 = vsel %vm2695, %v2692, %v2694
        %v2699 = vsel %vm2695, %v2694, 0.0
        %v2700 = vstv %s2690
        %v2701 = vmul.f32 %v2700, %v2696
        %v2702 = vmul.f32 %v2700, %v2699
        %s2703 = sld [smem:[#allocation10 + $0x57]]
        %2704 = vrot.lane.b32.xlu0 %v684, 82
        %v2705 = vpop.permute.xlu0 %2704
        %2706 = vrot.lane.b32.xlu0 %v691, 82
        %v2707 = vpop.permute.xlu0 %2706
        %v2708 = vsel %vm2695, %v2705, %v2707
        %v2711 = vsel %vm2695, %v2707, 0.0
        %v2712 = vstv %s2703
        %v2713 = vmul.f32 %v2712, %v2708
        %v2714 = vmul.f32 %v2712, %v2711
        %v2715 = vadd.f32 %v2701, %v2713
        %v2716 = vadd.f32 %v2702, %v2714
        %v2719 = vcombine.low %v2715, %v2716
        %v2721 = vunpack.c.l.s4 1966171168
        %v2722 = vunpack.c.0.s8 %v2721
        %v2723 = vlaneseq
        %v2724 = vshrl.u32 %v2723, 7
        %v2725 = vsub.s32 %v2722, %v2724
        %v2726 = vrot.slane %v2719, %v2725
        %v2728 = vunpack.c.l.s4 1966171168
        %v2729 = vunpack.c.0.s8 %v2728
        %v2730 = vlaneseq
        %v2731 = vshrl.u32 %v2730, 7
        %v2732 = vsub.s32 %v2729, %v2731
        %v2733 = vrot.slane %v2726, %v2732
        %v2735 = vsel %vm771, %v2733, 0.0
        %v2736 = vadd.f32 %v2689, %v2735
        %s2737 = sld [smem:[#allocation10 + $0x58]]
        %2738 = vrot.lane.b32.xlu0 %v676, 81
        %v2739 = vpop.permute.xlu0 %2738
        %2740 = vrot.lane.b32.xlu0 %v677, 81
        %v2741 = vpop.permute.xlu0 %2740
        %vm2742 = vcmask 662528
        %v2743 = vsel %vm2742, %v2739, %v2741
        %v2746 = vsel %vm2742, %v2741, 0.0
        %v2747 = vstv %s2737
        %v2748 = vmul.f32 %v2747, %v2743
        %v2749 = vmul.f32 %v2747, %v2746
        %s2750 = sld [smem:[#allocation10 + $0x59]]
        %2751 = vrot.lane.b32.xlu0 %v684, 81
        %v2752 = vpop.permute.xlu0 %2751
        %2753 = vrot.lane.b32.xlu0 %v691, 81
        %v2754 = vpop.permute.xlu0 %2753
        %v2755 = vsel %vm2742, %v2752, %v2754
        %v2758 = vsel %vm2742, %v2754, 0.0
        %v2759 = vstv %s2750
        %v2760 = vmul.f32 %v2759, %v2755
        %v2761 = vmul.f32 %v2759, %v2758
        %v2762 = vadd.f32 %v2748, %v2760
        %v2763 = vadd.f32 %v2749, %v2761
        %v2766 = vcombine.low %v2762, %v2763
        %v2768 = vunpack.c.l.s4 1966171168
        %v2769 = vunpack.c.0.s8 %v2768
        %v2770 = vlaneseq
        %v2771 = vshrl.u32 %v2770, 7
        %v2772 = vsub.s32 %v2769, %v2771
        %v2773 = vrot.slane %v2766, %v2772
        %v2775 = vunpack.c.l.s4 1966171168
        %v2776 = vunpack.c.0.s8 %v2775
        %v2777 = vlaneseq
        %v2778 = vshrl.u32 %v2777, 7
        %v2779 = vsub.s32 %v2776, %v2778
        %v2780 = vrot.slane %v2773, %v2779
        %v2782 = vsel %vm448, %v2780, 0.0
        %v2783 = vadd.f32 %v2736, %v2782
        %s2784 = sld [smem:[#allocation10 + $0x5a]]
        %2785 = vrot.lane.b32.xlu0 %v676, 80
        %v2786 = vpop.permute.xlu0 %2785
        %2787 = vrot.lane.b32.xlu0 %v677, 80
        %v2788 = vpop.permute.xlu0 %2787
        %vm2789 = vcmask 654336
        %v2790 = vsel %vm2789, %v2786, %v2788
        %v2793 = vsel %vm2789, %v2788, 0.0
        %v2794 = vstv %s2784
        %v2795 = vmul.f32 %v2794, %v2790
        %v2796 = vmul.f32 %v2794, %v2793
        %s2797 = sld [smem:[#allocation10 + $0x5b]]
        %2798 = vrot.lane.b32.xlu0 %v684, 80
        %v2799 = vpop.permute.xlu0 %2798
        %2800 = vrot.lane.b32.xlu0 %v691, 80
        %v2801 = vpop.permute.xlu0 %2800
        %v2802 = vsel %vm2789, %v2799, %v2801
        %v2805 = vsel %vm2789, %v2801, 0.0
        %v2806 = vstv %s2797
        %v2807 = vmul.f32 %v2806, %v2802
        %v2808 = vmul.f32 %v2806, %v2805
        %v2809 = vadd.f32 %v2795, %v2807
        %v2810 = vadd.f32 %v2796, %v2808
        %v2813 = vcombine.low %v2809, %v2810
        %v2815 = vunpack.c.l.s4 1966171168
        %v2816 = vunpack.c.0.s8 %v2815
        %v2817 = vlaneseq
        %v2818 = vshrl.u32 %v2817, 7
        %v2819 = vsub.s32 %v2816, %v2818
        %v2820 = vrot.slane %v2813, %v2819
        %v2822 = vunpack.c.l.s4 1966171168
        %v2823 = vunpack.c.0.s8 %v2822
        %v2824 = vlaneseq
        %v2825 = vshrl.u32 %v2824, 7
        %v2826 = vsub.s32 %v2823, %v2825
        %v2827 = vrot.slane %v2820, %v2826
        %v2829 = vadd.f32 %v2783, %v2827
        %s2830 = sld [smem:[#allocation10 + $0x5c]]
        %2831 = vrot.lane.b32.xlu0 %v676, 79
        %v2832 = vpop.permute.xlu0 %2831
        %2833 = vrot.lane.b32.xlu0 %v677, 79
        %v2834 = vpop.permute.xlu0 %2833
        %vm2835 = vcmask 646144
        %v2836 = vsel %vm2835, %v2832, %v2834
        %v2839 = vsel %vm2835, %v2834, 0.0
        %v2840 = vstv %s2830
        %v2841 = vmul.f32 %v2840, %v2836
        %v2842 = vmul.f32 %v2840, %v2839
        %s2843 = sld [smem:[#allocation10 + $0x5d]]
        %2844 = vrot.lane.b32.xlu0 %v684, 79
        %v2845 = vpop.permute.xlu0 %2844
        %2846 = vrot.lane.b32.xlu0 %v691, 79
        %v2847 = vpop.permute.xlu0 %2846
        %v2848 = vsel %vm2835, %v2845, %v2847
        %v2851 = vsel %vm2835, %v2847, 0.0
        %v2852 = vstv %s2843
        %v2853 = vmul.f32 %v2852, %v2848
        %v2854 = vmul.f32 %v2852, %v2851
        %v2855 = vadd.f32 %v2841, %v2853
        %v2856 = vadd.f32 %v2842, %v2854
        %v2859 = vcombine.low %v2855, %v2856
        %v2861 = vunpack.c.l.s4 1966171168
        %v2862 = vunpack.c.0.s8 %v2861
        %v2863 = vlaneseq
        %v2864 = vshrl.u32 %v2863, 7
        %v2865 = vsub.s32 %v2862, %v2864
        %v2866 = vrot.slane %v2859, %v2865
        %v2868 = vunpack.c.l.s4 1966171168
        %v2869 = vunpack.c.0.s8 %v2868
        %v2870 = vlaneseq
        %v2871 = vshrl.u32 %v2870, 7
        %v2872 = vsub.s32 %v2869, %v2871
        %v2873 = vrot.slane %v2866, %v2872
        %v2875 = vsel %vm488, %v2873, 0.0
        %v2876 = vadd.f32 %v2829, %v2875
        %s2877 = sld [smem:[#allocation10 + $0x5e]]
        %2878 = vrot.lane.b32.xlu0 %v676, 78
        %v2879 = vpop.permute.xlu0 %2878
        %2880 = vrot.lane.b32.xlu0 %v677, 78
        %v2881 = vpop.permute.xlu0 %2880
        %vm2882 = vcmask 637952
        %v2883 = vsel %vm2882, %v2879, %v2881
        %v2886 = vsel %vm2882, %v2881, 0.0
        %v2887 = vstv %s2877
        %v2888 = vmul.f32 %v2887, %v2883
        %v2889 = vmul.f32 %v2887, %v2886
        %s2890 = sld [smem:[#allocation10 + $0x5f]]
        %2891 = vrot.lane.b32.xlu0 %v684, 78
        %v2892 = vpop.permute.xlu0 %2891
        %2893 = vrot.lane.b32.xlu0 %v691, 78
        %v2894 = vpop.permute.xlu0 %2893
        %v2895 = vsel %vm2882, %v2892, %v2894
        %v2898 = vsel %vm2882, %v2894, 0.0
        %v2899 = vstv %s2890
        %v2900 = vmul.f32 %v2899, %v2895
        %v2901 = vmul.f32 %v2899, %v2898
        %v2902 = vadd.f32 %v2888, %v2900
        %v2903 = vadd.f32 %v2889, %v2901
        %v2906 = vcombine.low %v2902, %v2903
        %v2908 = vunpack.c.l.s4 1966171168
        %v2909 = vunpack.c.0.s8 %v2908
        %v2910 = vlaneseq
        %v2911 = vshrl.u32 %v2910, 7
        %v2912 = vsub.s32 %v2909, %v2911
        %v2913 = vrot.slane %v2906, %v2912
        %v2915 = vunpack.c.l.s4 1966171168
        %v2916 = vunpack.c.0.s8 %v2915
        %v2917 = vlaneseq
        %v2918 = vshrl.u32 %v2917, 7
        %v2919 = vsub.s32 %v2916, %v2918
        %v2920 = vrot.slane %v2913, %v2919
        %v2922 = vsel %vm959, %v2920, 0.0
        %v2923 = vadd.f32 %v2876, %v2922
        %s2924 = sld [smem:[#allocation10 + $0x60]]
        %2925 = vrot.lane.b32.xlu0 %v676, 77
        %v2926 = vpop.permute.xlu0 %2925
        %2927 = vrot.lane.b32.xlu0 %v677, 77
        %v2928 = vpop.permute.xlu0 %2927
        %vm2929 = vcmask 629760
        %v2930 = vsel %vm2929, %v2926, %v2928
        %v2933 = vsel %vm2929, %v2928, 0.0
        %v2934 = vstv %s2924
        %v2935 = vmul.f32 %v2934, %v2930
        %v2936 = vmul.f32 %v2934, %v2933
        %s2937 = sld [smem:[#allocation10 + $0x61]]
        %2938 = vrot.lane.b32.xlu0 %v684, 77
        %v2939 = vpop.permute.xlu0 %2938
        %2940 = vrot.lane.b32.xlu0 %v691, 77
        %v2941 = vpop.permute.xlu0 %2940
        %v2942 = vsel %vm2929, %v2939, %v2941
        %v2945 = vsel %vm2929, %v2941, 0.0
        %v2946 = vstv %s2937
        %v2947 = vmul.f32 %v2946, %v2942
        %v2948 = vmul.f32 %v2946, %v2945
        %v2949 = vadd.f32 %v2935, %v2947
        %v2950 = vadd.f32 %v2936, %v2948
        %v2953 = vcombine.low %v2949, %v2950
        %v2955 = vunpack.c.l.s4 1966171168
        %v2956 = vunpack.c.0.s8 %v2955
        %v2957 = vlaneseq
        %v2958 = vshrl.u32 %v2957, 7
        %v2959 = vsub.s32 %v2956, %v2958
        %v2960 = vrot.slane %v2953, %v2959
        %v2962 = vunpack.c.l.s4 1966171168
        %v2963 = vunpack.c.0.s8 %v2962
        %v2964 = vlaneseq
        %v2965 = vshrl.u32 %v2964, 7
        %v2966 = vsub.s32 %v2963, %v2965
        %v2967 = vrot.slane %v2960, %v2966
        %v2969 = vsel %vm1007, %v2967, 0.0
        %v2970 = vadd.f32 %v2923, %v2969
        %v2971 = vxor.u32 %v2970, 2147483648
        %v2972 = vmul.f32 %v2971, 1.442695
        %v2973 = vpow.pop %v2972
        %v2974 = vadd.f32 %v2973, 1.0
        %v2975 = vrcp.pop %v2974
        %v2976 = vmul.f32 1.0, %v2975
        %v2978 = vcombine.high %v434, %v434
        %v2980 = vsel %vm660, %v434, 0.0
        %v2981 = vrot.slane %v2980, 4
        %v2982 = vadd.f32 %v2980, %v2981
        %v2983 = vrot.slane %v2982, 2
        %v2984 = vadd.f32 %v2982, %v2983
        %v2985 = vrot.slane %v2984, 1
        %v2986 = vadd.f32 %v2984, %v2985
        %v2987 = vsel %vm660, %v2978, 0.0
        %v2988 = vrot.slane %v2987, 4
        %v2989 = vadd.f32 %v2987, %v2988
        %v2990 = vrot.slane %v2989, 2
        %v2991 = vadd.f32 %v2989, %v2990
        %v2992 = vrot.slane %v2991, 1
        %v2993 = vadd.f32 %v2991, %v2992
        %v2994 = vmul.f32 %v2986, %v675
        %v2995 = vmul.f32 %v2993, %v675
        %v2996 = vsel %vm660, %v434, -inf
        %v2997 = vrot.slane %v2996, 4
        %v2998 = vmax.f32 %v2996, %v2997
        %v2999 = vrot.slane %v2998, 2
        %v3000 = vmax.f32 %v2998, %v2999
        %v3001 = vrot.slane %v3000, 1
        %v3002 = vmax.f32 %v3000, %v3001
        %v3003 = vsel %vm660, %v2978, -inf
        %v3004 = vrot.slane %v3003, 4
        %v3005 = vmax.f32 %v3003, %v3004
        %v3006 = vrot.slane %v3005, 2
        %v3007 = vmax.f32 %v3005, %v3006
        %v3008 = vrot.slane %v3007, 1
        %v3009 = vmax.f32 %v3007, %v3008
        %s3010 = sld [smem:[#allocation9]]
        %3013 = vrot.lane.b32.xlu0 %v2994, 51
        %v3014 = vpop.permute.xlu0 %3013
        %3015 = vrot.lane.b32.xlu0 %v2995, 51
        %v3016 = vpop.permute.xlu0 %3015
        %v3017 = vsel %vm699, %v3014, %v3016
        %v3020 = vsel %vm699, 0.0, %v3014
        %v3021 = vstv %s3010
        %v3022 = vmul.f32 %v3021, %v3020
        %v3023 = vmul.f32 %v3021, %v3017
        %s3024 = sld [smem:[#allocation9 + $0x1]]
        %3027 = vrot.lane.b32.xlu0 %v3002, 51
        %v3028 = vpop.permute.xlu0 %3027
        %3029 = vrot.lane.b32.xlu0 %v3009, 51
        %v3030 = vpop.permute.xlu0 %3029
        %v3031 = vsel %vm699, %v3028, %v3030
        %v3034 = vsel %vm699, 0.0, %v3028
        %v3035 = vstv %s3024
        %v3036 = vmul.f32 %v3035, %v3034
        %v3037 = vmul.f32 %v3035, %v3031
        %v3038 = vadd.f32 %v3022, %v3036
        %v3039 = vadd.f32 %v3023, %v3037
        %v3042 = vcombine.low %v3038, %v3039
        %v3044 = vunpack.c.l.s4 1966171168
        %v3045 = vunpack.c.0.s8 %v3044
        %v3046 = vlaneseq
        %v3047 = vshrl.u32 %v3046, 7
        %v3048 = vsub.s32 %v3045, %v3047
        %v3049 = vrot.slane %v3042, %v3048
        %v3051 = vunpack.c.l.s4 1966171168
        %v3052 = vunpack.c.0.s8 %v3051
        %v3053 = vlaneseq
        %v3054 = vshrl.u32 %v3053, 7
        %v3055 = vsub.s32 %v3052, %v3054
        %v3056 = vrot.slane %v3049, %v3055
        %v3058 = vsel %vm723, %v3056, 0.0
        %v3059 = vadd.f32 %v3058, 0.0
        %s3060 = sld [smem:[#allocation9 + $0x2]]
        %3061 = vrot.lane.b32.xlu0 %v2994, 50
        %v3062 = vpop.permute.xlu0 %3061
        %3063 = vrot.lane.b32.xlu0 %v2995, 50
        %v3064 = vpop.permute.xlu0 %3063
        %v3065 = vsel %vm749, %v3062, %v3064
        %v3068 = vsel %vm749, 0.0, %v3062
        %v3069 = vstv %s3060
        %v3070 = vmul.f32 %v3069, %v3068
        %v3071 = vmul.f32 %v3069, %v3065
        %s3072 = sld [smem:[#allocation9 + $0x3]]
        %3073 = vrot.lane.b32.xlu0 %v3002, 50
        %v3074 = vpop.permute.xlu0 %3073
        %3075 = vrot.lane.b32.xlu0 %v3009, 50
        %v3076 = vpop.permute.xlu0 %3075
        %v3077 = vsel %vm749, %v3074, %v3076
        %v3080 = vsel %vm749, 0.0, %v3074
        %v3081 = vstv %s3072
        %v3082 = vmul.f32 %v3081, %v3080
        %v3083 = vmul.f32 %v3081, %v3077
        %v3084 = vadd.f32 %v3070, %v3082
        %v3085 = vadd.f32 %v3071, %v3083
        %v3088 = vcombine.low %v3084, %v3085
        %v3090 = vunpack.c.l.s4 1966171168
        %v3091 = vunpack.c.0.s8 %v3090
        %v3092 = vlaneseq
        %v3093 = vshrl.u32 %v3092, 7
        %v3094 = vsub.s32 %v3091, %v3093
        %v3095 = vrot.slane %v3088, %v3094
        %v3097 = vunpack.c.l.s4 1966171168
        %v3098 = vunpack.c.0.s8 %v3097
        %v3099 = vlaneseq
        %v3100 = vshrl.u32 %v3099, 7
        %v3101 = vsub.s32 %v3098, %v3100
        %v3102 = vrot.slane %v3095, %v3101
        %v3104 = vsel %vm771, %v3102, 0.0
        %v3105 = vadd.f32 %v3059, %v3104
        %s3106 = sld [smem:[#allocation9 + $0x4]]
        %3107 = vrot.lane.b32.xlu0 %v2994, 49
        %v3108 = vpop.permute.xlu0 %3107
        %3109 = vrot.lane.b32.xlu0 %v2995, 49
        %v3110 = vpop.permute.xlu0 %3109
        %v3111 = vsel %vm797, %v3108, %v3110
        %v3114 = vsel %vm797, 0.0, %v3108
        %v3115 = vstv %s3106
        %v3116 = vmul.f32 %v3115, %v3114
        %v3117 = vmul.f32 %v3115, %v3111
        %s3118 = sld [smem:[#allocation9 + $0x5]]
        %3119 = vrot.lane.b32.xlu0 %v3002, 49
        %v3120 = vpop.permute.xlu0 %3119
        %3121 = vrot.lane.b32.xlu0 %v3009, 49
        %v3122 = vpop.permute.xlu0 %3121
        %v3123 = vsel %vm797, %v3120, %v3122
        %v3126 = vsel %vm797, 0.0, %v3120
        %v3127 = vstv %s3118
        %v3128 = vmul.f32 %v3127, %v3126
        %v3129 = vmul.f32 %v3127, %v3123
        %v3130 = vadd.f32 %v3116, %v3128
        %v3131 = vadd.f32 %v3117, %v3129
        %v3134 = vcombine.low %v3130, %v3131
        %v3136 = vunpack.c.l.s4 1966171168
        %v3137 = vunpack.c.0.s8 %v3136
        %v3138 = vlaneseq
        %v3139 = vshrl.u32 %v3138, 7
        %v3140 = vsub.s32 %v3137, %v3139
        %v3141 = vrot.slane %v3134, %v3140
        %v3143 = vunpack.c.l.s4 1966171168
        %v3144 = vunpack.c.0.s8 %v3143
        %v3145 = vlaneseq
        %v3146 = vshrl.u32 %v3145, 7
        %v3147 = vsub.s32 %v3144, %v3146
        %v3148 = vrot.slane %v3141, %v3147
        %v3150 = vsel %vm448, %v3148, 0.0
        %v3151 = vadd.f32 %v3105, %v3150
        %s3152 = sld [smem:[#allocation9 + $0x6]]
        %3153 = vrot.lane.b32.xlu0 %v2994, 48
        %v3154 = vpop.permute.xlu0 %3153
        %3155 = vrot.lane.b32.xlu0 %v2995, 48
        %v3156 = vpop.permute.xlu0 %3155
        %v3157 = vsel %vm844, %v3154, %v3156
        %v3160 = vsel %vm844, 0.0, %v3154
        %v3161 = vstv %s3152
        %v3162 = vmul.f32 %v3161, %v3160
        %v3163 = vmul.f32 %v3161, %v3157
        %s3164 = sld [smem:[#allocation9 + $0x7]]
        %3165 = vrot.lane.b32.xlu0 %v3002, 48
        %v3166 = vpop.permute.xlu0 %3165
        %3167 = vrot.lane.b32.xlu0 %v3009, 48
        %v3168 = vpop.permute.xlu0 %3167
        %v3169 = vsel %vm844, %v3166, %v3168
        %v3172 = vsel %vm844, 0.0, %v3166
        %v3173 = vstv %s3164
        %v3174 = vmul.f32 %v3173, %v3172
        %v3175 = vmul.f32 %v3173, %v3169
        %v3176 = vadd.f32 %v3162, %v3174
        %v3177 = vadd.f32 %v3163, %v3175
        %v3180 = vcombine.low %v3176, %v3177
        %v3182 = vunpack.c.l.s4 1966171168
        %v3183 = vunpack.c.0.s8 %v3182
        %v3184 = vlaneseq
        %v3185 = vshrl.u32 %v3184, 7
        %v3186 = vsub.s32 %v3183, %v3185
        %v3187 = vrot.slane %v3180, %v3186
        %v3189 = vunpack.c.l.s4 1966171168
        %v3190 = vunpack.c.0.s8 %v3189
        %v3191 = vlaneseq
        %v3192 = vshrl.u32 %v3191, 7
        %v3193 = vsub.s32 %v3190, %v3192
        %v3194 = vrot.slane %v3187, %v3193
        %v3196 = vadd.f32 %v3151, %v3194
        %s3197 = sld [smem:[#allocation9 + $0x8]]
        %3198 = vrot.lane.b32.xlu0 %v2994, 47
        %v3199 = vpop.permute.xlu0 %3198
        %3200 = vrot.lane.b32.xlu0 %v2995, 47
        %v3201 = vpop.permute.xlu0 %3200
        %v3202 = vsel %vm890, %v3199, %v3201
        %v3205 = vsel %vm890, 0.0, %v3199
        %v3206 = vstv %s3197
        %v3207 = vmul.f32 %v3206, %v3205
        %v3208 = vmul.f32 %v3206, %v3202
        %s3209 = sld [smem:[#allocation9 + $0x9]]
        %3210 = vrot.lane.b32.xlu0 %v3002, 47
        %v3211 = vpop.permute.xlu0 %3210
        %3212 = vrot.lane.b32.xlu0 %v3009, 47
        %v3213 = vpop.permute.xlu0 %3212
        %v3214 = vsel %vm890, %v3211, %v3213
        %v3217 = vsel %vm890, 0.0, %v3211
        %v3218 = vstv %s3209
        %v3219 = vmul.f32 %v3218, %v3217
        %v3220 = vmul.f32 %v3218, %v3214
        %v3221 = vadd.f32 %v3207, %v3219
        %v3222 = vadd.f32 %v3208, %v3220
        %v3225 = vcombine.low %v3221, %v3222
        %v3227 = vunpack.c.l.s4 1966171168
        %v3228 = vunpack.c.0.s8 %v3227
        %v3229 = vlaneseq
        %v3230 = vshrl.u32 %v3229, 7
        %v3231 = vsub.s32 %v3228, %v3230
        %v3232 = vrot.slane %v3225, %v3231
        %v3234 = vunpack.c.l.s4 1966171168
        %v3235 = vunpack.c.0.s8 %v3234
        %v3236 = vlaneseq
        %v3237 = vshrl.u32 %v3236, 7
        %v3238 = vsub.s32 %v3235, %v3237
        %v3239 = vrot.slane %v3232, %v3238
        %v3241 = vsel %vm488, %v3239, 0.0
        %v3242 = vadd.f32 %v3196, %v3241
        %s3243 = sld [smem:[#allocation9 + $0xa]]
        %3244 = vrot.lane.b32.xlu0 %v2994, 46
        %v3245 = vpop.permute.xlu0 %3244
        %3246 = vrot.lane.b32.xlu0 %v2995, 46
        %v3247 = vpop.permute.xlu0 %3246
        %v3248 = vsel %vm937, %v3245, %v3247
        %v3251 = vsel %vm937, 0.0, %v3245
        %v3252 = vstv %s3243
        %v3253 = vmul.f32 %v3252, %v3251
        %v3254 = vmul.f32 %v3252, %v3248
        %s3255 = sld [smem:[#allocation9 + $0xb]]
        %3256 = vrot.lane.b32.xlu0 %v3002, 46
        %v3257 = vpop.permute.xlu0 %3256
        %3258 = vrot.lane.b32.xlu0 %v3009, 46
        %v3259 = vpop.permute.xlu0 %3258
        %v3260 = vsel %vm937, %v3257, %v3259
        %v3263 = vsel %vm937, 0.0, %v3257
        %v3264 = vstv %s3255
        %v3265 = vmul.f32 %v3264, %v3263
        %v3266 = vmul.f32 %v3264, %v3260
        %v3267 = vadd.f32 %v3253, %v3265
        %v3268 = vadd.f32 %v3254, %v3266
        %v3271 = vcombine.low %v3267, %v3268
        %v3273 = vunpack.c.l.s4 1966171168
        %v3274 = vunpack.c.0.s8 %v3273
        %v3275 = vlaneseq
        %v3276 = vshrl.u32 %v3275, 7
        %v3277 = vsub.s32 %v3274, %v3276
        %v3278 = vrot.slane %v3271, %v3277
        %v3280 = vunpack.c.l.s4 1966171168
        %v3281 = vunpack.c.0.s8 %v3280
        %v3282 = vlaneseq
        %v3283 = vshrl.u32 %v3282, 7
        %v3284 = vsub.s32 %v3281, %v3283
        %v3285 = vrot.slane %v3278, %v3284
        %v3287 = vsel %vm959, %v3285, 0.0
        %v3288 = vadd.f32 %v3242, %v3287
        %s3289 = sld [smem:[#allocation9 + $0xc]]
        %3290 = vrot.lane.b32.xlu0 %v2994, 45
        %v3291 = vpop.permute.xlu0 %3290
        %3292 = vrot.lane.b32.xlu0 %v2995, 45
        %v3293 = vpop.permute.xlu0 %3292
        %v3294 = vsel %vm985, %v3291, %v3293
        %v3297 = vsel %vm985, 0.0, %v3291
        %v3298 = vstv %s3289
        %v3299 = vmul.f32 %v3298, %v3297
        %v3300 = vmul.f32 %v3298, %v3294
        %s3301 = sld [smem:[#allocation9 + $0xd]]
        %3302 = vrot.lane.b32.xlu0 %v3002, 45
        %v3303 = vpop.permute.xlu0 %3302
        %3304 = vrot.lane.b32.xlu0 %v3009, 45
        %v3305 = vpop.permute.xlu0 %3304
        %v3306 = vsel %vm985, %v3303, %v3305
        %v3309 = vsel %vm985, 0.0, %v3303
        %v3310 = vstv %s3301
        %v3311 = vmul.f32 %v3310, %v3309
        %v3312 = vmul.f32 %v3310, %v3306
        %v3313 = vadd.f32 %v3299, %v3311
        %v3314 = vadd.f32 %v3300, %v3312
        %v3317 = vcombine.low %v3313, %v3314
        %v3319 = vunpack.c.l.s4 1966171168
        %v3320 = vunpack.c.0.s8 %v3319
        %v3321 = vlaneseq
        %v3322 = vshrl.u32 %v3321, 7
        %v3323 = vsub.s32 %v3320, %v3322
        %v3324 = vrot.slane %v3317, %v3323
        %v3326 = vunpack.c.l.s4 1966171168
        %v3327 = vunpack.c.0.s8 %v3326
        %v3328 = vlaneseq
        %v3329 = vshrl.u32 %v3328, 7
        %v3330 = vsub.s32 %v3327, %v3329
        %v3331 = vrot.slane %v3324, %v3330
        %v3333 = vsel %vm1007, %v3331, 0.0
        %v3334 = vadd.f32 %v3288, %v3333
        %s3335 = sld [smem:[#allocation9 + $0xe]]
        %3336 = vrot.lane.b32.xlu0 %v2994, 35
        %v3337 = vpop.permute.xlu0 %3336
        %3338 = vrot.lane.b32.xlu0 %v2995, 35
        %v3339 = vpop.permute.xlu0 %3338
        %v3340 = vsel %vm1033, %v3337, %v3339
        %v3343 = vsel %vm1033, 0.0, %v3337
        %v3344 = vstv %s3335
        %v3345 = vmul.f32 %v3344, %v3343
        %v3346 = vmul.f32 %v3344, %v3340
        %s3347 = sld [smem:[#allocation9 + $0xf]]
        %3348 = vrot.lane.b32.xlu0 %v3002, 35
        %v3349 = vpop.permute.xlu0 %3348
        %3350 = vrot.lane.b32.xlu0 %v3009, 35
        %v3351 = vpop.permute.xlu0 %3350
        %v3352 = vsel %vm1033, %v3349, %v3351
        %v3355 = vsel %vm1033, 0.0, %v3349
        %v3356 = vstv %s3347
        %v3357 = vmul.f32 %v3356, %v3355
        %v3358 = vmul.f32 %v3356, %v3352
        %v3359 = vadd.f32 %v3345, %v3357
        %v3360 = vadd.f32 %v3346, %v3358
        %v3363 = vcombine.low %v3359, %v3360
        %v3365 = vunpack.c.l.s4 1966171168
        %v3366 = vunpack.c.0.s8 %v3365
        %v3367 = vlaneseq
        %v3368 = vshrl.u32 %v3367, 7
        %v3369 = vsub.s32 %v3366, %v3368
        %v3370 = vrot.slane %v3363, %v3369
        %v3372 = vunpack.c.l.s4 1966171168
        %v3373 = vunpack.c.0.s8 %v3372
        %v3374 = vlaneseq
        %v3375 = vshrl.u32 %v3374, 7
        %v3376 = vsub.s32 %v3373, %v3375
        %v3377 = vrot.slane %v3370, %v3376
        %v3379 = vsel %vm723, %v3377, 0.0
        %v3380 = vadd.f32 %v3334, %v3379
        %s3381 = sld [smem:[#allocation9 + $0x10]]
        %3382 = vrot.lane.b32.xlu0 %v2994, 34
        %v3383 = vpop.permute.xlu0 %3382
        %3384 = vrot.lane.b32.xlu0 %v2995, 34
        %v3385 = vpop.permute.xlu0 %3384
        %v3386 = vsel %vm1080, %v3383, %v3385
        %v3389 = vsel %vm1080, 0.0, %v3383
        %v3390 = vstv %s3381
        %v3391 = vmul.f32 %v3390, %v3389
        %v3392 = vmul.f32 %v3390, %v3386
        %s3393 = sld [smem:[#allocation9 + $0x11]]
        %3394 = vrot.lane.b32.xlu0 %v3002, 34
        %v3395 = vpop.permute.xlu0 %3394
        %3396 = vrot.lane.b32.xlu0 %v3009, 34
        %v3397 = vpop.permute.xlu0 %3396
        %v3398 = vsel %vm1080, %v3395, %v3397
        %v3401 = vsel %vm1080, 0.0, %v3395
        %v3402 = vstv %s3393
        %v3403 = vmul.f32 %v3402, %v3401
        %v3404 = vmul.f32 %v3402, %v3398
        %v3405 = vadd.f32 %v3391, %v3403
        %v3406 = vadd.f32 %v3392, %v3404
        %v3409 = vcombine.low %v3405, %v3406
        %v3411 = vunpack.c.l.s4 1966171168
        %v3412 = vunpack.c.0.s8 %v3411
        %v3413 = vlaneseq
        %v3414 = vshrl.u32 %v3413, 7
        %v3415 = vsub.s32 %v3412, %v3414
        %v3416 = vrot.slane %v3409, %v3415
        %v3418 = vunpack.c.l.s4 1966171168
        %v3419 = vunpack.c.0.s8 %v3418
        %v3420 = vlaneseq
        %v3421 = vshrl.u32 %v3420, 7
        %v3422 = vsub.s32 %v3419, %v3421
        %v3423 = vrot.slane %v3416, %v3422
        %v3425 = vsel %vm771, %v3423, 0.0
        %v3426 = vadd.f32 %v3380, %v3425
        %s3427 = sld [smem:[#allocation9 + $0x12]]
        %3428 = vrot.lane.b32.xlu0 %v2994, 33
        %v3429 = vpop.permute.xlu0 %3428
        %3430 = vrot.lane.b32.xlu0 %v2995, 33
        %v3431 = vpop.permute.xlu0 %3430
        %v3432 = vsel %vm1127, %v3429, %v3431
        %v3435 = vsel %vm1127, 0.0, %v3429
        %v3436 = vstv %s3427
        %v3437 = vmul.f32 %v3436, %v3435
        %v3438 = vmul.f32 %v3436, %v3432
        %s3439 = sld [smem:[#allocation9 + $0x13]]
        %3440 = vrot.lane.b32.xlu0 %v3002, 33
        %v3441 = vpop.permute.xlu0 %3440
        %3442 = vrot.lane.b32.xlu0 %v3009, 33
        %v3443 = vpop.permute.xlu0 %3442
        %v3444 = vsel %vm1127, %v3441, %v3443
        %v3447 = vsel %vm1127, 0.0, %v3441
        %v3448 = vstv %s3439
        %v3449 = vmul.f32 %v3448, %v3447
        %v3450 = vmul.f32 %v3448, %v3444
        %v3451 = vadd.f32 %v3437, %v3449
        %v3452 = vadd.f32 %v3438, %v3450
        %v3455 = vcombine.low %v3451, %v3452
        %v3457 = vunpack.c.l.s4 1966171168
        %v3458 = vunpack.c.0.s8 %v3457
        %v3459 = vlaneseq
        %v3460 = vshrl.u32 %v3459, 7
        %v3461 = vsub.s32 %v3458, %v3460
        %v3462 = vrot.slane %v3455, %v3461
        %v3464 = vunpack.c.l.s4 1966171168
        %v3465 = vunpack.c.0.s8 %v3464
        %v3466 = vlaneseq
        %v3467 = vshrl.u32 %v3466, 7
        %v3468 = vsub.s32 %v3465, %v3467
        %v3469 = vrot.slane %v3462, %v3468
        %v3471 = vsel %vm448, %v3469, 0.0
        %v3472 = vadd.f32 %v3426, %v3471
        %s3473 = sld [smem:[#allocation9 + $0x14]]
        %3474 = vrot.lane.b32.xlu0 %v2994, 32
        %v3475 = vpop.permute.xlu0 %3474
        %3476 = vrot.lane.b32.xlu0 %v2995, 32
        %v3477 = vpop.permute.xlu0 %3476
        %v3478 = vsel %vm1174, %v3475, %v3477
        %v3481 = vsel %vm1174, 0.0, %v3475
        %v3482 = vstv %s3473
        %v3483 = vmul.f32 %v3482, %v3481
        %v3484 = vmul.f32 %v3482, %v3478
        %s3485 = sld [smem:[#allocation9 + $0x15]]
        %3486 = vrot.lane.b32.xlu0 %v3002, 32
        %v3487 = vpop.permute.xlu0 %3486
        %3488 = vrot.lane.b32.xlu0 %v3009, 32
        %v3489 = vpop.permute.xlu0 %3488
        %v3490 = vsel %vm1174, %v3487, %v3489
        %v3493 = vsel %vm1174, 0.0, %v3487
        %v3494 = vstv %s3485
        %v3495 = vmul.f32 %v3494, %v3493
        %v3496 = vmul.f32 %v3494, %v3490
        %v3497 = vadd.f32 %v3483, %v3495
        %v3498 = vadd.f32 %v3484, %v3496
        %v3501 = vcombine.low %v3497, %v3498
        %v3503 = vunpack.c.l.s4 1966171168
        %v3504 = vunpack.c.0.s8 %v3503
        %v3505 = vlaneseq
        %v3506 = vshrl.u32 %v3505, 7
        %v3507 = vsub.s32 %v3504, %v3506
        %v3508 = vrot.slane %v3501, %v3507
        %v3510 = vunpack.c.l.s4 1966171168
        %v3511 = vunpack.c.0.s8 %v3510
        %v3512 = vlaneseq
        %v3513 = vshrl.u32 %v3512, 7
        %v3514 = vsub.s32 %v3511, %v3513
        %v3515 = vrot.slane %v3508, %v3514
        %v3517 = vadd.f32 %v3472, %v3515
        %s3518 = sld [smem:[#allocation9 + $0x16]]
        %3519 = vrot.lane.b32.xlu0 %v2994, 31
        %v3520 = vpop.permute.xlu0 %3519
        %3521 = vrot.lane.b32.xlu0 %v2995, 31
        %v3522 = vpop.permute.xlu0 %3521
        %v3523 = vsel %vm1220, %v3520, %v3522
        %v3526 = vsel %vm1220, 0.0, %v3520
        %v3527 = vstv %s3518
        %v3528 = vmul.f32 %v3527, %v3526
        %v3529 = vmul.f32 %v3527, %v3523
        %s3530 = sld [smem:[#allocation9 + $0x17]]
        %3531 = vrot.lane.b32.xlu0 %v3002, 31
        %v3532 = vpop.permute.xlu0 %3531
        %3533 = vrot.lane.b32.xlu0 %v3009, 31
        %v3534 = vpop.permute.xlu0 %3533
        %v3535 = vsel %vm1220, %v3532, %v3534
        %v3538 = vsel %vm1220, 0.0, %v3532
        %v3539 = vstv %s3530
        %v3540 = vmul.f32 %v3539, %v3538
        %v3541 = vmul.f32 %v3539, %v3535
        %v3542 = vadd.f32 %v3528, %v3540
        %v3543 = vadd.f32 %v3529, %v3541
        %v3546 = vcombine.low %v3542, %v3543
        %v3548 = vunpack.c.l.s4 1966171168
        %v3549 = vunpack.c.0.s8 %v3548
        %v3550 = vlaneseq
        %v3551 = vshrl.u32 %v3550, 7
        %v3552 = vsub.s32 %v3549, %v3551
        %v3553 = vrot.slane %v3546, %v3552
        %v3555 = vunpack.c.l.s4 1966171168
        %v3556 = vunpack.c.0.s8 %v3555
        %v3557 = vlaneseq
        %v3558 = vshrl.u32 %v3557, 7
        %v3559 = vsub.s32 %v3556, %v3558
        %v3560 = vrot.slane %v3553, %v3559
        %v3562 = vsel %vm488, %v3560, 0.0
        %v3563 = vadd.f32 %v3517, %v3562
        %s3564 = sld [smem:[#allocation9 + $0x18]]
        %3565 = vrot.lane.b32.xlu0 %v2994, 30
        %v3566 = vpop.permute.xlu0 %3565
        %3567 = vrot.lane.b32.xlu0 %v2995, 30
        %v3568 = vpop.permute.xlu0 %3567
        %v3569 = vsel %vm1267, %v3566, %v3568
        %v3572 = vsel %vm1267, 0.0, %v3566
        %v3573 = vstv %s3564
        %v3574 = vmul.f32 %v3573, %v3572
        %v3575 = vmul.f32 %v3573, %v3569
        %s3576 = sld [smem:[#allocation9 + $0x19]]
        %3577 = vrot.lane.b32.xlu0 %v3002, 30
        %v3578 = vpop.permute.xlu0 %3577
        %3579 = vrot.lane.b32.xlu0 %v3009, 30
        %v3580 = vpop.permute.xlu0 %3579
        %v3581 = vsel %vm1267, %v3578, %v3580
        %v3584 = vsel %vm1267, 0.0, %v3578
        %v3585 = vstv %s3576
        %v3586 = vmul.f32 %v3585, %v3584
        %v3587 = vmul.f32 %v3585, %v3581
        %v3588 = vadd.f32 %v3574, %v3586
        %v3589 = vadd.f32 %v3575, %v3587
        %v3592 = vcombine.low %v3588, %v3589
        %v3594 = vunpack.c.l.s4 1966171168
        %v3595 = vunpack.c.0.s8 %v3594
        %v3596 = vlaneseq
        %v3597 = vshrl.u32 %v3596, 7
        %v3598 = vsub.s32 %v3595, %v3597
        %v3599 = vrot.slane %v3592, %v3598
        %v3601 = vunpack.c.l.s4 1966171168
        %v3602 = vunpack.c.0.s8 %v3601
        %v3603 = vlaneseq
        %v3604 = vshrl.u32 %v3603, 7
        %v3605 = vsub.s32 %v3602, %v3604
        %v3606 = vrot.slane %v3599, %v3605
        %v3608 = vsel %vm959, %v3606, 0.0
        %v3609 = vadd.f32 %v3563, %v3608
        %s3610 = sld [smem:[#allocation9 + $0x1a]]
        %3611 = vrot.lane.b32.xlu0 %v2994, 29
        %v3612 = vpop.permute.xlu0 %3611
        %3613 = vrot.lane.b32.xlu0 %v2995, 29
        %v3614 = vpop.permute.xlu0 %3613
        %v3615 = vsel %vm1314, %v3612, %v3614
        %v3618 = vsel %vm1314, 0.0, %v3612
        %v3619 = vstv %s3610
        %v3620 = vmul.f32 %v3619, %v3618
        %v3621 = vmul.f32 %v3619, %v3615
        %s3622 = sld [smem:[#allocation9 + $0x1b]]
        %3623 = vrot.lane.b32.xlu0 %v3002, 29
        %v3624 = vpop.permute.xlu0 %3623
        %3625 = vrot.lane.b32.xlu0 %v3009, 29
        %v3626 = vpop.permute.xlu0 %3625
        %v3627 = vsel %vm1314, %v3624, %v3626
        %v3630 = vsel %vm1314, 0.0, %v3624
        %v3631 = vstv %s3622
        %v3632 = vmul.f32 %v3631, %v3630
        %v3633 = vmul.f32 %v3631, %v3627
        %v3634 = vadd.f32 %v3620, %v3632
        %v3635 = vadd.f32 %v3621, %v3633
        %v3638 = vcombine.low %v3634, %v3635
        %v3640 = vunpack.c.l.s4 1966171168
        %v3641 = vunpack.c.0.s8 %v3640
        %v3642 = vlaneseq
        %v3643 = vshrl.u32 %v3642, 7
        %v3644 = vsub.s32 %v3641, %v3643
        %v3645 = vrot.slane %v3638, %v3644
        %v3647 = vunpack.c.l.s4 1966171168
        %v3648 = vunpack.c.0.s8 %v3647
        %v3649 = vlaneseq
        %v3650 = vshrl.u32 %v3649, 7
        %v3651 = vsub.s32 %v3648, %v3650
        %v3652 = vrot.slane %v3645, %v3651
        %v3654 = vsel %vm1007, %v3652, 0.0
        %v3655 = vadd.f32 %v3609, %v3654
        %s3656 = sld [smem:[#allocation9 + $0x1c]]
        %3657 = vrot.lane.b32.xlu0 %v2994, 19
        %v3658 = vpop.permute.xlu0 %3657
        %3659 = vrot.lane.b32.xlu0 %v2995, 19
        %v3660 = vpop.permute.xlu0 %3659
        %v3661 = vsel %vm1361, %v3658, %v3660
        %v3664 = vsel %vm1361, 0.0, %v3658
        %v3665 = vstv %s3656
        %v3666 = vmul.f32 %v3665, %v3664
        %v3667 = vmul.f32 %v3665, %v3661
        %s3668 = sld [smem:[#allocation9 + $0x1d]]
        %3669 = vrot.lane.b32.xlu0 %v3002, 19
        %v3670 = vpop.permute.xlu0 %3669
        %3671 = vrot.lane.b32.xlu0 %v3009, 19
        %v3672 = vpop.permute.xlu0 %3671
        %v3673 = vsel %vm1361, %v3670, %v3672
        %v3676 = vsel %vm1361, 0.0, %v3670
        %v3677 = vstv %s3668
        %v3678 = vmul.f32 %v3677, %v3676
        %v3679 = vmul.f32 %v3677, %v3673
        %v3680 = vadd.f32 %v3666, %v3678
        %v3681 = vadd.f32 %v3667, %v3679
        %v3684 = vcombine.low %v3680, %v3681
        %v3686 = vunpack.c.l.s4 1966171168
        %v3687 = vunpack.c.0.s8 %v3686
        %v3688 = vlaneseq
        %v3689 = vshrl.u32 %v3688, 7
        %v3690 = vsub.s32 %v3687, %v3689
        %v3691 = vrot.slane %v3684, %v3690
        %v3693 = vunpack.c.l.s4 1966171168
        %v3694 = vunpack.c.0.s8 %v3693
        %v3695 = vlaneseq
        %v3696 = vshrl.u32 %v3695, 7
        %v3697 = vsub.s32 %v3694, %v3696
        %v3698 = vrot.slane %v3691, %v3697
        %v3700 = vsel %vm723, %v3698, 0.0
        %v3701 = vadd.f32 %v3655, %v3700
        %s3702 = sld [smem:[#allocation9 + $0x1e]]
        %3703 = vrot.lane.b32.xlu0 %v2994, 18
        %v3704 = vpop.permute.xlu0 %3703
        %3705 = vrot.lane.b32.xlu0 %v2995, 18
        %v3706 = vpop.permute.xlu0 %3705
        %v3707 = vsel %vm1408, %v3704, %v3706
        %v3710 = vsel %vm1408, 0.0, %v3704
        %v3711 = vstv %s3702
        %v3712 = vmul.f32 %v3711, %v3710
        %v3713 = vmul.f32 %v3711, %v3707
        %s3714 = sld [smem:[#allocation9 + $0x1f]]
        %3715 = vrot.lane.b32.xlu0 %v3002, 18
        %v3716 = vpop.permute.xlu0 %3715
        %3717 = vrot.lane.b32.xlu0 %v3009, 18
        %v3718 = vpop.permute.xlu0 %3717
        %v3719 = vsel %vm1408, %v3716, %v3718
        %v3722 = vsel %vm1408, 0.0, %v3716
        %v3723 = vstv %s3714
        %v3724 = vmul.f32 %v3723, %v3722
        %v3725 = vmul.f32 %v3723, %v3719
        %v3726 = vadd.f32 %v3712, %v3724
        %v3727 = vadd.f32 %v3713, %v3725
        %v3730 = vcombine.low %v3726, %v3727
        %v3732 = vunpack.c.l.s4 1966171168
        %v3733 = vunpack.c.0.s8 %v3732
        %v3734 = vlaneseq
        %v3735 = vshrl.u32 %v3734, 7
        %v3736 = vsub.s32 %v3733, %v3735
        %v3737 = vrot.slane %v3730, %v3736
        %v3739 = vunpack.c.l.s4 1966171168
        %v3740 = vunpack.c.0.s8 %v3739
        %v3741 = vlaneseq
        %v3742 = vshrl.u32 %v3741, 7
        %v3743 = vsub.s32 %v3740, %v3742
        %v3744 = vrot.slane %v3737, %v3743
        %v3746 = vsel %vm771, %v3744, 0.0
        %v3747 = vadd.f32 %v3701, %v3746
        %s3748 = sld [smem:[#allocation9 + $0x20]]
        %3749 = vrot.lane.b32.xlu0 %v2994, 17
        %v3750 = vpop.permute.xlu0 %3749
        %3751 = vrot.lane.b32.xlu0 %v2995, 17
        %v3752 = vpop.permute.xlu0 %3751
        %v3753 = vsel %vm443, %v3750, %v3752
        %v3756 = vsel %vm443, 0.0, %v3750
        %v3757 = vstv %s3748
        %v3758 = vmul.f32 %v3757, %v3756
        %v3759 = vmul.f32 %v3757, %v3753
        %s3760 = sld [smem:[#allocation9 + $0x21]]
        %3761 = vrot.lane.b32.xlu0 %v3002, 17
        %v3762 = vpop.permute.xlu0 %3761
        %3763 = vrot.lane.b32.xlu0 %v3009, 17
        %v3764 = vpop.permute.xlu0 %3763
        %v3765 = vsel %vm443, %v3762, %v3764
        %v3768 = vsel %vm443, 0.0, %v3762
        %v3769 = vstv %s3760
        %v3770 = vmul.f32 %v3769, %v3768
        %v3771 = vmul.f32 %v3769, %v3765
        %v3772 = vadd.f32 %v3758, %v3770
        %v3773 = vadd.f32 %v3759, %v3771
        %v3776 = vcombine.low %v3772, %v3773
        %v3778 = vunpack.c.l.s4 1966171168
        %v3779 = vunpack.c.0.s8 %v3778
        %v3780 = vlaneseq
        %v3781 = vshrl.u32 %v3780, 7
        %v3782 = vsub.s32 %v3779, %v3781
        %v3783 = vrot.slane %v3776, %v3782
        %v3785 = vunpack.c.l.s4 1966171168
        %v3786 = vunpack.c.0.s8 %v3785
        %v3787 = vlaneseq
        %v3788 = vshrl.u32 %v3787, 7
        %v3789 = vsub.s32 %v3786, %v3788
        %v3790 = vrot.slane %v3783, %v3789
        %v3792 = vsel %vm448, %v3790, 0.0
        %v3793 = vadd.f32 %v3747, %v3792
        %s3794 = sld [smem:[#allocation9 + $0x22]]
        %3795 = vrot.lane.b32.xlu0 %v2994, 16
        %v3796 = vpop.permute.xlu0 %3795
        %3797 = vrot.lane.b32.xlu0 %v2995, 16
        %v3798 = vpop.permute.xlu0 %3797
        %v3799 = vsel %vm468, %v3796, %v3798
        %v3802 = vsel %vm468, 0.0, %v3796
        %v3803 = vstv %s3794
        %v3804 = vmul.f32 %v3803, %v3802
        %v3805 = vmul.f32 %v3803, %v3799
        %s3806 = sld [smem:[#allocation9 + $0x23]]
        %3807 = vrot.lane.b32.xlu0 %v3002, 16
        %v3808 = vpop.permute.xlu0 %3807
        %3809 = vrot.lane.b32.xlu0 %v3009, 16
        %v3810 = vpop.permute.xlu0 %3809
        %v3811 = vsel %vm468, %v3808, %v3810
        %v3814 = vsel %vm468, 0.0, %v3808
        %v3815 = vstv %s3806
        %v3816 = vmul.f32 %v3815, %v3814
        %v3817 = vmul.f32 %v3815, %v3811
        %v3818 = vadd.f32 %v3804, %v3816
        %v3819 = vadd.f32 %v3805, %v3817
        %v3822 = vcombine.low %v3818, %v3819
        %v3824 = vunpack.c.l.s4 1966171168
        %v3825 = vunpack.c.0.s8 %v3824
        %v3826 = vlaneseq
        %v3827 = vshrl.u32 %v3826, 7
        %v3828 = vsub.s32 %v3825, %v3827
        %v3829 = vrot.slane %v3822, %v3828
        %v3831 = vunpack.c.l.s4 1966171168
        %v3832 = vunpack.c.0.s8 %v3831
        %v3833 = vlaneseq
        %v3834 = vshrl.u32 %v3833, 7
        %v3835 = vsub.s32 %v3832, %v3834
        %v3836 = vrot.slane %v3829, %v3835
        %v3838 = vadd.f32 %v3793, %v3836
        %s3839 = sld [smem:[#allocation9 + $0x24]]
        %3840 = vrot.lane.b32.xlu0 %v2994, 15
        %v3841 = vpop.permute.xlu0 %3840
        %3842 = vrot.lane.b32.xlu0 %v2995, 15
        %v3843 = vpop.permute.xlu0 %3842
        %v3844 = vsel %vm483, %v3841, %v3843
        %v3847 = vsel %vm483, 0.0, %v3841
        %v3848 = vstv %s3839
        %v3849 = vmul.f32 %v3848, %v3847
        %v3850 = vmul.f32 %v3848, %v3844
        %s3851 = sld [smem:[#allocation9 + $0x25]]
        %3852 = vrot.lane.b32.xlu0 %v3002, 15
        %v3853 = vpop.permute.xlu0 %3852
        %3854 = vrot.lane.b32.xlu0 %v3009, 15
        %v3855 = vpop.permute.xlu0 %3854
        %v3856 = vsel %vm483, %v3853, %v3855
        %v3859 = vsel %vm483, 0.0, %v3853
        %v3860 = vstv %s3851
        %v3861 = vmul.f32 %v3860, %v3859
        %v3862 = vmul.f32 %v3860, %v3856
        %v3863 = vadd.f32 %v3849, %v3861
        %v3864 = vadd.f32 %v3850, %v3862
        %v3867 = vcombine.low %v3863, %v3864
        %v3869 = vunpack.c.l.s4 1966171168
        %v3870 = vunpack.c.0.s8 %v3869
        %v3871 = vlaneseq
        %v3872 = vshrl.u32 %v3871, 7
        %v3873 = vsub.s32 %v3870, %v3872
        %v3874 = vrot.slane %v3867, %v3873
        %v3876 = vunpack.c.l.s4 1966171168
        %v3877 = vunpack.c.0.s8 %v3876
        %v3878 = vlaneseq
        %v3879 = vshrl.u32 %v3878, 7
        %v3880 = vsub.s32 %v3877, %v3879
        %v3881 = vrot.slane %v3874, %v3880
        %v3883 = vsel %vm488, %v3881, 0.0
        %v3884 = vadd.f32 %v3838, %v3883
        %s3885 = sld [smem:[#allocation9 + $0x26]]
        %3886 = vrot.lane.b32.xlu0 %v2994, 14
        %v3887 = vpop.permute.xlu0 %3886
        %3888 = vrot.lane.b32.xlu0 %v2995, 14
        %v3889 = vpop.permute.xlu0 %3888
        %v3890 = vsel %vm1592, %v3887, %v3889
        %v3893 = vsel %vm1592, 0.0, %v3887
        %v3894 = vstv %s3885
        %v3895 = vmul.f32 %v3894, %v3893
        %v3896 = vmul.f32 %v3894, %v3890
        %s3897 = sld [smem:[#allocation9 + $0x27]]
        %3898 = vrot.lane.b32.xlu0 %v3002, 14
        %v3899 = vpop.permute.xlu0 %3898
        %3900 = vrot.lane.b32.xlu0 %v3009, 14
        %v3901 = vpop.permute.xlu0 %3900
        %v3902 = vsel %vm1592, %v3899, %v3901
        %v3905 = vsel %vm1592, 0.0, %v3899
        %v3906 = vstv %s3897
        %v3907 = vmul.f32 %v3906, %v3905
        %v3908 = vmul.f32 %v3906, %v3902
        %v3909 = vadd.f32 %v3895, %v3907
        %v3910 = vadd.f32 %v3896, %v3908
        %v3913 = vcombine.low %v3909, %v3910
        %v3915 = vunpack.c.l.s4 1966171168
        %v3916 = vunpack.c.0.s8 %v3915
        %v3917 = vlaneseq
        %v3918 = vshrl.u32 %v3917, 7
        %v3919 = vsub.s32 %v3916, %v3918
        %v3920 = vrot.slane %v3913, %v3919
        %v3922 = vunpack.c.l.s4 1966171168
        %v3923 = vunpack.c.0.s8 %v3922
        %v3924 = vlaneseq
        %v3925 = vshrl.u32 %v3924, 7
        %v3926 = vsub.s32 %v3923, %v3925
        %v3927 = vrot.slane %v3920, %v3926
        %v3929 = vsel %vm959, %v3927, 0.0
        %v3930 = vadd.f32 %v3884, %v3929
        %s3931 = sld [smem:[#allocation9 + $0x28]]
        %3932 = vrot.lane.b32.xlu0 %v2994, 13
        %v3933 = vpop.permute.xlu0 %3932
        %3934 = vrot.lane.b32.xlu0 %v2995, 13
        %v3935 = vpop.permute.xlu0 %3934
        %v3936 = vsel %vm1639, %v3933, %v3935
        %v3939 = vsel %vm1639, 0.0, %v3933
        %v3940 = vstv %s3931
        %v3941 = vmul.f32 %v3940, %v3939
        %v3942 = vmul.f32 %v3940, %v3936
        %s3943 = sld [smem:[#allocation9 + $0x29]]
        %3944 = vrot.lane.b32.xlu0 %v3002, 13
        %v3945 = vpop.permute.xlu0 %3944
        %3946 = vrot.lane.b32.xlu0 %v3009, 13
        %v3947 = vpop.permute.xlu0 %3946
        %v3948 = vsel %vm1639, %v3945, %v3947
        %v3951 = vsel %vm1639, 0.0, %v3945
        %v3952 = vstv %s3943
        %v3953 = vmul.f32 %v3952, %v3951
        %v3954 = vmul.f32 %v3952, %v3948
        %v3955 = vadd.f32 %v3941, %v3953
        %v3956 = vadd.f32 %v3942, %v3954
        %v3959 = vcombine.low %v3955, %v3956
        %v3961 = vunpack.c.l.s4 1966171168
        %v3962 = vunpack.c.0.s8 %v3961
        %v3963 = vlaneseq
        %v3964 = vshrl.u32 %v3963, 7
        %v3965 = vsub.s32 %v3962, %v3964
        %v3966 = vrot.slane %v3959, %v3965
        %v3968 = vunpack.c.l.s4 1966171168
        %v3969 = vunpack.c.0.s8 %v3968
        %v3970 = vlaneseq
        %v3971 = vshrl.u32 %v3970, 7
        %v3972 = vsub.s32 %v3969, %v3971
        %v3973 = vrot.slane %v3966, %v3972
        %v3975 = vsel %vm1007, %v3973, 0.0
        %v3976 = vadd.f32 %v3930, %v3975
        %s3977 = sld [smem:[#allocation9 + $0x2a]]
        %3978 = vrot.lane.b32.xlu0 %v2994, 3
        %v3979 = vpop.permute.xlu0 %3978
        %3980 = vrot.lane.b32.xlu0 %v2995, 3
        %v3981 = vpop.permute.xlu0 %3980
        %v3982 = vsel %vm1686, %v3979, %v3981
        %v3985 = vsel %vm1686, 0.0, %v3979
        %v3986 = vstv %s3977
        %v3987 = vmul.f32 %v3986, %v3985
        %v3988 = vmul.f32 %v3986, %v3982
        %s3989 = sld [smem:[#allocation9 + $0x2b]]
        %3990 = vrot.lane.b32.xlu0 %v3002, 3
        %v3991 = vpop.permute.xlu0 %3990
        %3992 = vrot.lane.b32.xlu0 %v3009, 3
        %v3993 = vpop.permute.xlu0 %3992
        %v3994 = vsel %vm1686, %v3991, %v3993
        %v3997 = vsel %vm1686, 0.0, %v3991
        %v3998 = vstv %s3989
        %v3999 = vmul.f32 %v3998, %v3997
        %v4000 = vmul.f32 %v3998, %v3994
        %v4001 = vadd.f32 %v3987, %v3999
        %v4002 = vadd.f32 %v3988, %v4000
        %v4005 = vcombine.low %v4001, %v4002
        %v4007 = vunpack.c.l.s4 1966171168
        %v4008 = vunpack.c.0.s8 %v4007
        %v4009 = vlaneseq
        %v4010 = vshrl.u32 %v4009, 7
        %v4011 = vsub.s32 %v4008, %v4010
        %v4012 = vrot.slane %v4005, %v4011
        %v4014 = vunpack.c.l.s4 1966171168
        %v4015 = vunpack.c.0.s8 %v4014
        %v4016 = vlaneseq
        %v4017 = vshrl.u32 %v4016, 7
        %v4018 = vsub.s32 %v4015, %v4017
        %v4019 = vrot.slane %v4012, %v4018
        %v4021 = vsel %vm723, %v4019, 0.0
        %v4022 = vadd.f32 %v3976, %v4021
        %s4023 = sld [smem:[#allocation9 + $0x2c]]
        %4024 = vrot.lane.b32.xlu0 %v2994, 2
        %v4025 = vpop.permute.xlu0 %4024
        %4026 = vrot.lane.b32.xlu0 %v2995, 2
        %v4027 = vpop.permute.xlu0 %4026
        %v4028 = vsel %vm1733, %v4025, %v4027
        %v4031 = vsel %vm1733, 0.0, %v4025
        %v4032 = vstv %s4023
        %v4033 = vmul.f32 %v4032, %v4031
        %v4034 = vmul.f32 %v4032, %v4028
        %s4035 = sld [smem:[#allocation9 + $0x2d]]
        %4036 = vrot.lane.b32.xlu0 %v3002, 2
        %v4037 = vpop.permute.xlu0 %4036
        %4038 = vrot.lane.b32.xlu0 %v3009, 2
        %v4039 = vpop.permute.xlu0 %4038
        %v4040 = vsel %vm1733, %v4037, %v4039
        %v4043 = vsel %vm1733, 0.0, %v4037
        %v4044 = vstv %s4035
        %v4045 = vmul.f32 %v4044, %v4043
        %v4046 = vmul.f32 %v4044, %v4040
        %v4047 = vadd.f32 %v4033, %v4045
        %v4048 = vadd.f32 %v4034, %v4046
        %v4051 = vcombine.low %v4047, %v4048
        %v4053 = vunpack.c.l.s4 1966171168
        %v4054 = vunpack.c.0.s8 %v4053
        %v4055 = vlaneseq
        %v4056 = vshrl.u32 %v4055, 7
        %v4057 = vsub.s32 %v4054, %v4056
        %v4058 = vrot.slane %v4051, %v4057
        %v4060 = vunpack.c.l.s4 1966171168
        %v4061 = vunpack.c.0.s8 %v4060
        %v4062 = vlaneseq
        %v4063 = vshrl.u32 %v4062, 7
        %v4064 = vsub.s32 %v4061, %v4063
        %v4065 = vrot.slane %v4058, %v4064
        %v4067 = vsel %vm771, %v4065, 0.0
        %v4068 = vadd.f32 %v4022, %v4067
        %s4069 = sld [smem:[#allocation9 + $0x2e]]
        %4070 = vrot.lane.b32.xlu0 %v2994, 1
        %v4071 = vpop.permute.xlu0 %4070
        %4072 = vrot.lane.b32.xlu0 %v2995, 1
        %v4073 = vpop.permute.xlu0 %4072
        %v4074 = vsel %vm508, %v4071, %v4073
        %v4077 = vsel %vm508, 0.0, %v4071
        %v4078 = vstv %s4069
        %v4079 = vmul.f32 %v4078, %v4077
        %v4080 = vmul.f32 %v4078, %v4074
        %s4081 = sld [smem:[#allocation9 + $0x2f]]
        %4082 = vrot.lane.b32.xlu0 %v3002, 1
        %v4083 = vpop.permute.xlu0 %4082
        %4084 = vrot.lane.b32.xlu0 %v3009, 1
        %v4085 = vpop.permute.xlu0 %4084
        %v4086 = vsel %vm508, %v4083, %v4085
        %v4089 = vsel %vm508, 0.0, %v4083
        %v4090 = vstv %s4081
        %v4091 = vmul.f32 %v4090, %v4089
        %v4092 = vmul.f32 %v4090, %v4086
        %v4093 = vadd.f32 %v4079, %v4091
        %v4094 = vadd.f32 %v4080, %v4092
        %v4097 = vcombine.low %v4093, %v4094
        %v4099 = vunpack.c.l.s4 1966171168
        %v4100 = vunpack.c.0.s8 %v4099
        %v4101 = vlaneseq
        %v4102 = vshrl.u32 %v4101, 7
        %v4103 = vsub.s32 %v4100, %v4102
        %v4104 = vrot.slane %v4097, %v4103
        %v4106 = vunpack.c.l.s4 1966171168
        %v4107 = vunpack.c.0.s8 %v4106
        %v4108 = vlaneseq
        %v4109 = vshrl.u32 %v4108, 7
        %v4110 = vsub.s32 %v4107, %v4109
        %v4111 = vrot.slane %v4104, %v4110
        %v4113 = vsel %vm448, %v4111, 0.0
        %v4114 = vadd.f32 %v4068, %v4113
        %s4115 = sld [smem:[#allocation9 + $0x30]]
        %v4116 = vstv %s4115
        %v4117 = vmul.f32 %v4116, %v2994
        %v4118 = vmul.f32 %v4116, %v2995
        %s4119 = sld [smem:[#allocation9 + $0x31]]
        %v4120 = vstv %s4119
        %v4121 = vmul.f32 %v4120, %v3002
        %v4122 = vmul.f32 %v4120, %v3009
        %v4123 = vadd.f32 %v4117, %v4121
        %v4124 = vadd.f32 %v4118, %v4122
        %v4127 = vcombine.low %v4123, %v4124
        %v4129 = vunpack.c.l.s4 1966171168
        %v4130 = vunpack.c.0.s8 %v4129
        %v4131 = vlaneseq
        %v4132 = vshrl.u32 %v4131, 7
        %v4133 = vsub.s32 %v4130, %v4132
        %v4134 = vrot.slane %v4127, %v4133
        %v4136 = vunpack.c.l.s4 1966171168
        %v4137 = vunpack.c.0.s8 %v4136
        %v4138 = vlaneseq
        %v4139 = vshrl.u32 %v4138, 7
        %v4140 = vsub.s32 %v4137, %v4139
        %v4141 = vrot.slane %v4134, %v4140
        %v4143 = vadd.f32 %v4114, %v4141
        %s4144 = sld [smem:[#allocation9 + $0x32]]
        %4145 = vrot.lane.b32.xlu0 %v2994, 127
        %v4146 = vpop.permute.xlu0 %4145
        %4147 = vrot.lane.b32.xlu0 %v2995, 127
        %v4148 = vpop.permute.xlu0 %4147
        %v4149 = vsel %vm530, %v4146, %v4148
        %v4152 = vsel %vm530, %v4148, 0.0
        %v4153 = vstv %s4144
        %v4154 = vmul.f32 %v4153, %v4149
        %v4155 = vmul.f32 %v4153, %v4152
        %s4156 = sld [smem:[#allocation9 + $0x33]]
        %4157 = vrot.lane.b32.xlu0 %v3002, 127
        %v4158 = vpop.permute.xlu0 %4157
        %4159 = vrot.lane.b32.xlu0 %v3009, 127
        %v4160 = vpop.permute.xlu0 %4159
        %v4161 = vsel %vm530, %v4158, %v4160
        %v4164 = vsel %vm530, %v4160, 0.0
        %v4165 = vstv %s4156
        %v4166 = vmul.f32 %v4165, %v4161
        %v4167 = vmul.f32 %v4165, %v4164
        %v4168 = vadd.f32 %v4154, %v4166
        %v4169 = vadd.f32 %v4155, %v4167
        %v4172 = vcombine.low %v4168, %v4169
        %v4174 = vunpack.c.l.s4 1966171168
        %v4175 = vunpack.c.0.s8 %v4174
        %v4176 = vlaneseq
        %v4177 = vshrl.u32 %v4176, 7
        %v4178 = vsub.s32 %v4175, %v4177
        %v4179 = vrot.slane %v4172, %v4178
        %v4181 = vunpack.c.l.s4 1966171168
        %v4182 = vunpack.c.0.s8 %v4181
        %v4183 = vlaneseq
        %v4184 = vshrl.u32 %v4183, 7
        %v4185 = vsub.s32 %v4182, %v4184
        %v4186 = vrot.slane %v4179, %v4185
        %v4188 = vsel %vm488, %v4186, 0.0
        %v4189 = vadd.f32 %v4143, %v4188
        %s4190 = sld [smem:[#allocation9 + $0x34]]
        %4191 = vrot.lane.b32.xlu0 %v2994, 126
        %v4192 = vpop.permute.xlu0 %4191
        %4193 = vrot.lane.b32.xlu0 %v2995, 126
        %v4194 = vpop.permute.xlu0 %4193
        %v4195 = vsel %vm1901, %v4192, %v4194
        %v4198 = vsel %vm1901, %v4194, 0.0
        %v4199 = vstv %s4190
        %v4200 = vmul.f32 %v4199, %v4195
        %v4201 = vmul.f32 %v4199, %v4198
        %s4202 = sld [smem:[#allocation9 + $0x35]]
        %4203 = vrot.lane.b32.xlu0 %v3002, 126
        %v4204 = vpop.permute.xlu0 %4203
        %4205 = vrot.lane.b32.xlu0 %v3009, 126
        %v4206 = vpop.permute.xlu0 %4205
        %v4207 = vsel %vm1901, %v4204, %v4206
        %v4210 = vsel %vm1901, %v4206, 0.0
        %v4211 = vstv %s4202
        %v4212 = vmul.f32 %v4211, %v4207
        %v4213 = vmul.f32 %v4211, %v4210
        %v4214 = vadd.f32 %v4200, %v4212
        %v4215 = vadd.f32 %v4201, %v4213
        %v4218 = vcombine.low %v4214, %v4215
        %v4220 = vunpack.c.l.s4 1966171168
        %v4221 = vunpack.c.0.s8 %v4220
        %v4222 = vlaneseq
        %v4223 = vshrl.u32 %v4222, 7
        %v4224 = vsub.s32 %v4221, %v4223
        %v4225 = vrot.slane %v4218, %v4224
        %v4227 = vunpack.c.l.s4 1966171168
        %v4228 = vunpack.c.0.s8 %v4227
        %v4229 = vlaneseq
        %v4230 = vshrl.u32 %v4229, 7
        %v4231 = vsub.s32 %v4228, %v4230
        %v4232 = vrot.slane %v4225, %v4231
        %v4234 = vsel %vm959, %v4232, 0.0
        %v4235 = vadd.f32 %v4189, %v4234
        %s4236 = sld [smem:[#allocation9 + $0x36]]
        %4237 = vrot.lane.b32.xlu0 %v2994, 125
        %v4238 = vpop.permute.xlu0 %4237
        %4239 = vrot.lane.b32.xlu0 %v2995, 125
        %v4240 = vpop.permute.xlu0 %4239
        %v4241 = vsel %vm1948, %v4238, %v4240
        %v4244 = vsel %vm1948, %v4240, 0.0
        %v4245 = vstv %s4236
        %v4246 = vmul.f32 %v4245, %v4241
        %v4247 = vmul.f32 %v4245, %v4244
        %s4248 = sld [smem:[#allocation9 + $0x37]]
        %4249 = vrot.lane.b32.xlu0 %v3002, 125
        %v4250 = vpop.permute.xlu0 %4249
        %4251 = vrot.lane.b32.xlu0 %v3009, 125
        %v4252 = vpop.permute.xlu0 %4251
        %v4253 = vsel %vm1948, %v4250, %v4252
        %v4256 = vsel %vm1948, %v4252, 0.0
        %v4257 = vstv %s4248
        %v4258 = vmul.f32 %v4257, %v4253
        %v4259 = vmul.f32 %v4257, %v4256
        %v4260 = vadd.f32 %v4246, %v4258
        %v4261 = vadd.f32 %v4247, %v4259
        %v4264 = vcombine.low %v4260, %v4261
        %v4266 = vunpack.c.l.s4 1966171168
        %v4267 = vunpack.c.0.s8 %v4266
        %v4268 = vlaneseq
        %v4269 = vshrl.u32 %v4268, 7
        %v4270 = vsub.s32 %v4267, %v4269
        %v4271 = vrot.slane %v4264, %v4270
        %v4273 = vunpack.c.l.s4 1966171168
        %v4274 = vunpack.c.0.s8 %v4273
        %v4275 = vlaneseq
        %v4276 = vshrl.u32 %v4275, 7
        %v4277 = vsub.s32 %v4274, %v4276
        %v4278 = vrot.slane %v4271, %v4277
        %v4280 = vsel %vm1007, %v4278, 0.0
        %v4281 = vadd.f32 %v4235, %v4280
        %s4282 = sld [smem:[#allocation9 + $0x38]]
        %4283 = vrot.lane.b32.xlu0 %v2994, 115
        %v4284 = vpop.permute.xlu0 %4283
        %4285 = vrot.lane.b32.xlu0 %v2995, 115
        %v4286 = vpop.permute.xlu0 %4285
        %v4287 = vsel %vm1995, %v4284, %v4286
        %v4290 = vsel %vm1995, %v4286, 0.0
        %v4291 = vstv %s4282
        %v4292 = vmul.f32 %v4291, %v4287
        %v4293 = vmul.f32 %v4291, %v4290
        %s4294 = sld [smem:[#allocation9 + $0x39]]
        %4295 = vrot.lane.b32.xlu0 %v3002, 115
        %v4296 = vpop.permute.xlu0 %4295
        %4297 = vrot.lane.b32.xlu0 %v3009, 115
        %v4298 = vpop.permute.xlu0 %4297
        %v4299 = vsel %vm1995, %v4296, %v4298
        %v4302 = vsel %vm1995, %v4298, 0.0
        %v4303 = vstv %s4294
        %v4304 = vmul.f32 %v4303, %v4299
        %v4305 = vmul.f32 %v4303, %v4302
        %v4306 = vadd.f32 %v4292, %v4304
        %v4307 = vadd.f32 %v4293, %v4305
        %v4310 = vcombine.low %v4306, %v4307
        %v4312 = vunpack.c.l.s4 1966171168
        %v4313 = vunpack.c.0.s8 %v4312
        %v4314 = vlaneseq
        %v4315 = vshrl.u32 %v4314, 7
        %v4316 = vsub.s32 %v4313, %v4315
        %v4317 = vrot.slane %v4310, %v4316
        %v4319 = vunpack.c.l.s4 1966171168
        %v4320 = vunpack.c.0.s8 %v4319
        %v4321 = vlaneseq
        %v4322 = vshrl.u32 %v4321, 7
        %v4323 = vsub.s32 %v4320, %v4322
        %v4324 = vrot.slane %v4317, %v4323
        %v4326 = vsel %vm723, %v4324, 0.0
        %v4327 = vadd.f32 %v4281, %v4326
        %s4328 = sld [smem:[#allocation9 + $0x3a]]
        %4329 = vrot.lane.b32.xlu0 %v2994, 114
        %v4330 = vpop.permute.xlu0 %4329
        %4331 = vrot.lane.b32.xlu0 %v2995, 114
        %v4332 = vpop.permute.xlu0 %4331
        %v4333 = vsel %vm2042, %v4330, %v4332
        %v4336 = vsel %vm2042, %v4332, 0.0
        %v4337 = vstv %s4328
        %v4338 = vmul.f32 %v4337, %v4333
        %v4339 = vmul.f32 %v4337, %v4336
        %s4340 = sld [smem:[#allocation9 + $0x3b]]
        %4341 = vrot.lane.b32.xlu0 %v3002, 114
        %v4342 = vpop.permute.xlu0 %4341
        %4343 = vrot.lane.b32.xlu0 %v3009, 114
        %v4344 = vpop.permute.xlu0 %4343
        %v4345 = vsel %vm2042, %v4342, %v4344
        %v4348 = vsel %vm2042, %v4344, 0.0
        %v4349 = vstv %s4340
        %v4350 = vmul.f32 %v4349, %v4345
        %v4351 = vmul.f32 %v4349, %v4348
        %v4352 = vadd.f32 %v4338, %v4350
        %v4353 = vadd.f32 %v4339, %v4351
        %v4356 = vcombine.low %v4352, %v4353
        %v4358 = vunpack.c.l.s4 1966171168
        %v4359 = vunpack.c.0.s8 %v4358
        %v4360 = vlaneseq
        %v4361 = vshrl.u32 %v4360, 7
        %v4362 = vsub.s32 %v4359, %v4361
        %v4363 = vrot.slane %v4356, %v4362
        %v4365 = vunpack.c.l.s4 1966171168
        %v4366 = vunpack.c.0.s8 %v4365
        %v4367 = vlaneseq
        %v4368 = vshrl.u32 %v4367, 7
        %v4369 = vsub.s32 %v4366, %v4368
        %v4370 = vrot.slane %v4363, %v4369
        %v4372 = vsel %vm771, %v4370, 0.0
        %v4373 = vadd.f32 %v4327, %v4372
        %s4374 = sld [smem:[#allocation9 + $0x3c]]
        %4375 = vrot.lane.b32.xlu0 %v2994, 113
        %v4376 = vpop.permute.xlu0 %4375
        %4377 = vrot.lane.b32.xlu0 %v2995, 113
        %v4378 = vpop.permute.xlu0 %4377
        %v4379 = vsel %vm549, %v4376, %v4378
        %v4382 = vsel %vm549, %v4378, 0.0
        %v4383 = vstv %s4374
        %v4384 = vmul.f32 %v4383, %v4379
        %v4385 = vmul.f32 %v4383, %v4382
        %s4386 = sld [smem:[#allocation9 + $0x3d]]
        %4387 = vrot.lane.b32.xlu0 %v3002, 113
        %v4388 = vpop.permute.xlu0 %4387
        %4389 = vrot.lane.b32.xlu0 %v3009, 113
        %v4390 = vpop.permute.xlu0 %4389
        %v4391 = vsel %vm549, %v4388, %v4390
        %v4394 = vsel %vm549, %v4390, 0.0
        %v4395 = vstv %s4386
        %v4396 = vmul.f32 %v4395, %v4391
        %v4397 = vmul.f32 %v4395, %v4394
        %v4398 = vadd.f32 %v4384, %v4396
        %v4399 = vadd.f32 %v4385, %v4397
        %v4402 = vcombine.low %v4398, %v4399
        %v4404 = vunpack.c.l.s4 1966171168
        %v4405 = vunpack.c.0.s8 %v4404
        %v4406 = vlaneseq
        %v4407 = vshrl.u32 %v4406, 7
        %v4408 = vsub.s32 %v4405, %v4407
        %v4409 = vrot.slane %v4402, %v4408
        %v4411 = vunpack.c.l.s4 1966171168
        %v4412 = vunpack.c.0.s8 %v4411
        %v4413 = vlaneseq
        %v4414 = vshrl.u32 %v4413, 7
        %v4415 = vsub.s32 %v4412, %v4414
        %v4416 = vrot.slane %v4409, %v4415
        %v4418 = vsel %vm448, %v4416, 0.0
        %v4419 = vadd.f32 %v4373, %v4418
        %s4420 = sld [smem:[#allocation9 + $0x3e]]
        %4421 = vrot.lane.b32.xlu0 %v2994, 112
        %v4422 = vpop.permute.xlu0 %4421
        %4423 = vrot.lane.b32.xlu0 %v2995, 112
        %v4424 = vpop.permute.xlu0 %4423
        %v4425 = vsel %vm562, %v4422, %v4424
        %v4428 = vsel %vm562, %v4424, 0.0
        %v4429 = vstv %s4420
        %v4430 = vmul.f32 %v4429, %v4425
        %v4431 = vmul.f32 %v4429, %v4428
        %s4432 = sld [smem:[#allocation9 + $0x3f]]
        %4433 = vrot.lane.b32.xlu0 %v3002, 112
        %v4434 = vpop.permute.xlu0 %4433
        %4435 = vrot.lane.b32.xlu0 %v3009, 112
        %v4436 = vpop.permute.xlu0 %4435
        %v4437 = vsel %vm562, %v4434, %v4436
        %v4440 = vsel %vm562, %v4436, 0.0
        %v4441 = vstv %s4432
        %v4442 = vmul.f32 %v4441, %v4437
        %v4443 = vmul.f32 %v4441, %v4440
        %v4444 = vadd.f32 %v4430, %v4442
        %v4445 = vadd.f32 %v4431, %v4443
        %v4448 = vcombine.low %v4444, %v4445
        %v4450 = vunpack.c.l.s4 1966171168
        %v4451 = vunpack.c.0.s8 %v4450
        %v4452 = vlaneseq
        %v4453 = vshrl.u32 %v4452, 7
        %v4454 = vsub.s32 %v4451, %v4453
        %v4455 = vrot.slane %v4448, %v4454
        %v4457 = vunpack.c.l.s4 1966171168
        %v4458 = vunpack.c.0.s8 %v4457
        %v4459 = vlaneseq
        %v4460 = vshrl.u32 %v4459, 7
        %v4461 = vsub.s32 %v4458, %v4460
        %v4462 = vrot.slane %v4455, %v4461
        %v4464 = vadd.f32 %v4419, %v4462
        %s4465 = sld [smem:[#allocation9 + $0x40]]
        %4466 = vrot.lane.b32.xlu0 %v2994, 111
        %v4467 = vpop.permute.xlu0 %4466
        %4468 = vrot.lane.b32.xlu0 %v2995, 111
        %v4469 = vpop.permute.xlu0 %4468
        %v4470 = vsel %vm577, %v4467, %v4469
        %v4473 = vsel %vm577, %v4469, 0.0
        %v4474 = vstv %s4465
        %v4475 = vmul.f32 %v4474, %v4470
        %v4476 = vmul.f32 %v4474, %v4473
        %s4477 = sld [smem:[#allocation9 + $0x41]]
        %4478 = vrot.lane.b32.xlu0 %v3002, 111
        %v4479 = vpop.permute.xlu0 %4478
        %4480 = vrot.lane.b32.xlu0 %v3009, 111
        %v4481 = vpop.permute.xlu0 %4480
        %v4482 = vsel %vm577, %v4479, %v4481
        %v4485 = vsel %vm577, %v4481, 0.0
        %v4486 = vstv %s4477
        %v4487 = vmul.f32 %v4486, %v4482
        %v4488 = vmul.f32 %v4486, %v4485
        %v4489 = vadd.f32 %v4475, %v4487
        %v4490 = vadd.f32 %v4476, %v4488
        %v4493 = vcombine.low %v4489, %v4490
        %v4495 = vunpack.c.l.s4 1966171168
        %v4496 = vunpack.c.0.s8 %v4495
        %v4497 = vlaneseq
        %v4498 = vshrl.u32 %v4497, 7
        %v4499 = vsub.s32 %v4496, %v4498
        %v4500 = vrot.slane %v4493, %v4499
        %v4502 = vunpack.c.l.s4 1966171168
        %v4503 = vunpack.c.0.s8 %v4502
        %v4504 = vlaneseq
        %v4505 = vshrl.u32 %v4504, 7
        %v4506 = vsub.s32 %v4503, %v4505
        %v4507 = vrot.slane %v4500, %v4506
        %v4509 = vsel %vm488, %v4507, 0.0
        %v4510 = vadd.f32 %v4464, %v4509
        %s4511 = sld [smem:[#allocation9 + $0x42]]
        %4512 = vrot.lane.b32.xlu0 %v2994, 110
        %v4513 = vpop.permute.xlu0 %4512
        %4514 = vrot.lane.b32.xlu0 %v2995, 110
        %v4515 = vpop.permute.xlu0 %4514
        %v4516 = vsel %vm2226, %v4513, %v4515
        %v4519 = vsel %vm2226, %v4515, 0.0
        %v4520 = vstv %s4511
        %v4521 = vmul.f32 %v4520, %v4516
        %v4522 = vmul.f32 %v4520, %v4519
        %s4523 = sld [smem:[#allocation9 + $0x43]]
        %4524 = vrot.lane.b32.xlu0 %v3002, 110
        %v4525 = vpop.permute.xlu0 %4524
        %4526 = vrot.lane.b32.xlu0 %v3009, 110
        %v4527 = vpop.permute.xlu0 %4526
        %v4528 = vsel %vm2226, %v4525, %v4527
        %v4531 = vsel %vm2226, %v4527, 0.0
        %v4532 = vstv %s4523
        %v4533 = vmul.f32 %v4532, %v4528
        %v4534 = vmul.f32 %v4532, %v4531
        %v4535 = vadd.f32 %v4521, %v4533
        %v4536 = vadd.f32 %v4522, %v4534
        %v4539 = vcombine.low %v4535, %v4536
        %v4541 = vunpack.c.l.s4 1966171168
        %v4542 = vunpack.c.0.s8 %v4541
        %v4543 = vlaneseq
        %v4544 = vshrl.u32 %v4543, 7
        %v4545 = vsub.s32 %v4542, %v4544
        %v4546 = vrot.slane %v4539, %v4545
        %v4548 = vunpack.c.l.s4 1966171168
        %v4549 = vunpack.c.0.s8 %v4548
        %v4550 = vlaneseq
        %v4551 = vshrl.u32 %v4550, 7
        %v4552 = vsub.s32 %v4549, %v4551
        %v4553 = vrot.slane %v4546, %v4552
        %v4555 = vsel %vm959, %v4553, 0.0
        %v4556 = vadd.f32 %v4510, %v4555
        %s4557 = sld [smem:[#allocation9 + $0x44]]
        %4558 = vrot.lane.b32.xlu0 %v2994, 109
        %v4559 = vpop.permute.xlu0 %4558
        %4560 = vrot.lane.b32.xlu0 %v2995, 109
        %v4561 = vpop.permute.xlu0 %4560
        %v4562 = vsel %vm2273, %v4559, %v4561
        %v4565 = vsel %vm2273, %v4561, 0.0
        %v4566 = vstv %s4557
        %v4567 = vmul.f32 %v4566, %v4562
        %v4568 = vmul.f32 %v4566, %v4565
        %s4569 = sld [smem:[#allocation9 + $0x45]]
        %4570 = vrot.lane.b32.xlu0 %v3002, 109
        %v4571 = vpop.permute.xlu0 %4570
        %4572 = vrot.lane.b32.xlu0 %v3009, 109
        %v4573 = vpop.permute.xlu0 %4572
        %v4574 = vsel %vm2273, %v4571, %v4573
        %v4577 = vsel %vm2273, %v4573, 0.0
        %v4578 = vstv %s4569
        %v4579 = vmul.f32 %v4578, %v4574
        %v4580 = vmul.f32 %v4578, %v4577
        %v4581 = vadd.f32 %v4567, %v4579
        %v4582 = vadd.f32 %v4568, %v4580
        %v4585 = vcombine.low %v4581, %v4582
        %v4587 = vunpack.c.l.s4 1966171168
        %v4588 = vunpack.c.0.s8 %v4587
        %v4589 = vlaneseq
        %v4590 = vshrl.u32 %v4589, 7
        %v4591 = vsub.s32 %v4588, %v4590
        %v4592 = vrot.slane %v4585, %v4591
        %v4594 = vunpack.c.l.s4 1966171168
        %v4595 = vunpack.c.0.s8 %v4594
        %v4596 = vlaneseq
        %v4597 = vshrl.u32 %v4596, 7
        %v4598 = vsub.s32 %v4595, %v4597
        %v4599 = vrot.slane %v4592, %v4598
        %v4601 = vsel %vm1007, %v4599, 0.0
        %v4602 = vadd.f32 %v4556, %v4601
        %s4603 = sld [smem:[#allocation9 + $0x46]]
        %4604 = vrot.lane.b32.xlu0 %v2994, 99
        %v4605 = vpop.permute.xlu0 %4604
        %4606 = vrot.lane.b32.xlu0 %v2995, 99
        %v4607 = vpop.permute.xlu0 %4606
        %v4608 = vsel %vm2320, %v4605, %v4607
        %v4611 = vsel %vm2320, %v4607, 0.0
        %v4612 = vstv %s4603
        %v4613 = vmul.f32 %v4612, %v4608
        %v4614 = vmul.f32 %v4612, %v4611
        %s4615 = sld [smem:[#allocation9 + $0x47]]
        %4616 = vrot.lane.b32.xlu0 %v3002, 99
        %v4617 = vpop.permute.xlu0 %4616
        %4618 = vrot.lane.b32.xlu0 %v3009, 99
        %v4619 = vpop.permute.xlu0 %4618
        %v4620 = vsel %vm2320, %v4617, %v4619
        %v4623 = vsel %vm2320, %v4619, 0.0
        %v4624 = vstv %s4615
        %v4625 = vmul.f32 %v4624, %v4620
        %v4626 = vmul.f32 %v4624, %v4623
        %v4627 = vadd.f32 %v4613, %v4625
        %v4628 = vadd.f32 %v4614, %v4626
        %v4631 = vcombine.low %v4627, %v4628
        %v4633 = vunpack.c.l.s4 1966171168
        %v4634 = vunpack.c.0.s8 %v4633
        %v4635 = vlaneseq
        %v4636 = vshrl.u32 %v4635, 7
        %v4637 = vsub.s32 %v4634, %v4636
        %v4638 = vrot.slane %v4631, %v4637
        %v4640 = vunpack.c.l.s4 1966171168
        %v4641 = vunpack.c.0.s8 %v4640
        %v4642 = vlaneseq
        %v4643 = vshrl.u32 %v4642, 7
        %v4644 = vsub.s32 %v4641, %v4643
        %v4645 = vrot.slane %v4638, %v4644
        %v4647 = vsel %vm723, %v4645, 0.0
        %v4648 = vadd.f32 %v4602, %v4647
        %s4649 = sld [smem:[#allocation9 + $0x48]]
        %4650 = vrot.lane.b32.xlu0 %v2994, 98
        %v4651 = vpop.permute.xlu0 %4650
        %4652 = vrot.lane.b32.xlu0 %v2995, 98
        %v4653 = vpop.permute.xlu0 %4652
        %v4654 = vsel %vm2367, %v4651, %v4653
        %v4657 = vsel %vm2367, %v4653, 0.0
        %v4658 = vstv %s4649
        %v4659 = vmul.f32 %v4658, %v4654
        %v4660 = vmul.f32 %v4658, %v4657
        %s4661 = sld [smem:[#allocation9 + $0x49]]
        %4662 = vrot.lane.b32.xlu0 %v3002, 98
        %v4663 = vpop.permute.xlu0 %4662
        %4664 = vrot.lane.b32.xlu0 %v3009, 98
        %v4665 = vpop.permute.xlu0 %4664
        %v4666 = vsel %vm2367, %v4663, %v4665
        %v4669 = vsel %vm2367, %v4665, 0.0
        %v4670 = vstv %s4661
        %v4671 = vmul.f32 %v4670, %v4666
        %v4672 = vmul.f32 %v4670, %v4669
        %v4673 = vadd.f32 %v4659, %v4671
        %v4674 = vadd.f32 %v4660, %v4672
        %v4677 = vcombine.low %v4673, %v4674
        %v4679 = vunpack.c.l.s4 1966171168
        %v4680 = vunpack.c.0.s8 %v4679
        %v4681 = vlaneseq
        %v4682 = vshrl.u32 %v4681, 7
        %v4683 = vsub.s32 %v4680, %v4682
        %v4684 = vrot.slane %v4677, %v4683
        %v4686 = vunpack.c.l.s4 1966171168
        %v4687 = vunpack.c.0.s8 %v4686
        %v4688 = vlaneseq
        %v4689 = vshrl.u32 %v4688, 7
        %v4690 = vsub.s32 %v4687, %v4689
        %v4691 = vrot.slane %v4684, %v4690
        %v4693 = vsel %vm771, %v4691, 0.0
        %v4694 = vadd.f32 %v4648, %v4693
        %s4695 = sld [smem:[#allocation9 + $0x4a]]
        %4696 = vrot.lane.b32.xlu0 %v2994, 97
        %v4697 = vpop.permute.xlu0 %4696
        %4698 = vrot.lane.b32.xlu0 %v2995, 97
        %v4699 = vpop.permute.xlu0 %4698
        %v4700 = vsel %vm2414, %v4697, %v4699
        %v4703 = vsel %vm2414, %v4699, 0.0
        %v4704 = vstv %s4695
        %v4705 = vmul.f32 %v4704, %v4700
        %v4706 = vmul.f32 %v4704, %v4703
        %s4707 = sld [smem:[#allocation9 + $0x4b]]
        %4708 = vrot.lane.b32.xlu0 %v3002, 97
        %v4709 = vpop.permute.xlu0 %4708
        %4710 = vrot.lane.b32.xlu0 %v3009, 97
        %v4711 = vpop.permute.xlu0 %4710
        %v4712 = vsel %vm2414, %v4709, %v4711
        %v4715 = vsel %vm2414, %v4711, 0.0
        %v4716 = vstv %s4707
        %v4717 = vmul.f32 %v4716, %v4712
        %v4718 = vmul.f32 %v4716, %v4715
        %v4719 = vadd.f32 %v4705, %v4717
        %v4720 = vadd.f32 %v4706, %v4718
        %v4723 = vcombine.low %v4719, %v4720
        %v4725 = vunpack.c.l.s4 1966171168
        %v4726 = vunpack.c.0.s8 %v4725
        %v4727 = vlaneseq
        %v4728 = vshrl.u32 %v4727, 7
        %v4729 = vsub.s32 %v4726, %v4728
        %v4730 = vrot.slane %v4723, %v4729
        %v4732 = vunpack.c.l.s4 1966171168
        %v4733 = vunpack.c.0.s8 %v4732
        %v4734 = vlaneseq
        %v4735 = vshrl.u32 %v4734, 7
        %v4736 = vsub.s32 %v4733, %v4735
        %v4737 = vrot.slane %v4730, %v4736
        %v4739 = vsel %vm448, %v4737, 0.0
        %v4740 = vadd.f32 %v4694, %v4739
        %s4741 = sld [smem:[#allocation9 + $0x4c]]
        %4742 = vrot.lane.b32.xlu0 %v2994, 96
        %v4743 = vpop.permute.xlu0 %4742
        %4744 = vrot.lane.b32.xlu0 %v2995, 96
        %v4745 = vpop.permute.xlu0 %4744
        %v4746 = vsel %vm2461, %v4743, %v4745
        %v4749 = vsel %vm2461, %v4745, 0.0
        %v4750 = vstv %s4741
        %v4751 = vmul.f32 %v4750, %v4746
        %v4752 = vmul.f32 %v4750, %v4749
        %s4753 = sld [smem:[#allocation9 + $0x4d]]
        %4754 = vrot.lane.b32.xlu0 %v3002, 96
        %v4755 = vpop.permute.xlu0 %4754
        %4756 = vrot.lane.b32.xlu0 %v3009, 96
        %v4757 = vpop.permute.xlu0 %4756
        %v4758 = vsel %vm2461, %v4755, %v4757
        %v4761 = vsel %vm2461, %v4757, 0.0
        %v4762 = vstv %s4753
        %v4763 = vmul.f32 %v4762, %v4758
        %v4764 = vmul.f32 %v4762, %v4761
        %v4765 = vadd.f32 %v4751, %v4763
        %v4766 = vadd.f32 %v4752, %v4764
        %v4769 = vcombine.low %v4765, %v4766
        %v4771 = vunpack.c.l.s4 1966171168
        %v4772 = vunpack.c.0.s8 %v4771
        %v4773 = vlaneseq
        %v4774 = vshrl.u32 %v4773, 7
        %v4775 = vsub.s32 %v4772, %v4774
        %v4776 = vrot.slane %v4769, %v4775
        %v4778 = vunpack.c.l.s4 1966171168
        %v4779 = vunpack.c.0.s8 %v4778
        %v4780 = vlaneseq
        %v4781 = vshrl.u32 %v4780, 7
        %v4782 = vsub.s32 %v4779, %v4781
        %v4783 = vrot.slane %v4776, %v4782
        %v4785 = vadd.f32 %v4740, %v4783
        %s4786 = sld [smem:[#allocation9 + $0x4e]]
        %4787 = vrot.lane.b32.xlu0 %v2994, 95
        %v4788 = vpop.permute.xlu0 %4787
        %4789 = vrot.lane.b32.xlu0 %v2995, 95
        %v4790 = vpop.permute.xlu0 %4789
        %v4791 = vsel %vm2507, %v4788, %v4790
        %v4794 = vsel %vm2507, %v4790, 0.0
        %v4795 = vstv %s4786
        %v4796 = vmul.f32 %v4795, %v4791
        %v4797 = vmul.f32 %v4795, %v4794
        %s4798 = sld [smem:[#allocation9 + $0x4f]]
        %4799 = vrot.lane.b32.xlu0 %v3002, 95
        %v4800 = vpop.permute.xlu0 %4799
        %4801 = vrot.lane.b32.xlu0 %v3009, 95
        %v4802 = vpop.permute.xlu0 %4801
        %v4803 = vsel %vm2507, %v4800, %v4802
        %v4806 = vsel %vm2507, %v4802, 0.0
        %v4807 = vstv %s4798
        %v4808 = vmul.f32 %v4807, %v4803
        %v4809 = vmul.f32 %v4807, %v4806
        %v4810 = vadd.f32 %v4796, %v4808
        %v4811 = vadd.f32 %v4797, %v4809
        %v4814 = vcombine.low %v4810, %v4811
        %v4816 = vunpack.c.l.s4 1966171168
        %v4817 = vunpack.c.0.s8 %v4816
        %v4818 = vlaneseq
        %v4819 = vshrl.u32 %v4818, 7
        %v4820 = vsub.s32 %v4817, %v4819
        %v4821 = vrot.slane %v4814, %v4820
        %v4823 = vunpack.c.l.s4 1966171168
        %v4824 = vunpack.c.0.s8 %v4823
        %v4825 = vlaneseq
        %v4826 = vshrl.u32 %v4825, 7
        %v4827 = vsub.s32 %v4824, %v4826
        %v4828 = vrot.slane %v4821, %v4827
        %v4830 = vsel %vm488, %v4828, 0.0
        %v4831 = vadd.f32 %v4785, %v4830
        %s4832 = sld [smem:[#allocation9 + $0x50]]
        %4833 = vrot.lane.b32.xlu0 %v2994, 94
        %v4834 = vpop.permute.xlu0 %4833
        %4835 = vrot.lane.b32.xlu0 %v2995, 94
        %v4836 = vpop.permute.xlu0 %4835
        %v4837 = vsel %vm2554, %v4834, %v4836
        %v4840 = vsel %vm2554, %v4836, 0.0
        %v4841 = vstv %s4832
        %v4842 = vmul.f32 %v4841, %v4837
        %v4843 = vmul.f32 %v4841, %v4840
        %s4844 = sld [smem:[#allocation9 + $0x51]]
        %4845 = vrot.lane.b32.xlu0 %v3002, 94
        %v4846 = vpop.permute.xlu0 %4845
        %4847 = vrot.lane.b32.xlu0 %v3009, 94
        %v4848 = vpop.permute.xlu0 %4847
        %v4849 = vsel %vm2554, %v4846, %v4848
        %v4852 = vsel %vm2554, %v4848, 0.0
        %v4853 = vstv %s4844
        %v4854 = vmul.f32 %v4853, %v4849
        %v4855 = vmul.f32 %v4853, %v4852
        %v4856 = vadd.f32 %v4842, %v4854
        %v4857 = vadd.f32 %v4843, %v4855
        %v4860 = vcombine.low %v4856, %v4857
        %v4862 = vunpack.c.l.s4 1966171168
        %v4863 = vunpack.c.0.s8 %v4862
        %v4864 = vlaneseq
        %v4865 = vshrl.u32 %v4864, 7
        %v4866 = vsub.s32 %v4863, %v4865
        %v4867 = vrot.slane %v4860, %v4866
        %v4869 = vunpack.c.l.s4 1966171168
        %v4870 = vunpack.c.0.s8 %v4869
        %v4871 = vlaneseq
        %v4872 = vshrl.u32 %v4871, 7
        %v4873 = vsub.s32 %v4870, %v4872
        %v4874 = vrot.slane %v4867, %v4873
        %v4876 = vsel %vm959, %v4874, 0.0
        %v4877 = vadd.f32 %v4831, %v4876
        %s4878 = sld [smem:[#allocation9 + $0x52]]
        %4879 = vrot.lane.b32.xlu0 %v2994, 93
        %v4880 = vpop.permute.xlu0 %4879
        %4881 = vrot.lane.b32.xlu0 %v2995, 93
        %v4882 = vpop.permute.xlu0 %4881
        %v4883 = vsel %vm2601, %v4880, %v4882
        %v4886 = vsel %vm2601, %v4882, 0.0
        %v4887 = vstv %s4878
        %v4888 = vmul.f32 %v4887, %v4883
        %v4889 = vmul.f32 %v4887, %v4886
        %s4890 = sld [smem:[#allocation9 + $0x53]]
        %4891 = vrot.lane.b32.xlu0 %v3002, 93
        %v4892 = vpop.permute.xlu0 %4891
        %4893 = vrot.lane.b32.xlu0 %v3009, 93
        %v4894 = vpop.permute.xlu0 %4893
        %v4895 = vsel %vm2601, %v4892, %v4894
        %v4898 = vsel %vm2601, %v4894, 0.0
        %v4899 = vstv %s4890
        %v4900 = vmul.f32 %v4899, %v4895
        %v4901 = vmul.f32 %v4899, %v4898
        %v4902 = vadd.f32 %v4888, %v4900
        %v4903 = vadd.f32 %v4889, %v4901
        %v4906 = vcombine.low %v4902, %v4903
        %v4908 = vunpack.c.l.s4 1966171168
        %v4909 = vunpack.c.0.s8 %v4908
        %v4910 = vlaneseq
        %v4911 = vshrl.u32 %v4910, 7
        %v4912 = vsub.s32 %v4909, %v4911
        %v4913 = vrot.slane %v4906, %v4912
        %v4915 = vunpack.c.l.s4 1966171168
        %v4916 = vunpack.c.0.s8 %v4915
        %v4917 = vlaneseq
        %v4918 = vshrl.u32 %v4917, 7
        %v4919 = vsub.s32 %v4916, %v4918
        %v4920 = vrot.slane %v4913, %v4919
        %v4922 = vsel %vm1007, %v4920, 0.0
        %v4923 = vadd.f32 %v4877, %v4922
        %s4924 = sld [smem:[#allocation9 + $0x54]]
        %4925 = vrot.lane.b32.xlu0 %v2994, 83
        %v4926 = vpop.permute.xlu0 %4925
        %4927 = vrot.lane.b32.xlu0 %v2995, 83
        %v4928 = vpop.permute.xlu0 %4927
        %v4929 = vsel %vm2648, %v4926, %v4928
        %v4932 = vsel %vm2648, %v4928, 0.0
        %v4933 = vstv %s4924
        %v4934 = vmul.f32 %v4933, %v4929
        %v4935 = vmul.f32 %v4933, %v4932
        %s4936 = sld [smem:[#allocation9 + $0x55]]
        %4937 = vrot.lane.b32.xlu0 %v3002, 83
        %v4938 = vpop.permute.xlu0 %4937
        %4939 = vrot.lane.b32.xlu0 %v3009, 83
        %v4940 = vpop.permute.xlu0 %4939
        %v4941 = vsel %vm2648, %v4938, %v4940
        %v4944 = vsel %vm2648, %v4940, 0.0
        %v4945 = vstv %s4936
        %v4946 = vmul.f32 %v4945, %v4941
        %v4947 = vmul.f32 %v4945, %v4944
        %v4948 = vadd.f32 %v4934, %v4946
        %v4949 = vadd.f32 %v4935, %v4947
        %v4952 = vcombine.low %v4948, %v4949
        %v4954 = vunpack.c.l.s4 1966171168
        %v4955 = vunpack.c.0.s8 %v4954
        %v4956 = vlaneseq
        %v4957 = vshrl.u32 %v4956, 7
        %v4958 = vsub.s32 %v4955, %v4957
        %v4959 = vrot.slane %v4952, %v4958
        %v4961 = vunpack.c.l.s4 1966171168
        %v4962 = vunpack.c.0.s8 %v4961
        %v4963 = vlaneseq
        %v4964 = vshrl.u32 %v4963, 7
        %v4965 = vsub.s32 %v4962, %v4964
        %v4966 = vrot.slane %v4959, %v4965
        %v4968 = vsel %vm723, %v4966, 0.0
        %v4969 = vadd.f32 %v4923, %v4968
        %s4970 = sld [smem:[#allocation9 + $0x56]]
        %4971 = vrot.lane.b32.xlu0 %v2994, 82
        %v4972 = vpop.permute.xlu0 %4971
        %4973 = vrot.lane.b32.xlu0 %v2995, 82
        %v4974 = vpop.permute.xlu0 %4973
        %v4975 = vsel %vm2695, %v4972, %v4974
        %v4978 = vsel %vm2695, %v4974, 0.0
        %v4979 = vstv %s4970
        %v4980 = vmul.f32 %v4979, %v4975
        %v4981 = vmul.f32 %v4979, %v4978
        %s4982 = sld [smem:[#allocation9 + $0x57]]
        %4983 = vrot.lane.b32.xlu0 %v3002, 82
        %v4984 = vpop.permute.xlu0 %4983
        %4985 = vrot.lane.b32.xlu0 %v3009, 82
        %v4986 = vpop.permute.xlu0 %4985
        %v4987 = vsel %vm2695, %v4984, %v4986
        %v4990 = vsel %vm2695, %v4986, 0.0
        %v4991 = vstv %s4982
        %v4992 = vmul.f32 %v4991, %v4987
        %v4993 = vmul.f32 %v4991, %v4990
        %v4994 = vadd.f32 %v4980, %v4992
        %v4995 = vadd.f32 %v4981, %v4993
        %v4998 = vcombine.low %v4994, %v4995
        %v5000 = vunpack.c.l.s4 1966171168
        %v5001 = vunpack.c.0.s8 %v5000
        %v5002 = vlaneseq
        %v5003 = vshrl.u32 %v5002, 7
        %v5004 = vsub.s32 %v5001, %v5003
        %v5005 = vrot.slane %v4998, %v5004
        %v5007 = vunpack.c.l.s4 1966171168
        %v5008 = vunpack.c.0.s8 %v5007
        %v5009 = vlaneseq
        %v5010 = vshrl.u32 %v5009, 7
        %v5011 = vsub.s32 %v5008, %v5010
        %v5012 = vrot.slane %v5005, %v5011
        %v5014 = vsel %vm771, %v5012, 0.0
        %v5015 = vadd.f32 %v4969, %v5014
        %s5016 = sld [smem:[#allocation9 + $0x58]]
        %5017 = vrot.lane.b32.xlu0 %v2994, 81
        %v5018 = vpop.permute.xlu0 %5017
        %5019 = vrot.lane.b32.xlu0 %v2995, 81
        %v5020 = vpop.permute.xlu0 %5019
        %v5021 = vsel %vm2742, %v5018, %v5020
        %v5024 = vsel %vm2742, %v5020, 0.0
        %v5025 = vstv %s5016
        %v5026 = vmul.f32 %v5025, %v5021
        %v5027 = vmul.f32 %v5025, %v5024
        %s5028 = sld [smem:[#allocation9 + $0x59]]
        %5029 = vrot.lane.b32.xlu0 %v3002, 81
        %v5030 = vpop.permute.xlu0 %5029
        %5031 = vrot.lane.b32.xlu0 %v3009, 81
        %v5032 = vpop.permute.xlu0 %5031
        %v5033 = vsel %vm2742, %v5030, %v5032
        %v5036 = vsel %vm2742, %v5032, 0.0
        %v5037 = vstv %s5028
        %v5038 = vmul.f32 %v5037, %v5033
        %v5039 = vmul.f32 %v5037, %v5036
        %v5040 = vadd.f32 %v5026, %v5038
        %v5041 = vadd.f32 %v5027, %v5039
        %v5044 = vcombine.low %v5040, %v5041
        %v5046 = vunpack.c.l.s4 1966171168
        %v5047 = vunpack.c.0.s8 %v5046
        %v5048 = vlaneseq
        %v5049 = vshrl.u32 %v5048, 7
        %v5050 = vsub.s32 %v5047, %v5049
        %v5051 = vrot.slane %v5044, %v5050
        %v5053 = vunpack.c.l.s4 1966171168
        %v5054 = vunpack.c.0.s8 %v5053
        %v5055 = vlaneseq
        %v5056 = vshrl.u32 %v5055, 7
        %v5057 = vsub.s32 %v5054, %v5056
        %v5058 = vrot.slane %v5051, %v5057
        %v5060 = vsel %vm448, %v5058, 0.0
        %v5061 = vadd.f32 %v5015, %v5060
        %s5062 = sld [smem:[#allocation9 + $0x5a]]
        %5063 = vrot.lane.b32.xlu0 %v2994, 80
        %v5064 = vpop.permute.xlu0 %5063
        %5065 = vrot.lane.b32.xlu0 %v2995, 80
        %v5066 = vpop.permute.xlu0 %5065
        %v5067 = vsel %vm2789, %v5064, %v5066
        %v5070 = vsel %vm2789, %v5066, 0.0
        %v5071 = vstv %s5062
        %v5072 = vmul.f32 %v5071, %v5067
        %v5073 = vmul.f32 %v5071, %v5070
        %s5074 = sld [smem:[#allocation9 + $0x5b]]
        %5075 = vrot.lane.b32.xlu0 %v3002, 80
        %v5076 = vpop.permute.xlu0 %5075
        %5077 = vrot.lane.b32.xlu0 %v3009, 80
        %v5078 = vpop.permute.xlu0 %5077
        %v5079 = vsel %vm2789, %v5076, %v5078
        %v5082 = vsel %vm2789, %v5078, 0.0
        %v5083 = vstv %s5074
        %v5084 = vmul.f32 %v5083, %v5079
        %v5085 = vmul.f32 %v5083, %v5082
        %v5086 = vadd.f32 %v5072, %v5084
        %v5087 = vadd.f32 %v5073, %v5085
        %v5090 = vcombine.low %v5086, %v5087
        %v5092 = vunpack.c.l.s4 1966171168
        %v5093 = vunpack.c.0.s8 %v5092
        %v5094 = vlaneseq
        %v5095 = vshrl.u32 %v5094, 7
        %v5096 = vsub.s32 %v5093, %v5095
        %v5097 = vrot.slane %v5090, %v5096
        %v5099 = vunpack.c.l.s4 1966171168
        %v5100 = vunpack.c.0.s8 %v5099
        %v5101 = vlaneseq
        %v5102 = vshrl.u32 %v5101, 7
        %v5103 = vsub.s32 %v5100, %v5102
        %v5104 = vrot.slane %v5097, %v5103
        %v5106 = vadd.f32 %v5061, %v5104
        %s5107 = sld [smem:[#allocation9 + $0x5c]]
        %5108 = vrot.lane.b32.xlu0 %v2994, 79
        %v5109 = vpop.permute.xlu0 %5108
        %5110 = vrot.lane.b32.xlu0 %v2995, 79
        %v5111 = vpop.permute.xlu0 %5110
        %v5112 = vsel %vm2835, %v5109, %v5111
        %v5115 = vsel %vm2835, %v5111, 0.0
        %v5116 = vstv %s5107
        %v5117 = vmul.f32 %v5116, %v5112
        %v5118 = vmul.f32 %v5116, %v5115
        %s5119 = sld [smem:[#allocation9 + $0x5d]]
        %5120 = vrot.lane.b32.xlu0 %v3002, 79
        %v5121 = vpop.permute.xlu0 %5120
        %5122 = vrot.lane.b32.xlu0 %v3009, 79
        %v5123 = vpop.permute.xlu0 %5122
        %v5124 = vsel %vm2835, %v5121, %v5123
        %v5127 = vsel %vm2835, %v5123, 0.0
        %v5128 = vstv %s5119
        %v5129 = vmul.f32 %v5128, %v5124
        %v5130 = vmul.f32 %v5128, %v5127
        %v5131 = vadd.f32 %v5117, %v5129
        %v5132 = vadd.f32 %v5118, %v5130
        %v5135 = vcombine.low %v5131, %v5132
        %v5137 = vunpack.c.l.s4 1966171168
        %v5138 = vunpack.c.0.s8 %v5137
        %v5139 = vlaneseq
        %v5140 = vshrl.u32 %v5139, 7
        %v5141 = vsub.s32 %v5138, %v5140
        %v5142 = vrot.slane %v5135, %v5141
        %v5144 = vunpack.c.l.s4 1966171168
        %v5145 = vunpack.c.0.s8 %v5144
        %v5146 = vlaneseq
        %v5147 = vshrl.u32 %v5146, 7
        %v5148 = vsub.s32 %v5145, %v5147
        %v5149 = vrot.slane %v5142, %v5148
        %v5151 = vsel %vm488, %v5149, 0.0
        %v5152 = vadd.f32 %v5106, %v5151
        %s5153 = sld [smem:[#allocation9 + $0x5e]]
        %5154 = vrot.lane.b32.xlu0 %v2994, 78
        %v5155 = vpop.permute.xlu0 %5154
        %5156 = vrot.lane.b32.xlu0 %v2995, 78
        %v5157 = vpop.permute.xlu0 %5156
        %v5158 = vsel %vm2882, %v5155, %v5157
        %v5161 = vsel %vm2882, %v5157, 0.0
        %v5162 = vstv %s5153
        %v5163 = vmul.f32 %v5162, %v5158
        %v5164 = vmul.f32 %v5162, %v5161
        %s5165 = sld [smem:[#allocation9 + $0x5f]]
        %5166 = vrot.lane.b32.xlu0 %v3002, 78
        %v5167 = vpop.permute.xlu0 %5166
        %5168 = vrot.lane.b32.xlu0 %v3009, 78
        %v5169 = vpop.permute.xlu0 %5168
        %v5170 = vsel %vm2882, %v5167, %v5169
        %v5173 = vsel %vm2882, %v5169, 0.0
        %v5174 = vstv %s5165
        %v5175 = vmul.f32 %v5174, %v5170
        %v5176 = vmul.f32 %v5174, %v5173
        %v5177 = vadd.f32 %v5163, %v5175
        %v5178 = vadd.f32 %v5164, %v5176
        %v5181 = vcombine.low %v5177, %v5178
        %v5183 = vunpack.c.l.s4 1966171168
        %v5184 = vunpack.c.0.s8 %v5183
        %v5185 = vlaneseq
        %v5186 = vshrl.u32 %v5185, 7
        %v5187 = vsub.s32 %v5184, %v5186
        %v5188 = vrot.slane %v5181, %v5187
        %v5190 = vunpack.c.l.s4 1966171168
        %v5191 = vunpack.c.0.s8 %v5190
        %v5192 = vlaneseq
        %v5193 = vshrl.u32 %v5192, 7
        %v5194 = vsub.s32 %v5191, %v5193
        %v5195 = vrot.slane %v5188, %v5194
        %v5197 = vsel %vm959, %v5195, 0.0
        %v5198 = vadd.f32 %v5152, %v5197
        %s5199 = sld [smem:[#allocation9 + $0x60]]
        %5200 = vrot.lane.b32.xlu0 %v2994, 77
        %v5201 = vpop.permute.xlu0 %5200
        %5202 = vrot.lane.b32.xlu0 %v2995, 77
        %v5203 = vpop.permute.xlu0 %5202
        %v5204 = vsel %vm2929, %v5201, %v5203
        %v5207 = vsel %vm2929, %v5203, 0.0
        %v5208 = vstv %s5199
        %v5209 = vmul.f32 %v5208, %v5204
        %v5210 = vmul.f32 %v5208, %v5207
        %s5211 = sld [smem:[#allocation9 + $0x61]]
        %5212 = vrot.lane.b32.xlu0 %v3002, 77
        %v5213 = vpop.permute.xlu0 %5212
        %5214 = vrot.lane.b32.xlu0 %v3009, 77
        %v5215 = vpop.permute.xlu0 %5214
        %v5216 = vsel %vm2929, %v5213, %v5215
        %v5219 = vsel %vm2929, %v5215, 0.0
        %v5220 = vstv %s5211
        %v5221 = vmul.f32 %v5220, %v5216
        %v5222 = vmul.f32 %v5220, %v5219
        %v5223 = vadd.f32 %v5209, %v5221
        %v5224 = vadd.f32 %v5210, %v5222
        %v5227 = vcombine.low %v5223, %v5224
        %v5229 = vunpack.c.l.s4 1966171168
        %v5230 = vunpack.c.0.s8 %v5229
        %v5231 = vlaneseq
        %v5232 = vshrl.u32 %v5231, 7
        %v5233 = vsub.s32 %v5230, %v5232
        %v5234 = vrot.slane %v5227, %v5233
        %v5236 = vunpack.c.l.s4 1966171168
        %v5237 = vunpack.c.0.s8 %v5236
        %v5238 = vlaneseq
        %v5239 = vshrl.u32 %v5238, 7
        %v5240 = vsub.s32 %v5237, %v5239
        %v5241 = vrot.slane %v5234, %v5240
        %v5243 = vsel %vm1007, %v5241, 0.0
        %v5244 = vadd.f32 %v5198, %v5243
        %v5245 = vxor.u32 %v5244, 2147483648
        %v5246 = vmul.f32 %v5245, 1.442695
        %v5247 = vpow.pop %v5246
        %v5248 = vadd.f32 %v5247, 1.0
        %v5249 = vrcp.pop %v5248
        %v5250 = vmul.f32 1.0, %v5249
        %v5252 = vlaneseq
        %v5253 = vshrl.u32 %v5252, 7
        %v5254 = vsub.s32 0, %v5253
        %v5255 = vrot.slane %v2976, %v5254
        %v5256 = vlaneseq
        %v5257 = vshrl.u32 %v5256, 7
        %v5258 = vsub.s32 1, %v5257
        %v5259 = vrot.slane %v2976, %v5258
        %v5260 = vcombine.low %v5255, %v5259
        %v5262 = vmul.f32 %v434, %v5260
        %v5263 = vadd.f32 %v5262, %v434
        %v5265 = vcombine.high %v5263, %v5263
        %v5267 = vpack.c.bf16 %v5263, %v5263
        %v5268 = vpack.c.bf16 %v5265, %v5265
        %v5271 = vcombine.low %v5267, %v5268
        %v5273 = vunpack.c.l.s4 1983009808
        %v5274 = vunpack.c.0.s8 %v5273
        %v5275 = vlaneseq
        %v5276 = vshrl.u32 %v5275, 7
        %v5277 = vsub.s32 %v5274, %v5276
        %v5278 = vrot.slane %v5271, %v5277
        %5280 = vst [vmem:[%s417] sm:$0xf] %v5278
        %v5282 = vlaneseq
        %v5283 = vshrl.u32 %v5282, 7
        %v5284 = vsub.s32 0, %v5283
        %v5285 = vrot.slane %v5250, %v5284
        %v5286 = vlaneseq
        %v5287 = vshrl.u32 %v5286, 7
        %v5288 = vsub.s32 1, %v5287
        %v5289 = vrot.slane %v5250, %v5288
        %v5292 = vmul.f32 %v654, %v5285
        %v5293 = vmul.f32 %v656, %v5289
        %v5294 = vadd.f32 %v5292, %v654
        %v5295 = vadd.f32 %v5293, %v656
        %v5296 = vpack.c.bf16 %v5294, %v5294
        %v5297 = vpack.c.bf16 %v5295, %v5295
        %v5300 = vcombine.low %v5296, %v5297
        %v5302 = vunpack.c.l.s4 1983009808
        %v5303 = vunpack.c.0.s8 %v5302
        %v5304 = vlaneseq
        %v5305 = vshrl.u32 %v5304, 7
        %v5306 = vsub.s32 %v5303, %v5305
        %v5307 = vrot.slane %v5300, %v5306
        %5309 = vst [vmem:[%s424] sm:$0xf] %v5307
        %v5312 = vcombine.low %v654, %v656
        %v5314 = vadd.f32 %v434, %v5312
        %v5316 = vcombine.high %v5314, %v5314
        %v5318 = vpack.c.bf16 %v5314, %v5314
        %v5319 = vpack.c.bf16 %v5316, %v5316
        %v5322 = vcombine.low %v5318, %v5319
        %v5324 = vunpack.c.l.s4 1983009808
        %v5325 = vunpack.c.0.s8 %v5324
        %v5326 = vlaneseq
        %v5327 = vshrl.u32 %v5326, 7
        %v5328 = vsub.s32 %v5325, %v5327
        %v5329 = vrot.slane %v5322, %v5328
        %5331 = vst [vmem:[%s431] sm:$0xf] %v5329
        %s5332 = sand.u32 %s200, 1
        %s5333 = scalar_lea.sflag [#allocation5], %s5332
        %s5334 = sand.u32 %s200, 1
        %s5335 = smul.addr %s5334, 4
        %s5336 = scalar_lea.vmem [#allocation12], %s5335
        %s5337 = sand.u32 %s35, 1
        %s5338 = scalar_lea.sflag [#allocation14], %s5337
        %s5339 = sand.u32 %s226, 1
        %s5340 = smul.addr %s5339, 4
        %s5341 = scalar_lea.vmem [#allocation13], %s5340
        %s5342 = sand.u32 %s35, 1
        %s5343 = scalar_lea.sflag [#allocation14], %s5342
        %s5344 = sand.u32 %s252, 1
        %s5345 = smul.addr %s5344, 4
        %s5346 = scalar_lea.vmem [#allocation15], %s5345
        // Predicated region
        $region65: #{tpu_custom_call.1} parent=47 // pred_check
          %p5347 = pneg %p210
        $region66: #{tpu_custom_call.1} parent=47 // pred_check_branch
          %5349 = sbr.rel (%p5347) target = $region68
        $region67: #{tpu_custom_call.1} parent=47 // pred_region
          %s5351 = ssub.s32 64, 64
          %5352 = vsyncadd %s5333, %s5351
          %s5353 = smul.addr %s35, 2
          %s5354 = smul.addr %s5353, 32
          %s5355 = scalar_lea.hbm %s7, %s5354
          %s5357 = sshll.u32 %s5336, 4
          %s5358 = int_to_ptr.vmem [resolvable:$true] %s5357
          %5360 = dma.vmem_to_hbm [thread:$0]  %s5358, 64, %s5355, %s5333
        $region68: #{tpu_custom_call.1} parent=47 // pred_fallthru
          _
        // Predicated region
        $region69: #{tpu_custom_call.1} parent=47 // pred_check
          %p5361 = pneg %p236
        $region70: #{tpu_custom_call.1} parent=47 // pred_check_branch
          %5363 = sbr.rel (%p5361) target = $region72
        $region71: #{tpu_custom_call.1} parent=47 // pred_region
          %s5365 = ssub.s32 64, 64
          %5366 = vsyncadd %s5338, %s5365
          %s5367 = smul.addr %s35, 2
          %s5368 = smul.addr %s5367, 32
          %s5369 = scalar_lea.hbm %s8, %s5368
          %s5371 = sshll.u32 %s5341, 4
          %s5372 = int_to_ptr.vmem [resolvable:$true] %s5371
          %5374 = dma.vmem_to_hbm [thread:$0]  %s5372, 64, %s5369, %s5338
        $region72: #{tpu_custom_call.1} parent=47 // pred_fallthru
          _
        // Predicated region
        $region73: #{tpu_custom_call.1} parent=47 // pred_check
          %p5375 = pneg %p262
        $region74: #{tpu_custom_call.1} parent=47 // pred_check_branch
          %5377 = sbr.rel (%p5375) target = $region76
        $region75: #{tpu_custom_call.1} parent=47 // pred_region
          %s5379 = ssub.s32 64, 64
          %5380 = vsyncadd %s5343, %s5379
          %s5381 = smul.addr %s35, 2
          %s5382 = smul.addr %s5381, 32
          %s5383 = scalar_lea.hbm %s9, %s5382
          %s5385 = sshll.u32 %s5346, 4
          %s5386 = int_to_ptr.vmem [resolvable:$true] %s5385
          %5388 = dma.vmem_to_hbm [thread:$0]  %s5386, 64, %s5383, %s5343
        $region76: #{tpu_custom_call.1} parent=47 // pred_fallthru
          _
      $region48: #{tpu_custom_call.1} parent=5 // pred_fallthru
        _
      %p5389 = scmp.le.s32.totalorder 2, %s30
      // Predicated region
      $region77: #{tpu_custom_call.1} parent=5 // pred_check
        %p5390 = pneg %p5389
      $region78: #{tpu_custom_call.1} parent=5 // pred_check_branch
        %5392 = sbr.rel (%p5390) target = $region80
      $region79: #{tpu_custom_call.1} parent=5 // pred_region
        %s5393 = ssub.s32 %s30, 2
        // Predicated region
        $region81: #{tpu_custom_call.1} parent=79 // pred_check
          %p5394 = pneg %p216
        $region82: #{tpu_custom_call.1} parent=79 // pred_check_branch
          %5396 = sbr.rel (%p5394) target = $region84
        $region83: #{tpu_custom_call.1} parent=79 // pred_region
          %s5397 = sand.u32 %s201, 1
          %s5398 = scalar_lea.sflag [#allocation5], %s5397
          %s5399 = sand.u32 %s201, 1
          %s5400 = smul.addr %s5399, 4
          %s5401 = scalar_lea.vmem [#allocation12], %s5400
          %5402 = dma.done %s5398, 64
        $region84: #{tpu_custom_call.1} parent=79 // pred_fallthru
          _
        // Predicated region
        $region85: #{tpu_custom_call.1} parent=79 // pred_check
          %p5403 = pneg %p242
        $region86: #{tpu_custom_call.1} parent=79 // pred_check_branch
          %5405 = sbr.rel (%p5403) target = $region88
        $region87: #{tpu_custom_call.1} parent=79 // pred_region
          %s5406 = sand.u32 %s36, 1
          %s5407 = scalar_lea.sflag [#allocation14], %s5406
          %s5408 = sand.u32 %s227, 1
          %s5409 = smul.addr %s5408, 4
          %s5410 = scalar_lea.vmem [#allocation13], %s5409
          %5411 = dma.done %s5407, 64
        $region88: #{tpu_custom_call.1} parent=79 // pred_fallthru
          _
        // Predicated region
        $region89: #{tpu_custom_call.1} parent=79 // pred_check
          %p5412 = pneg %p268
        $region90: #{tpu_custom_call.1} parent=79 // pred_check_branch
          %5414 = sbr.rel (%p5412) target = $region92
        $region91: #{tpu_custom_call.1} parent=79 // pred_region
          %s5415 = sand.u32 %s36, 1
          %s5416 = scalar_lea.sflag [#allocation14], %s5415
          %s5417 = sand.u32 %s253, 1
          %s5418 = smul.addr %s5417, 4
          %s5419 = scalar_lea.vmem [#allocation15], %s5418
          %5420 = dma.done %s5416, 64
        $region92: #{tpu_custom_call.1} parent=79 // pred_fallthru
          _
      $region80: #{tpu_custom_call.1} parent=5 // pred_fallthru
        _
    $region6: #{tpu_custom_call.1} parent=1 // loop_footer
      %s34 = sadd.s32 1, %s30
    $region7: #{tpu_custom_call.1} parent=1 // loop_footer_branch
      %29 = sbr.rel target = $region3
    $region8: #{tpu_custom_call.1} parent=1 // loop_exit
      _
    %5421 = vsyncpa [#allocation4], 1
    %s5422 = scalar_lea.sflag [#allocation4], 1
    %5423 = vsyncpa %s5422, 1
    %5424 = vsyncpa [#allocation8], 1
    %s5425 = scalar_lea.sflag [#allocation8], 1
    %5426 = vsyncpa %s5425, 1
    %5427 = vsyncpa [#allocation5], 1
    %s5428 = scalar_lea.sflag [#allocation5], 1
    %5429 = vsyncpa %s5428, 1
    %5430 = vsyncpa [#allocation14], 1
    %s5431 = scalar_lea.sflag [#allocation14], 1
    %5432 = vsyncpa %s5431, 1
    %5433 = vsyncpa [#allocation6], 1
    %s5434 = scalar_lea.sflag [#allocation6], 1
    %5435 = vsyncpa %s5434, 1
    %5436 = vsyncpa [#allocation11], 1

</llo_original>
